<compile_context>
chip_gen: v6e
topology: v6e:2x2x1
jax: 0.10.0
libtpu: 0.0.40
codegen_flags: <defaults>
</compile_context>

<pallas_src>
import numpy as np
import jax
import jax.numpy as jnp
from jax import lax
from jax.experimental import pallas as pl
from jax.experimental.pallas import tpu as pltpu

HIDDEN = 20
INPUT_SIZE = 10
OUTPUT_SIZE = 10
NUM_LAYERS = 1
DROPOUT = 0.1          # eval-mode => identity

HP = 128               # hidden padded to one full lane tile
GP = 4 * HP            # packed gate width; gate g occupies lanes [g*128, g*128+H)
OP = 128               # padded (lane-dense) logits width


def _vmem():
    return pl.BlockSpec(memory_space=pltpu.MemorySpace.VMEM)


def _smem():
    return pl.BlockSpec(memory_space=pltpu.MemorySpace.SMEM)


def _lstm_step(x_pre, h, c, whh, b):
    """One LSTM cell step with 128-aligned packed gates.

    x_pre: [1, GP] pre-projected input (emb @ W_ih already folded in).
    h, c : [1, HP]; whh: [HP, GP]; b: [1, GP]. Gate order i, f, g, o.
    Padded lanes (>= HIDDEN) of h/c stay exactly zero.
    """
    gates = x_pre + jnp.dot(h, whh, preferred_element_type=jnp.float32) + b   # [1, GP]
    i = jax.nn.sigmoid(gates[:, 0 * HP:1 * HP])
    f = jax.nn.sigmoid(gates[:, 1 * HP:2 * HP])
    g = jnp.tanh(gates[:, 2 * HP:3 * HP])
    o = jax.nn.sigmoid(gates[:, 3 * HP:4 * HP])
    c_new = f * c + i * g
    h_new = o * jnp.tanh(c_new)
    return h_new, c_new


# ------------------------- Fused Seq2Seq kernel -------------------------
def seq2seq_kernel(src_ref, srclen_ref, trg_ref, tf_ref,
                   enc_pre_ref, dec_pre_ref,
                   enc_whh_ref, enc_b_ref,
                   dec_whh_ref, dec_b_ref,
                   wfc_ref, bfc_ref,
                   out_ref,
                   enc_out_ref):
    src_len = enc_out_ref.shape[0]
    trg_len = out_ref.shape[0]
    srclen = srclen_ref[0]

    # Loop-invariant operands: load once, reuse across every timestep.
    enc_whh, enc_b = enc_whh_ref[...], enc_b_ref[...]
    dec_whh, dec_b = dec_whh_ref[...], dec_b_ref[...]
    dec_pre = dec_pre_ref[...]
    wfc, bfc = wfc_ref[...], bfc_ref[...]

    out_ids = lax.broadcasted_iota(jnp.int32, (1, OP), 1)
    out_valid = out_ids < OUTPUT_SIZE

    # -------------------- Encoder --------------------
    # TODO(synk): nn.Dropout(0.1) on the embedding is eval-mode => identity.
    # TODO(synk): pack_padded/pad_packed emulated by freezing (h, c) for steps
    #   t >= src_length, writing zeros for those rows and masking them out of
    #   the attention softmax.
    def enc_body(t, carry):
        h, c = carry
        # Direct dynamic-row VMEM load of the pre-projected embedding row.
        x_pre = enc_pre_ref[pl.ds(src_ref[t], 1), :]                  # [1, GP]
        h_new, c_new = _lstm_step(x_pre, h, c, enc_whh, enc_b)
        valid = t < srclen
        h_new = jnp.where(valid, h_new, h)
        c_new = jnp.where(valid, c_new, c)
        row = jnp.where(valid, h_new, jnp.zeros_like(h_new))          # pad with zeros
        enc_out_ref[pl.ds(t, 1), :] = row
        return h_new, c_new

    h0 = jnp.zeros((1, HP), jnp.float32)
    c0 = jnp.zeros((1, HP), jnp.float32)
    h, c = lax.fori_loop(0, src_len, enc_body, (h0, c0), unroll=True)

    enc_out = enc_out_ref[...]                      # [src_len, HP]
    enc_out_T = enc_out.T                           # [HP, src_len]; ONE transpose, hoisted
    lane_ids = lax.broadcasted_iota(jnp.int32, (1, src_len), 1)
    att_valid = lane_ids < srclen                   # [1, src_len] lane mask
    att_maskf = att_valid.astype(jnp.float32)

    # -------------------- Decoder --------------------
    out_ref[pl.ds(0, 1), :] = jnp.zeros((1, OP), jnp.float32)   # ref pre-allocs zeros row 0

    def dec_body(t, carry):
        h, c, x_pre = carry
        # TODO(synk): Decoder.forward calls self.dropout which is never defined
        #   in the reference __init__; treated as identity.
        h_new, c_new = _lstm_step(x_pre, h, c, dec_whh, dec_b)

        # Dot-product attention, lane layout (no per-step transposes).
        # TODO(synk): the reference Attention uses a 4-D torch.bmm (runtime
        #   error) and softmax over a singleton dim; implemented the intended
        #   dot-product attention with softmax over encoder timesteps instead.
        scores = jnp.dot(h_new, enc_out_T, preferred_element_type=jnp.float32)  # [1, T]
        scores = jnp.where(att_valid, scores, -1e30)
        scores = scores - jnp.max(scores, axis=-1, keepdims=True)
        w = jnp.exp(scores) * att_maskf
        denom = jnp.maximum(jnp.sum(w, axis=-1, keepdims=True), 1e-30)
        w = w * pl.reciprocal(denom, approx=True)
        context = jnp.dot(w, enc_out, preferred_element_type=jnp.float32)       # [1, HP]

        # fc(rnn_output + attention_applied); the reference's `embedded` after
        # self.rnn IS the hidden state for a 1-layer single-step LSTM == h_new.
        feat = h_new + context
        logits = jnp.dot(feat, wfc, preferred_element_type=jnp.float32) + bfc   # [1, OP]
        out_ref[pl.ds(t, 1), :] = logits            # lane-dense 128-wide row store

        # Next token: argmax over valid lanes (first max) vs. teacher forcing.
        masked = jnp.where(out_valid, logits, -1e30)
        max_val = jnp.max(masked, axis=-1, keepdims=True)
        first_idx = jnp.min(
            jnp.where(masked >= max_val, out_ids, jnp.int32(OP)),
            axis=-1, keepdims=True)                                     # [1, 1]
        onehot_pred = (out_ids == first_idx).astype(jnp.float32)
        onehot_trg = (out_ids == trg_ref[t]).astype(jnp.float32)
        onehot_next = jnp.where(tf_ref[t] > 0, onehot_trg, onehot_pred)  # [1, OP]
        # One MXU dot == embedding gather + input projection (table pre-folded).
        x_next = jnp.dot(onehot_next, dec_pre, preferred_element_type=jnp.float32)
        return h_new, c_new, x_next

    x0 = dec_pre_ref[pl.ds(trg_ref[0], 1), :]       # decoder_input = trg[0]
    lax.fori_loop(1, trg_len, dec_body, (h, c, x0), unroll=True)


def seq2seq_pallas(src, src_length, trg, tf_mask, params):
    src_len = src.shape[0]
    trg_len = trg.shape[0]
    return pl.pallas_call(
        seq2seq_kernel,
        out_shape=jax.ShapeDtypeStruct((trg_len, OP), jnp.float32),
        in_specs=[_smem()] * 4 + [_vmem()] * 8,
        out_specs=_vmem(),
        scratch_shapes=[pltpu.VMEM((src_len, HP), jnp.float32)],
    )(src, src_length, trg, tf_mask,
      params["enc_pre"], params["dec_pre"],
      params["enc_whh"], params["enc_b"],
      params["dec_whh"], params["dec_b"],
      params["wfc"], params["bfc"])


@jax.jit
def seq2seq_forward(params, src, src_length, trg, tf_mask):
    logits = seq2seq_pallas(src, src_length, trg, tf_mask, params)
    return logits[:, :OUTPUT_SIZE][:, None, :]       # [trg_len, 1, output_size]


# ------------------------- Parameter init (deterministic) -------------------------
def init_params(key):
    ks = jax.random.split(key, 12)
    H = HIDDEN

    def nrm(k, shape, scale=0.1):
        return scale * jax.random.normal(k, shape, jnp.float32)

    def pack_gate_cols(w_t):
        # w_t: [H_in, 4H] contiguous gates i,f,g,o -> [H_in, GP], gate g at lanes g*128..
        h_in = w_t.shape[0]
        out = jnp.zeros((h_in, GP), jnp.float32)
        for g in range(4):
            out = out.at[:, g * HP:g * HP + H].set(w_t[:, g * H:(g + 1) * H])
        return out

    def lstm(k1, k2, k3, k4):
        w_ih = nrm(k1, (4 * H, H))        # PyTorch layout [4H, H], gate order i,f,g,o
        w_hh = nrm(k2, (4 * H, H))
        b_ih = nrm(k3, (4 * H,))
        b_hh = nrm(k4, (4 * H,))
        wih_p = pack_gate_cols(jnp.transpose(w_ih))                    # [H, GP]
        whh_p = jnp.zeros((HP, GP), jnp.float32).at[:H].set(
            pack_gate_cols(jnp.transpose(w_hh)))                       # [HP, GP]
        b_p = pack_gate_cols((b_ih + b_hh).reshape(1, 4 * H))          # [1, GP]
        return wih_p, whh_p, b_p

    enc_wih, enc_whh, enc_b = lstm(ks[0], ks[1], ks[2], ks[3])
    dec_wih, dec_whh, dec_b = lstm(ks[4], ks[5], ks[6], ks[7])

    enc_emb = nrm(ks[8], (INPUT_SIZE, H))
    dec_emb = nrm(ks[9], (OUTPUT_SIZE, H))

    # Fold embedding + input projection: one table row == gate pre-activations.
    enc_pre = jnp.dot(enc_emb, enc_wih)                                # [I, GP]
    dec_pre = jnp.zeros((OP, GP), jnp.float32).at[:OUTPUT_SIZE].set(
        jnp.dot(dec_emb, dec_wih))                                     # [OP, GP]

    w_fc = nrm(ks[10], (OUTPUT_SIZE, H))                               # PyTorch [O, H]
    b_fc = nrm(ks[11], (OUTPUT_SIZE,))
    wfc_p = jnp.zeros((HP, OP), jnp.float32).at[:H, :OUTPUT_SIZE].set(jnp.transpose(w_fc))
    bfc_p = jnp.zeros((1, OP), jnp.float32).at[0, :OUTPUT_SIZE].set(b_fc)

    # TODO(synk): Attention.attn = nn.Linear(2H, 1) is never used in the
    #   reference forward pass, so it is not materialized here.
    return dict(
        enc_pre=enc_pre, dec_pre=dec_pre,
        enc_whh=enc_whh, enc_b=enc_b,
        dec_whh=dec_whh, dec_b=dec_b,
        wfc=wfc_p, bfc=bfc_p,
    )


if __name__ == "__main__":
    key = jax.random.PRNGKey(0)
    pk, sk, tk = jax.random.split(key, 3)
    params = init_params(pk)

    src_len, trg_len = 8, 8
    teacher_forcing_ratio = 0.5
    src = jax.random.randint(sk, (src_len,), 0, INPUT_SIZE, dtype=jnp.int32)
    trg = jax.random.randint(tk, (trg_len,), 0, OUTPUT_SIZE, dtype=jnp.int32)
    src_length = jnp.asarray([src_len], dtype=jnp.int32)

    # TODO(synk): random.random() teacher forcing replaced by a seeded numpy RNG
    #   precomputed on host (one draw per decoder step, as in the reference loop).
    rng = np.random.RandomState(0)
    tf_np = np.zeros((trg_len,), np.int32)
    for t in range(1, trg_len):
        tf_np[t] = np.int32(rng.rand() < teacher_forcing_ratio)
    tf_mask = jnp.asarray(tf_np)

    out = seq2seq_forward(params, src, src_length, trg, tf_mask)
    out = jax.block_until_ready(out)
    assert out.shape == (trg_len, 1, OUTPUT_SIZE)
    assert bool(jnp.all(jnp.isfinite(out)))
    print("KERNEL_OK")
</pallas_src>

<mosaic_0001>
module attributes {stable_mosaic.version = 11 : i64} {
  func.func @seq2seq_kernel(%arg0: memref<8xi32, #tpu.memory_space<smem>>, %arg1: memref<1xi32, #tpu.memory_space<smem>>, %arg2: memref<8xi32, #tpu.memory_space<smem>>, %arg3: memref<8xi32, #tpu.memory_space<smem>>, %arg4: memref<10x512xf32, #tpu.memory_space<vmem>>, %arg5: memref<128x512xf32, #tpu.memory_space<vmem>>, %arg6: memref<128x512xf32, #tpu.memory_space<vmem>>, %arg7: memref<1x512xf32, #tpu.memory_space<vmem>>, %arg8: memref<128x512xf32, #tpu.memory_space<vmem>>, %arg9: memref<1x512xf32, #tpu.memory_space<vmem>>, %arg10: memref<128x128xf32, #tpu.memory_space<vmem>>, %arg11: memref<1x128xf32, #tpu.memory_space<vmem>>, %arg12: memref<8x128xf32, #tpu.memory_space<vmem>>, %arg13: memref<8x128xf32, #tpu.memory_space<vmem>>) attributes {dimension_semantics = [], scalar_prefetch = 0 : i64, scratch_operands = 1 : i64, tpu.core_type = #tpu.core_type<tc>} {
    %c0 = arith.constant 0 : index
    %0 = memref.load %arg1[%c0] : memref<1xi32, #tpu.memory_space<smem>>
    %c0_0 = arith.constant 0 : index
    %c0_1 = arith.constant 0 : index
    %1 = vector.load %arg6[%c0_0, %c0_1] : memref<128x512xf32, #tpu.memory_space<vmem>>, vector<128x512xf32>
    %c0_2 = arith.constant 0 : index
    %c0_3 = arith.constant 0 : index
    %2 = vector.load %arg7[%c0_2, %c0_3] : memref<1x512xf32, #tpu.memory_space<vmem>>, vector<1x512xf32>
    %c0_4 = arith.constant 0 : index
    %c0_5 = arith.constant 0 : index
    %3 = vector.load %arg8[%c0_4, %c0_5] : memref<128x512xf32, #tpu.memory_space<vmem>>, vector<128x512xf32>
    %c0_6 = arith.constant 0 : index
    %c0_7 = arith.constant 0 : index
    %4 = vector.load %arg9[%c0_6, %c0_7] : memref<1x512xf32, #tpu.memory_space<vmem>>, vector<1x512xf32>
    %c0_8 = arith.constant 0 : index
    %c0_9 = arith.constant 0 : index
    %5 = vector.load %arg5[%c0_8, %c0_9] : memref<128x512xf32, #tpu.memory_space<vmem>>, vector<128x512xf32>
    %c0_10 = arith.constant 0 : index
    %c0_11 = arith.constant 0 : index
    %6 = vector.load %arg10[%c0_10, %c0_11] : memref<128x128xf32, #tpu.memory_space<vmem>>, vector<128x128xf32>
    %c0_12 = arith.constant 0 : index
    %c0_13 = arith.constant 0 : index
    %7 = vector.load %arg11[%c0_12, %c0_13] : memref<1x128xf32, #tpu.memory_space<vmem>>, vector<1x128xf32>
    %8 = tpu.iota {dimensions = array<i32: 1>} : vector<1x128xi32>
    %c10_i32 = arith.constant 10 : i32
    %9 = vector.broadcast %c10_i32 : i32 to vector<1x128xi32>
    %10 = arith.cmpi slt, %8, %9 : vector<1x128xi32>
    %cst = arith.constant 0.000000e+00 : f32
    %11 = vector.broadcast %cst : f32 to vector<1x128xf32>
    %cst_14 = arith.constant 0.000000e+00 : f32
    %12 = vector.broadcast %cst_14 : f32 to vector<1x128xf32>
    %c0_i32 = arith.constant 0 : i32
    %13 = arith.index_cast %c0_i32 : i32 to index
    %14 = memref.load %arg0[%13] : memref<8xi32, #tpu.memory_space<smem>>
    %15 = arith.index_cast %14 : i32 to index
    %c0_15 = arith.constant 0 : index
    %16 = vector.load %arg4[%15, %c0_15] : memref<10x512xf32, #tpu.memory_space<vmem>>, vector<1x512xf32>
    %cst_16 = arith.constant dense<0.000000e+00> : vector<1x512xf32>
    %17 = tpu.matmul %11, %1, %cst_16 {dimension_numbers = #tpu.dot_dimension_numbers<[1], [0], [0], [1], [0, 0, 1, 1], [], []>} : vector<1x128xf32>, vector<128x512xf32>, vector<1x512xf32> -> vector<1x512xf32>
    %18 = arith.addf %16, %17 : vector<1x512xf32>
    %19 = arith.addf %18, %2 : vector<1x512xf32>
    %20 = vector.extract_strided_slice %19 {offsets = [0, 0], sizes = [1, 128], strides = [1, 1]} : vector<1x512xf32> to vector<1x128xf32>
    %21 = arith.negf %20 : vector<1x128xf32>
    %22 = math.exp %21 : vector<1x128xf32>
    %cst_17 = arith.constant 1.000000e+00 : f32
    %23 = vector.broadcast %cst_17 : f32 to vector<1x128xf32>
    %24 = arith.addf %23, %22 : vector<1x128xf32>
    %25 = arith.divf %23, %24 : vector<1x128xf32>
    %26 = vector.extract_strided_slice %19 {offsets = [0, 128], sizes = [1, 128], strides = [1, 1]} : vector<1x512xf32> to vector<1x128xf32>
    %27 = arith.negf %26 : vector<1x128xf32>
    %28 = math.exp %27 : vector<1x128xf32>
    %cst_18 = arith.constant 1.000000e+00 : f32
    %29 = vector.broadcast %cst_18 : f32 to vector<1x128xf32>
    %30 = arith.addf %29, %28 : vector<1x128xf32>
    %31 = arith.divf %29, %30 : vector<1x128xf32>
    %32 = vector.extract_strided_slice %19 {offsets = [0, 256], sizes = [1, 128], strides = [1, 1]} : vector<1x512xf32> to vector<1x128xf32>
    %33 = math.tanh %32 : vector<1x128xf32>
    %34 = vector.extract_strided_slice %19 {offsets = [0, 384], sizes = [1, 128], strides = [1, 1]} : vector<1x512xf32> to vector<1x128xf32>
    %35 = arith.negf %34 : vector<1x128xf32>
    %36 = math.exp %35 : vector<1x128xf32>
    %cst_19 = arith.constant 1.000000e+00 : f32
    %37 = vector.broadcast %cst_19 : f32 to vector<1x128xf32>
    %38 = arith.addf %37, %36 : vector<1x128xf32>
    %39 = arith.divf %37, %38 : vector<1x128xf32>
    %40 = arith.mulf %31, %12 : vector<1x128xf32>
    %41 = arith.mulf %25, %33 : vector<1x128xf32>
    %42 = arith.addf %40, %41 : vector<1x128xf32>
    %43 = math.tanh %42 : vector<1x128xf32>
    %44 = arith.mulf %39, %43 : vector<1x128xf32>
    %45 = arith.cmpi slt, %c0_i32, %0 : i32
    %46 = arith.select %45, %44, %11 : vector<1x128xf32>
    %47 = arith.select %45, %42, %12 : vector<1x128xf32>
    %cst_20 = arith.constant 0.000000e+00 : f32
    %48 = vector.broadcast %cst_20 : f32 to vector<1x128xf32>
    %49 = arith.select %45, %46, %48 : vector<1x128xf32>
    %50 = arith.index_cast %c0_i32 : i32 to index
    %c0_21 = arith.constant 0 : index
    %51 = vector.load %arg13[%50, %c0_21] : memref<8x128xf32, #tpu.memory_space<vmem>>, vector<1x128xf32>
    tpu.vector_store %arg13[%50, %c0_21], %49 {strides = array<i32>} : memref<8x128xf32, #tpu.memory_space<vmem>>, vector<1x128xf32>,
    %c1_i32 = arith.constant 1 : i32
    %52 = arith.index_cast %c1_i32 : i32 to index
    %53 = memref.load %arg0[%52] : memref<8xi32, #tpu.memory_space<smem>>
    %54 = arith.index_cast %53 : i32 to index
    %c0_22 = arith.constant 0 : index
    %55 = vector.load %arg4[%54, %c0_22] : memref<10x512xf32, #tpu.memory_space<vmem>>, vector<1x512xf32>
    %cst_23 = arith.constant dense<0.000000e+00> : vector<1x512xf32>
    %56 = tpu.matmul %46, %1, %cst_23 {dimension_numbers = #tpu.dot_dimension_numbers<[1], [0], [0], [1], [0, 0, 1, 1], [], []>} : vector<1x128xf32>, vector<128x512xf32>, vector<1x512xf32> -> vector<1x512xf32>
    %57 = arith.addf %55, %56 : vector<1x512xf32>
    %58 = arith.addf %57, %2 : vector<1x512xf32>
    %59 = vector.extract_strided_slice %58 {offsets = [0, 0], sizes = [1, 128], strides = [1, 1]} : vector<1x512xf32> to vector<1x128xf32>
    %60 = arith.negf %59 : vector<1x128xf32>
    %61 = math.exp %60 : vector<1x128xf32>
    %cst_24 = arith.constant 1.000000e+00 : f32
    %62 = vector.broadcast %cst_24 : f32 to vector<1x128xf32>
    %63 = arith.addf %62, %61 : vector<1x128xf32>
    %64 = arith.divf %62, %63 : vector<1x128xf32>
    %65 = vector.extract_strided_slice %58 {offsets = [0, 128], sizes = [1, 128], strides = [1, 1]} : vector<1x512xf32> to vector<1x128xf32>
    %66 = arith.negf %65 : vector<1x128xf32>
    %67 = math.exp %66 : vector<1x128xf32>
    %cst_25 = arith.constant 1.000000e+00 : f32
    %68 = vector.broadcast %cst_25 : f32 to vector<1x128xf32>
    %69 = arith.addf %68, %67 : vector<1x128xf32>
    %70 = arith.divf %68, %69 : vector<1x128xf32>
    %71 = vector.extract_strided_slice %58 {offsets = [0, 256], sizes = [1, 128], strides = [1, 1]} : vector<1x512xf32> to vector<1x128xf32>
    %72 = math.tanh %71 : vector<1x128xf32>
    %73 = vector.extract_strided_slice %58 {offsets = [0, 384], sizes = [1, 128], strides = [1, 1]} : vector<1x512xf32> to vector<1x128xf32>
    %74 = arith.negf %73 : vector<1x128xf32>
    %75 = math.exp %74 : vector<1x128xf32>
    %cst_26 = arith.constant 1.000000e+00 : f32
    %76 = vector.broadcast %cst_26 : f32 to vector<1x128xf32>
    %77 = arith.addf %76, %75 : vector<1x128xf32>
    %78 = arith.divf %76, %77 : vector<1x128xf32>
    %79 = arith.mulf %70, %47 : vector<1x128xf32>
    %80 = arith.mulf %64, %72 : vector<1x128xf32>
    %81 = arith.addf %79, %80 : vector<1x128xf32>
    %82 = math.tanh %81 : vector<1x128xf32>
    %83 = arith.mulf %78, %82 : vector<1x128xf32>
    %84 = arith.cmpi slt, %c1_i32, %0 : i32
    %85 = arith.select %84, %83, %46 : vector<1x128xf32>
    %86 = arith.select %84, %81, %47 : vector<1x128xf32>
    %cst_27 = arith.constant 0.000000e+00 : f32
    %87 = vector.broadcast %cst_27 : f32 to vector<1x128xf32>
    %88 = arith.select %84, %85, %87 : vector<1x128xf32>
    %89 = arith.index_cast %c1_i32 : i32 to index
    %c0_28 = arith.constant 0 : index
    %90 = vector.load %arg13[%89, %c0_28] : memref<8x128xf32, #tpu.memory_space<vmem>>, vector<1x128xf32>
    tpu.vector_store %arg13[%89, %c0_28], %88 {strides = array<i32>} : memref<8x128xf32, #tpu.memory_space<vmem>>, vector<1x128xf32>,
    %c2_i32 = arith.constant 2 : i32
    %91 = arith.index_cast %c2_i32 : i32 to index
    %92 = memref.load %arg0[%91] : memref<8xi32, #tpu.memory_space<smem>>
    %93 = arith.index_cast %92 : i32 to index
    %c0_29 = arith.constant 0 : index
    %94 = vector.load %arg4[%93, %c0_29] : memref<10x512xf32, #tpu.memory_space<vmem>>, vector<1x512xf32>
    %cst_30 = arith.constant dense<0.000000e+00> : vector<1x512xf32>
    %95 = tpu.matmul %85, %1, %cst_30 {dimension_numbers = #tpu.dot_dimension_numbers<[1], [0], [0], [1], [0, 0, 1, 1], [], []>} : vector<1x128xf32>, vector<128x512xf32>, vector<1x512xf32> -> vector<1x512xf32>
    %96 = arith.addf %94, %95 : vector<1x512xf32>
    %97 = arith.addf %96, %2 : vector<1x512xf32>
    %98 = vector.extract_strided_slice %97 {offsets = [0, 0], sizes = [1, 128], strides = [1, 1]} : vector<1x512xf32> to vector<1x128xf32>
    %99 = arith.negf %98 : vector<1x128xf32>
    %100 = math.exp %99 : vector<1x128xf32>
    %cst_31 = arith.constant 1.000000e+00 : f32
    %101 = vector.broadcast %cst_31 : f32 to vector<1x128xf32>
    %102 = arith.addf %101, %100 : vector<1x128xf32>
    %103 = arith.divf %101, %102 : vector<1x128xf32>
    %104 = vector.extract_strided_slice %97 {offsets = [0, 128], sizes = [1, 128], strides = [1, 1]} : vector<1x512xf32> to vector<1x128xf32>
    %105 = arith.negf %104 : vector<1x128xf32>
    %106 = math.exp %105 : vector<1x128xf32>
    %cst_32 = arith.constant 1.000000e+00 : f32
    %107 = vector.broadcast %cst_32 : f32 to vector<1x128xf32>
    %108 = arith.addf %107, %106 : vector<1x128xf32>
    %109 = arith.divf %107, %108 : vector<1x128xf32>
    %110 = vector.extract_strided_slice %97 {offsets = [0, 256], sizes = [1, 128], strides = [1, 1]} : vector<1x512xf32> to vector<1x128xf32>
    %111 = math.tanh %110 : vector<1x128xf32>
    %112 = vector.extract_strided_slice %97 {offsets = [0, 384], sizes = [1, 128], strides = [1, 1]} : vector<1x512xf32> to vector<1x128xf32>
    %113 = arith.negf %112 : vector<1x128xf32>
    %114 = math.exp %113 : vector<1x128xf32>
    %cst_33 = arith.constant 1.000000e+00 : f32
    %115 = vector.broadcast %cst_33 : f32 to vector<1x128xf32>
    %116 = arith.addf %115, %114 : vector<1x128xf32>
    %117 = arith.divf %115, %116 : vector<1x128xf32>
    %118 = arith.mulf %109, %86 : vector<1x128xf32>
    %119 = arith.mulf %103, %111 : vector<1x128xf32>
    %120 = arith.addf %118, %119 : vector<1x128xf32>
    %121 = math.tanh %120 : vector<1x128xf32>
    %122 = arith.mulf %117, %121 : vector<1x128xf32>
    %123 = arith.cmpi slt, %c2_i32, %0 : i32
    %124 = arith.select %123, %122, %85 : vector<1x128xf32>
    %125 = arith.select %123, %120, %86 : vector<1x128xf32>
    %cst_34 = arith.constant 0.000000e+00 : f32
    %126 = vector.broadcast %cst_34 : f32 to vector<1x128xf32>
    %127 = arith.select %123, %124, %126 : vector<1x128xf32>
    %128 = arith.index_cast %c2_i32 : i32 to index
    %c0_35 = arith.constant 0 : index
    %129 = vector.load %arg13[%128, %c0_35] : memref<8x128xf32, #tpu.memory_space<vmem>>, vector<1x128xf32>
    tpu.vector_store %arg13[%128, %c0_35], %127 {strides = array<i32>} : memref<8x128xf32, #tpu.memory_space<vmem>>, vector<1x128xf32>,
    %c3_i32 = arith.constant 3 : i32
    %130 = arith.index_cast %c3_i32 : i32 to index
    %131 = memref.load %arg0[%130] : memref<8xi32, #tpu.memory_space<smem>>
    %132 = arith.index_cast %131 : i32 to index
    %c0_36 = arith.constant 0 : index
    %133 = vector.load %arg4[%132, %c0_36] : memref<10x512xf32, #tpu.memory_space<vmem>>, vector<1x512xf32>
    %cst_37 = arith.constant dense<0.000000e+00> : vector<1x512xf32>
    %134 = tpu.matmul %124, %1, %cst_37 {dimension_numbers = #tpu.dot_dimension_numbers<[1], [0], [0], [1], [0, 0, 1, 1], [], []>} : vector<1x128xf32>, vector<128x512xf32>, vector<1x512xf32> -> vector<1x512xf32>
    %135 = arith.addf %133, %134 : vector<1x512xf32>
    %136 = arith.addf %135, %2 : vector<1x512xf32>
    %137 = vector.extract_strided_slice %136 {offsets = [0, 0], sizes = [1, 128], strides = [1, 1]} : vector<1x512xf32> to vector<1x128xf32>
    %138 = arith.negf %137 : vector<1x128xf32>
    %139 = math.exp %138 : vector<1x128xf32>
    %cst_38 = arith.constant 1.000000e+00 : f32
    %140 = vector.broadcast %cst_38 : f32 to vector<1x128xf32>
    %141 = arith.addf %140, %139 : vector<1x128xf32>
    %142 = arith.divf %140, %141 : vector<1x128xf32>
    %143 = vector.extract_strided_slice %136 {offsets = [0, 128], sizes = [1, 128], strides = [1, 1]} : vector<1x512xf32> to vector<1x128xf32>
    %144 = arith.negf %143 : vector<1x128xf32>
    %145 = math.exp %144 : vector<1x128xf32>
    %cst_39 = arith.constant 1.000000e+00 : f32
    %146 = vector.broadcast %cst_39 : f32 to vector<1x128xf32>
    %147 = arith.addf %146, %145 : vector<1x128xf32>
    %148 = arith.divf %146, %147 : vector<1x128xf32>
    %149 = vector.extract_strided_slice %136 {offsets = [0, 256], sizes = [1, 128], strides = [1, 1]} : vector<1x512xf32> to vector<1x128xf32>
    %150 = math.tanh %149 : vector<1x128xf32>
    %151 = vector.extract_strided_slice %136 {offsets = [0, 384], sizes = [1, 128], strides = [1, 1]} : vector<1x512xf32> to vector<1x128xf32>
    %152 = arith.negf %151 : vector<1x128xf32>
    %153 = math.exp %152 : vector<1x128xf32>
    %cst_40 = arith.constant 1.000000e+00 : f32
    %154 = vector.broadcast %cst_40 : f32 to vector<1x128xf32>
    %155 = arith.addf %154, %153 : vector<1x128xf32>
    %156 = arith.divf %154, %155 : vector<1x128xf32>
    %157 = arith.mulf %148, %125 : vector<1x128xf32>
    %158 = arith.mulf %142, %150 : vector<1x128xf32>
    %159 = arith.addf %157, %158 : vector<1x128xf32>
    %160 = math.tanh %159 : vector<1x128xf32>
    %161 = arith.mulf %156, %160 : vector<1x128xf32>
    %162 = arith.cmpi slt, %c3_i32, %0 : i32
    %163 = arith.select %162, %161, %124 : vector<1x128xf32>
    %164 = arith.select %162, %159, %125 : vector<1x128xf32>
    %cst_41 = arith.constant 0.000000e+00 : f32
    %165 = vector.broadcast %cst_41 : f32 to vector<1x128xf32>
    %166 = arith.select %162, %163, %165 : vector<1x128xf32>
    %167 = arith.index_cast %c3_i32 : i32 to index
    %c0_42 = arith.constant 0 : index
    %168 = vector.load %arg13[%167, %c0_42] : memref<8x128xf32, #tpu.memory_space<vmem>>, vector<1x128xf32>
    tpu.vector_store %arg13[%167, %c0_42], %166 {strides = array<i32>} : memref<8x128xf32, #tpu.memory_space<vmem>>, vector<1x128xf32>,
    %c4_i32 = arith.constant 4 : i32
    %169 = arith.index_cast %c4_i32 : i32 to index
    %170 = memref.load %arg0[%169] : memref<8xi32, #tpu.memory_space<smem>>
    %171 = arith.index_cast %170 : i32 to index
    %c0_43 = arith.constant 0 : index
    %172 = vector.load %arg4[%171, %c0_43] : memref<10x512xf32, #tpu.memory_space<vmem>>, vector<1x512xf32>
    %cst_44 = arith.constant dense<0.000000e+00> : vector<1x512xf32>
    %173 = tpu.matmul %163, %1, %cst_44 {dimension_numbers = #tpu.dot_dimension_numbers<[1], [0], [0], [1], [0, 0, 1, 1], [], []>} : vector<1x128xf32>, vector<128x512xf32>, vector<1x512xf32> -> vector<1x512xf32>
    %174 = arith.addf %172, %173 : vector<1x512xf32>
    %175 = arith.addf %174, %2 : vector<1x512xf32>
    %176 = vector.extract_strided_slice %175 {offsets = [0, 0], sizes = [1, 128], strides = [1, 1]} : vector<1x512xf32> to vector<1x128xf32>
    %177 = arith.negf %176 : vector<1x128xf32>
    %178 = math.exp %177 : vector<1x128xf32>
    %cst_45 = arith.constant 1.000000e+00 : f32
    %179 = vector.broadcast %cst_45 : f32 to vector<1x128xf32>
    %180 = arith.addf %179, %178 : vector<1x128xf32>
    %181 = arith.divf %179, %180 : vector<1x128xf32>
    %182 = vector.extract_strided_slice %175 {offsets = [0, 128], sizes = [1, 128], strides = [1, 1]} : vector<1x512xf32> to vector<1x128xf32>
    %183 = arith.negf %182 : vector<1x128xf32>
    %184 = math.exp %183 : vector<1x128xf32>
    %cst_46 = arith.constant 1.000000e+00 : f32
    %185 = vector.broadcast %cst_46 : f32 to vector<1x128xf32>
    %186 = arith.addf %185, %184 : vector<1x128xf32>
    %187 = arith.divf %185, %186 : vector<1x128xf32>
    %188 = vector.extract_strided_slice %175 {offsets = [0, 256], sizes = [1, 128], strides = [1, 1]} : vector<1x512xf32> to vector<1x128xf32>
    %189 = math.tanh %188 : vector<1x128xf32>
    %190 = vector.extract_strided_slice %175 {offsets = [0, 384], sizes = [1, 128], strides = [1, 1]} : vector<1x512xf32> to vector<1x128xf32>
    %191 = arith.negf %190 : vector<1x128xf32>
    %192 = math.exp %191 : vector<1x128xf32>
    %cst_47 = arith.constant 1.000000e+00 : f32
    %193 = vector.broadcast %cst_47 : f32 to vector<1x128xf32>
    %194 = arith.addf %193, %192 : vector<1x128xf32>
    %195 = arith.divf %193, %194 : vector<1x128xf32>
    %196 = arith.mulf %187, %164 : vector<1x128xf32>
    %197 = arith.mulf %181, %189 : vector<1x128xf32>
    %198 = arith.addf %196, %197 : vector<1x128xf32>
    %199 = math.tanh %198 : vector<1x128xf32>
    %200 = arith.mulf %195, %199 : vector<1x128xf32>
    %201 = arith.cmpi slt, %c4_i32, %0 : i32
    %202 = arith.select %201, %200, %163 : vector<1x128xf32>
    %203 = arith.select %201, %198, %164 : vector<1x128xf32>
    %cst_48 = arith.constant 0.000000e+00 : f32
    %204 = vector.broadcast %cst_48 : f32 to vector<1x128xf32>
    %205 = arith.select %201, %202, %204 : vector<1x128xf32>
    %206 = arith.index_cast %c4_i32 : i32 to index
    %c0_49 = arith.constant 0 : index
    %207 = vector.load %arg13[%206, %c0_49] : memref<8x128xf32, #tpu.memory_space<vmem>>, vector<1x128xf32>
    tpu.vector_store %arg13[%206, %c0_49], %205 {strides = array<i32>} : memref<8x128xf32, #tpu.memory_space<vmem>>, vector<1x128xf32>,
    %c5_i32 = arith.constant 5 : i32
    %208 = arith.index_cast %c5_i32 : i32 to index
    %209 = memref.load %arg0[%208] : memref<8xi32, #tpu.memory_space<smem>>
    %210 = arith.index_cast %209 : i32 to index
    %c0_50 = arith.constant 0 : index
    %211 = vector.load %arg4[%210, %c0_50] : memref<10x512xf32, #tpu.memory_space<vmem>>, vector<1x512xf32>
    %cst_51 = arith.constant dense<0.000000e+00> : vector<1x512xf32>
    %212 = tpu.matmul %202, %1, %cst_51 {dimension_numbers = #tpu.dot_dimension_numbers<[1], [0], [0], [1], [0, 0, 1, 1], [], []>} : vector<1x128xf32>, vector<128x512xf32>, vector<1x512xf32> -> vector<1x512xf32>
    %213 = arith.addf %211, %212 : vector<1x512xf32>
    %214 = arith.addf %213, %2 : vector<1x512xf32>
    %215 = vector.extract_strided_slice %214 {offsets = [0, 0], sizes = [1, 128], strides = [1, 1]} : vector<1x512xf32> to vector<1x128xf32>
    %216 = arith.negf %215 : vector<1x128xf32>
    %217 = math.exp %216 : vector<1x128xf32>
    %cst_52 = arith.constant 1.000000e+00 : f32
    %218 = vector.broadcast %cst_52 : f32 to vector<1x128xf32>
    %219 = arith.addf %218, %217 : vector<1x128xf32>
    %220 = arith.divf %218, %219 : vector<1x128xf32>
    %221 = vector.extract_strided_slice %214 {offsets = [0, 128], sizes = [1, 128], strides = [1, 1]} : vector<1x512xf32> to vector<1x128xf32>
    %222 = arith.negf %221 : vector<1x128xf32>
    %223 = math.exp %222 : vector<1x128xf32>
    %cst_53 = arith.constant 1.000000e+00 : f32
    %224 = vector.broadcast %cst_53 : f32 to vector<1x128xf32>
    %225 = arith.addf %224, %223 : vector<1x128xf32>
    %226 = arith.divf %224, %225 : vector<1x128xf32>
    %227 = vector.extract_strided_slice %214 {offsets = [0, 256], sizes = [1, 128], strides = [1, 1]} : vector<1x512xf32> to vector<1x128xf32>
    %228 = math.tanh %227 : vector<1x128xf32>
    %229 = vector.extract_strided_slice %214 {offsets = [0, 384], sizes = [1, 128], strides = [1, 1]} : vector<1x512xf32> to vector<1x128xf32>
    %230 = arith.negf %229 : vector<1x128xf32>
    %231 = math.exp %230 : vector<1x128xf32>
    %cst_54 = arith.constant 1.000000e+00 : f32
    %232 = vector.broadcast %cst_54 : f32 to vector<1x128xf32>
    %233 = arith.addf %232, %231 : vector<1x128xf32>
    %234 = arith.divf %232, %233 : vector<1x128xf32>
    %235 = arith.mulf %226, %203 : vector<1x128xf32>
    %236 = arith.mulf %220, %228 : vector<1x128xf32>
    %237 = arith.addf %235, %236 : vector<1x128xf32>
    %238 = math.tanh %237 : vector<1x128xf32>
    %239 = arith.mulf %234, %238 : vector<1x128xf32>
    %240 = arith.cmpi slt, %c5_i32, %0 : i32
    %241 = arith.select %240, %239, %202 : vector<1x128xf32>
    %242 = arith.select %240, %237, %203 : vector<1x128xf32>
    %cst_55 = arith.constant 0.000000e+00 : f32
    %243 = vector.broadcast %cst_55 : f32 to vector<1x128xf32>
    %244 = arith.select %240, %241, %243 : vector<1x128xf32>
    %245 = arith.index_cast %c5_i32 : i32 to index
    %c0_56 = arith.constant 0 : index
    %246 = vector.load %arg13[%245, %c0_56] : memref<8x128xf32, #tpu.memory_space<vmem>>, vector<1x128xf32>
    tpu.vector_store %arg13[%245, %c0_56], %244 {strides = array<i32>} : memref<8x128xf32, #tpu.memory_space<vmem>>, vector<1x128xf32>,
    %c6_i32 = arith.constant 6 : i32
    %247 = arith.index_cast %c6_i32 : i32 to index
    %248 = memref.load %arg0[%247] : memref<8xi32, #tpu.memory_space<smem>>
    %249 = arith.index_cast %248 : i32 to index
    %c0_57 = arith.constant 0 : index
    %250 = vector.load %arg4[%249, %c0_57] : memref<10x512xf32, #tpu.memory_space<vmem>>, vector<1x512xf32>
    %cst_58 = arith.constant dense<0.000000e+00> : vector<1x512xf32>
    %251 = tpu.matmul %241, %1, %cst_58 {dimension_numbers = #tpu.dot_dimension_numbers<[1], [0], [0], [1], [0, 0, 1, 1], [], []>} : vector<1x128xf32>, vector<128x512xf32>, vector<1x512xf32> -> vector<1x512xf32>
    %252 = arith.addf %250, %251 : vector<1x512xf32>
    %253 = arith.addf %252, %2 : vector<1x512xf32>
    %254 = vector.extract_strided_slice %253 {offsets = [0, 0], sizes = [1, 128], strides = [1, 1]} : vector<1x512xf32> to vector<1x128xf32>
    %255 = arith.negf %254 : vector<1x128xf32>
    %256 = math.exp %255 : vector<1x128xf32>
    %cst_59 = arith.constant 1.000000e+00 : f32
    %257 = vector.broadcast %cst_59 : f32 to vector<1x128xf32>
    %258 = arith.addf %257, %256 : vector<1x128xf32>
    %259 = arith.divf %257, %258 : vector<1x128xf32>
    %260 = vector.extract_strided_slice %253 {offsets = [0, 128], sizes = [1, 128], strides = [1, 1]} : vector<1x512xf32> to vector<1x128xf32>
    %261 = arith.negf %260 : vector<1x128xf32>
    %262 = math.exp %261 : vector<1x128xf32>
    %cst_60 = arith.constant 1.000000e+00 : f32
    %263 = vector.broadcast %cst_60 : f32 to vector<1x128xf32>
    %264 = arith.addf %263, %262 : vector<1x128xf32>
    %265 = arith.divf %263, %264 : vector<1x128xf32>
    %266 = vector.extract_strided_slice %253 {offsets = [0, 256], sizes = [1, 128], strides = [1, 1]} : vector<1x512xf32> to vector<1x128xf32>
    %267 = math.tanh %266 : vector<1x128xf32>
    %268 = vector.extract_strided_slice %253 {offsets = [0, 384], sizes = [1, 128], strides = [1, 1]} : vector<1x512xf32> to vector<1x128xf32>
    %269 = arith.negf %268 : vector<1x128xf32>
    %270 = math.exp %269 : vector<1x128xf32>
    %cst_61 = arith.constant 1.000000e+00 : f32
    %271 = vector.broadcast %cst_61 : f32 to vector<1x128xf32>
    %272 = arith.addf %271, %270 : vector<1x128xf32>
    %273 = arith.divf %271, %272 : vector<1x128xf32>
    %274 = arith.mulf %265, %242 : vector<1x128xf32>
    %275 = arith.mulf %259, %267 : vector<1x128xf32>
    %276 = arith.addf %274, %275 : vector<1x128xf32>
    %277 = math.tanh %276 : vector<1x128xf32>
    %278 = arith.mulf %273, %277 : vector<1x128xf32>
    %279 = arith.cmpi slt, %c6_i32, %0 : i32
    %280 = arith.select %279, %278, %241 : vector<1x128xf32>
    %281 = arith.select %279, %276, %242 : vector<1x128xf32>
    %cst_62 = arith.constant 0.000000e+00 : f32
    %282 = vector.broadcast %cst_62 : f32 to vector<1x128xf32>
    %283 = arith.select %279, %280, %282 : vector<1x128xf32>
    %284 = arith.index_cast %c6_i32 : i32 to index
    %c0_63 = arith.constant 0 : index
    %285 = vector.load %arg13[%284, %c0_63] : memref<8x128xf32, #tpu.memory_space<vmem>>, vector<1x128xf32>
    tpu.vector_store %arg13[%284, %c0_63], %283 {strides = array<i32>} : memref<8x128xf32, #tpu.memory_space<vmem>>, vector<1x128xf32>,
    %c7_i32 = arith.constant 7 : i32
    %286 = arith.index_cast %c7_i32 : i32 to index
    %287 = memref.load %arg0[%286] : memref<8xi32, #tpu.memory_space<smem>>
    %288 = arith.index_cast %287 : i32 to index
    %c0_64 = arith.constant 0 : index
    %289 = vector.load %arg4[%288, %c0_64] : memref<10x512xf32, #tpu.memory_space<vmem>>, vector<1x512xf32>
    %cst_65 = arith.constant dense<0.000000e+00> : vector<1x512xf32>
    %290 = tpu.matmul %280, %1, %cst_65 {dimension_numbers = #tpu.dot_dimension_numbers<[1], [0], [0], [1], [0, 0, 1, 1], [], []>} : vector<1x128xf32>, vector<128x512xf32>, vector<1x512xf32> -> vector<1x512xf32>
    %291 = arith.addf %289, %290 : vector<1x512xf32>
    %292 = arith.addf %291, %2 : vector<1x512xf32>
    %293 = vector.extract_strided_slice %292 {offsets = [0, 0], sizes = [1, 128], strides = [1, 1]} : vector<1x512xf32> to vector<1x128xf32>
    %294 = arith.negf %293 : vector<1x128xf32>
    %295 = math.exp %294 : vector<1x128xf32>
    %cst_66 = arith.constant 1.000000e+00 : f32
    %296 = vector.broadcast %cst_66 : f32 to vector<1x128xf32>
    %297 = arith.addf %296, %295 : vector<1x128xf32>
    %298 = arith.divf %296, %297 : vector<1x128xf32>
    %299 = vector.extract_strided_slice %292 {offsets = [0, 128], sizes = [1, 128], strides = [1, 1]} : vector<1x512xf32> to vector<1x128xf32>
    %300 = arith.negf %299 : vector<1x128xf32>
    %301 = math.exp %300 : vector<1x128xf32>
    %cst_67 = arith.constant 1.000000e+00 : f32
    %302 = vector.broadcast %cst_67 : f32 to vector<1x128xf32>
    %303 = arith.addf %302, %301 : vector<1x128xf32>
    %304 = arith.divf %302, %303 : vector<1x128xf32>
    %305 = vector.extract_strided_slice %292 {offsets = [0, 256], sizes = [1, 128], strides = [1, 1]} : vector<1x512xf32> to vector<1x128xf32>
    %306 = math.tanh %305 : vector<1x128xf32>
    %307 = vector.extract_strided_slice %292 {offsets = [0, 384], sizes = [1, 128], strides = [1, 1]} : vector<1x512xf32> to vector<1x128xf32>
    %308 = arith.negf %307 : vector<1x128xf32>
    %309 = math.exp %308 : vector<1x128xf32>
    %cst_68 = arith.constant 1.000000e+00 : f32
    %310 = vector.broadcast %cst_68 : f32 to vector<1x128xf32>
    %311 = arith.addf %310, %309 : vector<1x128xf32>
    %312 = arith.divf %310, %311 : vector<1x128xf32>
    %313 = arith.mulf %304, %281 : vector<1x128xf32>
    %314 = arith.mulf %298, %306 : vector<1x128xf32>
    %315 = arith.addf %313, %314 : vector<1x128xf32>
    %316 = math.tanh %315 : vector<1x128xf32>
    %317 = arith.mulf %312, %316 : vector<1x128xf32>
    %318 = arith.cmpi slt, %c7_i32, %0 : i32
    %319 = arith.select %318, %317, %280 : vector<1x128xf32>
    %320 = arith.select %318, %315, %281 : vector<1x128xf32>
    %cst_69 = arith.constant 0.000000e+00 : f32
    %321 = vector.broadcast %cst_69 : f32 to vector<1x128xf32>
    %322 = arith.select %318, %319, %321 : vector<1x128xf32>
    %323 = arith.index_cast %c7_i32 : i32 to index
    %c0_70 = arith.constant 0 : index
    %324 = vector.load %arg13[%323, %c0_70] : memref<8x128xf32, #tpu.memory_space<vmem>>, vector<1x128xf32>
    tpu.vector_store %arg13[%323, %c0_70], %322 {strides = array<i32>} : memref<8x128xf32, #tpu.memory_space<vmem>>, vector<1x128xf32>,
    %c8_i32 = arith.constant 8 : i32
    %c0_71 = arith.constant 0 : index
    %c0_72 = arith.constant 0 : index
    %325 = vector.load %arg13[%c0_71, %c0_72] : memref<8x128xf32, #tpu.memory_space<vmem>>, vector<8x128xf32>
    %326 = tpu.transpose %325, [1, 0] : vector<8x128xf32> -> vector<128x8xf32>
    %327 = tpu.iota {dimensions = array<i32: 1>} : vector<1x8xi32>
    %328 = vector.broadcast %0 : i32 to vector<1x8xi32>
    %329 = arith.cmpi slt, %327, %328 : vector<1x8xi32>
    %330 = arith.extui %329 : vector<1x8xi1> to vector<1x8xi32>
    %331 = arith.sitofp %330 : vector<1x8xi32> to vector<1x8xf32>
    %cst_73 = arith.constant 0.000000e+00 : f32
    %332 = vector.broadcast %cst_73 : f32 to vector<1x128xf32>
    %c0_74 = arith.constant 0 : index
    %c0_75 = arith.constant 0 : index
    %333 = vector.load %arg12[%c0_74, %c0_75] : memref<8x128xf32, #tpu.memory_space<vmem>>, vector<1x128xf32>
    tpu.vector_store %arg12[%c0_74, %c0_75], %332 {strides = array<i32>} : memref<8x128xf32, #tpu.memory_space<vmem>>, vector<1x128xf32>,
    %c0_76 = arith.constant 0 : index
    %334 = memref.load %arg2[%c0_76] : memref<8xi32, #tpu.memory_space<smem>>
    %335 = arith.index_cast %334 : i32 to index
    %c0_77 = arith.constant 0 : index
    %336 = vector.load %arg5[%335, %c0_77] : memref<128x512xf32, #tpu.memory_space<vmem>>, vector<1x512xf32>
    %c1_i32_78 = arith.constant 1 : i32
    %cst_79 = arith.constant dense<0.000000e+00> : vector<1x512xf32>
    %337 = tpu.matmul %319, %3, %cst_79 {dimension_numbers = #tpu.dot_dimension_numbers<[1], [0], [0], [1], [0, 0, 1, 1], [], []>} : vector<1x128xf32>, vector<128x512xf32>, vector<1x512xf32> -> vector<1x512xf32>
    %338 = arith.addf %336, %337 : vector<1x512xf32>
    %339 = arith.addf %338, %4 : vector<1x512xf32>
    %340 = vector.extract_strided_slice %339 {offsets = [0, 0], sizes = [1, 128], strides = [1, 1]} : vector<1x512xf32> to vector<1x128xf32>
    %341 = arith.negf %340 : vector<1x128xf32>
    %342 = math.exp %341 : vector<1x128xf32>
    %cst_80 = arith.constant 1.000000e+00 : f32
    %343 = vector.broadcast %cst_80 : f32 to vector<1x128xf32>
    %344 = arith.addf %343, %342 : vector<1x128xf32>
    %345 = arith.divf %343, %344 : vector<1x128xf32>
    %346 = vector.extract_strided_slice %339 {offsets = [0, 128], sizes = [1, 128], strides = [1, 1]} : vector<1x512xf32> to vector<1x128xf32>
    %347 = arith.negf %346 : vector<1x128xf32>
    %348 = math.exp %347 : vector<1x128xf32>
    %cst_81 = arith.constant 1.000000e+00 : f32
    %349 = vector.broadcast %cst_81 : f32 to vector<1x128xf32>
    %350 = arith.addf %349, %348 : vector<1x128xf32>
    %351 = arith.divf %349, %350 : vector<1x128xf32>
    %352 = vector.extract_strided_slice %339 {offsets = [0, 256], sizes = [1, 128], strides = [1, 1]} : vector<1x512xf32> to vector<1x128xf32>
    %353 = math.tanh %352 : vector<1x128xf32>
    %354 = vector.extract_strided_slice %339 {offsets = [0, 384], sizes = [1, 128], strides = [1, 1]} : vector<1x512xf32> to vector<1x128xf32>
    %355 = arith.negf %354 : vector<1x128xf32>
    %356 = math.exp %355 : vector<1x128xf32>
    %cst_82 = arith.constant 1.000000e+00 : f32
    %357 = vector.broadcast %cst_82 : f32 to vector<1x128xf32>
    %358 = arith.addf %357, %356 : vector<1x128xf32>
    %359 = arith.divf %357, %358 : vector<1x128xf32>
    %360 = arith.mulf %351, %320 : vector<1x128xf32>
    %361 = arith.mulf %345, %353 : vector<1x128xf32>
    %362 = arith.addf %360, %361 : vector<1x128xf32>
    %363 = math.tanh %362 : vector<1x128xf32>
    %364 = arith.mulf %359, %363 : vector<1x128xf32>
    %cst_83 = arith.constant dense<0.000000e+00> : vector<1x8xf32>
    %365 = tpu.matmul %364, %326, %cst_83 {dimension_numbers = #tpu.dot_dimension_numbers<[1], [0], [0], [1], [0, 0, 1, 1], [], []>} : vector<1x128xf32>, vector<128x8xf32>, vector<1x8xf32> -> vector<1x8xf32>
    %cst_84 = arith.constant -1.000000e+30 : f32
    %366 = vector.broadcast %cst_84 : f32 to vector<1x8xf32>
    %367 = arith.select %329, %365, %366 : vector<1x8xi1>, vector<1x8xf32>
    %cst_85 = arith.constant dense<0xFF800000> : vector<1xf32>
    %368 = vector.multi_reduction <maximumf>, %367, %cst_85 [1] : vector<1x8xf32> to vector<1xf32>
    %369 = vector.shape_cast %368 : vector<1xf32> to vector<1x1xf32>
    %370 = vector.broadcast %369 : vector<1x1xf32> to vector<1x8xf32>
    %371 = arith.subf %367, %370 : vector<1x8xf32>
    %372 = math.exp %371 : vector<1x8xf32>
    %373 = arith.mulf %372, %331 : vector<1x8xf32>
    %cst_86 = arith.constant dense<0.000000e+00> : vector<1xf32>
    %374 = vector.multi_reduction <add>, %373, %cst_86 [1] : vector<1x8xf32> to vector<1xf32>
    %375 = vector.shape_cast %374 : vector<1xf32> to vector<1x1xf32>
    %cst_87 = arith.constant 1.000000e-30 : f32
    %376 = vector.broadcast %cst_87 : f32 to vector<1x1xf32>
    %377 = arith.maximumf %375, %376 : vector<1x1xf32>
    %378 = tpu.reciprocal %377 {approx = true} : vector<1x1xf32> -> vector<1x1xf32>
    %379 = vector.broadcast %378 : vector<1x1xf32> to vector<1x8xf32>
    %380 = arith.mulf %373, %379 : vector<1x8xf32>
    %cst_88 = arith.constant dense<0.000000e+00> : vector<1x128xf32>
    %381 = tpu.matmul %380, %325, %cst_88 {dimension_numbers = #tpu.dot_dimension_numbers<[1], [0], [0], [1], [0, 0, 1, 1], [], []>} : vector<1x8xf32>, vector<8x128xf32>, vector<1x128xf32> -> vector<1x128xf32>
    %382 = arith.addf %364, %381 : vector<1x128xf32>
    %cst_89 = arith.constant dense<0.000000e+00> : vector<1x128xf32>
    %383 = tpu.matmul %382, %6, %cst_89 {dimension_numbers = #tpu.dot_dimension_numbers<[1], [0], [0], [1], [0, 0, 1, 1], [], []>} : vector<1x128xf32>, vector<128x128xf32>, vector<1x128xf32> -> vector<1x128xf32>
    %384 = arith.addf %383, %7 : vector<1x128xf32>
    %385 = arith.index_cast %c1_i32_78 : i32 to index
    %c0_90 = arith.constant 0 : index
    %386 = vector.load %arg12[%385, %c0_90] : memref<8x128xf32, #tpu.memory_space<vmem>>, vector<1x128xf32>
    tpu.vector_store %arg12[%385, %c0_90], %384 {strides = array<i32>} : memref<8x128xf32, #tpu.memory_space<vmem>>, vector<1x128xf32>,
    %cst_91 = arith.constant -1.000000e+30 : f32
    %387 = vector.broadcast %cst_91 : f32 to vector<1x128xf32>
    %388 = arith.select %10, %384, %387 : vector<1x128xi1>, vector<1x128xf32>
    %cst_92 = arith.constant dense<0xFF800000> : vector<1xf32>
    %389 = vector.multi_reduction <maximumf>, %388, %cst_92 [1] : vector<1x128xf32> to vector<1xf32>
    %390 = vector.shape_cast %389 : vector<1xf32> to vector<1x1xf32>
    %391 = vector.broadcast %390 : vector<1x1xf32> to vector<1x128xf32>
    %392 = arith.cmpf oge, %388, %391 : vector<1x128xf32>
    %c128_i32 = arith.constant 128 : i32
    %393 = vector.broadcast %c128_i32 : i32 to vector<1x128xi32>
    %394 = arith.select %392, %8, %393 : vector<1x128xi1>, vector<1x128xi32>
    %cst_93 = arith.constant dense<2147483647> : vector<1xi32>
    %395 = vector.multi_reduction <minsi>, %394, %cst_93 [1] : vector<1x128xi32> to vector<1xi32>
    %396 = vector.shape_cast %395 : vector<1xi32> to vector<1x1xi32>
    %397 = vector.broadcast %396 : vector<1x1xi32> to vector<1x128xi32>
    %398 = arith.cmpi eq, %8, %397 : vector<1x128xi32>
    %399 = arith.extui %398 : vector<1x128xi1> to vector<1x128xi32>
    %400 = arith.sitofp %399 : vector<1x128xi32> to vector<1x128xf32>
    %401 = arith.index_cast %c1_i32_78 : i32 to index
    %402 = memref.load %arg2[%401] : memref<8xi32, #tpu.memory_space<smem>>
    %403 = vector.broadcast %402 : i32 to vector<1x128xi32>
    %404 = arith.cmpi eq, %8, %403 : vector<1x128xi32>
    %405 = arith.extui %404 : vector<1x128xi1> to vector<1x128xi32>
    %406 = arith.sitofp %405 : vector<1x128xi32> to vector<1x128xf32>
    %407 = arith.index_cast %c1_i32_78 : i32 to index
    %408 = memref.load %arg3[%407] : memref<8xi32, #tpu.memory_space<smem>>
    %c0_i32_94 = arith.constant 0 : i32
    %409 = arith.cmpi sgt, %408, %c0_i32_94 : i32
    %410 = arith.select %409, %406, %400 : vector<1x128xf32>
    %cst_95 = arith.constant dense<0.000000e+00> : vector<1x512xf32>
    %411 = tpu.matmul %410, %5, %cst_95 {dimension_numbers = #tpu.dot_dimension_numbers<[1], [0], [0], [1], [0, 0, 1, 1], [], []>} : vector<1x128xf32>, vector<128x512xf32>, vector<1x512xf32> -> vector<1x512xf32>
    %c2_i32_96 = arith.constant 2 : i32
    %cst_97 = arith.constant dense<0.000000e+00> : vector<1x512xf32>
    %412 = tpu.matmul %364, %3, %cst_97 {dimension_numbers = #tpu.dot_dimension_numbers<[1], [0], [0], [1], [0, 0, 1, 1], [], []>} : vector<1x128xf32>, vector<128x512xf32>, vector<1x512xf32> -> vector<1x512xf32>
    %413 = arith.addf %411, %412 : vector<1x512xf32>
    %414 = arith.addf %413, %4 : vector<1x512xf32>
    %415 = vector.extract_strided_slice %414 {offsets = [0, 0], sizes = [1, 128], strides = [1, 1]} : vector<1x512xf32> to vector<1x128xf32>
    %416 = arith.negf %415 : vector<1x128xf32>
    %417 = math.exp %416 : vector<1x128xf32>
    %cst_98 = arith.constant 1.000000e+00 : f32
    %418 = vector.broadcast %cst_98 : f32 to vector<1x128xf32>
    %419 = arith.addf %418, %417 : vector<1x128xf32>
    %420 = arith.divf %418, %419 : vector<1x128xf32>
    %421 = vector.extract_strided_slice %414 {offsets = [0, 128], sizes = [1, 128], strides = [1, 1]} : vector<1x512xf32> to vector<1x128xf32>
    %422 = arith.negf %421 : vector<1x128xf32>
    %423 = math.exp %422 : vector<1x128xf32>
    %cst_99 = arith.constant 1.000000e+00 : f32
    %424 = vector.broadcast %cst_99 : f32 to vector<1x128xf32>
    %425 = arith.addf %424, %423 : vector<1x128xf32>
    %426 = arith.divf %424, %425 : vector<1x128xf32>
    %427 = vector.extract_strided_slice %414 {offsets = [0, 256], sizes = [1, 128], strides = [1, 1]} : vector<1x512xf32> to vector<1x128xf32>
    %428 = math.tanh %427 : vector<1x128xf32>
    %429 = vector.extract_strided_slice %414 {offsets = [0, 384], sizes = [1, 128], strides = [1, 1]} : vector<1x512xf32> to vector<1x128xf32>
    %430 = arith.negf %429 : vector<1x128xf32>
    %431 = math.exp %430 : vector<1x128xf32>
    %cst_100 = arith.constant 1.000000e+00 : f32
    %432 = vector.broadcast %cst_100 : f32 to vector<1x128xf32>
    %433 = arith.addf %432, %431 : vector<1x128xf32>
    %434 = arith.divf %432, %433 : vector<1x128xf32>
    %435 = arith.mulf %426, %362 : vector<1x128xf32>
    %436 = arith.mulf %420, %428 : vector<1x128xf32>
    %437 = arith.addf %435, %436 : vector<1x128xf32>
    %438 = math.tanh %437 : vector<1x128xf32>
    %439 = arith.mulf %434, %438 : vector<1x128xf32>
    %cst_101 = arith.constant dense<0.000000e+00> : vector<1x8xf32>
    %440 = tpu.matmul %439, %326, %cst_101 {dimension_numbers = #tpu.dot_dimension_numbers<[1], [0], [0], [1], [0, 0, 1, 1], [], []>} : vector<1x128xf32>, vector<128x8xf32>, vector<1x8xf32> -> vector<1x8xf32>
    %cst_102 = arith.constant -1.000000e+30 : f32
    %441 = vector.broadcast %cst_102 : f32 to vector<1x8xf32>
    %442 = arith.select %329, %440, %441 : vector<1x8xi1>, vector<1x8xf32>
    %cst_103 = arith.constant dense<0xFF800000> : vector<1xf32>
    %443 = vector.multi_reduction <maximumf>, %442, %cst_103 [1] : vector<1x8xf32> to vector<1xf32>
    %444 = vector.shape_cast %443 : vector<1xf32> to vector<1x1xf32>
    %445 = vector.broadcast %444 : vector<1x1xf32> to vector<1x8xf32>
    %446 = arith.subf %442, %445 : vector<1x8xf32>
    %447 = math.exp %446 : vector<1x8xf32>
    %448 = arith.mulf %447, %331 : vector<1x8xf32>
    %cst_104 = arith.constant dense<0.000000e+00> : vector<1xf32>
    %449 = vector.multi_reduction <add>, %448, %cst_104 [1] : vector<1x8xf32> to vector<1xf32>
    %450 = vector.shape_cast %449 : vector<1xf32> to vector<1x1xf32>
    %cst_105 = arith.constant 1.000000e-30 : f32
    %451 = vector.broadcast %cst_105 : f32 to vector<1x1xf32>
    %452 = arith.maximumf %450, %451 : vector<1x1xf32>
    %453 = tpu.reciprocal %452 {approx = true} : vector<1x1xf32> -> vector<1x1xf32>
    %454 = vector.broadcast %453 : vector<1x1xf32> to vector<1x8xf32>
    %455 = arith.mulf %448, %454 : vector<1x8xf32>
    %cst_106 = arith.constant dense<0.000000e+00> : vector<1x128xf32>
    %456 = tpu.matmul %455, %325, %cst_106 {dimension_numbers = #tpu.dot_dimension_numbers<[1], [0], [0], [1], [0, 0, 1, 1], [], []>} : vector<1x8xf32>, vector<8x128xf32>, vector<1x128xf32> -> vector<1x128xf32>
    %457 = arith.addf %439, %456 : vector<1x128xf32>
    %cst_107 = arith.constant dense<0.000000e+00> : vector<1x128xf32>
    %458 = tpu.matmul %457, %6, %cst_107 {dimension_numbers = #tpu.dot_dimension_numbers<[1], [0], [0], [1], [0, 0, 1, 1], [], []>} : vector<1x128xf32>, vector<128x128xf32>, vector<1x128xf32> -> vector<1x128xf32>
    %459 = arith.addf %458, %7 : vector<1x128xf32>
    %460 = arith.index_cast %c2_i32_96 : i32 to index
    %c0_108 = arith.constant 0 : index
    %461 = vector.load %arg12[%460, %c0_108] : memref<8x128xf32, #tpu.memory_space<vmem>>, vector<1x128xf32>
    tpu.vector_store %arg12[%460, %c0_108], %459 {strides = array<i32>} : memref<8x128xf32, #tpu.memory_space<vmem>>, vector<1x128xf32>,
    %cst_109 = arith.constant -1.000000e+30 : f32
    %462 = vector.broadcast %cst_109 : f32 to vector<1x128xf32>
    %463 = arith.select %10, %459, %462 : vector<1x128xi1>, vector<1x128xf32>
    %cst_110 = arith.constant dense<0xFF800000> : vector<1xf32>
    %464 = vector.multi_reduction <maximumf>, %463, %cst_110 [1] : vector<1x128xf32> to vector<1xf32>
    %465 = vector.shape_cast %464 : vector<1xf32> to vector<1x1xf32>
    %466 = vector.broadcast %465 : vector<1x1xf32> to vector<1x128xf32>
    %467 = arith.cmpf oge, %463, %466 : vector<1x128xf32>
    %c128_i32_111 = arith.constant 128 : i32
    %468 = vector.broadcast %c128_i32_111 : i32 to vector<1x128xi32>
    %469 = arith.select %467, %8, %468 : vector<1x128xi1>, vector<1x128xi32>
    %cst_112 = arith.constant dense<2147483647> : vector<1xi32>
    %470 = vector.multi_reduction <minsi>, %469, %cst_112 [1] : vector<1x128xi32> to vector<1xi32>
    %471 = vector.shape_cast %470 : vector<1xi32> to vector<1x1xi32>
    %472 = vector.broadcast %471 : vector<1x1xi32> to vector<1x128xi32>
    %473 = arith.cmpi eq, %8, %472 : vector<1x128xi32>
    %474 = arith.extui %473 : vector<1x128xi1> to vector<1x128xi32>
    %475 = arith.sitofp %474 : vector<1x128xi32> to vector<1x128xf32>
    %476 = arith.index_cast %c2_i32_96 : i32 to index
    %477 = memref.load %arg2[%476] : memref<8xi32, #tpu.memory_space<smem>>
    %478 = vector.broadcast %477 : i32 to vector<1x128xi32>
    %479 = arith.cmpi eq, %8, %478 : vector<1x128xi32>
    %480 = arith.extui %479 : vector<1x128xi1> to vector<1x128xi32>
    %481 = arith.sitofp %480 : vector<1x128xi32> to vector<1x128xf32>
    %482 = arith.index_cast %c2_i32_96 : i32 to index
    %483 = memref.load %arg3[%482] : memref<8xi32, #tpu.memory_space<smem>>
    %c0_i32_113 = arith.constant 0 : i32
    %484 = arith.cmpi sgt, %483, %c0_i32_113 : i32
    %485 = arith.select %484, %481, %475 : vector<1x128xf32>
    %cst_114 = arith.constant dense<0.000000e+00> : vector<1x512xf32>
    %486 = tpu.matmul %485, %5, %cst_114 {dimension_numbers = #tpu.dot_dimension_numbers<[1], [0], [0], [1], [0, 0, 1, 1], [], []>} : vector<1x128xf32>, vector<128x512xf32>, vector<1x512xf32> -> vector<1x512xf32>
    %c3_i32_115 = arith.constant 3 : i32
    %cst_116 = arith.constant dense<0.000000e+00> : vector<1x512xf32>
    %487 = tpu.matmul %439, %3, %cst_116 {dimension_numbers = #tpu.dot_dimension_numbers<[1], [0], [0], [1], [0, 0, 1, 1], [], []>} : vector<1x128xf32>, vector<128x512xf32>, vector<1x512xf32> -> vector<1x512xf32>
    %488 = arith.addf %486, %487 : vector<1x512xf32>
    %489 = arith.addf %488, %4 : vector<1x512xf32>
    %490 = vector.extract_strided_slice %489 {offsets = [0, 0], sizes = [1, 128], strides = [1, 1]} : vector<1x512xf32> to vector<1x128xf32>
    %491 = arith.negf %490 : vector<1x128xf32>
    %492 = math.exp %491 : vector<1x128xf32>
    %cst_117 = arith.constant 1.000000e+00 : f32
    %493 = vector.broadcast %cst_117 : f32 to vector<1x128xf32>
    %494 = arith.addf %493, %492 : vector<1x128xf32>
    %495 = arith.divf %493, %494 : vector<1x128xf32>
    %496 = vector.extract_strided_slice %489 {offsets = [0, 128], sizes = [1, 128], strides = [1, 1]} : vector<1x512xf32> to vector<1x128xf32>
    %497 = arith.negf %496 : vector<1x128xf32>
    %498 = math.exp %497 : vector<1x128xf32>
    %cst_118 = arith.constant 1.000000e+00 : f32
    %499 = vector.broadcast %cst_118 : f32 to vector<1x128xf32>
    %500 = arith.addf %499, %498 : vector<1x128xf32>
    %501 = arith.divf %499, %500 : vector<1x128xf32>
    %502 = vector.extract_strided_slice %489 {offsets = [0, 256], sizes = [1, 128], strides = [1, 1]} : vector<1x512xf32> to vector<1x128xf32>
    %503 = math.tanh %502 : vector<1x128xf32>
    %504 = vector.extract_strided_slice %489 {offsets = [0, 384], sizes = [1, 128], strides = [1, 1]} : vector<1x512xf32> to vector<1x128xf32>
    %505 = arith.negf %504 : vector<1x128xf32>
    %506 = math.exp %505 : vector<1x128xf32>
    %cst_119 = arith.constant 1.000000e+00 : f32
    %507 = vector.broadcast %cst_119 : f32 to vector<1x128xf32>
    %508 = arith.addf %507, %506 : vector<1x128xf32>
    %509 = arith.divf %507, %508 : vector<1x128xf32>
    %510 = arith.mulf %501, %437 : vector<1x128xf32>
    %511 = arith.mulf %495, %503 : vector<1x128xf32>
    %512 = arith.addf %510, %511 : vector<1x128xf32>
    %513 = math.tanh %512 : vector<1x128xf32>
    %514 = arith.mulf %509, %513 : vector<1x128xf32>
    %cst_120 = arith.constant dense<0.000000e+00> : vector<1x8xf32>
    %515 = tpu.matmul %514, %326, %cst_120 {dimension_numbers = #tpu.dot_dimension_numbers<[1], [0], [0], [1], [0, 0, 1, 1], [], []>} : vector<1x128xf32>, vector<128x8xf32>, vector<1x8xf32> -> vector<1x8xf32>
    %cst_121 = arith.constant -1.000000e+30 : f32
    %516 = vector.broadcast %cst_121 : f32 to vector<1x8xf32>
    %517 = arith.select %329, %515, %516 : vector<1x8xi1>, vector<1x8xf32>
    %cst_122 = arith.constant dense<0xFF800000> : vector<1xf32>
    %518 = vector.multi_reduction <maximumf>, %517, %cst_122 [1] : vector<1x8xf32> to vector<1xf32>
    %519 = vector.shape_cast %518 : vector<1xf32> to vector<1x1xf32>
    %520 = vector.broadcast %519 : vector<1x1xf32> to vector<1x8xf32>
    %521 = arith.subf %517, %520 : vector<1x8xf32>
    %522 = math.exp %521 : vector<1x8xf32>
    %523 = arith.mulf %522, %331 : vector<1x8xf32>
    %cst_123 = arith.constant dense<0.000000e+00> : vector<1xf32>
    %524 = vector.multi_reduction <add>, %523, %cst_123 [1] : vector<1x8xf32> to vector<1xf32>
    %525 = vector.shape_cast %524 : vector<1xf32> to vector<1x1xf32>
    %cst_124 = arith.constant 1.000000e-30 : f32
    %526 = vector.broadcast %cst_124 : f32 to vector<1x1xf32>
    %527 = arith.maximumf %525, %526 : vector<1x1xf32>
    %528 = tpu.reciprocal %527 {approx = true} : vector<1x1xf32> -> vector<1x1xf32>
    %529 = vector.broadcast %528 : vector<1x1xf32> to vector<1x8xf32>
    %530 = arith.mulf %523, %529 : vector<1x8xf32>
    %cst_125 = arith.constant dense<0.000000e+00> : vector<1x128xf32>
    %531 = tpu.matmul %530, %325, %cst_125 {dimension_numbers = #tpu.dot_dimension_numbers<[1], [0], [0], [1], [0, 0, 1, 1], [], []>} : vector<1x8xf32>, vector<8x128xf32>, vector<1x128xf32> -> vector<1x128xf32>
    %532 = arith.addf %514, %531 : vector<1x128xf32>
    %cst_126 = arith.constant dense<0.000000e+00> : vector<1x128xf32>
    %533 = tpu.matmul %532, %6, %cst_126 {dimension_numbers = #tpu.dot_dimension_numbers<[1], [0], [0], [1], [0, 0, 1, 1], [], []>} : vector<1x128xf32>, vector<128x128xf32>, vector<1x128xf32> -> vector<1x128xf32>
    %534 = arith.addf %533, %7 : vector<1x128xf32>
    %535 = arith.index_cast %c3_i32_115 : i32 to index
    %c0_127 = arith.constant 0 : index
    %536 = vector.load %arg12[%535, %c0_127] : memref<8x128xf32, #tpu.memory_space<vmem>>, vector<1x128xf32>
    tpu.vector_store %arg12[%535, %c0_127], %534 {strides = array<i32>} : memref<8x128xf32, #tpu.memory_space<vmem>>, vector<1x128xf32>,
    %cst_128 = arith.constant -1.000000e+30 : f32
    %537 = vector.broadcast %cst_128 : f32 to vector<1x128xf32>
    %538 = arith.select %10, %534, %537 : vector<1x128xi1>, vector<1x128xf32>
    %cst_129 = arith.constant dense<0xFF800000> : vector<1xf32>
    %539 = vector.multi_reduction <maximumf>, %538, %cst_129 [1] : vector<1x128xf32> to vector<1xf32>
    %540 = vector.shape_cast %539 : vector<1xf32> to vector<1x1xf32>
    %541 = vector.broadcast %540 : vector<1x1xf32> to vector<1x128xf32>
    %542 = arith.cmpf oge, %538, %541 : vector<1x128xf32>
    %c128_i32_130 = arith.constant 128 : i32
    %543 = vector.broadcast %c128_i32_130 : i32 to vector<1x128xi32>
    %544 = arith.select %542, %8, %543 : vector<1x128xi1>, vector<1x128xi32>
    %cst_131 = arith.constant dense<2147483647> : vector<1xi32>
    %545 = vector.multi_reduction <minsi>, %544, %cst_131 [1] : vector<1x128xi32> to vector<1xi32>
    %546 = vector.shape_cast %545 : vector<1xi32> to vector<1x1xi32>
    %547 = vector.broadcast %546 : vector<1x1xi32> to vector<1x128xi32>
    %548 = arith.cmpi eq, %8, %547 : vector<1x128xi32>
    %549 = arith.extui %548 : vector<1x128xi1> to vector<1x128xi32>
    %550 = arith.sitofp %549 : vector<1x128xi32> to vector<1x128xf32>
    %551 = arith.index_cast %c3_i32_115 : i32 to index
    %552 = memref.load %arg2[%551] : memref<8xi32, #tpu.memory_space<smem>>
    %553 = vector.broadcast %552 : i32 to vector<1x128xi32>
    %554 = arith.cmpi eq, %8, %553 : vector<1x128xi32>
    %555 = arith.extui %554 : vector<1x128xi1> to vector<1x128xi32>
    %556 = arith.sitofp %555 : vector<1x128xi32> to vector<1x128xf32>
    %557 = arith.index_cast %c3_i32_115 : i32 to index
    %558 = memref.load %arg3[%557] : memref<8xi32, #tpu.memory_space<smem>>
    %c0_i32_132 = arith.constant 0 : i32
    %559 = arith.cmpi sgt, %558, %c0_i32_132 : i32
    %560 = arith.select %559, %556, %550 : vector<1x128xf32>
    %cst_133 = arith.constant dense<0.000000e+00> : vector<1x512xf32>
    %561 = tpu.matmul %560, %5, %cst_133 {dimension_numbers = #tpu.dot_dimension_numbers<[1], [0], [0], [1], [0, 0, 1, 1], [], []>} : vector<1x128xf32>, vector<128x512xf32>, vector<1x512xf32> -> vector<1x512xf32>
    %c4_i32_134 = arith.constant 4 : i32
    %cst_135 = arith.constant dense<0.000000e+00> : vector<1x512xf32>
    %562 = tpu.matmul %514, %3, %cst_135 {dimension_numbers = #tpu.dot_dimension_numbers<[1], [0], [0], [1], [0, 0, 1, 1], [], []>} : vector<1x128xf32>, vector<128x512xf32>, vector<1x512xf32> -> vector<1x512xf32>
    %563 = arith.addf %561, %562 : vector<1x512xf32>
    %564 = arith.addf %563, %4 : vector<1x512xf32>
    %565 = vector.extract_strided_slice %564 {offsets = [0, 0], sizes = [1, 128], strides = [1, 1]} : vector<1x512xf32> to vector<1x128xf32>
    %566 = arith.negf %565 : vector<1x128xf32>
    %567 = math.exp %566 : vector<1x128xf32>
    %cst_136 = arith.constant 1.000000e+00 : f32
    %568 = vector.broadcast %cst_136 : f32 to vector<1x128xf32>
    %569 = arith.addf %568, %567 : vector<1x128xf32>
    %570 = arith.divf %568, %569 : vector<1x128xf32>
    %571 = vector.extract_strided_slice %564 {offsets = [0, 128], sizes = [1, 128], strides = [1, 1]} : vector<1x512xf32> to vector<1x128xf32>
    %572 = arith.negf %571 : vector<1x128xf32>
    %573 = math.exp %572 : vector<1x128xf32>
    %cst_137 = arith.constant 1.000000e+00 : f32
    %574 = vector.broadcast %cst_137 : f32 to vector<1x128xf32>
    %575 = arith.addf %574, %573 : vector<1x128xf32>
    %576 = arith.divf %574, %575 : vector<1x128xf32>
    %577 = vector.extract_strided_slice %564 {offsets = [0, 256], sizes = [1, 128], strides = [1, 1]} : vector<1x512xf32> to vector<1x128xf32>
    %578 = math.tanh %577 : vector<1x128xf32>
    %579 = vector.extract_strided_slice %564 {offsets = [0, 384], sizes = [1, 128], strides = [1, 1]} : vector<1x512xf32> to vector<1x128xf32>
    %580 = arith.negf %579 : vector<1x128xf32>
    %581 = math.exp %580 : vector<1x128xf32>
    %cst_138 = arith.constant 1.000000e+00 : f32
    %582 = vector.broadcast %cst_138 : f32 to vector<1x128xf32>
    %583 = arith.addf %582, %581 : vector<1x128xf32>
    %584 = arith.divf %582, %583 : vector<1x128xf32>
    %585 = arith.mulf %576, %512 : vector<1x128xf32>
    %586 = arith.mulf %570, %578 : vector<1x128xf32>
    %587 = arith.addf %585, %586 : vector<1x128xf32>
    %588 = math.tanh %587 : vector<1x128xf32>
    %589 = arith.mulf %584, %588 : vector<1x128xf32>
    %cst_139 = arith.constant dense<0.000000e+00> : vector<1x8xf32>
    %590 = tpu.matmul %589, %326, %cst_139 {dimension_numbers = #tpu.dot_dimension_numbers<[1], [0], [0], [1], [0, 0, 1, 1], [], []>} : vector<1x128xf32>, vector<128x8xf32>, vector<1x8xf32> -> vector<1x8xf32>
    %cst_140 = arith.constant -1.000000e+30 : f32
    %591 = vector.broadcast %cst_140 : f32 to vector<1x8xf32>
    %592 = arith.select %329, %590, %591 : vector<1x8xi1>, vector<1x8xf32>
    %cst_141 = arith.constant dense<0xFF800000> : vector<1xf32>
    %593 = vector.multi_reduction <maximumf>, %592, %cst_141 [1] : vector<1x8xf32> to vector<1xf32>
    %594 = vector.shape_cast %593 : vector<1xf32> to vector<1x1xf32>
    %595 = vector.broadcast %594 : vector<1x1xf32> to vector<1x8xf32>
    %596 = arith.subf %592, %595 : vector<1x8xf32>
    %597 = math.exp %596 : vector<1x8xf32>
    %598 = arith.mulf %597, %331 : vector<1x8xf32>
    %cst_142 = arith.constant dense<0.000000e+00> : vector<1xf32>
    %599 = vector.multi_reduction <add>, %598, %cst_142 [1] : vector<1x8xf32> to vector<1xf32>
    %600 = vector.shape_cast %599 : vector<1xf32> to vector<1x1xf32>
    %cst_143 = arith.constant 1.000000e-30 : f32
    %601 = vector.broadcast %cst_143 : f32 to vector<1x1xf32>
    %602 = arith.maximumf %600, %601 : vector<1x1xf32>
    %603 = tpu.reciprocal %602 {approx = true} : vector<1x1xf32> -> vector<1x1xf32>
    %604 = vector.broadcast %603 : vector<1x1xf32> to vector<1x8xf32>
    %605 = arith.mulf %598, %604 : vector<1x8xf32>
    %cst_144 = arith.constant dense<0.000000e+00> : vector<1x128xf32>
    %606 = tpu.matmul %605, %325, %cst_144 {dimension_numbers = #tpu.dot_dimension_numbers<[1], [0], [0], [1], [0, 0, 1, 1], [], []>} : vector<1x8xf32>, vector<8x128xf32>, vector<1x128xf32> -> vector<1x128xf32>
    %607 = arith.addf %589, %606 : vector<1x128xf32>
    %cst_145 = arith.constant dense<0.000000e+00> : vector<1x128xf32>
    %608 = tpu.matmul %607, %6, %cst_145 {dimension_numbers = #tpu.dot_dimension_numbers<[1], [0], [0], [1], [0, 0, 1, 1], [], []>} : vector<1x128xf32>, vector<128x128xf32>, vector<1x128xf32> -> vector<1x128xf32>
    %609 = arith.addf %608, %7 : vector<1x128xf32>
    %610 = arith.index_cast %c4_i32_134 : i32 to index
    %c0_146 = arith.constant 0 : index
    %611 = vector.load %arg12[%610, %c0_146] : memref<8x128xf32, #tpu.memory_space<vmem>>, vector<1x128xf32>
    tpu.vector_store %arg12[%610, %c0_146], %609 {strides = array<i32>} : memref<8x128xf32, #tpu.memory_space<vmem>>, vector<1x128xf32>,
    %cst_147 = arith.constant -1.000000e+30 : f32
    %612 = vector.broadcast %cst_147 : f32 to vector<1x128xf32>
    %613 = arith.select %10, %609, %612 : vector<1x128xi1>, vector<1x128xf32>
    %cst_148 = arith.constant dense<0xFF800000> : vector<1xf32>
    %614 = vector.multi_reduction <maximumf>, %613, %cst_148 [1] : vector<1x128xf32> to vector<1xf32>
    %615 = vector.shape_cast %614 : vector<1xf32> to vector<1x1xf32>
    %616 = vector.broadcast %615 : vector<1x1xf32> to vector<1x128xf32>
    %617 = arith.cmpf oge, %613, %616 : vector<1x128xf32>
    %c128_i32_149 = arith.constant 128 : i32
    %618 = vector.broadcast %c128_i32_149 : i32 to vector<1x128xi32>
    %619 = arith.select %617, %8, %618 : vector<1x128xi1>, vector<1x128xi32>
    %cst_150 = arith.constant dense<2147483647> : vector<1xi32>
    %620 = vector.multi_reduction <minsi>, %619, %cst_150 [1] : vector<1x128xi32> to vector<1xi32>
    %621 = vector.shape_cast %620 : vector<1xi32> to vector<1x1xi32>
    %622 = vector.broadcast %621 : vector<1x1xi32> to vector<1x128xi32>
    %623 = arith.cmpi eq, %8, %622 : vector<1x128xi32>
    %624 = arith.extui %623 : vector<1x128xi1> to vector<1x128xi32>
    %625 = arith.sitofp %624 : vector<1x128xi32> to vector<1x128xf32>
    %626 = arith.index_cast %c4_i32_134 : i32 to index
    %627 = memref.load %arg2[%626] : memref<8xi32, #tpu.memory_space<smem>>
    %628 = vector.broadcast %627 : i32 to vector<1x128xi32>
    %629 = arith.cmpi eq, %8, %628 : vector<1x128xi32>
    %630 = arith.extui %629 : vector<1x128xi1> to vector<1x128xi32>
    %631 = arith.sitofp %630 : vector<1x128xi32> to vector<1x128xf32>
    %632 = arith.index_cast %c4_i32_134 : i32 to index
    %633 = memref.load %arg3[%632] : memref<8xi32, #tpu.memory_space<smem>>
    %c0_i32_151 = arith.constant 0 : i32
    %634 = arith.cmpi sgt, %633, %c0_i32_151 : i32
    %635 = arith.select %634, %631, %625 : vector<1x128xf32>
    %cst_152 = arith.constant dense<0.000000e+00> : vector<1x512xf32>
    %636 = tpu.matmul %635, %5, %cst_152 {dimension_numbers = #tpu.dot_dimension_numbers<[1], [0], [0], [1], [0, 0, 1, 1], [], []>} : vector<1x128xf32>, vector<128x512xf32>, vector<1x512xf32> -> vector<1x512xf32>
    %c5_i32_153 = arith.constant 5 : i32
    %cst_154 = arith.constant dense<0.000000e+00> : vector<1x512xf32>
    %637 = tpu.matmul %589, %3, %cst_154 {dimension_numbers = #tpu.dot_dimension_numbers<[1], [0], [0], [1], [0, 0, 1, 1], [], []>} : vector<1x128xf32>, vector<128x512xf32>, vector<1x512xf32> -> vector<1x512xf32>
    %638 = arith.addf %636, %637 : vector<1x512xf32>
    %639 = arith.addf %638, %4 : vector<1x512xf32>
    %640 = vector.extract_strided_slice %639 {offsets = [0, 0], sizes = [1, 128], strides = [1, 1]} : vector<1x512xf32> to vector<1x128xf32>
    %641 = arith.negf %640 : vector<1x128xf32>
    %642 = math.exp %641 : vector<1x128xf32>
    %cst_155 = arith.constant 1.000000e+00 : f32
    %643 = vector.broadcast %cst_155 : f32 to vector<1x128xf32>
    %644 = arith.addf %643, %642 : vector<1x128xf32>
    %645 = arith.divf %643, %644 : vector<1x128xf32>
    %646 = vector.extract_strided_slice %639 {offsets = [0, 128], sizes = [1, 128], strides = [1, 1]} : vector<1x512xf32> to vector<1x128xf32>
    %647 = arith.negf %646 : vector<1x128xf32>
    %648 = math.exp %647 : vector<1x128xf32>
    %cst_156 = arith.constant 1.000000e+00 : f32
    %649 = vector.broadcast %cst_156 : f32 to vector<1x128xf32>
    %650 = arith.addf %649, %648 : vector<1x128xf32>
    %651 = arith.divf %649, %650 : vector<1x128xf32>
    %652 = vector.extract_strided_slice %639 {offsets = [0, 256], sizes = [1, 128], strides = [1, 1]} : vector<1x512xf32> to vector<1x128xf32>
    %653 = math.tanh %652 : vector<1x128xf32>
    %654 = vector.extract_strided_slice %639 {offsets = [0, 384], sizes = [1, 128], strides = [1, 1]} : vector<1x512xf32> to vector<1x128xf32>
    %655 = arith.negf %654 : vector<1x128xf32>
    %656 = math.exp %655 : vector<1x128xf32>
    %cst_157 = arith.constant 1.000000e+00 : f32
    %657 = vector.broadcast %cst_157 : f32 to vector<1x128xf32>
    %658 = arith.addf %657, %656 : vector<1x128xf32>
    %659 = arith.divf %657, %658 : vector<1x128xf32>
    %660 = arith.mulf %651, %587 : vector<1x128xf32>
    %661 = arith.mulf %645, %653 : vector<1x128xf32>
    %662 = arith.addf %660, %661 : vector<1x128xf32>
    %663 = math.tanh %662 : vector<1x128xf32>
    %664 = arith.mulf %659, %663 : vector<1x128xf32>
    %cst_158 = arith.constant dense<0.000000e+00> : vector<1x8xf32>
    %665 = tpu.matmul %664, %326, %cst_158 {dimension_numbers = #tpu.dot_dimension_numbers<[1], [0], [0], [1], [0, 0, 1, 1], [], []>} : vector<1x128xf32>, vector<128x8xf32>, vector<1x8xf32> -> vector<1x8xf32>
    %cst_159 = arith.constant -1.000000e+30 : f32
    %666 = vector.broadcast %cst_159 : f32 to vector<1x8xf32>
    %667 = arith.select %329, %665, %666 : vector<1x8xi1>, vector<1x8xf32>
    %cst_160 = arith.constant dense<0xFF800000> : vector<1xf32>
    %668 = vector.multi_reduction <maximumf>, %667, %cst_160 [1] : vector<1x8xf32> to vector<1xf32>
    %669 = vector.shape_cast %668 : vector<1xf32> to vector<1x1xf32>
    %670 = vector.broadcast %669 : vector<1x1xf32> to vector<1x8xf32>
    %671 = arith.subf %667, %670 : vector<1x8xf32>
    %672 = math.exp %671 : vector<1x8xf32>
    %673 = arith.mulf %672, %331 : vector<1x8xf32>
    %cst_161 = arith.constant dense<0.000000e+00> : vector<1xf32>
    %674 = vector.multi_reduction <add>, %673, %cst_161 [1] : vector<1x8xf32> to vector<1xf32>
    %675 = vector.shape_cast %674 : vector<1xf32> to vector<1x1xf32>
    %cst_162 = arith.constant 1.000000e-30 : f32
    %676 = vector.broadcast %cst_162 : f32 to vector<1x1xf32>
    %677 = arith.maximumf %675, %676 : vector<1x1xf32>
    %678 = tpu.reciprocal %677 {approx = true} : vector<1x1xf32> -> vector<1x1xf32>
    %679 = vector.broadcast %678 : vector<1x1xf32> to vector<1x8xf32>
    %680 = arith.mulf %673, %679 : vector<1x8xf32>
    %cst_163 = arith.constant dense<0.000000e+00> : vector<1x128xf32>
    %681 = tpu.matmul %680, %325, %cst_163 {dimension_numbers = #tpu.dot_dimension_numbers<[1], [0], [0], [1], [0, 0, 1, 1], [], []>} : vector<1x8xf32>, vector<8x128xf32>, vector<1x128xf32> -> vector<1x128xf32>
    %682 = arith.addf %664, %681 : vector<1x128xf32>
    %cst_164 = arith.constant dense<0.000000e+00> : vector<1x128xf32>
    %683 = tpu.matmul %682, %6, %cst_164 {dimension_numbers = #tpu.dot_dimension_numbers<[1], [0], [0], [1], [0, 0, 1, 1], [], []>} : vector<1x128xf32>, vector<128x128xf32>, vector<1x128xf32> -> vector<1x128xf32>
    %684 = arith.addf %683, %7 : vector<1x128xf32>
    %685 = arith.index_cast %c5_i32_153 : i32 to index
    %c0_165 = arith.constant 0 : index
    %686 = vector.load %arg12[%685, %c0_165] : memref<8x128xf32, #tpu.memory_space<vmem>>, vector<1x128xf32>
    tpu.vector_store %arg12[%685, %c0_165], %684 {strides = array<i32>} : memref<8x128xf32, #tpu.memory_space<vmem>>, vector<1x128xf32>,
    %cst_166 = arith.constant -1.000000e+30 : f32
    %687 = vector.broadcast %cst_166 : f32 to vector<1x128xf32>
    %688 = arith.select %10, %684, %687 : vector<1x128xi1>, vector<1x128xf32>
    %cst_167 = arith.constant dense<0xFF800000> : vector<1xf32>
    %689 = vector.multi_reduction <maximumf>, %688, %cst_167 [1] : vector<1x128xf32> to vector<1xf32>
    %690 = vector.shape_cast %689 : vector<1xf32> to vector<1x1xf32>
    %691 = vector.broadcast %690 : vector<1x1xf32> to vector<1x128xf32>
    %692 = arith.cmpf oge, %688, %691 : vector<1x128xf32>
    %c128_i32_168 = arith.constant 128 : i32
    %693 = vector.broadcast %c128_i32_168 : i32 to vector<1x128xi32>
    %694 = arith.select %692, %8, %693 : vector<1x128xi1>, vector<1x128xi32>
    %cst_169 = arith.constant dense<2147483647> : vector<1xi32>
    %695 = vector.multi_reduction <minsi>, %694, %cst_169 [1] : vector<1x128xi32> to vector<1xi32>
    %696 = vector.shape_cast %695 : vector<1xi32> to vector<1x1xi32>
    %697 = vector.broadcast %696 : vector<1x1xi32> to vector<1x128xi32>
    %698 = arith.cmpi eq, %8, %697 : vector<1x128xi32>
    %699 = arith.extui %698 : vector<1x128xi1> to vector<1x128xi32>
    %700 = arith.sitofp %699 : vector<1x128xi32> to vector<1x128xf32>
    %701 = arith.index_cast %c5_i32_153 : i32 to index
    %702 = memref.load %arg2[%701] : memref<8xi32, #tpu.memory_space<smem>>
    %703 = vector.broadcast %702 : i32 to vector<1x128xi32>
    %704 = arith.cmpi eq, %8, %703 : vector<1x128xi32>
    %705 = arith.extui %704 : vector<1x128xi1> to vector<1x128xi32>
    %706 = arith.sitofp %705 : vector<1x128xi32> to vector<1x128xf32>
    %707 = arith.index_cast %c5_i32_153 : i32 to index
    %708 = memref.load %arg3[%707] : memref<8xi32, #tpu.memory_space<smem>>
    %c0_i32_170 = arith.constant 0 : i32
    %709 = arith.cmpi sgt, %708, %c0_i32_170 : i32
    %710 = arith.select %709, %706, %700 : vector<1x128xf32>
    %cst_171 = arith.constant dense<0.000000e+00> : vector<1x512xf32>
    %711 = tpu.matmul %710, %5, %cst_171 {dimension_numbers = #tpu.dot_dimension_numbers<[1], [0], [0], [1], [0, 0, 1, 1], [], []>} : vector<1x128xf32>, vector<128x512xf32>, vector<1x512xf32> -> vector<1x512xf32>
    %c6_i32_172 = arith.constant 6 : i32
    %cst_173 = arith.constant dense<0.000000e+00> : vector<1x512xf32>
    %712 = tpu.matmul %664, %3, %cst_173 {dimension_numbers = #tpu.dot_dimension_numbers<[1], [0], [0], [1], [0, 0, 1, 1], [], []>} : vector<1x128xf32>, vector<128x512xf32>, vector<1x512xf32> -> vector<1x512xf32>
    %713 = arith.addf %711, %712 : vector<1x512xf32>
    %714 = arith.addf %713, %4 : vector<1x512xf32>
    %715 = vector.extract_strided_slice %714 {offsets = [0, 0], sizes = [1, 128], strides = [1, 1]} : vector<1x512xf32> to vector<1x128xf32>
    %716 = arith.negf %715 : vector<1x128xf32>
    %717 = math.exp %716 : vector<1x128xf32>
    %cst_174 = arith.constant 1.000000e+00 : f32
    %718 = vector.broadcast %cst_174 : f32 to vector<1x128xf32>
    %719 = arith.addf %718, %717 : vector<1x128xf32>
    %720 = arith.divf %718, %719 : vector<1x128xf32>
    %721 = vector.extract_strided_slice %714 {offsets = [0, 128], sizes = [1, 128], strides = [1, 1]} : vector<1x512xf32> to vector<1x128xf32>
    %722 = arith.negf %721 : vector<1x128xf32>
    %723 = math.exp %722 : vector<1x128xf32>
    %cst_175 = arith.constant 1.000000e+00 : f32
    %724 = vector.broadcast %cst_175 : f32 to vector<1x128xf32>
    %725 = arith.addf %724, %723 : vector<1x128xf32>
    %726 = arith.divf %724, %725 : vector<1x128xf32>
    %727 = vector.extract_strided_slice %714 {offsets = [0, 256], sizes = [1, 128], strides = [1, 1]} : vector<1x512xf32> to vector<1x128xf32>
    %728 = math.tanh %727 : vector<1x128xf32>
    %729 = vector.extract_strided_slice %714 {offsets = [0, 384], sizes = [1, 128], strides = [1, 1]} : vector<1x512xf32> to vector<1x128xf32>
    %730 = arith.negf %729 : vector<1x128xf32>
    %731 = math.exp %730 : vector<1x128xf32>
    %cst_176 = arith.constant 1.000000e+00 : f32
    %732 = vector.broadcast %cst_176 : f32 to vector<1x128xf32>
    %733 = arith.addf %732, %731 : vector<1x128xf32>
    %734 = arith.divf %732, %733 : vector<1x128xf32>
    %735 = arith.mulf %726, %662 : vector<1x128xf32>
    %736 = arith.mulf %720, %728 : vector<1x128xf32>
    %737 = arith.addf %735, %736 : vector<1x128xf32>
    %738 = math.tanh %737 : vector<1x128xf32>
    %739 = arith.mulf %734, %738 : vector<1x128xf32>
    %cst_177 = arith.constant dense<0.000000e+00> : vector<1x8xf32>
    %740 = tpu.matmul %739, %326, %cst_177 {dimension_numbers = #tpu.dot_dimension_numbers<[1], [0], [0], [1], [0, 0, 1, 1], [], []>} : vector<1x128xf32>, vector<128x8xf32>, vector<1x8xf32> -> vector<1x8xf32>
    %cst_178 = arith.constant -1.000000e+30 : f32
    %741 = vector.broadcast %cst_178 : f32 to vector<1x8xf32>
    %742 = arith.select %329, %740, %741 : vector<1x8xi1>, vector<1x8xf32>
    %cst_179 = arith.constant dense<0xFF800000> : vector<1xf32>
    %743 = vector.multi_reduction <maximumf>, %742, %cst_179 [1] : vector<1x8xf32> to vector<1xf32>
    %744 = vector.shape_cast %743 : vector<1xf32> to vector<1x1xf32>
    %745 = vector.broadcast %744 : vector<1x1xf32> to vector<1x8xf32>
    %746 = arith.subf %742, %745 : vector<1x8xf32>
    %747 = math.exp %746 : vector<1x8xf32>
    %748 = arith.mulf %747, %331 : vector<1x8xf32>
    %cst_180 = arith.constant dense<0.000000e+00> : vector<1xf32>
    %749 = vector.multi_reduction <add>, %748, %cst_180 [1] : vector<1x8xf32> to vector<1xf32>
    %750 = vector.shape_cast %749 : vector<1xf32> to vector<1x1xf32>
    %cst_181 = arith.constant 1.000000e-30 : f32
    %751 = vector.broadcast %cst_181 : f32 to vector<1x1xf32>
    %752 = arith.maximumf %750, %751 : vector<1x1xf32>
    %753 = tpu.reciprocal %752 {approx = true} : vector<1x1xf32> -> vector<1x1xf32>
    %754 = vector.broadcast %753 : vector<1x1xf32> to vector<1x8xf32>
    %755 = arith.mulf %748, %754 : vector<1x8xf32>
    %cst_182 = arith.constant dense<0.000000e+00> : vector<1x128xf32>
    %756 = tpu.matmul %755, %325, %cst_182 {dimension_numbers = #tpu.dot_dimension_numbers<[1], [0], [0], [1], [0, 0, 1, 1], [], []>} : vector<1x8xf32>, vector<8x128xf32>, vector<1x128xf32> -> vector<1x128xf32>
    %757 = arith.addf %739, %756 : vector<1x128xf32>
    %cst_183 = arith.constant dense<0.000000e+00> : vector<1x128xf32>
    %758 = tpu.matmul %757, %6, %cst_183 {dimension_numbers = #tpu.dot_dimension_numbers<[1], [0], [0], [1], [0, 0, 1, 1], [], []>} : vector<1x128xf32>, vector<128x128xf32>, vector<1x128xf32> -> vector<1x128xf32>
    %759 = arith.addf %758, %7 : vector<1x128xf32>
    %760 = arith.index_cast %c6_i32_172 : i32 to index
    %c0_184 = arith.constant 0 : index
    %761 = vector.load %arg12[%760, %c0_184] : memref<8x128xf32, #tpu.memory_space<vmem>>, vector<1x128xf32>
    tpu.vector_store %arg12[%760, %c0_184], %759 {strides = array<i32>} : memref<8x128xf32, #tpu.memory_space<vmem>>, vector<1x128xf32>,
    %cst_185 = arith.constant -1.000000e+30 : f32
    %762 = vector.broadcast %cst_185 : f32 to vector<1x128xf32>
    %763 = arith.select %10, %759, %762 : vector<1x128xi1>, vector<1x128xf32>
    %cst_186 = arith.constant dense<0xFF800000> : vector<1xf32>
    %764 = vector.multi_reduction <maximumf>, %763, %cst_186 [1] : vector<1x128xf32> to vector<1xf32>
    %765 = vector.shape_cast %764 : vector<1xf32> to vector<1x1xf32>
    %766 = vector.broadcast %765 : vector<1x1xf32> to vector<1x128xf32>
    %767 = arith.cmpf oge, %763, %766 : vector<1x128xf32>
    %c128_i32_187 = arith.constant 128 : i32
    %768 = vector.broadcast %c128_i32_187 : i32 to vector<1x128xi32>
    %769 = arith.select %767, %8, %768 : vector<1x128xi1>, vector<1x128xi32>
    %cst_188 = arith.constant dense<2147483647> : vector<1xi32>
    %770 = vector.multi_reduction <minsi>, %769, %cst_188 [1] : vector<1x128xi32> to vector<1xi32>
    %771 = vector.shape_cast %770 : vector<1xi32> to vector<1x1xi32>
    %772 = vector.broadcast %771 : vector<1x1xi32> to vector<1x128xi32>
    %773 = arith.cmpi eq, %8, %772 : vector<1x128xi32>
    %774 = arith.extui %773 : vector<1x128xi1> to vector<1x128xi32>
    %775 = arith.sitofp %774 : vector<1x128xi32> to vector<1x128xf32>
    %776 = arith.index_cast %c6_i32_172 : i32 to index
    %777 = memref.load %arg2[%776] : memref<8xi32, #tpu.memory_space<smem>>
    %778 = vector.broadcast %777 : i32 to vector<1x128xi32>
    %779 = arith.cmpi eq, %8, %778 : vector<1x128xi32>
    %780 = arith.extui %779 : vector<1x128xi1> to vector<1x128xi32>
    %781 = arith.sitofp %780 : vector<1x128xi32> to vector<1x128xf32>
    %782 = arith.index_cast %c6_i32_172 : i32 to index
    %783 = memref.load %arg3[%782] : memref<8xi32, #tpu.memory_space<smem>>
    %c0_i32_189 = arith.constant 0 : i32
    %784 = arith.cmpi sgt, %783, %c0_i32_189 : i32
    %785 = arith.select %784, %781, %775 : vector<1x128xf32>
    %cst_190 = arith.constant dense<0.000000e+00> : vector<1x512xf32>
    %786 = tpu.matmul %785, %5, %cst_190 {dimension_numbers = #tpu.dot_dimension_numbers<[1], [0], [0], [1], [0, 0, 1, 1], [], []>} : vector<1x128xf32>, vector<128x512xf32>, vector<1x512xf32> -> vector<1x512xf32>
    %c7_i32_191 = arith.constant 7 : i32
    %cst_192 = arith.constant dense<0.000000e+00> : vector<1x512xf32>
    %787 = tpu.matmul %739, %3, %cst_192 {dimension_numbers = #tpu.dot_dimension_numbers<[1], [0], [0], [1], [0, 0, 1, 1], [], []>} : vector<1x128xf32>, vector<128x512xf32>, vector<1x512xf32> -> vector<1x512xf32>
    %788 = arith.addf %786, %787 : vector<1x512xf32>
    %789 = arith.addf %788, %4 : vector<1x512xf32>
    %790 = vector.extract_strided_slice %789 {offsets = [0, 0], sizes = [1, 128], strides = [1, 1]} : vector<1x512xf32> to vector<1x128xf32>
    %791 = arith.negf %790 : vector<1x128xf32>
    %792 = math.exp %791 : vector<1x128xf32>
    %cst_193 = arith.constant 1.000000e+00 : f32
    %793 = vector.broadcast %cst_193 : f32 to vector<1x128xf32>
    %794 = arith.addf %793, %792 : vector<1x128xf32>
    %795 = arith.divf %793, %794 : vector<1x128xf32>
    %796 = vector.extract_strided_slice %789 {offsets = [0, 128], sizes = [1, 128], strides = [1, 1]} : vector<1x512xf32> to vector<1x128xf32>
    %797 = arith.negf %796 : vector<1x128xf32>
    %798 = math.exp %797 : vector<1x128xf32>
    %cst_194 = arith.constant 1.000000e+00 : f32
    %799 = vector.broadcast %cst_194 : f32 to vector<1x128xf32>
    %800 = arith.addf %799, %798 : vector<1x128xf32>
    %801 = arith.divf %799, %800 : vector<1x128xf32>
    %802 = vector.extract_strided_slice %789 {offsets = [0, 256], sizes = [1, 128], strides = [1, 1]} : vector<1x512xf32> to vector<1x128xf32>
    %803 = math.tanh %802 : vector<1x128xf32>
    %804 = vector.extract_strided_slice %789 {offsets = [0, 384], sizes = [1, 128], strides = [1, 1]} : vector<1x512xf32> to vector<1x128xf32>
    %805 = arith.negf %804 : vector<1x128xf32>
    %806 = math.exp %805 : vector<1x128xf32>
    %cst_195 = arith.constant 1.000000e+00 : f32
    %807 = vector.broadcast %cst_195 : f32 to vector<1x128xf32>
    %808 = arith.addf %807, %806 : vector<1x128xf32>
    %809 = arith.divf %807, %808 : vector<1x128xf32>
    %810 = arith.mulf %801, %737 : vector<1x128xf32>
    %811 = arith.mulf %795, %803 : vector<1x128xf32>
    %812 = arith.addf %810, %811 : vector<1x128xf32>
    %813 = math.tanh %812 : vector<1x128xf32>
    %814 = arith.mulf %809, %813 : vector<1x128xf32>
    %cst_196 = arith.constant dense<0.000000e+00> : vector<1x8xf32>
    %815 = tpu.matmul %814, %326, %cst_196 {dimension_numbers = #tpu.dot_dimension_numbers<[1], [0], [0], [1], [0, 0, 1, 1], [], []>} : vector<1x128xf32>, vector<128x8xf32>, vector<1x8xf32> -> vector<1x8xf32>
    %cst_197 = arith.constant -1.000000e+30 : f32
    %816 = vector.broadcast %cst_197 : f32 to vector<1x8xf32>
    %817 = arith.select %329, %815, %816 : vector<1x8xi1>, vector<1x8xf32>
    %cst_198 = arith.constant dense<0xFF800000> : vector<1xf32>
    %818 = vector.multi_reduction <maximumf>, %817, %cst_198 [1] : vector<1x8xf32> to vector<1xf32>
    %819 = vector.shape_cast %818 : vector<1xf32> to vector<1x1xf32>
    %820 = vector.broadcast %819 : vector<1x1xf32> to vector<1x8xf32>
    %821 = arith.subf %817, %820 : vector<1x8xf32>
    %822 = math.exp %821 : vector<1x8xf32>
    %823 = arith.mulf %822, %331 : vector<1x8xf32>
    %cst_199 = arith.constant dense<0.000000e+00> : vector<1xf32>
    %824 = vector.multi_reduction <add>, %823, %cst_199 [1] : vector<1x8xf32> to vector<1xf32>
    %825 = vector.shape_cast %824 : vector<1xf32> to vector<1x1xf32>
    %cst_200 = arith.constant 1.000000e-30 : f32
    %826 = vector.broadcast %cst_200 : f32 to vector<1x1xf32>
    %827 = arith.maximumf %825, %826 : vector<1x1xf32>
    %828 = tpu.reciprocal %827 {approx = true} : vector<1x1xf32> -> vector<1x1xf32>
    %829 = vector.broadcast %828 : vector<1x1xf32> to vector<1x8xf32>
    %830 = arith.mulf %823, %829 : vector<1x8xf32>
    %cst_201 = arith.constant dense<0.000000e+00> : vector<1x128xf32>
    %831 = tpu.matmul %830, %325, %cst_201 {dimension_numbers = #tpu.dot_dimension_numbers<[1], [0], [0], [1], [0, 0, 1, 1], [], []>} : vector<1x8xf32>, vector<8x128xf32>, vector<1x128xf32> -> vector<1x128xf32>
    %832 = arith.addf %814, %831 : vector<1x128xf32>
    %cst_202 = arith.constant dense<0.000000e+00> : vector<1x128xf32>
    %833 = tpu.matmul %832, %6, %cst_202 {dimension_numbers = #tpu.dot_dimension_numbers<[1], [0], [0], [1], [0, 0, 1, 1], [], []>} : vector<1x128xf32>, vector<128x128xf32>, vector<1x128xf32> -> vector<1x128xf32>
    %834 = arith.addf %833, %7 : vector<1x128xf32>
    %835 = arith.index_cast %c7_i32_191 : i32 to index
    %c0_203 = arith.constant 0 : index
    %836 = vector.load %arg12[%835, %c0_203] : memref<8x128xf32, #tpu.memory_space<vmem>>, vector<1x128xf32>
    tpu.vector_store %arg12[%835, %c0_203], %834 {strides = array<i32>} : memref<8x128xf32, #tpu.memory_space<vmem>>, vector<1x128xf32>,
    %cst_204 = arith.constant -1.000000e+30 : f32
    %837 = vector.broadcast %cst_204 : f32 to vector<1x128xf32>
    %838 = arith.select %10, %834, %837 : vector<1x128xi1>, vector<1x128xf32>
    %cst_205 = arith.constant dense<0xFF800000> : vector<1xf32>
    %839 = vector.multi_reduction <maximumf>, %838, %cst_205 [1] : vector<1x128xf32> to vector<1xf32>
    %840 = vector.shape_cast %839 : vector<1xf32> to vector<1x1xf32>
    %841 = vector.broadcast %840 : vector<1x1xf32> to vector<1x128xf32>
    %842 = arith.cmpf oge, %838, %841 : vector<1x128xf32>
    %c128_i32_206 = arith.constant 128 : i32
    %843 = vector.broadcast %c128_i32_206 : i32 to vector<1x128xi32>
    %844 = arith.select %842, %8, %843 : vector<1x128xi1>, vector<1x128xi32>
    %cst_207 = arith.constant dense<2147483647> : vector<1xi32>
    %845 = vector.multi_reduction <minsi>, %844, %cst_207 [1] : vector<1x128xi32> to vector<1xi32>
    %846 = vector.shape_cast %845 : vector<1xi32> to vector<1x1xi32>
    %847 = vector.broadcast %846 : vector<1x1xi32> to vector<1x128xi32>
    %848 = arith.cmpi eq, %8, %847 : vector<1x128xi32>
    %849 = arith.extui %848 : vector<1x128xi1> to vector<1x128xi32>
    %850 = arith.sitofp %849 : vector<1x128xi32> to vector<1x128xf32>
    %851 = arith.index_cast %c7_i32_191 : i32 to index
    %852 = memref.load %arg2[%851] : memref<8xi32, #tpu.memory_space<smem>>
    %853 = vector.broadcast %852 : i32 to vector<1x128xi32>
    %854 = arith.cmpi eq, %8, %853 : vector<1x128xi32>
    %855 = arith.extui %854 : vector<1x128xi1> to vector<1x128xi32>
    %856 = arith.sitofp %855 : vector<1x128xi32> to vector<1x128xf32>
    %857 = arith.index_cast %c7_i32_191 : i32 to index
    %858 = memref.load %arg3[%857] : memref<8xi32, #tpu.memory_space<smem>>
    %c0_i32_208 = arith.constant 0 : i32
    %859 = arith.cmpi sgt, %858, %c0_i32_208 : i32
    %860 = arith.select %859, %856, %850 : vector<1x128xf32>
    %cst_209 = arith.constant dense<0.000000e+00> : vector<1x512xf32>
    %861 = tpu.matmul %860, %5, %cst_209 {dimension_numbers = #tpu.dot_dimension_numbers<[1], [0], [0], [1], [0, 0, 1, 1], [], []>} : vector<1x128xf32>, vector<128x512xf32>, vector<1x512xf32> -> vector<1x512xf32>
    %c7_i32_210 = arith.constant 7 : i32
    return
  }
}

</mosaic_0001>

<llo_original>
// kernel: seq2seq_forward.1
$region0: #{seq2seq_forward.1}
  #allocation0 [shape = 'u32[]', space=smem, size = 0x4, offset = 0x4, fixed_abs, tag = 'smem constant byte address 0x4 - core index']
  #allocation1 [shape = 'u32[144,128]{1,0:T(1,128)}', space=vmem, size = 0x12000, scoped, tag = 'internal scratch']
  #allocation2 [shape = 'f32[8,128]{1,0:T(8,128)}', space=vmem, size = 0x1000, scoped, tag = 'scratch operand']
  #allocation3 [shape = 's32[1]{0:T(128)S(6)}', space=smem, size = 0x200, scoped, tag = 'scoped memory for seq2seq_forward.1']
  %s0 = inlined_call_operand.vmem [shape: s32[8], index: 0, kind: input, shape index: {}]
  %s1 = inlined_call_operand.<no memory space> [shape: s32[1], index: 1, kind: input, shape index: {}]
  %s2 = inlined_call_operand.vmem [shape: s32[8], index: 2, kind: input, shape index: {}]
  %s3 = inlined_call_operand.vmem [shape: s32[8], index: 3, kind: input, shape index: {}]
  %s4 = inlined_call_operand.hbm [shape: f32[10,512], index: 4, kind: input, shape index: {}]
  %s5 = inlined_call_operand.hbm [shape: f32[128,512], index: 5, kind: input, shape index: {}]
  %s6 = inlined_call_operand.hbm [shape: f32[128,512], index: 6, kind: input, shape index: {}]
  %s7 = inlined_call_operand.vmem [shape: f32[1,512], index: 7, kind: input, shape index: {}]
  %s8 = inlined_call_operand.hbm [shape: f32[128,512], index: 8, kind: input, shape index: {}]
  %s9 = inlined_call_operand.hbm [shape: f32[1,512], index: 9, kind: input, shape index: {}]
  %s10 = inlined_call_operand.hbm [shape: f32[128,128], index: 10, kind: input, shape index: {}]
  %s11 = inlined_call_operand.hbm [shape: f32[1,128], index: 11, kind: input, shape index: {}]
  %s12 = inlined_call_operand.hbm [shape: f32[8,128], index: 12, kind: output, shape index: {}]
  %s13 = sld [smem:[#allocation0]]
  $region98: #{seq2seq_forward.1} parent=0
    _
  %s15 = ssub.s32 1, %s13
  %s16 = scalar_select 0, %s15, %s13
  %17 = sst [smem:[#allocation3]] %s1
  $region1: #{seq2seq_forward.1} parent=0
    #allocation4 [shape = 'u8[512]{0}', space=smem, size = 0x200, scoped, tag = 'input window, operand 0, single buffered']
    #allocation5 [shape = 's32[1]{0}', space=sflag, size = 0x4, scoped, tag = 'scoped memory for seq2seq_forward.1']
    #allocation6 [shape = 's32[1]{0}', space=sflag, size = 0x4, scoped, tag = 'scoped memory for seq2seq_forward.1']
    #allocation7 [shape = 's32[1]{0}', space=sflag, size = 0x4, scoped, tag = 'scoped memory for seq2seq_forward.1']
    #allocation8 [shape = 'u8[512]{0}', space=smem, size = 0x200, scoped, tag = 'input window, operand 2, single buffered']
    #allocation9 [shape = 's32[1]{0}', space=sflag, size = 0x4, scoped, tag = 'scoped memory for seq2seq_forward.1']
    #allocation10 [shape = 'u8[512]{0}', space=smem, size = 0x200, scoped, tag = 'input window, operand 3, single buffered']
    #allocation11 [shape = 'u8[32768]{0}', space=vmem, size = 0x8000, scoped, tag = 'input window, operand 4, single buffered']
    #allocation12 [shape = 'u8[262144]{0}', space=vmem, size = 0x40000, scoped, tag = 'input window, operand 5, single buffered']
    #allocation13 [shape = 's32[1]{0}', space=sflag, size = 0x4, scoped, tag = 'scoped memory for seq2seq_forward.1']
    #allocation14 [shape = 'u8[262144]{0}', space=vmem, size = 0x40000, scoped, tag = 'input window, operand 6, single buffered']
    #allocation15 [shape = 'u8[262144]{0}', space=vmem, size = 0x40000, scoped, tag = 'input window, operand 8, single buffered']
    #allocation16 [shape = 's32[1]{0}', space=sflag, size = 0x4, scoped, tag = 'scoped memory for seq2seq_forward.1']
    #allocation17 [shape = 'u8[2048]{0}', space=vmem, size = 0x800, scoped, tag = 'input window, operand 9, single buffered']
    #allocation18 [shape = 'u8[65536]{0}', space=vmem, size = 0x10000, scoped, tag = 'input window, operand 10, single buffered']
    #allocation19 [shape = 's32[1]{0}', space=sflag, size = 0x4, scoped, tag = 'scoped memory for seq2seq_forward.1']
    #allocation20 [shape = 'u8[512]{0}', space=vmem, size = 0x400, scoped, tag = 'input window, operand 11, single buffered']
    #allocation21 [shape = 'u8[4096]{0}', space=vmem, size = 0x1000, scoped, tag = 'output window, operand 0, single buffered']
    %18 = vsyncpa [#allocation7], 0
    %19 = vsyncpa [#allocation9], 0
    %20 = vsyncpa [#allocation5], 0
    %21 = vsyncpa [#allocation13], 0
    %22 = vsyncpa [#allocation16], 0
    %23 = vsyncpa [#allocation19], 0
    %24 = vsyncpa [#allocation6], 0
    // Predicated region
    $region2: #{seq2seq_forward.1} parent=1 // pred_check
      _
    $region3: #{seq2seq_forward.1} parent=1 // pred_check_branch
      %26 = sbr.rel (0) target = $region5
    $region4: #{seq2seq_forward.1} parent=1 // pred_region
      %s28 = ssub.s32 16, 16
      %29 = vsyncadd [#allocation7], %s28
      %s31 = sshll.u32 %s0, 4
      %s32 = int_to_ptr.vmem [resolvable:$true] %s31
      %34 = dma.vmem_to_smem %s32, 16, [#allocation4], [#allocation7]
    $region5: #{seq2seq_forward.1} parent=1 // pred_fallthru
      _
    // Predicated region
    $region6: #{seq2seq_forward.1} parent=1 // pred_check
      _
    $region7: #{seq2seq_forward.1} parent=1 // pred_check_branch
      %36 = sbr.rel (0) target = $region9
    $region8: #{seq2seq_forward.1} parent=1 // pred_region
      _
    $region9: #{seq2seq_forward.1} parent=1 // pred_fallthru
      _
    // Predicated region
    $region10: #{seq2seq_forward.1} parent=1 // pred_check
      _
    $region11: #{seq2seq_forward.1} parent=1 // pred_check_branch
      %38 = sbr.rel (0) target = $region13
    $region12: #{seq2seq_forward.1} parent=1 // pred_region
      %s40 = ssub.s32 16, 16
      %41 = vsyncadd [#allocation9], %s40
      %s43 = sshll.u32 %s2, 4
      %s44 = int_to_ptr.vmem [resolvable:$true] %s43
      %46 = dma.vmem_to_smem %s44, 16, [#allocation8], [#allocation9]
    $region13: #{seq2seq_forward.1} parent=1 // pred_fallthru
      _
    // Predicated region
    $region14: #{seq2seq_forward.1} parent=1 // pred_check
      _
    $region15: #{seq2seq_forward.1} parent=1 // pred_check_branch
      %48 = sbr.rel (0) target = $region17
    $region16: #{seq2seq_forward.1} parent=1 // pred_region
      %s50 = ssub.s32 16, 16
      %51 = vsyncadd [#allocation9], %s50
      %s53 = sshll.u32 %s3, 4
      %s54 = int_to_ptr.vmem [resolvable:$true] %s53
      %56 = dma.vmem_to_smem %s54, 16, [#allocation10], [#allocation9]
    $region17: #{seq2seq_forward.1} parent=1 // pred_fallthru
      _
    // Predicated region
    $region18: #{seq2seq_forward.1} parent=1 // pred_check
      _
    $region19: #{seq2seq_forward.1} parent=1 // pred_check_branch
      %58 = sbr.rel (0) target = $region21
    $region20: #{seq2seq_forward.1} parent=1 // pred_region
      %s60 = ssub.s32 1024, 1024
      %61 = vsyncadd [#allocation5], %s60
      %s62 = sshll.u32 [#allocation11], 4
      %s63 = int_to_ptr.vmem [resolvable:$true] %s62
      %68 = dma.hbm_to_vmem [thread:$0]  %s4, 1024, %s63, [#allocation5], 512, 512, 32
    $region21: #{seq2seq_forward.1} parent=1 // pred_fallthru
      _
    // Predicated region
    $region22: #{seq2seq_forward.1} parent=1 // pred_check
      _
    $region23: #{seq2seq_forward.1} parent=1 // pred_check_branch
      %70 = sbr.rel (0) target = $region25
    $region24: #{seq2seq_forward.1} parent=1 // pred_region
      %s72 = ssub.s32 8192, 8192
      %73 = vsyncadd [#allocation13], %s72
      %s74 = sshll.u32 [#allocation12], 4
      %s75 = int_to_ptr.vmem [resolvable:$true] %s74
      %80 = dma.hbm_to_vmem [thread:$0]  %s5, 8192, %s75, [#allocation13], 512, 512, 32
    $region25: #{seq2seq_forward.1} parent=1 // pred_fallthru
      _
    // Predicated region
    $region26: #{seq2seq_forward.1} parent=1 // pred_check
      _
    $region27: #{seq2seq_forward.1} parent=1 // pred_check_branch
      %82 = sbr.rel (0) target = $region29
    $region28: #{seq2seq_forward.1} parent=1 // pred_region
      %s84 = ssub.s32 8192, 8192
      %85 = vsyncadd [#allocation13], %s84
      %s86 = sshll.u32 [#allocation14], 4
      %s87 = int_to_ptr.vmem [resolvable:$true] %s86
      %92 = dma.hbm_to_vmem [thread:$0]  %s6, 8192, %s87, [#allocation13], 512, 512, 32
    $region29: #{seq2seq_forward.1} parent=1 // pred_fallthru
      _
    // Predicated region
    $region30: #{seq2seq_forward.1} parent=1 // pred_check
      _
    $region31: #{seq2seq_forward.1} parent=1 // pred_check_branch
      %94 = sbr.rel (0) target = $region33
    $region32: #{seq2seq_forward.1} parent=1 // pred_region
      _
    $region33: #{seq2seq_forward.1} parent=1 // pred_fallthru
      _
    // Predicated region
    $region34: #{seq2seq_forward.1} parent=1 // pred_check
      _
    $region35: #{seq2seq_forward.1} parent=1 // pred_check_branch
      %96 = sbr.rel (0) target = $region37
    $region36: #{seq2seq_forward.1} parent=1 // pred_region
      %s98 = ssub.s32 8192, 8192
      %99 = vsyncadd [#allocation16], %s98
      %s100 = sshll.u32 [#allocation15], 4
      %s101 = int_to_ptr.vmem [resolvable:$true] %s100
      %106 = dma.hbm_to_vmem [thread:$0]  %s8, 8192, %s101, [#allocation16], 512, 512, 32
    $region37: #{seq2seq_forward.1} parent=1 // pred_fallthru
      _
    // Predicated region
    $region38: #{seq2seq_forward.1} parent=1 // pred_check
      _
    $region39: #{seq2seq_forward.1} parent=1 // pred_check_branch
      %108 = sbr.rel (0) target = $region41
    $region40: #{seq2seq_forward.1} parent=1 // pred_region
      %s110 = ssub.s32 64, 64
      %111 = vsyncadd [#allocation16], %s110
      %s113 = sshll.u32 [#allocation17], 4
      %s114 = int_to_ptr.vmem [resolvable:$true] %s113
      %116 = dma.hbm_to_vmem [thread:$0]  %s9, 64, %s114, [#allocation16]
    $region41: #{seq2seq_forward.1} parent=1 // pred_fallthru
      _
    // Predicated region
    $region42: #{seq2seq_forward.1} parent=1 // pred_check
      _
    $region43: #{seq2seq_forward.1} parent=1 // pred_check_branch
      %118 = sbr.rel (0) target = $region45
    $region44: #{seq2seq_forward.1} parent=1 // pred_region
      %s120 = ssub.s32 2048, 2048
      %121 = vsyncadd [#allocation19], %s120
      %s122 = sshll.u32 [#allocation18], 4
      %s123 = int_to_ptr.vmem [resolvable:$true] %s122
      %128 = dma.hbm_to_vmem [thread:$0]  %s10, 2048, %s123, [#allocation19], 128, 128, 8
    $region45: #{seq2seq_forward.1} parent=1 // pred_fallthru
      _
    // Predicated region
    $region46: #{seq2seq_forward.1} parent=1 // pred_check
      _
    $region47: #{seq2seq_forward.1} parent=1 // pred_check_branch
      %130 = sbr.rel (0) target = $region49
    $region48: #{seq2seq_forward.1} parent=1 // pred_region
      %s132 = ssub.s32 16, 16
      %133 = vsyncadd [#allocation19], %s132
      %s135 = sshll.u32 [#allocation20], 4
      %s136 = int_to_ptr.vmem [resolvable:$true] %s135
      %138 = dma.hbm_to_vmem [thread:$0]  %s11, 16, %s136, [#allocation19]
    $region49: #{seq2seq_forward.1} parent=1 // pred_fallthru
      _
    // Predicated region
    $region50: #{seq2seq_forward.1} parent=1 // pred_check
      _
    $region51: #{seq2seq_forward.1} parent=1 // pred_check_branch
      %140 = sbr.rel (0) target = $region53
    $region52: #{seq2seq_forward.1} parent=1 // pred_region
      %141 = dma.done [#allocation7], 16
    $region53: #{seq2seq_forward.1} parent=1 // pred_fallthru
      _
    // Predicated region
    $region54: #{seq2seq_forward.1} parent=1 // pred_check
      _
    $region55: #{seq2seq_forward.1} parent=1 // pred_check_branch
      %143 = sbr.rel (0) target = $region57
    $region56: #{seq2seq_forward.1} parent=1 // pred_region
      %144 = dma.done [#allocation9], 16
    $region57: #{seq2seq_forward.1} parent=1 // pred_fallthru
      _
    // Predicated region
    $region58: #{seq2seq_forward.1} parent=1 // pred_check
      _
    $region59: #{seq2seq_forward.1} parent=1 // pred_check_branch
      %146 = sbr.rel (0) target = $region61
    $region60: #{seq2seq_forward.1} parent=1 // pred_region
      %147 = dma.done [#allocation9], 16
    $region61: #{seq2seq_forward.1} parent=1 // pred_fallthru
      _
    // Predicated region
    $region62: #{seq2seq_forward.1} parent=1 // pred_check
      _
    $region63: #{seq2seq_forward.1} parent=1 // pred_check_branch
      %149 = sbr.rel (0) target = $region65
    $region64: #{seq2seq_forward.1} parent=1 // pred_region
      %150 = dma.done [#allocation5], 1024
    $region65: #{seq2seq_forward.1} parent=1 // pred_fallthru
      _
    // Predicated region
    $region66: #{seq2seq_forward.1} parent=1 // pred_check
      _
    $region67: #{seq2seq_forward.1} parent=1 // pred_check_branch
      %152 = sbr.rel (0) target = $region69
    $region68: #{seq2seq_forward.1} parent=1 // pred_region
      %153 = dma.done [#allocation13], 8192
    $region69: #{seq2seq_forward.1} parent=1 // pred_fallthru
      _
    // Predicated region
    $region70: #{seq2seq_forward.1} parent=1 // pred_check
      _
    $region71: #{seq2seq_forward.1} parent=1 // pred_check_branch
      %155 = sbr.rel (0) target = $region73
    $region72: #{seq2seq_forward.1} parent=1 // pred_region
      %156 = dma.done [#allocation13], 8192
    $region73: #{seq2seq_forward.1} parent=1 // pred_fallthru
      _
    // Predicated region
    $region74: #{seq2seq_forward.1} parent=1 // pred_check
      _
    $region75: #{seq2seq_forward.1} parent=1 // pred_check_branch
      %158 = sbr.rel (0) target = $region77
    $region76: #{seq2seq_forward.1} parent=1 // pred_region
      %159 = dma.done [#allocation16], 8192
    $region77: #{seq2seq_forward.1} parent=1 // pred_fallthru
      _
    // Predicated region
    $region78: #{seq2seq_forward.1} parent=1 // pred_check
      _
    $region79: #{seq2seq_forward.1} parent=1 // pred_check_branch
      %161 = sbr.rel (0) target = $region81
    $region80: #{seq2seq_forward.1} parent=1 // pred_region
      %162 = dma.done [#allocation16], 64
    $region81: #{seq2seq_forward.1} parent=1 // pred_fallthru
      _
    // Predicated region
    $region82: #{seq2seq_forward.1} parent=1 // pred_check
      _
    $region83: #{seq2seq_forward.1} parent=1 // pred_check_branch
      %164 = sbr.rel (0) target = $region85
    $region84: #{seq2seq_forward.1} parent=1 // pred_region
      %165 = dma.done [#allocation19], 2048
    $region85: #{seq2seq_forward.1} parent=1 // pred_fallthru
      _
    // Predicated region
    $region86: #{seq2seq_forward.1} parent=1 // pred_check
      _
    $region87: #{seq2seq_forward.1} parent=1 // pred_check_branch
      %167 = sbr.rel (0) target = $region89
    $region88: #{seq2seq_forward.1} parent=1 // pred_region
      %168 = dma.done [#allocation19], 16
    $region89: #{seq2seq_forward.1} parent=1 // pred_fallthru
      _
    %169 = sfence
    %s170 = sld [smem:[#allocation3]]
    %v171 = vld [vmem:[#allocation14] sm:$0xff]
    %v172 = vld [vmem:[#allocation14 + $0x8] sm:$0xff]
    %v173 = vld [vmem:[#allocation14 + $0x10] sm:$0xff]
    %v174 = vld [vmem:[#allocation14 + $0x18] sm:$0xff]
    %v175 = vld [vmem:[#allocation14 + $0x20] sm:$0xff]
    %v176 = vld [vmem:[#allocation14 + $0x28] sm:$0xff]
    %v177 = vld [vmem:[#allocation14 + $0x30] sm:$0xff]
    %v178 = vld [vmem:[#allocation14 + $0x38] sm:$0xff]
    %v179 = vld [vmem:[#allocation14 + $0x40] sm:$0xff]
    %v180 = vld [vmem:[#allocation14 + $0x48] sm:$0xff]
    %v181 = vld [vmem:[#allocation14 + $0x50] sm:$0xff]
    %v182 = vld [vmem:[#allocation14 + $0x58] sm:$0xff]
    %v183 = vld [vmem:[#allocation14 + $0x60] sm:$0xff]
    %v184 = vld [vmem:[#allocation14 + $0x68] sm:$0xff]
    %v185 = vld [vmem:[#allocation14 + $0x70] sm:$0xff]
    %v186 = vld [vmem:[#allocation14 + $0x78] sm:$0xff]
    %v187 = vld [vmem:[#allocation14 + $0x80] sm:$0xff]
    %v188 = vld [vmem:[#allocation14 + $0x88] sm:$0xff]
    %v189 = vld [vmem:[#allocation14 + $0x90] sm:$0xff]
    %v190 = vld [vmem:[#allocation14 + $0x98] sm:$0xff]
    %v191 = vld [vmem:[#allocation14 + $0xa0] sm:$0xff]
    %v192 = vld [vmem:[#allocation14 + $0xa8] sm:$0xff]
    %v193 = vld [vmem:[#allocation14 + $0xb0] sm:$0xff]
    %v194 = vld [vmem:[#allocation14 + $0xb8] sm:$0xff]
    %v195 = vld [vmem:[#allocation14 + $0xc0] sm:$0xff]
    %v196 = vld [vmem:[#allocation14 + $0xc8] sm:$0xff]
    %v197 = vld [vmem:[#allocation14 + $0xd0] sm:$0xff]
    %v198 = vld [vmem:[#allocation14 + $0xd8] sm:$0xff]
    %v199 = vld [vmem:[#allocation14 + $0xe0] sm:$0xff]
    %v200 = vld [vmem:[#allocation14 + $0xe8] sm:$0xff]
    %v201 = vld [vmem:[#allocation14 + $0xf0] sm:$0xff]
    %v202 = vld [vmem:[#allocation14 + $0xf8] sm:$0xff]
    %v203 = vld [vmem:[#allocation14 + $0x100] sm:$0xff]
    %v204 = vld [vmem:[#allocation14 + $0x108] sm:$0xff]
    %v205 = vld [vmem:[#allocation14 + $0x110] sm:$0xff]
    %v206 = vld [vmem:[#allocation14 + $0x118] sm:$0xff]
    %v207 = vld [vmem:[#allocation14 + $0x120] sm:$0xff]
    %v208 = vld [vmem:[#allocation14 + $0x128] sm:$0xff]
    %v209 = vld [vmem:[#allocation14 + $0x130] sm:$0xff]
    %v210 = vld [vmem:[#allocation14 + $0x138] sm:$0xff]
    %v211 = vld [vmem:[#allocation14 + $0x140] sm:$0xff]
    %v212 = vld [vmem:[#allocation14 + $0x148] sm:$0xff]
    %v213 = vld [vmem:[#allocation14 + $0x150] sm:$0xff]
    %v214 = vld [vmem:[#allocation14 + $0x158] sm:$0xff]
    %v215 = vld [vmem:[#allocation14 + $0x160] sm:$0xff]
    %v216 = vld [vmem:[#allocation14 + $0x168] sm:$0xff]
    %v217 = vld [vmem:[#allocation14 + $0x170] sm:$0xff]
    %v218 = vld [vmem:[#allocation14 + $0x178] sm:$0xff]
    %v219 = vld [vmem:[#allocation14 + $0x180] sm:$0xff]
    %v220 = vld [vmem:[#allocation14 + $0x188] sm:$0xff]
    %v221 = vld [vmem:[#allocation14 + $0x190] sm:$0xff]
    %v222 = vld [vmem:[#allocation14 + $0x198] sm:$0xff]
    %v223 = vld [vmem:[#allocation14 + $0x1a0] sm:$0xff]
    %v224 = vld [vmem:[#allocation14 + $0x1a8] sm:$0xff]
    %v225 = vld [vmem:[#allocation14 + $0x1b0] sm:$0xff]
    %v226 = vld [vmem:[#allocation14 + $0x1b8] sm:$0xff]
    %v227 = vld [vmem:[#allocation14 + $0x1c0] sm:$0xff]
    %v228 = vld [vmem:[#allocation14 + $0x1c8] sm:$0xff]
    %v229 = vld [vmem:[#allocation14 + $0x1d0] sm:$0xff]
    %v230 = vld [vmem:[#allocation14 + $0x1d8] sm:$0xff]
    %v231 = vld [vmem:[#allocation14 + $0x1e0] sm:$0xff]
    %v232 = vld [vmem:[#allocation14 + $0x1e8] sm:$0xff]
    %v233 = vld [vmem:[#allocation14 + $0x1f0] sm:$0xff]
    %v234 = vld [vmem:[#allocation14 + $0x1f8] sm:$0xff]
    %v235 = vld [vmem:[%s7] sm:$0xf]
    %v236 = vld [vmem:[#allocation15] sm:$0xff]
    %v237 = vld [vmem:[#allocation15 + $0x8] sm:$0xff]
    %v238 = vld [vmem:[#allocation15 + $0x10] sm:$0xff]
    %v239 = vld [vmem:[#allocation15 + $0x18] sm:$0xff]
    %v240 = vld [vmem:[#allocation15 + $0x20] sm:$0xff]
    %v241 = vld [vmem:[#allocation15 + $0x28] sm:$0xff]
    %v242 = vld [vmem:[#allocation15 + $0x30] sm:$0xff]
    %v243 = vld [vmem:[#allocation15 + $0x38] sm:$0xff]
    %v244 = vld [vmem:[#allocation15 + $0x40] sm:$0xff]
    %v245 = vld [vmem:[#allocation15 + $0x48] sm:$0xff]
    %v246 = vld [vmem:[#allocation15 + $0x50] sm:$0xff]
    %v247 = vld [vmem:[#allocation15 + $0x58] sm:$0xff]
    %v248 = vld [vmem:[#allocation15 + $0x60] sm:$0xff]
    %v249 = vld [vmem:[#allocation15 + $0x68] sm:$0xff]
    %v250 = vld [vmem:[#allocation15 + $0x70] sm:$0xff]
    %v251 = vld [vmem:[#allocation15 + $0x78] sm:$0xff]
    %v252 = vld [vmem:[#allocation15 + $0x80] sm:$0xff]
    %v253 = vld [vmem:[#allocation15 + $0x88] sm:$0xff]
    %v254 = vld [vmem:[#allocation15 + $0x90] sm:$0xff]
    %v255 = vld [vmem:[#allocation15 + $0x98] sm:$0xff]
    %v256 = vld [vmem:[#allocation15 + $0xa0] sm:$0xff]
    %v257 = vld [vmem:[#allocation15 + $0xa8] sm:$0xff]
    %v258 = vld [vmem:[#allocation15 + $0xb0] sm:$0xff]
    %v259 = vld [vmem:[#allocation15 + $0xb8] sm:$0xff]
    %v260 = vld [vmem:[#allocation15 + $0xc0] sm:$0xff]
    %v261 = vld [vmem:[#allocation15 + $0xc8] sm:$0xff]
    %v262 = vld [vmem:[#allocation15 + $0xd0] sm:$0xff]
    %v263 = vld [vmem:[#allocation15 + $0xd8] sm:$0xff]
    %v264 = vld [vmem:[#allocation15 + $0xe0] sm:$0xff]
    %v265 = vld [vmem:[#allocation15 + $0xe8] sm:$0xff]
    %v266 = vld [vmem:[#allocation15 + $0xf0] sm:$0xff]
    %v267 = vld [vmem:[#allocation15 + $0xf8] sm:$0xff]
    %v268 = vld [vmem:[#allocation15 + $0x100] sm:$0xff]
    %v269 = vld [vmem:[#allocation15 + $0x108] sm:$0xff]
    %v270 = vld [vmem:[#allocation15 + $0x110] sm:$0xff]
    %v271 = vld [vmem:[#allocation15 + $0x118] sm:$0xff]
    %v272 = vld [vmem:[#allocation15 + $0x120] sm:$0xff]
    %v273 = vld [vmem:[#allocation15 + $0x128] sm:$0xff]
    %v274 = vld [vmem:[#allocation15 + $0x130] sm:$0xff]
    %v275 = vld [vmem:[#allocation15 + $0x138] sm:$0xff]
    %v276 = vld [vmem:[#allocation15 + $0x140] sm:$0xff]
    %v277 = vld [vmem:[#allocation15 + $0x148] sm:$0xff]
    %v278 = vld [vmem:[#allocation15 + $0x150] sm:$0xff]
    %v279 = vld [vmem:[#allocation15 + $0x158] sm:$0xff]
    %v280 = vld [vmem:[#allocation15 + $0x160] sm:$0xff]
    %v281 = vld [vmem:[#allocation15 + $0x168] sm:$0xff]
    %v282 = vld [vmem:[#allocation15 + $0x170] sm:$0xff]
    %v283 = vld [vmem:[#allocation15 + $0x178] sm:$0xff]
    %v284 = vld [vmem:[#allocation15 + $0x180] sm:$0xff]
    %v285 = vld [vmem:[#allocation15 + $0x188] sm:$0xff]
    %v286 = vld [vmem:[#allocation15 + $0x190] sm:$0xff]
    %v287 = vld [vmem:[#allocation15 + $0x198] sm:$0xff]
    %v288 = vld [vmem:[#allocation15 + $0x1a0] sm:$0xff]
    %v289 = vld [vmem:[#allocation15 + $0x1a8] sm:$0xff]
    %v290 = vld [vmem:[#allocation15 + $0x1b0] sm:$0xff]
    %v291 = vld [vmem:[#allocation15 + $0x1b8] sm:$0xff]
    %v292 = vld [vmem:[#allocation15 + $0x1c0] sm:$0xff]
    %v293 = vld [vmem:[#allocation15 + $0x1c8] sm:$0xff]
    %v294 = vld [vmem:[#allocation15 + $0x1d0] sm:$0xff]
    %v295 = vld [vmem:[#allocation15 + $0x1d8] sm:$0xff]
    %v296 = vld [vmem:[#allocation15 + $0x1e0] sm:$0xff]
    %v297 = vld [vmem:[#allocation15 + $0x1e8] sm:$0xff]
    %v298 = vld [vmem:[#allocation15 + $0x1f0] sm:$0xff]
    %v299 = vld [vmem:[#allocation15 + $0x1f8] sm:$0xff]
    %v300 = vld [vmem:[#allocation17] sm:$0xf]
    %v301 = vld [vmem:[#allocation12] sm:$0xff]
    %v302 = vld [vmem:[#allocation12 + $0x8] sm:$0xff]
    %v303 = vld [vmem:[#allocation12 + $0x10] sm:$0xff]
    %v304 = vld [vmem:[#allocation12 + $0x18] sm:$0xff]
    %v305 = vld [vmem:[#allocation12 + $0x20] sm:$0xff]
    %v306 = vld [vmem:[#allocation12 + $0x28] sm:$0xff]
    %v307 = vld [vmem:[#allocation12 + $0x30] sm:$0xff]
    %v308 = vld [vmem:[#allocation12 + $0x38] sm:$0xff]
    %v309 = vld [vmem:[#allocation12 + $0x40] sm:$0xff]
    %v310 = vld [vmem:[#allocation12 + $0x48] sm:$0xff]
    %v311 = vld [vmem:[#allocation12 + $0x50] sm:$0xff]
    %v312 = vld [vmem:[#allocation12 + $0x58] sm:$0xff]
    %v313 = vld [vmem:[#allocation12 + $0x60] sm:$0xff]
    %v314 = vld [vmem:[#allocation12 + $0x68] sm:$0xff]
    %v315 = vld [vmem:[#allocation12 + $0x70] sm:$0xff]
    %v316 = vld [vmem:[#allocation12 + $0x78] sm:$0xff]
    %v317 = vld [vmem:[#allocation12 + $0x80] sm:$0xff]
    %v318 = vld [vmem:[#allocation12 + $0x88] sm:$0xff]
    %v319 = vld [vmem:[#allocation12 + $0x90] sm:$0xff]
    %v320 = vld [vmem:[#allocation12 + $0x98] sm:$0xff]
    %v321 = vld [vmem:[#allocation12 + $0xa0] sm:$0xff]
    %v322 = vld [vmem:[#allocation12 + $0xa8] sm:$0xff]
    %v323 = vld [vmem:[#allocation12 + $0xb0] sm:$0xff]
    %v324 = vld [vmem:[#allocation12 + $0xb8] sm:$0xff]
    %v325 = vld [vmem:[#allocation12 + $0xc0] sm:$0xff]
    %v326 = vld [vmem:[#allocation12 + $0xc8] sm:$0xff]
    %v327 = vld [vmem:[#allocation12 + $0xd0] sm:$0xff]
    %v328 = vld [vmem:[#allocation12 + $0xd8] sm:$0xff]
    %v329 = vld [vmem:[#allocation12 + $0xe0] sm:$0xff]
    %v330 = vld [vmem:[#allocation12 + $0xe8] sm:$0xff]
    %v331 = vld [vmem:[#allocation12 + $0xf0] sm:$0xff]
    %v332 = vld [vmem:[#allocation12 + $0xf8] sm:$0xff]
    %v333 = vld [vmem:[#allocation12 + $0x100] sm:$0xff]
    %v334 = vld [vmem:[#allocation12 + $0x108] sm:$0xff]
    %v335 = vld [vmem:[#allocation12 + $0x110] sm:$0xff]
    %v336 = vld [vmem:[#allocation12 + $0x118] sm:$0xff]
    %v337 = vld [vmem:[#allocation12 + $0x120] sm:$0xff]
    %v338 = vld [vmem:[#allocation12 + $0x128] sm:$0xff]
    %v339 = vld [vmem:[#allocation12 + $0x130] sm:$0xff]
    %v340 = vld [vmem:[#allocation12 + $0x138] sm:$0xff]
    %v341 = vld [vmem:[#allocation12 + $0x140] sm:$0xff]
    %v342 = vld [vmem:[#allocation12 + $0x148] sm:$0xff]
    %v343 = vld [vmem:[#allocation12 + $0x150] sm:$0xff]
    %v344 = vld [vmem:[#allocation12 + $0x158] sm:$0xff]
    %v345 = vld [vmem:[#allocation12 + $0x160] sm:$0xff]
    %v346 = vld [vmem:[#allocation12 + $0x168] sm:$0xff]
    %v347 = vld [vmem:[#allocation12 + $0x170] sm:$0xff]
    %v348 = vld [vmem:[#allocation12 + $0x178] sm:$0xff]
    %v349 = vld [vmem:[#allocation12 + $0x180] sm:$0xff]
    %v350 = vld [vmem:[#allocation12 + $0x188] sm:$0xff]
    %v351 = vld [vmem:[#allocation12 + $0x190] sm:$0xff]
    %v352 = vld [vmem:[#allocation12 + $0x198] sm:$0xff]
    %v353 = vld [vmem:[#allocation12 + $0x1a0] sm:$0xff]
    %v354 = vld [vmem:[#allocation12 + $0x1a8] sm:$0xff]
    %v355 = vld [vmem:[#allocation12 + $0x1b0] sm:$0xff]
    %v356 = vld [vmem:[#allocation12 + $0x1b8] sm:$0xff]
    %v357 = vld [vmem:[#allocation12 + $0x1c0] sm:$0xff]
    %v358 = vld [vmem:[#allocation12 + $0x1c8] sm:$0xff]
    %v359 = vld [vmem:[#allocation12 + $0x1d0] sm:$0xff]
    %v360 = vld [vmem:[#allocation12 + $0x1d8] sm:$0xff]
    %v361 = vld [vmem:[#allocation12 + $0x1e0] sm:$0xff]
    %v362 = vld [vmem:[#allocation12 + $0x1e8] sm:$0xff]
    %v363 = vld [vmem:[#allocation12 + $0x1f0] sm:$0xff]
    %v364 = vld [vmem:[#allocation12 + $0x1f8] sm:$0xff]
    %v365 = vld [vmem:[#allocation18] sm:$0xff]
    %v366 = vld [vmem:[#allocation18 + $0x8] sm:$0xff]
    %v367 = vld [vmem:[#allocation18 + $0x10] sm:$0xff]
    %v368 = vld [vmem:[#allocation18 + $0x18] sm:$0xff]
    %v369 = vld [vmem:[#allocation18 + $0x20] sm:$0xff]
    %v370 = vld [vmem:[#allocation18 + $0x28] sm:$0xff]
    %v371 = vld [vmem:[#allocation18 + $0x30] sm:$0xff]
    %v372 = vld [vmem:[#allocation18 + $0x38] sm:$0xff]
    %v373 = vld [vmem:[#allocation18 + $0x40] sm:$0xff]
    %v374 = vld [vmem:[#allocation18 + $0x48] sm:$0xff]
    %v375 = vld [vmem:[#allocation18 + $0x50] sm:$0xff]
    %v376 = vld [vmem:[#allocation18 + $0x58] sm:$0xff]
    %v377 = vld [vmem:[#allocation18 + $0x60] sm:$0xff]
    %v378 = vld [vmem:[#allocation18 + $0x68] sm:$0xff]
    %v379 = vld [vmem:[#allocation18 + $0x70] sm:$0xff]
    %v380 = vld [vmem:[#allocation18 + $0x78] sm:$0xff]
    %v381 = vld [vmem:[#allocation20] sm:$0x1]
    %v382 = vlaneseq
    %v383 = vand.u32 %v382, 127
    %vm384 = vcmp.lt.s32.totalorder %v383, 10
    %s385 = sld [smem:[#allocation4]]
    %s386 = sshra.s32 %s385, 3
    %s387 = sand.u32 %s385, 7
    %s388 = sshra.s32 %s385, 3
    %s389 = sand.u32 %s385, 7
    %s390 = smul.u32 %s386, 4
    %s391 = smul.u32 %s390, 8
    %s392 = sadd.s32 %s391, %s389
    %s393 = scalar_lea.vmem [#allocation11], %s392
    %v394 = vld [vmem:[%s393] ss:$8 sm:$0xf]
    %395 = vmatprep.subr.mxu0 %v232
    %396 = vmatpush1.msra.mxu0 %v231
    %397 = vmatprep.subr.mxu0 %v228
    %398 = vmatpush1.msra.mxu0 %v227
    %399 = vmatprep.subr.mxu0 %v224
    %400 = vmatpush1.msra.mxu0 %v223
    %401 = vmatprep.subr.mxu0 %v220
    %402 = vmatpush1.msra.mxu0 %v219
    %403 = vmatprep.subr.mxu0 %v216
    %404 = vmatpush1.msra.mxu0 %v215
    %405 = vmatprep.subr.mxu0 %v212
    %406 = vmatpush1.msra.mxu0 %v211
    %407 = vmatprep.subr.mxu0 %v208
    %408 = vmatpush1.msra.mxu0 %v207
    %409 = vmatprep.subr.mxu0 %v204
    %410 = vmatpush1.msra.mxu0 %v203
    %411 = vmatprep.subr.mxu0 %v200
    %412 = vmatpush1.msra.mxu0 %v199
    %413 = vmatprep.subr.mxu0 %v196
    %414 = vmatpush1.msra.mxu0 %v195
    %415 = vmatprep.subr.mxu0 %v192
    %416 = vmatpush1.msra.mxu0 %v191
    %417 = vmatprep.subr.mxu0 %v188
    %418 = vmatpush1.msra.mxu0 %v187
    %419 = vmatprep.subr.mxu0 %v184
    %420 = vmatpush1.msra.mxu0 %v183
    %421 = vmatprep.subr.mxu0 %v180
    %422 = vmatpush1.msra.mxu0 %v179
    %423 = vmatprep.subr.mxu0 %v176
    %424 = vmatpush1.msra.mxu0 %v175
    %425 = vmatprep.subr.mxu0 %v172
    %426 = vmatpush1.msra.mxu0 %v171
    %427 = vmatprep.subr.mxu0 0.0
    %428 = vmatpush2.msra.mxu0 0.0
    %429 = vmatprep.subr.mxu0 0.0
    %430 = vmatpush2.msra.mxu0 0.0
    %431 = vmatprep.subr.mxu0 0.0
    %432 = vmatpush2.msra.mxu0 0.0
    %433 = vmatprep.subr.mxu0 0.0
    %434 = vmatpush2.msra.mxu0 0.0
    %435 = vmatprep.subr.mxu0 0.0
    %436 = vmatpush2.msra.mxu0 0.0
    %437 = vmatprep.subr.mxu0 0.0
    %438 = vmatpush2.msra.mxu0 0.0
    %439 = vmatprep.subr.mxu0 0.0
    %440 = vmatpush2.msra.mxu0 0.0
    %441 = vmatprep.subr.mxu0 0.0
    %442 = vmatpush2.msra.mxu0 0.0
    %443 = vmatprep.subr.mxu0 0.0
    %444 = vmatpush2.msra.mxu0 0.0
    %445 = vmatprep.subr.mxu0 0.0
    %446 = vmatpush2.msra.mxu0 0.0
    %447 = vmatprep.subr.mxu0 0.0
    %448 = vmatpush2.msra.mxu0 0.0
    %449 = vmatprep.subr.mxu0 0.0
    %450 = vmatpush2.msra.mxu0 0.0
    %451 = vmatprep.subr.mxu0 0.0
    %452 = vmatpush2.msra.mxu0 0.0
    %453 = vmatprep.subr.mxu0 0.0
    %454 = vmatpush2.msra.mxu0 0.0
    %455 = vmatprep.subr.mxu0 0.0
    %456 = vmatpush2.msra.mxu0 0.0
    %457 = vmatprep.subr.mxu0 0.0
    %458 = vmatpush2.msra.mxu0 0.0
    %459 = vmatprep.mubr.f32.mxu0 0.0
    %460 = vmatmul.mubr.f32.gmra.mxu0 0.0
    %v461 = vpop.f32.mrf.mxu0
    %v462 = vadd.f32 0.0, %v461
    %v463 = vpop.f32.mrf.mxu0
    %v464 = vadd.f32 0.0, %v463
    %465 = vdwg.mxu0
    %466 = vmatprep.subr.mxu0 %v234
    %467 = vmatpush1.msra.mxu0 %v233
    %468 = vmatprep.subr.mxu0 %v230
    %469 = vmatpush1.msra.mxu0 %v229
    %470 = vmatprep.subr.mxu0 %v226
    %471 = vmatpush1.msra.mxu0 %v225
    %472 = vmatprep.subr.mxu0 %v222
    %473 = vmatpush1.msra.mxu0 %v221
    %474 = vmatprep.subr.mxu0 %v218
    %475 = vmatpush1.msra.mxu0 %v217
    %476 = vmatprep.subr.mxu0 %v214
    %477 = vmatpush1.msra.mxu0 %v213
    %478 = vmatprep.subr.mxu0 %v210
    %479 = vmatpush1.msra.mxu0 %v209
    %480 = vmatprep.subr.mxu0 %v206
    %481 = vmatpush1.msra.mxu0 %v205
    %482 = vmatprep.subr.mxu0 %v202
    %483 = vmatpush1.msra.mxu0 %v201
    %484 = vmatprep.subr.mxu0 %v198
    %485 = vmatpush1.msra.mxu0 %v197
    %486 = vmatprep.subr.mxu0 %v194
    %487 = vmatpush1.msra.mxu0 %v193
    %488 = vmatprep.subr.mxu0 %v190
    %489 = vmatpush1.msra.mxu0 %v189
    %490 = vmatprep.subr.mxu0 %v186
    %491 = vmatpush1.msra.mxu0 %v185
    %492 = vmatprep.subr.mxu0 %v182
    %493 = vmatpush1.msra.mxu0 %v181
    %494 = vmatprep.subr.mxu0 %v178
    %495 = vmatpush1.msra.mxu0 %v177
    %496 = vmatprep.subr.mxu0 %v174
    %497 = vmatpush1.msra.mxu0 %v173
    %498 = vmatprep.subr.mxu0 0.0
    %499 = vmatpush2.msra.mxu0 0.0
    %500 = vmatprep.subr.mxu0 0.0
    %501 = vmatpush2.msra.mxu0 0.0
    %502 = vmatprep.subr.mxu0 0.0
    %503 = vmatpush2.msra.mxu0 0.0
    %504 = vmatprep.subr.mxu0 0.0
    %505 = vmatpush2.msra.mxu0 0.0
    %506 = vmatprep.subr.mxu0 0.0
    %507 = vmatpush2.msra.mxu0 0.0
    %508 = vmatprep.subr.mxu0 0.0
    %509 = vmatpush2.msra.mxu0 0.0
    %510 = vmatprep.subr.mxu0 0.0
    %511 = vmatpush2.msra.mxu0 0.0
    %512 = vmatprep.subr.mxu0 0.0
    %513 = vmatpush2.msra.mxu0 0.0
    %514 = vmatprep.subr.mxu0 0.0
    %515 = vmatpush2.msra.mxu0 0.0
    %516 = vmatprep.subr.mxu0 0.0
    %517 = vmatpush2.msra.mxu0 0.0
    %518 = vmatprep.subr.mxu0 0.0
    %519 = vmatpush2.msra.mxu0 0.0
    %520 = vmatprep.subr.mxu0 0.0
    %521 = vmatpush2.msra.mxu0 0.0
    %522 = vmatprep.subr.mxu0 0.0
    %523 = vmatpush2.msra.mxu0 0.0
    %524 = vmatprep.subr.mxu0 0.0
    %525 = vmatpush2.msra.mxu0 0.0
    %526 = vmatprep.subr.mxu0 0.0
    %527 = vmatpush2.msra.mxu0 0.0
    %528 = vmatprep.subr.mxu0 0.0
    %529 = vmatpush2.msra.mxu0 0.0
    %530 = vmatprep.mubr.f32.mxu0 0.0
    %531 = vmatmul.mubr.f32.gmra.mxu0 0.0
    %v532 = vpop.f32.mrf.mxu0
    %v533 = vadd.f32 0.0, %v532
    %v534 = vpop.f32.mrf.mxu0
    %v535 = vadd.f32 0.0, %v534
    %536 = vdwg.mxu0
    %v541 = vcombine.low %v462, %v464
    %v542 = vcombine.low %v533, %v535
    %v544 = vunpack.c.l.s4 1966171168
    %v545 = vunpack.c.0.s8 %v544
    %v546 = vlaneseq
    %v547 = vshrl.u32 %v546, 7
    %v548 = vsub.s32 %v545, %v547
    %v549 = vrot.slane %v541, %v548
    %v551 = vunpack.c.l.s4 1966171168
    %v552 = vunpack.c.0.s8 %v551
    %v553 = vlaneseq
    %v554 = vshrl.u32 %v553, 7
    %v555 = vsub.s32 %v552, %v554
    %v556 = vrot.slane %v542, %v555
    %v557 = vcombine.low %v549, %v556
    %v559 = vunpack.c.l.s4 1966171168
    %v560 = vunpack.c.0.s8 %v559
    %v561 = vlaneseq
    %v562 = vshrl.u32 %v561, 7
    %v563 = vsub.s32 %v560, %v562
    %v564 = vrot.slane %v557, %v563
    %v566 = vadd.f32 %v394, %v564
    %v567 = vadd.f32 %v566, %v235
    %v568 = vxor.u32 %v567, 2147483648
    %v569 = vmul.f32 %v568, 1.442695
    %v570 = vpow.pop %v569
    %v571 = vadd.f32 %v570, 1.0
    %v572 = vrcp.pop %v571
    %v573 = vmul.f32 1.0, %v572
    %v575 = vrot.slane %v567, 1
    %v577 = vxor.u32 %v575, 2147483648
    %v578 = vmul.f32 %v577, 1.442695
    %v579 = vpow.pop %v578
    %v580 = vadd.f32 %v579, 1.0
    %v581 = vrcp.pop %v580
    %v582 = vmul.f32 1.0, %v581
    %v583 = vrot.slane %v567, 2
    %v585 = vtanh.pop %v583
    %v586 = vrot.slane %v567, 3
    %v588 = vxor.u32 %v586, 2147483648
    %v589 = vmul.f32 %v588, 1.442695
    %v590 = vpow.pop %v589
    %v591 = vadd.f32 %v590, 1.0
    %v592 = vrcp.pop %v591
    %v593 = vmul.f32 1.0, %v592
    %v594 = vmul.f32 %v582, 0.0
    %v595 = vmul.f32 %v573, %v585
    %v596 = vadd.f32 %v594, %v595
    %v597 = vtanh.pop %v596
    %v598 = vmul.f32 %v593, %v597
    %p599 = scmp.gt.s32.totalorder %s170, 0
    %s600 = scalar_select %p599, 1, 0
    %v601 = vstv %s600
    %vm602 = vcmp.eq.s32.totalorder %v601, 1
    %v603 = vsel %vm602, %v598, 0.0
    %v604 = vsel %vm602, %v596, 0.0
    %605 = vst [vmem:[#allocation2] sm:$0x1] %v603
    %s606 = sld [smem:[#allocation4 + $0x1]]
    %s607 = sshra.s32 %s606, 3
    %s608 = sand.u32 %s606, 7
    %s609 = sshra.s32 %s606, 3
    %s610 = sand.u32 %s606, 7
    %s611 = smul.u32 %s607, 4
    %s612 = smul.u32 %s611, 8
    %s613 = sadd.s32 %s612, %s610
    %s614 = scalar_lea.vmem [#allocation11], %s613
    %v615 = vld [vmem:[%s614] ss:$8 sm:$0xf]
    %616 = vmatprep.subr.mxu0 %v232
    %617 = vmatpush1.msra.mxu0 %v231
    %618 = vmatprep.subr.mxu0 %v228
    %619 = vmatpush1.msra.mxu0 %v227
    %620 = vmatprep.subr.mxu0 %v224
    %621 = vmatpush1.msra.mxu0 %v223
    %622 = vmatprep.subr.mxu0 %v220
    %623 = vmatpush1.msra.mxu0 %v219
    %624 = vmatprep.subr.mxu0 %v216
    %625 = vmatpush1.msra.mxu0 %v215
    %626 = vmatprep.subr.mxu0 %v212
    %627 = vmatpush1.msra.mxu0 %v211
    %628 = vmatprep.subr.mxu0 %v208
    %629 = vmatpush1.msra.mxu0 %v207
    %630 = vmatprep.subr.mxu0 %v204
    %631 = vmatpush1.msra.mxu0 %v203
    %632 = vmatprep.subr.mxu0 %v200
    %633 = vmatpush1.msra.mxu0 %v199
    %634 = vmatprep.subr.mxu0 %v196
    %635 = vmatpush1.msra.mxu0 %v195
    %636 = vmatprep.subr.mxu0 %v192
    %637 = vmatpush1.msra.mxu0 %v191
    %638 = vmatprep.subr.mxu0 %v188
    %639 = vmatpush1.msra.mxu0 %v187
    %640 = vmatprep.subr.mxu0 %v184
    %641 = vmatpush1.msra.mxu0 %v183
    %642 = vmatprep.subr.mxu0 %v180
    %643 = vmatpush1.msra.mxu0 %v179
    %644 = vmatprep.subr.mxu0 %v176
    %645 = vmatpush1.msra.mxu0 %v175
    %646 = vmatprep.subr.mxu0 %v172
    %647 = vmatpush1.msra.mxu0 %v171
    %648 = vmatprep.subr.mxu0 0.0
    %649 = vmatpush2.msra.mxu0 0.0
    %650 = vmatprep.subr.mxu0 0.0
    %651 = vmatpush2.msra.mxu0 0.0
    %652 = vmatprep.subr.mxu0 0.0
    %653 = vmatpush2.msra.mxu0 0.0
    %654 = vmatprep.subr.mxu0 0.0
    %655 = vmatpush2.msra.mxu0 0.0
    %656 = vmatprep.subr.mxu0 0.0
    %657 = vmatpush2.msra.mxu0 0.0
    %658 = vmatprep.subr.mxu0 0.0
    %659 = vmatpush2.msra.mxu0 0.0
    %660 = vmatprep.subr.mxu0 0.0
    %661 = vmatpush2.msra.mxu0 0.0
    %662 = vmatprep.subr.mxu0 0.0
    %663 = vmatpush2.msra.mxu0 0.0
    %664 = vmatprep.subr.mxu0 0.0
    %665 = vmatpush2.msra.mxu0 0.0
    %666 = vmatprep.subr.mxu0 0.0
    %667 = vmatpush2.msra.mxu0 0.0
    %668 = vmatprep.subr.mxu0 0.0
    %669 = vmatpush2.msra.mxu0 0.0
    %670 = vmatprep.subr.mxu0 0.0
    %671 = vmatpush2.msra.mxu0 0.0
    %672 = vmatprep.subr.mxu0 0.0
    %673 = vmatpush2.msra.mxu0 0.0
    %674 = vmatprep.subr.mxu0 0.0
    %675 = vmatpush2.msra.mxu0 0.0
    %676 = vmatprep.subr.mxu0 0.0
    %677 = vmatpush2.msra.mxu0 0.0
    %678 = vmatprep.subr.mxu0 0.0
    %679 = vmatpush2.msra.mxu0 0.0
    %680 = vmatprep.mubr.f32.mxu0 0.0
    %681 = vmatmul.mubr.f32.gmra.mxu0 %v603
    %v682 = vpop.f32.mrf.mxu0
    %v683 = vadd.f32 0.0, %v682
    %v684 = vpop.f32.mrf.mxu0
    %v685 = vadd.f32 0.0, %v684
    %686 = vdwg.mxu0
    %687 = vmatprep.subr.mxu0 %v234
    %688 = vmatpush1.msra.mxu0 %v233
    %689 = vmatprep.subr.mxu0 %v230
    %690 = vmatpush1.msra.mxu0 %v229
    %691 = vmatprep.subr.mxu0 %v226
    %692 = vmatpush1.msra.mxu0 %v225
    %693 = vmatprep.subr.mxu0 %v222
    %694 = vmatpush1.msra.mxu0 %v221
    %695 = vmatprep.subr.mxu0 %v218
    %696 = vmatpush1.msra.mxu0 %v217
    %697 = vmatprep.subr.mxu0 %v214
    %698 = vmatpush1.msra.mxu0 %v213
    %699 = vmatprep.subr.mxu0 %v210
    %700 = vmatpush1.msra.mxu0 %v209
    %701 = vmatprep.subr.mxu0 %v206
    %702 = vmatpush1.msra.mxu0 %v205
    %703 = vmatprep.subr.mxu0 %v202
    %704 = vmatpush1.msra.mxu0 %v201
    %705 = vmatprep.subr.mxu0 %v198
    %706 = vmatpush1.msra.mxu0 %v197
    %707 = vmatprep.subr.mxu0 %v194
    %708 = vmatpush1.msra.mxu0 %v193
    %709 = vmatprep.subr.mxu0 %v190
    %710 = vmatpush1.msra.mxu0 %v189
    %711 = vmatprep.subr.mxu0 %v186
    %712 = vmatpush1.msra.mxu0 %v185
    %713 = vmatprep.subr.mxu0 %v182
    %714 = vmatpush1.msra.mxu0 %v181
    %715 = vmatprep.subr.mxu0 %v178
    %716 = vmatpush1.msra.mxu0 %v177
    %717 = vmatprep.subr.mxu0 %v174
    %718 = vmatpush1.msra.mxu0 %v173
    %719 = vmatprep.subr.mxu0 0.0
    %720 = vmatpush2.msra.mxu0 0.0
    %721 = vmatprep.subr.mxu0 0.0
    %722 = vmatpush2.msra.mxu0 0.0
    %723 = vmatprep.subr.mxu0 0.0
    %724 = vmatpush2.msra.mxu0 0.0
    %725 = vmatprep.subr.mxu0 0.0
    %726 = vmatpush2.msra.mxu0 0.0
    %727 = vmatprep.subr.mxu0 0.0
    %728 = vmatpush2.msra.mxu0 0.0
    %729 = vmatprep.subr.mxu0 0.0
    %730 = vmatpush2.msra.mxu0 0.0
    %731 = vmatprep.subr.mxu0 0.0
    %732 = vmatpush2.msra.mxu0 0.0
    %733 = vmatprep.subr.mxu0 0.0
    %734 = vmatpush2.msra.mxu0 0.0
    %735 = vmatprep.subr.mxu0 0.0
    %736 = vmatpush2.msra.mxu0 0.0
    %737 = vmatprep.subr.mxu0 0.0
    %738 = vmatpush2.msra.mxu0 0.0
    %739 = vmatprep.subr.mxu0 0.0
    %740 = vmatpush2.msra.mxu0 0.0
    %741 = vmatprep.subr.mxu0 0.0
    %742 = vmatpush2.msra.mxu0 0.0
    %743 = vmatprep.subr.mxu0 0.0
    %744 = vmatpush2.msra.mxu0 0.0
    %745 = vmatprep.subr.mxu0 0.0
    %746 = vmatpush2.msra.mxu0 0.0
    %747 = vmatprep.subr.mxu0 0.0
    %748 = vmatpush2.msra.mxu0 0.0
    %749 = vmatprep.subr.mxu0 0.0
    %750 = vmatpush2.msra.mxu0 0.0
    %751 = vmatprep.mubr.f32.mxu0 0.0
    %752 = vmatmul.mubr.f32.gmra.mxu0 %v603
    %v753 = vpop.f32.mrf.mxu0
    %v754 = vadd.f32 0.0, %v753
    %v755 = vpop.f32.mrf.mxu0
    %v756 = vadd.f32 0.0, %v755
    %757 = vdwg.mxu0
    %v762 = vcombine.low %v683, %v685
    %v763 = vcombine.low %v754, %v756
    %v765 = vunpack.c.l.s4 1966171168
    %v766 = vunpack.c.0.s8 %v765
    %v767 = vlaneseq
    %v768 = vshrl.u32 %v767, 7
    %v769 = vsub.s32 %v766, %v768
    %v770 = vrot.slane %v762, %v769
    %v772 = vunpack.c.l.s4 1966171168
    %v773 = vunpack.c.0.s8 %v772
    %v774 = vlaneseq
    %v775 = vshrl.u32 %v774, 7
    %v776 = vsub.s32 %v773, %v775
    %v777 = vrot.slane %v763, %v776
    %v778 = vcombine.low %v770, %v777
    %v780 = vunpack.c.l.s4 1966171168
    %v781 = vunpack.c.0.s8 %v780
    %v782 = vlaneseq
    %v783 = vshrl.u32 %v782, 7
    %v784 = vsub.s32 %v781, %v783
    %v785 = vrot.slane %v778, %v784
    %v787 = vadd.f32 %v615, %v785
    %v788 = vadd.f32 %v787, %v235
    %v789 = vxor.u32 %v788, 2147483648
    %v790 = vmul.f32 %v789, 1.442695
    %v791 = vpow.pop %v790
    %v792 = vadd.f32 %v791, 1.0
    %v793 = vrcp.pop %v792
    %v794 = vmul.f32 1.0, %v793
    %v796 = vrot.slane %v788, 1
    %v798 = vxor.u32 %v796, 2147483648
    %v799 = vmul.f32 %v798, 1.442695
    %v800 = vpow.pop %v799
    %v801 = vadd.f32 %v800, 1.0
    %v802 = vrcp.pop %v801
    %v803 = vmul.f32 1.0, %v802
    %v804 = vrot.slane %v788, 2
    %v806 = vtanh.pop %v804
    %v807 = vrot.slane %v788, 3
    %v809 = vxor.u32 %v807, 2147483648
    %v810 = vmul.f32 %v809, 1.442695
    %v811 = vpow.pop %v810
    %v812 = vadd.f32 %v811, 1.0
    %v813 = vrcp.pop %v812
    %v814 = vmul.f32 1.0, %v813
    %v815 = vmul.f32 %v803, %v604
    %v816 = vmul.f32 %v794, %v806
    %v817 = vadd.f32 %v815, %v816
    %v818 = vtanh.pop %v817
    %v819 = vmul.f32 %v814, %v818
    %p820 = scmp.gt.s32.totalorder %s170, 1
    %s821 = scalar_select %p820, 1, 0
    %v822 = vstv %s821
    %vm823 = vcmp.eq.s32.totalorder %v822, 1
    %v824 = vsel %vm823, %v819, %v603
    %v825 = vsel %vm823, %v817, %v604
    %v826 = vsel %vm823, %v819, 0.0
    %827 = vst [vmem:[#allocation2 + $0x1] sm:$0x1] %v826
    %s828 = sld [smem:[#allocation4 + $0x2]]
    %s829 = sshra.s32 %s828, 3
    %s830 = sand.u32 %s828, 7
    %s831 = sshra.s32 %s828, 3
    %s832 = sand.u32 %s828, 7
    %s833 = smul.u32 %s829, 4
    %s834 = smul.u32 %s833, 8
    %s835 = sadd.s32 %s834, %s832
    %s836 = scalar_lea.vmem [#allocation11], %s835
    %v837 = vld [vmem:[%s836] ss:$8 sm:$0xf]
    %838 = vmatprep.subr.mxu0 %v232
    %839 = vmatpush1.msra.mxu0 %v231
    %840 = vmatprep.subr.mxu0 %v228
    %841 = vmatpush1.msra.mxu0 %v227
    %842 = vmatprep.subr.mxu0 %v224
    %843 = vmatpush1.msra.mxu0 %v223
    %844 = vmatprep.subr.mxu0 %v220
    %845 = vmatpush1.msra.mxu0 %v219
    %846 = vmatprep.subr.mxu0 %v216
    %847 = vmatpush1.msra.mxu0 %v215
    %848 = vmatprep.subr.mxu0 %v212
    %849 = vmatpush1.msra.mxu0 %v211
    %850 = vmatprep.subr.mxu0 %v208
    %851 = vmatpush1.msra.mxu0 %v207
    %852 = vmatprep.subr.mxu0 %v204
    %853 = vmatpush1.msra.mxu0 %v203
    %854 = vmatprep.subr.mxu0 %v200
    %855 = vmatpush1.msra.mxu0 %v199
    %856 = vmatprep.subr.mxu0 %v196
    %857 = vmatpush1.msra.mxu0 %v195
    %858 = vmatprep.subr.mxu0 %v192
    %859 = vmatpush1.msra.mxu0 %v191
    %860 = vmatprep.subr.mxu0 %v188
    %861 = vmatpush1.msra.mxu0 %v187
    %862 = vmatprep.subr.mxu0 %v184
    %863 = vmatpush1.msra.mxu0 %v183
    %864 = vmatprep.subr.mxu0 %v180
    %865 = vmatpush1.msra.mxu0 %v179
    %866 = vmatprep.subr.mxu0 %v176
    %867 = vmatpush1.msra.mxu0 %v175
    %868 = vmatprep.subr.mxu0 %v172
    %869 = vmatpush1.msra.mxu0 %v171
    %870 = vmatprep.subr.mxu0 0.0
    %871 = vmatpush2.msra.mxu0 0.0
    %872 = vmatprep.subr.mxu0 0.0
    %873 = vmatpush2.msra.mxu0 0.0
    %874 = vmatprep.subr.mxu0 0.0
    %875 = vmatpush2.msra.mxu0 0.0
    %876 = vmatprep.subr.mxu0 0.0
    %877 = vmatpush2.msra.mxu0 0.0
    %878 = vmatprep.subr.mxu0 0.0
    %879 = vmatpush2.msra.mxu0 0.0
    %880 = vmatprep.subr.mxu0 0.0
    %881 = vmatpush2.msra.mxu0 0.0
    %882 = vmatprep.subr.mxu0 0.0
    %883 = vmatpush2.msra.mxu0 0.0
    %884 = vmatprep.subr.mxu0 0.0
    %885 = vmatpush2.msra.mxu0 0.0
    %886 = vmatprep.subr.mxu0 0.0
    %887 = vmatpush2.msra.mxu0 0.0
    %888 = vmatprep.subr.mxu0 0.0
    %889 = vmatpush2.msra.mxu0 0.0
    %890 = vmatprep.subr.mxu0 0.0
    %891 = vmatpush2.msra.mxu0 0.0
    %892 = vmatprep.subr.mxu0 0.0
    %893 = vmatpush2.msra.mxu0 0.0
    %894 = vmatprep.subr.mxu0 0.0
    %895 = vmatpush2.msra.mxu0 0.0
    %896 = vmatprep.subr.mxu0 0.0
    %897 = vmatpush2.msra.mxu0 0.0
    %898 = vmatprep.subr.mxu0 0.0
    %899 = vmatpush2.msra.mxu0 0.0
    %900 = vmatprep.subr.mxu0 0.0
    %901 = vmatpush2.msra.mxu0 0.0
    %902 = vmatprep.mubr.f32.mxu0 0.0
    %903 = vmatmul.mubr.f32.gmra.mxu0 %v824
    %v904 = vpop.f32.mrf.mxu0
    %v905 = vadd.f32 0.0, %v904
    %v906 = vpop.f32.mrf.mxu0
    %v907 = vadd.f32 0.0, %v906
    %908 = vdwg.mxu0
    %909 = vmatprep.subr.mxu0 %v234
    %910 = vmatpush1.msra.mxu0 %v233
    %911 = vmatprep.subr.mxu0 %v230
    %912 = vmatpush1.msra.mxu0 %v229
    %913 = vmatprep.subr.mxu0 %v226
    %914 = vmatpush1.msra.mxu0 %v225
    %915 = vmatprep.subr.mxu0 %v222
    %916 = vmatpush1.msra.mxu0 %v221
    %917 = vmatprep.subr.mxu0 %v218
    %918 = vmatpush1.msra.mxu0 %v217
    %919 = vmatprep.subr.mxu0 %v214
    %920 = vmatpush1.msra.mxu0 %v213
    %921 = vmatprep.subr.mxu0 %v210
    %922 = vmatpush1.msra.mxu0 %v209
    %923 = vmatprep.subr.mxu0 %v206
    %924 = vmatpush1.msra.mxu0 %v205
    %925 = vmatprep.subr.mxu0 %v202
    %926 = vmatpush1.msra.mxu0 %v201
    %927 = vmatprep.subr.mxu0 %v198
    %928 = vmatpush1.msra.mxu0 %v197
    %929 = vmatprep.subr.mxu0 %v194
    %930 = vmatpush1.msra.mxu0 %v193
    %931 = vmatprep.subr.mxu0 %v190
    %932 = vmatpush1.msra.mxu0 %v189
    %933 = vmatprep.subr.mxu0 %v186
    %934 = vmatpush1.msra.mxu0 %v185
    %935 = vmatprep.subr.mxu0 %v182
    %936 = vmatpush1.msra.mxu0 %v181
    %937 = vmatprep.subr.mxu0 %v178
    %938 = vmatpush1.msra.mxu0 %v177
    %939 = vmatprep.subr.mxu0 %v174
    %940 = vmatpush1.msra.mxu0 %v173
    %941 = vmatprep.subr.mxu0 0.0
    %942 = vmatpush2.msra.mxu0 0.0
    %943 = vmatprep.subr.mxu0 0.0
    %944 = vmatpush2.msra.mxu0 0.0
    %945 = vmatprep.subr.mxu0 0.0
    %946 = vmatpush2.msra.mxu0 0.0
    %947 = vmatprep.subr.mxu0 0.0
    %948 = vmatpush2.msra.mxu0 0.0
    %949 = vmatprep.subr.mxu0 0.0
    %950 = vmatpush2.msra.mxu0 0.0
    %951 = vmatprep.subr.mxu0 0.0
    %952 = vmatpush2.msra.mxu0 0.0
    %953 = vmatprep.subr.mxu0 0.0
    %954 = vmatpush2.msra.mxu0 0.0
    %955 = vmatprep.subr.mxu0 0.0
    %956 = vmatpush2.msra.mxu0 0.0
    %957 = vmatprep.subr.mxu0 0.0
    %958 = vmatpush2.msra.mxu0 0.0
    %959 = vmatprep.subr.mxu0 0.0
    %960 = vmatpush2.msra.mxu0 0.0
    %961 = vmatprep.subr.mxu0 0.0
    %962 = vmatpush2.msra.mxu0 0.0
    %963 = vmatprep.subr.mxu0 0.0
    %964 = vmatpush2.msra.mxu0 0.0
    %965 = vmatprep.subr.mxu0 0.0
    %966 = vmatpush2.msra.mxu0 0.0
    %967 = vmatprep.subr.mxu0 0.0
    %968 = vmatpush2.msra.mxu0 0.0
    %969 = vmatprep.subr.mxu0 0.0
    %970 = vmatpush2.msra.mxu0 0.0
    %971 = vmatprep.subr.mxu0 0.0
    %972 = vmatpush2.msra.mxu0 0.0
    %973 = vmatprep.mubr.f32.mxu0 0.0
    %974 = vmatmul.mubr.f32.gmra.mxu0 %v824
    %v975 = vpop.f32.mrf.mxu0
    %v976 = vadd.f32 0.0, %v975
    %v977 = vpop.f32.mrf.mxu0
    %v978 = vadd.f32 0.0, %v977
    %979 = vdwg.mxu0
    %v984 = vcombine.low %v905, %v907
    %v985 = vcombine.low %v976, %v978
    %v987 = vunpack.c.l.s4 1966171168
    %v988 = vunpack.c.0.s8 %v987
    %v989 = vlaneseq
    %v990 = vshrl.u32 %v989, 7
    %v991 = vsub.s32 %v988, %v990
    %v992 = vrot.slane %v984, %v991
    %v994 = vunpack.c.l.s4 1966171168
    %v995 = vunpack.c.0.s8 %v994
    %v996 = vlaneseq
    %v997 = vshrl.u32 %v996, 7
    %v998 = vsub.s32 %v995, %v997
    %v999 = vrot.slane %v985, %v998
    %v1000 = vcombine.low %v992, %v999
    %v1002 = vunpack.c.l.s4 1966171168
    %v1003 = vunpack.c.0.s8 %v1002
    %v1004 = vlaneseq
    %v1005 = vshrl.u32 %v1004, 7
    %v1006 = vsub.s32 %v1003, %v1005
    %v1007 = vrot.slane %v1000, %v1006
    %v1009 = vadd.f32 %v837, %v1007
    %v1010 = vadd.f32 %v1009, %v235
    %v1011 = vxor.u32 %v1010, 2147483648
    %v1012 = vmul.f32 %v1011, 1.442695
    %v1013 = vpow.pop %v1012
    %v1014 = vadd.f32 %v1013, 1.0
    %v1015 = vrcp.pop %v1014
    %v1016 = vmul.f32 1.0, %v1015
    %v1018 = vrot.slane %v1010, 1
    %v1020 = vxor.u32 %v1018, 2147483648
    %v1021 = vmul.f32 %v1020, 1.442695
    %v1022 = vpow.pop %v1021
    %v1023 = vadd.f32 %v1022, 1.0
    %v1024 = vrcp.pop %v1023
    %v1025 = vmul.f32 1.0, %v1024
    %v1026 = vrot.slane %v1010, 2
    %v1028 = vtanh.pop %v1026
    %v1029 = vrot.slane %v1010, 3
    %v1031 = vxor.u32 %v1029, 2147483648
    %v1032 = vmul.f32 %v1031, 1.442695
    %v1033 = vpow.pop %v1032
    %v1034 = vadd.f32 %v1033, 1.0
    %v1035 = vrcp.pop %v1034
    %v1036 = vmul.f32 1.0, %v1035
    %v1037 = vmul.f32 %v1025, %v825
    %v1038 = vmul.f32 %v1016, %v1028
    %v1039 = vadd.f32 %v1037, %v1038
    %v1040 = vtanh.pop %v1039
    %v1041 = vmul.f32 %v1036, %v1040
    %p1042 = scmp.gt.s32.totalorder %s170, 2
    %s1043 = scalar_select %p1042, 1, 0
    %v1044 = vstv %s1043
    %vm1045 = vcmp.eq.s32.totalorder %v1044, 1
    %v1046 = vsel %vm1045, %v1041, %v824
    %v1047 = vsel %vm1045, %v1039, %v825
    %v1048 = vsel %vm1045, %v1041, 0.0
    %1049 = vst [vmem:[#allocation2 + $0x2] sm:$0x1] %v1048
    %s1050 = sld [smem:[#allocation4 + $0x3]]
    %s1051 = sshra.s32 %s1050, 3
    %s1052 = sand.u32 %s1050, 7
    %s1053 = sshra.s32 %s1050, 3
    %s1054 = sand.u32 %s1050, 7
    %s1055 = smul.u32 %s1051, 4
    %s1056 = smul.u32 %s1055, 8
    %s1057 = sadd.s32 %s1056, %s1054
    %s1058 = scalar_lea.vmem [#allocation11], %s1057
    %v1059 = vld [vmem:[%s1058] ss:$8 sm:$0xf]
    %1060 = vmatprep.subr.mxu0 %v232
    %1061 = vmatpush1.msra.mxu0 %v231
    %1062 = vmatprep.subr.mxu0 %v228
    %1063 = vmatpush1.msra.mxu0 %v227
    %1064 = vmatprep.subr.mxu0 %v224
    %1065 = vmatpush1.msra.mxu0 %v223
    %1066 = vmatprep.subr.mxu0 %v220
    %1067 = vmatpush1.msra.mxu0 %v219
    %1068 = vmatprep.subr.mxu0 %v216
    %1069 = vmatpush1.msra.mxu0 %v215
    %1070 = vmatprep.subr.mxu0 %v212
    %1071 = vmatpush1.msra.mxu0 %v211
    %1072 = vmatprep.subr.mxu0 %v208
    %1073 = vmatpush1.msra.mxu0 %v207
    %1074 = vmatprep.subr.mxu0 %v204
    %1075 = vmatpush1.msra.mxu0 %v203
    %1076 = vmatprep.subr.mxu0 %v200
    %1077 = vmatpush1.msra.mxu0 %v199
    %1078 = vmatprep.subr.mxu0 %v196
    %1079 = vmatpush1.msra.mxu0 %v195
    %1080 = vmatprep.subr.mxu0 %v192
    %1081 = vmatpush1.msra.mxu0 %v191
    %1082 = vmatprep.subr.mxu0 %v188
    %1083 = vmatpush1.msra.mxu0 %v187
    %1084 = vmatprep.subr.mxu0 %v184
    %1085 = vmatpush1.msra.mxu0 %v183
    %1086 = vmatprep.subr.mxu0 %v180
    %1087 = vmatpush1.msra.mxu0 %v179
    %1088 = vmatprep.subr.mxu0 %v176
    %1089 = vmatpush1.msra.mxu0 %v175
    %1090 = vmatprep.subr.mxu0 %v172
    %1091 = vmatpush1.msra.mxu0 %v171
    %1092 = vmatprep.subr.mxu0 0.0
    %1093 = vmatpush2.msra.mxu0 0.0
    %1094 = vmatprep.subr.mxu0 0.0
    %1095 = vmatpush2.msra.mxu0 0.0
    %1096 = vmatprep.subr.mxu0 0.0
    %1097 = vmatpush2.msra.mxu0 0.0
    %1098 = vmatprep.subr.mxu0 0.0
    %1099 = vmatpush2.msra.mxu0 0.0
    %1100 = vmatprep.subr.mxu0 0.0
    %1101 = vmatpush2.msra.mxu0 0.0
    %1102 = vmatprep.subr.mxu0 0.0
    %1103 = vmatpush2.msra.mxu0 0.0
    %1104 = vmatprep.subr.mxu0 0.0
    %1105 = vmatpush2.msra.mxu0 0.0
    %1106 = vmatprep.subr.mxu0 0.0
    %1107 = vmatpush2.msra.mxu0 0.0
    %1108 = vmatprep.subr.mxu0 0.0
    %1109 = vmatpush2.msra.mxu0 0.0
    %1110 = vmatprep.subr.mxu0 0.0
    %1111 = vmatpush2.msra.mxu0 0.0
    %1112 = vmatprep.subr.mxu0 0.0
    %1113 = vmatpush2.msra.mxu0 0.0
    %1114 = vmatprep.subr.mxu0 0.0
    %1115 = vmatpush2.msra.mxu0 0.0
    %1116 = vmatprep.subr.mxu0 0.0
    %1117 = vmatpush2.msra.mxu0 0.0
    %1118 = vmatprep.subr.mxu0 0.0
    %1119 = vmatpush2.msra.mxu0 0.0
    %1120 = vmatprep.subr.mxu0 0.0
    %1121 = vmatpush2.msra.mxu0 0.0
    %1122 = vmatprep.subr.mxu0 0.0
    %1123 = vmatpush2.msra.mxu0 0.0
    %1124 = vmatprep.mubr.f32.mxu0 0.0
    %1125 = vmatmul.mubr.f32.gmra.mxu0 %v1046
    %v1126 = vpop.f32.mrf.mxu0
    %v1127 = vadd.f32 0.0, %v1126
    %v1128 = vpop.f32.mrf.mxu0
    %v1129 = vadd.f32 0.0, %v1128
    %1130 = vdwg.mxu0
    %1131 = vmatprep.subr.mxu0 %v234
    %1132 = vmatpush1.msra.mxu0 %v233
    %1133 = vmatprep.subr.mxu0 %v230
    %1134 = vmatpush1.msra.mxu0 %v229
    %1135 = vmatprep.subr.mxu0 %v226
    %1136 = vmatpush1.msra.mxu0 %v225
    %1137 = vmatprep.subr.mxu0 %v222
    %1138 = vmatpush1.msra.mxu0 %v221
    %1139 = vmatprep.subr.mxu0 %v218
    %1140 = vmatpush1.msra.mxu0 %v217
    %1141 = vmatprep.subr.mxu0 %v214
    %1142 = vmatpush1.msra.mxu0 %v213
    %1143 = vmatprep.subr.mxu0 %v210
    %1144 = vmatpush1.msra.mxu0 %v209
    %1145 = vmatprep.subr.mxu0 %v206
    %1146 = vmatpush1.msra.mxu0 %v205
    %1147 = vmatprep.subr.mxu0 %v202
    %1148 = vmatpush1.msra.mxu0 %v201
    %1149 = vmatprep.subr.mxu0 %v198
    %1150 = vmatpush1.msra.mxu0 %v197
    %1151 = vmatprep.subr.mxu0 %v194
    %1152 = vmatpush1.msra.mxu0 %v193
    %1153 = vmatprep.subr.mxu0 %v190
    %1154 = vmatpush1.msra.mxu0 %v189
    %1155 = vmatprep.subr.mxu0 %v186
    %1156 = vmatpush1.msra.mxu0 %v185
    %1157 = vmatprep.subr.mxu0 %v182
    %1158 = vmatpush1.msra.mxu0 %v181
    %1159 = vmatprep.subr.mxu0 %v178
    %1160 = vmatpush1.msra.mxu0 %v177
    %1161 = vmatprep.subr.mxu0 %v174
    %1162 = vmatpush1.msra.mxu0 %v173
    %1163 = vmatprep.subr.mxu0 0.0
    %1164 = vmatpush2.msra.mxu0 0.0
    %1165 = vmatprep.subr.mxu0 0.0
    %1166 = vmatpush2.msra.mxu0 0.0
    %1167 = vmatprep.subr.mxu0 0.0
    %1168 = vmatpush2.msra.mxu0 0.0
    %1169 = vmatprep.subr.mxu0 0.0
    %1170 = vmatpush2.msra.mxu0 0.0
    %1171 = vmatprep.subr.mxu0 0.0
    %1172 = vmatpush2.msra.mxu0 0.0
    %1173 = vmatprep.subr.mxu0 0.0
    %1174 = vmatpush2.msra.mxu0 0.0
    %1175 = vmatprep.subr.mxu0 0.0
    %1176 = vmatpush2.msra.mxu0 0.0
    %1177 = vmatprep.subr.mxu0 0.0
    %1178 = vmatpush2.msra.mxu0 0.0
    %1179 = vmatprep.subr.mxu0 0.0
    %1180 = vmatpush2.msra.mxu0 0.0
    %1181 = vmatprep.subr.mxu0 0.0
    %1182 = vmatpush2.msra.mxu0 0.0
    %1183 = vmatprep.subr.mxu0 0.0
    %1184 = vmatpush2.msra.mxu0 0.0
    %1185 = vmatprep.subr.mxu0 0.0
    %1186 = vmatpush2.msra.mxu0 0.0
    %1187 = vmatprep.subr.mxu0 0.0
    %1188 = vmatpush2.msra.mxu0 0.0
    %1189 = vmatprep.subr.mxu0 0.0
    %1190 = vmatpush2.msra.mxu0 0.0
    %1191 = vmatprep.subr.mxu0 0.0
    %1192 = vmatpush2.msra.mxu0 0.0
    %1193 = vmatprep.subr.mxu0 0.0
    %1194 = vmatpush2.msra.mxu0 0.0
    %1195 = vmatprep.mubr.f32.mxu0 0.0
    %1196 = vmatmul.mubr.f32.gmra.mxu0 %v1046
    %v1197 = vpop.f32.mrf.mxu0
    %v1198 = vadd.f32 0.0, %v1197
    %v1199 = vpop.f32.mrf.mxu0
    %v1200 = vadd.f32 0.0, %v1199
    %1201 = vdwg.mxu0
    %v1206 = vcombine.low %v1127, %v1129
    %v1207 = vcombine.low %v1198, %v1200
    %v1209 = vunpack.c.l.s4 1966171168
    %v1210 = vunpack.c.0.s8 %v1209
    %v1211 = vlaneseq
    %v1212 = vshrl.u32 %v1211, 7
    %v1213 = vsub.s32 %v1210, %v1212
    %v1214 = vrot.slane %v1206, %v1213
    %v1216 = vunpack.c.l.s4 1966171168
    %v1217 = vunpack.c.0.s8 %v1216
    %v1218 = vlaneseq
    %v1219 = vshrl.u32 %v1218, 7
    %v1220 = vsub.s32 %v1217, %v1219
    %v1221 = vrot.slane %v1207, %v1220
    %v1222 = vcombine.low %v1214, %v1221
    %v1224 = vunpack.c.l.s4 1966171168
    %v1225 = vunpack.c.0.s8 %v1224
    %v1226 = vlaneseq
    %v1227 = vshrl.u32 %v1226, 7
    %v1228 = vsub.s32 %v1225, %v1227
    %v1229 = vrot.slane %v1222, %v1228
    %v1231 = vadd.f32 %v1059, %v1229
    %v1232 = vadd.f32 %v1231, %v235
    %v1233 = vxor.u32 %v1232, 2147483648
    %v1234 = vmul.f32 %v1233, 1.442695
    %v1235 = vpow.pop %v1234
    %v1236 = vadd.f32 %v1235, 1.0
    %v1237 = vrcp.pop %v1236
    %v1238 = vmul.f32 1.0, %v1237
    %v1240 = vrot.slane %v1232, 1
    %v1242 = vxor.u32 %v1240, 2147483648
    %v1243 = vmul.f32 %v1242, 1.442695
    %v1244 = vpow.pop %v1243
    %v1245 = vadd.f32 %v1244, 1.0
    %v1246 = vrcp.pop %v1245
    %v1247 = vmul.f32 1.0, %v1246
    %v1248 = vrot.slane %v1232, 2
    %v1250 = vtanh.pop %v1248
    %v1251 = vrot.slane %v1232, 3
    %v1253 = vxor.u32 %v1251, 2147483648
    %v1254 = vmul.f32 %v1253, 1.442695
    %v1255 = vpow.pop %v1254
    %v1256 = vadd.f32 %v1255, 1.0
    %v1257 = vrcp.pop %v1256
    %v1258 = vmul.f32 1.0, %v1257
    %v1259 = vmul.f32 %v1247, %v1047
    %v1260 = vmul.f32 %v1238, %v1250
    %v1261 = vadd.f32 %v1259, %v1260
    %v1262 = vtanh.pop %v1261
    %v1263 = vmul.f32 %v1258, %v1262
    %p1264 = scmp.gt.s32.totalorder %s170, 3
    %s1265 = scalar_select %p1264, 1, 0
    %v1266 = vstv %s1265
    %vm1267 = vcmp.eq.s32.totalorder %v1266, 1
    %v1268 = vsel %vm1267, %v1263, %v1046
    %v1269 = vsel %vm1267, %v1261, %v1047
    %v1270 = vsel %vm1267, %v1263, 0.0
    %1271 = vst [vmem:[#allocation2 + $0x3] sm:$0x1] %v1270
    %s1272 = sld [smem:[#allocation4 + $0x4]]
    %s1273 = sshra.s32 %s1272, 3
    %s1274 = sand.u32 %s1272, 7
    %s1275 = sshra.s32 %s1272, 3
    %s1276 = sand.u32 %s1272, 7
    %s1277 = smul.u32 %s1273, 4
    %s1278 = smul.u32 %s1277, 8
    %s1279 = sadd.s32 %s1278, %s1276
    %s1280 = scalar_lea.vmem [#allocation11], %s1279
    %v1281 = vld [vmem:[%s1280] ss:$8 sm:$0xf]
    %1282 = vmatprep.subr.mxu0 %v232
    %1283 = vmatpush1.msra.mxu0 %v231
    %1284 = vmatprep.subr.mxu0 %v228
    %1285 = vmatpush1.msra.mxu0 %v227
    %1286 = vmatprep.subr.mxu0 %v224
    %1287 = vmatpush1.msra.mxu0 %v223
    %1288 = vmatprep.subr.mxu0 %v220
    %1289 = vmatpush1.msra.mxu0 %v219
    %1290 = vmatprep.subr.mxu0 %v216
    %1291 = vmatpush1.msra.mxu0 %v215
    %1292 = vmatprep.subr.mxu0 %v212
    %1293 = vmatpush1.msra.mxu0 %v211
    %1294 = vmatprep.subr.mxu0 %v208
    %1295 = vmatpush1.msra.mxu0 %v207
    %1296 = vmatprep.subr.mxu0 %v204
    %1297 = vmatpush1.msra.mxu0 %v203
    %1298 = vmatprep.subr.mxu0 %v200
    %1299 = vmatpush1.msra.mxu0 %v199
    %1300 = vmatprep.subr.mxu0 %v196
    %1301 = vmatpush1.msra.mxu0 %v195
    %1302 = vmatprep.subr.mxu0 %v192
    %1303 = vmatpush1.msra.mxu0 %v191
    %1304 = vmatprep.subr.mxu0 %v188
    %1305 = vmatpush1.msra.mxu0 %v187
    %1306 = vmatprep.subr.mxu0 %v184
    %1307 = vmatpush1.msra.mxu0 %v183
    %1308 = vmatprep.subr.mxu0 %v180
    %1309 = vmatpush1.msra.mxu0 %v179
    %1310 = vmatprep.subr.mxu0 %v176
    %1311 = vmatpush1.msra.mxu0 %v175
    %1312 = vmatprep.subr.mxu0 %v172
    %1313 = vmatpush1.msra.mxu0 %v171
    %1314 = vmatprep.subr.mxu0 0.0
    %1315 = vmatpush2.msra.mxu0 0.0
    %1316 = vmatprep.subr.mxu0 0.0
    %1317 = vmatpush2.msra.mxu0 0.0
    %1318 = vmatprep.subr.mxu0 0.0
    %1319 = vmatpush2.msra.mxu0 0.0
    %1320 = vmatprep.subr.mxu0 0.0
    %1321 = vmatpush2.msra.mxu0 0.0
    %1322 = vmatprep.subr.mxu0 0.0
    %1323 = vmatpush2.msra.mxu0 0.0
    %1324 = vmatprep.subr.mxu0 0.0
    %1325 = vmatpush2.msra.mxu0 0.0
    %1326 = vmatprep.subr.mxu0 0.0
    %1327 = vmatpush2.msra.mxu0 0.0
    %1328 = vmatprep.subr.mxu0 0.0
    %1329 = vmatpush2.msra.mxu0 0.0
    %1330 = vmatprep.subr.mxu0 0.0
    %1331 = vmatpush2.msra.mxu0 0.0
    %1332 = vmatprep.subr.mxu0 0.0
    %1333 = vmatpush2.msra.mxu0 0.0
    %1334 = vmatprep.subr.mxu0 0.0
    %1335 = vmatpush2.msra.mxu0 0.0
    %1336 = vmatprep.subr.mxu0 0.0
    %1337 = vmatpush2.msra.mxu0 0.0
    %1338 = vmatprep.subr.mxu0 0.0
    %1339 = vmatpush2.msra.mxu0 0.0
    %1340 = vmatprep.subr.mxu0 0.0
    %1341 = vmatpush2.msra.mxu0 0.0
    %1342 = vmatprep.subr.mxu0 0.0
    %1343 = vmatpush2.msra.mxu0 0.0
    %1344 = vmatprep.subr.mxu0 0.0
    %1345 = vmatpush2.msra.mxu0 0.0
    %1346 = vmatprep.mubr.f32.mxu0 0.0
    %1347 = vmatmul.mubr.f32.gmra.mxu0 %v1268
    %v1348 = vpop.f32.mrf.mxu0
    %v1349 = vadd.f32 0.0, %v1348
    %v1350 = vpop.f32.mrf.mxu0
    %v1351 = vadd.f32 0.0, %v1350
    %1352 = vdwg.mxu0
    %1353 = vmatprep.subr.mxu0 %v234
    %1354 = vmatpush1.msra.mxu0 %v233
    %1355 = vmatprep.subr.mxu0 %v230
    %1356 = vmatpush1.msra.mxu0 %v229
    %1357 = vmatprep.subr.mxu0 %v226
    %1358 = vmatpush1.msra.mxu0 %v225
    %1359 = vmatprep.subr.mxu0 %v222
    %1360 = vmatpush1.msra.mxu0 %v221
    %1361 = vmatprep.subr.mxu0 %v218
    %1362 = vmatpush1.msra.mxu0 %v217
    %1363 = vmatprep.subr.mxu0 %v214
    %1364 = vmatpush1.msra.mxu0 %v213
    %1365 = vmatprep.subr.mxu0 %v210
    %1366 = vmatpush1.msra.mxu0 %v209
    %1367 = vmatprep.subr.mxu0 %v206
    %1368 = vmatpush1.msra.mxu0 %v205
    %1369 = vmatprep.subr.mxu0 %v202
    %1370 = vmatpush1.msra.mxu0 %v201
    %1371 = vmatprep.subr.mxu0 %v198
    %1372 = vmatpush1.msra.mxu0 %v197
    %1373 = vmatprep.subr.mxu0 %v194
    %1374 = vmatpush1.msra.mxu0 %v193
    %1375 = vmatprep.subr.mxu0 %v190
    %1376 = vmatpush1.msra.mxu0 %v189
    %1377 = vmatprep.subr.mxu0 %v186
    %1378 = vmatpush1.msra.mxu0 %v185
    %1379 = vmatprep.subr.mxu0 %v182
    %1380 = vmatpush1.msra.mxu0 %v181
    %1381 = vmatprep.subr.mxu0 %v178
    %1382 = vmatpush1.msra.mxu0 %v177
    %1383 = vmatprep.subr.mxu0 %v174
    %1384 = vmatpush1.msra.mxu0 %v173
    %1385 = vmatprep.subr.mxu0 0.0
    %1386 = vmatpush2.msra.mxu0 0.0
    %1387 = vmatprep.subr.mxu0 0.0
    %1388 = vmatpush2.msra.mxu0 0.0
    %1389 = vmatprep.subr.mxu0 0.0
    %1390 = vmatpush2.msra.mxu0 0.0
    %1391 = vmatprep.subr.mxu0 0.0
    %1392 = vmatpush2.msra.mxu0 0.0
    %1393 = vmatprep.subr.mxu0 0.0
    %1394 = vmatpush2.msra.mxu0 0.0
    %1395 = vmatprep.subr.mxu0 0.0
    %1396 = vmatpush2.msra.mxu0 0.0
    %1397 = vmatprep.subr.mxu0 0.0
    %1398 = vmatpush2.msra.mxu0 0.0
    %1399 = vmatprep.subr.mxu0 0.0
    %1400 = vmatpush2.msra.mxu0 0.0
    %1401 = vmatprep.subr.mxu0 0.0
    %1402 = vmatpush2.msra.mxu0 0.0
    %1403 = vmatprep.subr.mxu0 0.0
    %1404 = vmatpush2.msra.mxu0 0.0
    %1405 = vmatprep.subr.mxu0 0.0
    %1406 = vmatpush2.msra.mxu0 0.0
    %1407 = vmatprep.subr.mxu0 0.0
    %1408 = vmatpush2.msra.mxu0 0.0
    %1409 = vmatprep.subr.mxu0 0.0
    %1410 = vmatpush2.msra.mxu0 0.0
    %1411 = vmatprep.subr.mxu0 0.0
    %1412 = vmatpush2.msra.mxu0 0.0
    %1413 = vmatprep.subr.mxu0 0.0
    %1414 = vmatpush2.msra.mxu0 0.0
    %1415 = vmatprep.subr.mxu0 0.0
    %1416 = vmatpush2.msra.mxu0 0.0
    %1417 = vmatprep.mubr.f32.mxu0 0.0
    %1418 = vmatmul.mubr.f32.gmra.mxu0 %v1268
    %v1419 = vpop.f32.mrf.mxu0
    %v1420 = vadd.f32 0.0, %v1419
    %v1421 = vpop.f32.mrf.mxu0
    %v1422 = vadd.f32 0.0, %v1421
    %1423 = vdwg.mxu0
    %v1428 = vcombine.low %v1349, %v1351
    %v1429 = vcombine.low %v1420, %v1422
    %v1431 = vunpack.c.l.s4 1966171168
    %v1432 = vunpack.c.0.s8 %v1431
    %v1433 = vlaneseq
    %v1434 = vshrl.u32 %v1433, 7
    %v1435 = vsub.s32 %v1432, %v1434
    %v1436 = vrot.slane %v1428, %v1435
    %v1438 = vunpack.c.l.s4 1966171168
    %v1439 = vunpack.c.0.s8 %v1438
    %v1440 = vlaneseq
    %v1441 = vshrl.u32 %v1440, 7
    %v1442 = vsub.s32 %v1439, %v1441
    %v1443 = vrot.slane %v1429, %v1442
    %v1444 = vcombine.low %v1436, %v1443
    %v1446 = vunpack.c.l.s4 1966171168
    %v1447 = vunpack.c.0.s8 %v1446
    %v1448 = vlaneseq
    %v1449 = vshrl.u32 %v1448, 7
    %v1450 = vsub.s32 %v1447, %v1449
    %v1451 = vrot.slane %v1444, %v1450
    %v1453 = vadd.f32 %v1281, %v1451
    %v1454 = vadd.f32 %v1453, %v235
    %v1455 = vxor.u32 %v1454, 2147483648
    %v1456 = vmul.f32 %v1455, 1.442695
    %v1457 = vpow.pop %v1456
    %v1458 = vadd.f32 %v1457, 1.0
    %v1459 = vrcp.pop %v1458
    %v1460 = vmul.f32 1.0, %v1459
    %v1462 = vrot.slane %v1454, 1
    %v1464 = vxor.u32 %v1462, 2147483648
    %v1465 = vmul.f32 %v1464, 1.442695
    %v1466 = vpow.pop %v1465
    %v1467 = vadd.f32 %v1466, 1.0
    %v1468 = vrcp.pop %v1467
    %v1469 = vmul.f32 1.0, %v1468
    %v1470 = vrot.slane %v1454, 2
    %v1472 = vtanh.pop %v1470
    %v1473 = vrot.slane %v1454, 3
    %v1475 = vxor.u32 %v1473, 2147483648
    %v1476 = vmul.f32 %v1475, 1.442695
    %v1477 = vpow.pop %v1476
    %v1478 = vadd.f32 %v1477, 1.0
    %v1479 = vrcp.pop %v1478
    %v1480 = vmul.f32 1.0, %v1479
    %v1481 = vmul.f32 %v1469, %v1269
    %v1482 = vmul.f32 %v1460, %v1472
    %v1483 = vadd.f32 %v1481, %v1482
    %v1484 = vtanh.pop %v1483
    %v1485 = vmul.f32 %v1480, %v1484
    %p1486 = scmp.gt.s32.totalorder %s170, 4
    %s1487 = scalar_select %p1486, 1, 0
    %v1488 = vstv %s1487
    %vm1489 = vcmp.eq.s32.totalorder %v1488, 1
    %v1490 = vsel %vm1489, %v1485, %v1268
    %v1491 = vsel %vm1489, %v1483, %v1269
    %v1492 = vsel %vm1489, %v1485, 0.0
    %1493 = vst [vmem:[#allocation2 + $0x4] sm:$0x1] %v1492
    %s1494 = sld [smem:[#allocation4 + $0x5]]
    %s1495 = sshra.s32 %s1494, 3
    %s1496 = sand.u32 %s1494, 7
    %s1497 = sshra.s32 %s1494, 3
    %s1498 = sand.u32 %s1494, 7
    %s1499 = smul.u32 %s1495, 4
    %s1500 = smul.u32 %s1499, 8
    %s1501 = sadd.s32 %s1500, %s1498
    %s1502 = scalar_lea.vmem [#allocation11], %s1501
    %v1503 = vld [vmem:[%s1502] ss:$8 sm:$0xf]
    %1504 = vmatprep.subr.mxu0 %v232
    %1505 = vmatpush1.msra.mxu0 %v231
    %1506 = vmatprep.subr.mxu0 %v228
    %1507 = vmatpush1.msra.mxu0 %v227
    %1508 = vmatprep.subr.mxu0 %v224
    %1509 = vmatpush1.msra.mxu0 %v223
    %1510 = vmatprep.subr.mxu0 %v220
    %1511 = vmatpush1.msra.mxu0 %v219
    %1512 = vmatprep.subr.mxu0 %v216
    %1513 = vmatpush1.msra.mxu0 %v215
    %1514 = vmatprep.subr.mxu0 %v212
    %1515 = vmatpush1.msra.mxu0 %v211
    %1516 = vmatprep.subr.mxu0 %v208
    %1517 = vmatpush1.msra.mxu0 %v207
    %1518 = vmatprep.subr.mxu0 %v204
    %1519 = vmatpush1.msra.mxu0 %v203
    %1520 = vmatprep.subr.mxu0 %v200
    %1521 = vmatpush1.msra.mxu0 %v199
    %1522 = vmatprep.subr.mxu0 %v196
    %1523 = vmatpush1.msra.mxu0 %v195
    %1524 = vmatprep.subr.mxu0 %v192
    %1525 = vmatpush1.msra.mxu0 %v191
    %1526 = vmatprep.subr.mxu0 %v188
    %1527 = vmatpush1.msra.mxu0 %v187
    %1528 = vmatprep.subr.mxu0 %v184
    %1529 = vmatpush1.msra.mxu0 %v183
    %1530 = vmatprep.subr.mxu0 %v180
    %1531 = vmatpush1.msra.mxu0 %v179
    %1532 = vmatprep.subr.mxu0 %v176
    %1533 = vmatpush1.msra.mxu0 %v175
    %1534 = vmatprep.subr.mxu0 %v172
    %1535 = vmatpush1.msra.mxu0 %v171
    %1536 = vmatprep.subr.mxu0 0.0
    %1537 = vmatpush2.msra.mxu0 0.0
    %1538 = vmatprep.subr.mxu0 0.0
    %1539 = vmatpush2.msra.mxu0 0.0
    %1540 = vmatprep.subr.mxu0 0.0
    %1541 = vmatpush2.msra.mxu0 0.0
    %1542 = vmatprep.subr.mxu0 0.0
    %1543 = vmatpush2.msra.mxu0 0.0
    %1544 = vmatprep.subr.mxu0 0.0
    %1545 = vmatpush2.msra.mxu0 0.0
    %1546 = vmatprep.subr.mxu0 0.0
    %1547 = vmatpush2.msra.mxu0 0.0
    %1548 = vmatprep.subr.mxu0 0.0
    %1549 = vmatpush2.msra.mxu0 0.0
    %1550 = vmatprep.subr.mxu0 0.0
    %1551 = vmatpush2.msra.mxu0 0.0
    %1552 = vmatprep.subr.mxu0 0.0
    %1553 = vmatpush2.msra.mxu0 0.0
    %1554 = vmatprep.subr.mxu0 0.0
    %1555 = vmatpush2.msra.mxu0 0.0
    %1556 = vmatprep.subr.mxu0 0.0
    %1557 = vmatpush2.msra.mxu0 0.0
    %1558 = vmatprep.subr.mxu0 0.0
    %1559 = vmatpush2.msra.mxu0 0.0
    %1560 = vmatprep.subr.mxu0 0.0
    %1561 = vmatpush2.msra.mxu0 0.0
    %1562 = vmatprep.subr.mxu0 0.0
    %1563 = vmatpush2.msra.mxu0 0.0
    %1564 = vmatprep.subr.mxu0 0.0
    %1565 = vmatpush2.msra.mxu0 0.0
    %1566 = vmatprep.subr.mxu0 0.0
    %1567 = vmatpush2.msra.mxu0 0.0
    %1568 = vmatprep.mubr.f32.mxu0 0.0
    %1569 = vmatmul.mubr.f32.gmra.mxu0 %v1490
    %v1570 = vpop.f32.mrf.mxu0
    %v1571 = vadd.f32 0.0, %v1570
    %v1572 = vpop.f32.mrf.mxu0
    %v1573 = vadd.f32 0.0, %v1572
    %1574 = vdwg.mxu0
    %1575 = vmatprep.subr.mxu0 %v234
    %1576 = vmatpush1.msra.mxu0 %v233
    %1577 = vmatprep.subr.mxu0 %v230
    %1578 = vmatpush1.msra.mxu0 %v229
    %1579 = vmatprep.subr.mxu0 %v226
    %1580 = vmatpush1.msra.mxu0 %v225
    %1581 = vmatprep.subr.mxu0 %v222
    %1582 = vmatpush1.msra.mxu0 %v221
    %1583 = vmatprep.subr.mxu0 %v218
    %1584 = vmatpush1.msra.mxu0 %v217
    %1585 = vmatprep.subr.mxu0 %v214
    %1586 = vmatpush1.msra.mxu0 %v213
    %1587 = vmatprep.subr.mxu0 %v210
    %1588 = vmatpush1.msra.mxu0 %v209
    %1589 = vmatprep.subr.mxu0 %v206
    %1590 = vmatpush1.msra.mxu0 %v205
    %1591 = vmatprep.subr.mxu0 %v202
    %1592 = vmatpush1.msra.mxu0 %v201
    %1593 = vmatprep.subr.mxu0 %v198
    %1594 = vmatpush1.msra.mxu0 %v197
    %1595 = vmatprep.subr.mxu0 %v194
    %1596 = vmatpush1.msra.mxu0 %v193
    %1597 = vmatprep.subr.mxu0 %v190
    %1598 = vmatpush1.msra.mxu0 %v189
    %1599 = vmatprep.subr.mxu0 %v186
    %1600 = vmatpush1.msra.mxu0 %v185
    %1601 = vmatprep.subr.mxu0 %v182
    %1602 = vmatpush1.msra.mxu0 %v181
    %1603 = vmatprep.subr.mxu0 %v178
    %1604 = vmatpush1.msra.mxu0 %v177
    %1605 = vmatprep.subr.mxu0 %v174
    %1606 = vmatpush1.msra.mxu0 %v173
    %1607 = vmatprep.subr.mxu0 0.0
    %1608 = vmatpush2.msra.mxu0 0.0
    %1609 = vmatprep.subr.mxu0 0.0
    %1610 = vmatpush2.msra.mxu0 0.0
    %1611 = vmatprep.subr.mxu0 0.0
    %1612 = vmatpush2.msra.mxu0 0.0
    %1613 = vmatprep.subr.mxu0 0.0
    %1614 = vmatpush2.msra.mxu0 0.0
    %1615 = vmatprep.subr.mxu0 0.0
    %1616 = vmatpush2.msra.mxu0 0.0
    %1617 = vmatprep.subr.mxu0 0.0
    %1618 = vmatpush2.msra.mxu0 0.0
    %1619 = vmatprep.subr.mxu0 0.0
    %1620 = vmatpush2.msra.mxu0 0.0
    %1621 = vmatprep.subr.mxu0 0.0
    %1622 = vmatpush2.msra.mxu0 0.0
    %1623 = vmatprep.subr.mxu0 0.0
    %1624 = vmatpush2.msra.mxu0 0.0
    %1625 = vmatprep.subr.mxu0 0.0
    %1626 = vmatpush2.msra.mxu0 0.0
    %1627 = vmatprep.subr.mxu0 0.0
    %1628 = vmatpush2.msra.mxu0 0.0
    %1629 = vmatprep.subr.mxu0 0.0
    %1630 = vmatpush2.msra.mxu0 0.0
    %1631 = vmatprep.subr.mxu0 0.0
    %1632 = vmatpush2.msra.mxu0 0.0
    %1633 = vmatprep.subr.mxu0 0.0
    %1634 = vmatpush2.msra.mxu0 0.0
    %1635 = vmatprep.subr.mxu0 0.0
    %1636 = vmatpush2.msra.mxu0 0.0
    %1637 = vmatprep.subr.mxu0 0.0
    %1638 = vmatpush2.msra.mxu0 0.0
    %1639 = vmatprep.mubr.f32.mxu0 0.0
    %1640 = vmatmul.mubr.f32.gmra.mxu0 %v1490
    %v1641 = vpop.f32.mrf.mxu0
    %v1642 = vadd.f32 0.0, %v1641
    %v1643 = vpop.f32.mrf.mxu0
    %v1644 = vadd.f32 0.0, %v1643
    %1645 = vdwg.mxu0
    %v1650 = vcombine.low %v1571, %v1573
    %v1651 = vcombine.low %v1642, %v1644
    %v1653 = vunpack.c.l.s4 1966171168
    %v1654 = vunpack.c.0.s8 %v1653
    %v1655 = vlaneseq
    %v1656 = vshrl.u32 %v1655, 7
    %v1657 = vsub.s32 %v1654, %v1656
    %v1658 = vrot.slane %v1650, %v1657
    %v1660 = vunpack.c.l.s4 1966171168
    %v1661 = vunpack.c.0.s8 %v1660
    %v1662 = vlaneseq
    %v1663 = vshrl.u32 %v1662, 7
    %v1664 = vsub.s32 %v1661, %v1663
    %v1665 = vrot.slane %v1651, %v1664
    %v1666 = vcombine.low %v1658, %v1665
    %v1668 = vunpack.c.l.s4 1966171168
    %v1669 = vunpack.c.0.s8 %v1668
    %v1670 = vlaneseq
    %v1671 = vshrl.u32 %v1670, 7
    %v1672 = vsub.s32 %v1669, %v1671
    %v1673 = vrot.slane %v1666, %v1672
    %v1675 = vadd.f32 %v1503, %v1673
    %v1676 = vadd.f32 %v1675, %v235
    %v1677 = vxor.u32 %v1676, 2147483648
    %v1678 = vmul.f32 %v1677, 1.442695
    %v1679 = vpow.pop %v1678
    %v1680 = vadd.f32 %v1679, 1.0
    %v1681 = vrcp.pop %v1680
    %v1682 = vmul.f32 1.0, %v1681
    %v1684 = vrot.slane %v1676, 1
    %v1686 = vxor.u32 %v1684, 2147483648
    %v1687 = vmul.f32 %v1686, 1.442695
    %v1688 = vpow.pop %v1687
    %v1689 = vadd.f32 %v1688, 1.0
    %v1690 = vrcp.pop %v1689
    %v1691 = vmul.f32 1.0, %v1690
    %v1692 = vrot.slane %v1676, 2
    %v1694 = vtanh.pop %v1692
    %v1695 = vrot.slane %v1676, 3
    %v1697 = vxor.u32 %v1695, 2147483648
    %v1698 = vmul.f32 %v1697, 1.442695
    %v1699 = vpow.pop %v1698
    %v1700 = vadd.f32 %v1699, 1.0
    %v1701 = vrcp.pop %v1700
    %v1702 = vmul.f32 1.0, %v1701
    %v1703 = vmul.f32 %v1691, %v1491
    %v1704 = vmul.f32 %v1682, %v1694
    %v1705 = vadd.f32 %v1703, %v1704
    %v1706 = vtanh.pop %v1705
    %v1707 = vmul.f32 %v1702, %v1706
    %p1708 = scmp.gt.s32.totalorder %s170, 5
    %s1709 = scalar_select %p1708, 1, 0
    %v1710 = vstv %s1709
    %vm1711 = vcmp.eq.s32.totalorder %v1710, 1
    %v1712 = vsel %vm1711, %v1707, %v1490
    %v1713 = vsel %vm1711, %v1705, %v1491
    %v1714 = vsel %vm1711, %v1707, 0.0
    %1715 = vst [vmem:[#allocation2 + $0x5] sm:$0x1] %v1714
    %s1716 = sld [smem:[#allocation4 + $0x6]]
    %s1717 = sshra.s32 %s1716, 3
    %s1718 = sand.u32 %s1716, 7
    %s1719 = sshra.s32 %s1716, 3
    %s1720 = sand.u32 %s1716, 7
    %s1721 = smul.u32 %s1717, 4
    %s1722 = smul.u32 %s1721, 8
    %s1723 = sadd.s32 %s1722, %s1720
    %s1724 = scalar_lea.vmem [#allocation11], %s1723
    %v1725 = vld [vmem:[%s1724] ss:$8 sm:$0xf]
    %1726 = vmatprep.subr.mxu0 %v232
    %1727 = vmatpush1.msra.mxu0 %v231
    %1728 = vmatprep.subr.mxu0 %v228
    %1729 = vmatpush1.msra.mxu0 %v227
    %1730 = vmatprep.subr.mxu0 %v224
    %1731 = vmatpush1.msra.mxu0 %v223
    %1732 = vmatprep.subr.mxu0 %v220
    %1733 = vmatpush1.msra.mxu0 %v219
    %1734 = vmatprep.subr.mxu0 %v216
    %1735 = vmatpush1.msra.mxu0 %v215
    %1736 = vmatprep.subr.mxu0 %v212
    %1737 = vmatpush1.msra.mxu0 %v211
    %1738 = vmatprep.subr.mxu0 %v208
    %1739 = vmatpush1.msra.mxu0 %v207
    %1740 = vmatprep.subr.mxu0 %v204
    %1741 = vmatpush1.msra.mxu0 %v203
    %1742 = vmatprep.subr.mxu0 %v200
    %1743 = vmatpush1.msra.mxu0 %v199
    %1744 = vmatprep.subr.mxu0 %v196
    %1745 = vmatpush1.msra.mxu0 %v195
    %1746 = vmatprep.subr.mxu0 %v192
    %1747 = vmatpush1.msra.mxu0 %v191
    %1748 = vmatprep.subr.mxu0 %v188
    %1749 = vmatpush1.msra.mxu0 %v187
    %1750 = vmatprep.subr.mxu0 %v184
    %1751 = vmatpush1.msra.mxu0 %v183
    %1752 = vmatprep.subr.mxu0 %v180
    %1753 = vmatpush1.msra.mxu0 %v179
    %1754 = vmatprep.subr.mxu0 %v176
    %1755 = vmatpush1.msra.mxu0 %v175
    %1756 = vmatprep.subr.mxu0 %v172
    %1757 = vmatpush1.msra.mxu0 %v171
    %1758 = vmatprep.subr.mxu0 0.0
    %1759 = vmatpush2.msra.mxu0 0.0
    %1760 = vmatprep.subr.mxu0 0.0
    %1761 = vmatpush2.msra.mxu0 0.0
    %1762 = vmatprep.subr.mxu0 0.0
    %1763 = vmatpush2.msra.mxu0 0.0
    %1764 = vmatprep.subr.mxu0 0.0
    %1765 = vmatpush2.msra.mxu0 0.0
    %1766 = vmatprep.subr.mxu0 0.0
    %1767 = vmatpush2.msra.mxu0 0.0
    %1768 = vmatprep.subr.mxu0 0.0
    %1769 = vmatpush2.msra.mxu0 0.0
    %1770 = vmatprep.subr.mxu0 0.0
    %1771 = vmatpush2.msra.mxu0 0.0
    %1772 = vmatprep.subr.mxu0 0.0
    %1773 = vmatpush2.msra.mxu0 0.0
    %1774 = vmatprep.subr.mxu0 0.0
    %1775 = vmatpush2.msra.mxu0 0.0
    %1776 = vmatprep.subr.mxu0 0.0
    %1777 = vmatpush2.msra.mxu0 0.0
    %1778 = vmatprep.subr.mxu0 0.0
    %1779 = vmatpush2.msra.mxu0 0.0
    %1780 = vmatprep.subr.mxu0 0.0
    %1781 = vmatpush2.msra.mxu0 0.0
    %1782 = vmatprep.subr.mxu0 0.0
    %1783 = vmatpush2.msra.mxu0 0.0
    %1784 = vmatprep.subr.mxu0 0.0
    %1785 = vmatpush2.msra.mxu0 0.0
    %1786 = vmatprep.subr.mxu0 0.0
    %1787 = vmatpush2.msra.mxu0 0.0
    %1788 = vmatprep.subr.mxu0 0.0
    %1789 = vmatpush2.msra.mxu0 0.0
    %1790 = vmatprep.mubr.f32.mxu0 0.0
    %1791 = vmatmul.mubr.f32.gmra.mxu0 %v1712
    %v1792 = vpop.f32.mrf.mxu0
    %v1793 = vadd.f32 0.0, %v1792
    %v1794 = vpop.f32.mrf.mxu0
    %v1795 = vadd.f32 0.0, %v1794
    %1796 = vdwg.mxu0
    %1797 = vmatprep.subr.mxu0 %v234
    %1798 = vmatpush1.msra.mxu0 %v233
    %1799 = vmatprep.subr.mxu0 %v230
    %1800 = vmatpush1.msra.mxu0 %v229
    %1801 = vmatprep.subr.mxu0 %v226
    %1802 = vmatpush1.msra.mxu0 %v225
    %1803 = vmatprep.subr.mxu0 %v222
    %1804 = vmatpush1.msra.mxu0 %v221
    %1805 = vmatprep.subr.mxu0 %v218
    %1806 = vmatpush1.msra.mxu0 %v217
    %1807 = vmatprep.subr.mxu0 %v214
    %1808 = vmatpush1.msra.mxu0 %v213
    %1809 = vmatprep.subr.mxu0 %v210
    %1810 = vmatpush1.msra.mxu0 %v209
    %1811 = vmatprep.subr.mxu0 %v206
    %1812 = vmatpush1.msra.mxu0 %v205
    %1813 = vmatprep.subr.mxu0 %v202
    %1814 = vmatpush1.msra.mxu0 %v201
    %1815 = vmatprep.subr.mxu0 %v198
    %1816 = vmatpush1.msra.mxu0 %v197
    %1817 = vmatprep.subr.mxu0 %v194
    %1818 = vmatpush1.msra.mxu0 %v193
    %1819 = vmatprep.subr.mxu0 %v190
    %1820 = vmatpush1.msra.mxu0 %v189
    %1821 = vmatprep.subr.mxu0 %v186
    %1822 = vmatpush1.msra.mxu0 %v185
    %1823 = vmatprep.subr.mxu0 %v182
    %1824 = vmatpush1.msra.mxu0 %v181
    %1825 = vmatprep.subr.mxu0 %v178
    %1826 = vmatpush1.msra.mxu0 %v177
    %1827 = vmatprep.subr.mxu0 %v174
    %1828 = vmatpush1.msra.mxu0 %v173
    %1829 = vmatprep.subr.mxu0 0.0
    %1830 = vmatpush2.msra.mxu0 0.0
    %1831 = vmatprep.subr.mxu0 0.0
    %1832 = vmatpush2.msra.mxu0 0.0
    %1833 = vmatprep.subr.mxu0 0.0
    %1834 = vmatpush2.msra.mxu0 0.0
    %1835 = vmatprep.subr.mxu0 0.0
    %1836 = vmatpush2.msra.mxu0 0.0
    %1837 = vmatprep.subr.mxu0 0.0
    %1838 = vmatpush2.msra.mxu0 0.0
    %1839 = vmatprep.subr.mxu0 0.0
    %1840 = vmatpush2.msra.mxu0 0.0
    %1841 = vmatprep.subr.mxu0 0.0
    %1842 = vmatpush2.msra.mxu0 0.0
    %1843 = vmatprep.subr.mxu0 0.0
    %1844 = vmatpush2.msra.mxu0 0.0
    %1845 = vmatprep.subr.mxu0 0.0
    %1846 = vmatpush2.msra.mxu0 0.0
    %1847 = vmatprep.subr.mxu0 0.0
    %1848 = vmatpush2.msra.mxu0 0.0
    %1849 = vmatprep.subr.mxu0 0.0
    %1850 = vmatpush2.msra.mxu0 0.0
    %1851 = vmatprep.subr.mxu0 0.0
    %1852 = vmatpush2.msra.mxu0 0.0
    %1853 = vmatprep.subr.mxu0 0.0
    %1854 = vmatpush2.msra.mxu0 0.0
    %1855 = vmatprep.subr.mxu0 0.0
    %1856 = vmatpush2.msra.mxu0 0.0
    %1857 = vmatprep.subr.mxu0 0.0
    %1858 = vmatpush2.msra.mxu0 0.0
    %1859 = vmatprep.subr.mxu0 0.0
    %1860 = vmatpush2.msra.mxu0 0.0
    %1861 = vmatprep.mubr.f32.mxu0 0.0
    %1862 = vmatmul.mubr.f32.gmra.mxu0 %v1712
    %v1863 = vpop.f32.mrf.mxu0
    %v1864 = vadd.f32 0.0, %v1863
    %v1865 = vpop.f32.mrf.mxu0
    %v1866 = vadd.f32 0.0, %v1865
    %1867 = vdwg.mxu0
    %v1872 = vcombine.low %v1793, %v1795
    %v1873 = vcombine.low %v1864, %v1866
    %v1875 = vunpack.c.l.s4 1966171168
    %v1876 = vunpack.c.0.s8 %v1875
    %v1877 = vlaneseq
    %v1878 = vshrl.u32 %v1877, 7
    %v1879 = vsub.s32 %v1876, %v1878
    %v1880 = vrot.slane %v1872, %v1879
    %v1882 = vunpack.c.l.s4 1966171168
    %v1883 = vunpack.c.0.s8 %v1882
    %v1884 = vlaneseq
    %v1885 = vshrl.u32 %v1884, 7
    %v1886 = vsub.s32 %v1883, %v1885
    %v1887 = vrot.slane %v1873, %v1886
    %v1888 = vcombine.low %v1880, %v1887
    %v1890 = vunpack.c.l.s4 1966171168
    %v1891 = vunpack.c.0.s8 %v1890
    %v1892 = vlaneseq
    %v1893 = vshrl.u32 %v1892, 7
    %v1894 = vsub.s32 %v1891, %v1893
    %v1895 = vrot.slane %v1888, %v1894
    %v1897 = vadd.f32 %v1725, %v1895
    %v1898 = vadd.f32 %v1897, %v235
    %v1899 = vxor.u32 %v1898, 2147483648
    %v1900 = vmul.f32 %v1899, 1.442695
    %v1901 = vpow.pop %v1900
    %v1902 = vadd.f32 %v1901, 1.0
    %v1903 = vrcp.pop %v1902
    %v1904 = vmul.f32 1.0, %v1903
    %v1906 = vrot.slane %v1898, 1
    %v1908 = vxor.u32 %v1906, 2147483648
    %v1909 = vmul.f32 %v1908, 1.442695
    %v1910 = vpow.pop %v1909
    %v1911 = vadd.f32 %v1910, 1.0
    %v1912 = vrcp.pop %v1911
    %v1913 = vmul.f32 1.0, %v1912
    %v1914 = vrot.slane %v1898, 2
    %v1916 = vtanh.pop %v1914
    %v1917 = vrot.slane %v1898, 3
    %v1919 = vxor.u32 %v1917, 2147483648
    %v1920 = vmul.f32 %v1919, 1.442695
    %v1921 = vpow.pop %v1920
    %v1922 = vadd.f32 %v1921, 1.0
    %v1923 = vrcp.pop %v1922
    %v1924 = vmul.f32 1.0, %v1923
    %v1925 = vmul.f32 %v1913, %v1713
    %v1926 = vmul.f32 %v1904, %v1916
    %v1927 = vadd.f32 %v1925, %v1926
    %v1928 = vtanh.pop %v1927
    %v1929 = vmul.f32 %v1924, %v1928
    %p1930 = scmp.gt.s32.totalorder %s170, 6
    %s1931 = scalar_select %p1930, 1, 0
    %v1932 = vstv %s1931
    %vm1933 = vcmp.eq.s32.totalorder %v1932, 1
    %v1934 = vsel %vm1933, %v1929, %v1712
    %v1935 = vsel %vm1933, %v1927, %v1713
    %v1936 = vsel %vm1933, %v1929, 0.0
    %1937 = vst [vmem:[#allocation2 + $0x6] sm:$0x1] %v1936
    %s1938 = sld [smem:[#allocation4 + $0x7]]
    %s1939 = sshra.s32 %s1938, 3
    %s1940 = sand.u32 %s1938, 7
    %s1941 = sshra.s32 %s1938, 3
    %s1942 = sand.u32 %s1938, 7
    %s1943 = smul.u32 %s1939, 4
    %s1944 = smul.u32 %s1943, 8
    %s1945 = sadd.s32 %s1944, %s1942
    %s1946 = scalar_lea.vmem [#allocation11], %s1945
    %v1947 = vld [vmem:[%s1946] ss:$8 sm:$0xf]
    %1948 = vmatprep.subr.mxu0 %v232
    %1949 = vmatpush1.msra.mxu0 %v231
    %1950 = vmatprep.subr.mxu0 %v228
    %1951 = vmatpush1.msra.mxu0 %v227
    %1952 = vmatprep.subr.mxu0 %v224
    %1953 = vmatpush1.msra.mxu0 %v223
    %1954 = vmatprep.subr.mxu0 %v220
    %1955 = vmatpush1.msra.mxu0 %v219
    %1956 = vmatprep.subr.mxu0 %v216
    %1957 = vmatpush1.msra.mxu0 %v215
    %1958 = vmatprep.subr.mxu0 %v212
    %1959 = vmatpush1.msra.mxu0 %v211
    %1960 = vmatprep.subr.mxu0 %v208
    %1961 = vmatpush1.msra.mxu0 %v207
    %1962 = vmatprep.subr.mxu0 %v204
    %1963 = vmatpush1.msra.mxu0 %v203
    %1964 = vmatprep.subr.mxu0 %v200
    %1965 = vmatpush1.msra.mxu0 %v199
    %1966 = vmatprep.subr.mxu0 %v196
    %1967 = vmatpush1.msra.mxu0 %v195
    %1968 = vmatprep.subr.mxu0 %v192
    %1969 = vmatpush1.msra.mxu0 %v191
    %1970 = vmatprep.subr.mxu0 %v188
    %1971 = vmatpush1.msra.mxu0 %v187
    %1972 = vmatprep.subr.mxu0 %v184
    %1973 = vmatpush1.msra.mxu0 %v183
    %1974 = vmatprep.subr.mxu0 %v180
    %1975 = vmatpush1.msra.mxu0 %v179
    %1976 = vmatprep.subr.mxu0 %v176
    %1977 = vmatpush1.msra.mxu0 %v175
    %1978 = vmatprep.subr.mxu0 %v172
    %1979 = vmatpush1.msra.mxu0 %v171
    %1980 = vmatprep.subr.mxu0 0.0
    %1981 = vmatpush2.msra.mxu0 0.0
    %1982 = vmatprep.subr.mxu0 0.0
    %1983 = vmatpush2.msra.mxu0 0.0
    %1984 = vmatprep.subr.mxu0 0.0
    %1985 = vmatpush2.msra.mxu0 0.0
    %1986 = vmatprep.subr.mxu0 0.0
    %1987 = vmatpush2.msra.mxu0 0.0
    %1988 = vmatprep.subr.mxu0 0.0
    %1989 = vmatpush2.msra.mxu0 0.0
    %1990 = vmatprep.subr.mxu0 0.0
    %1991 = vmatpush2.msra.mxu0 0.0
    %1992 = vmatprep.subr.mxu0 0.0
    %1993 = vmatpush2.msra.mxu0 0.0
    %1994 = vmatprep.subr.mxu0 0.0
    %1995 = vmatpush2.msra.mxu0 0.0
    %1996 = vmatprep.subr.mxu0 0.0
    %1997 = vmatpush2.msra.mxu0 0.0
    %1998 = vmatprep.subr.mxu0 0.0
    %1999 = vmatpush2.msra.mxu0 0.0
    %2000 = vmatprep.subr.mxu0 0.0
    %2001 = vmatpush2.msra.mxu0 0.0
    %2002 = vmatprep.subr.mxu0 0.0
    %2003 = vmatpush2.msra.mxu0 0.0
    %2004 = vmatprep.subr.mxu0 0.0
    %2005 = vmatpush2.msra.mxu0 0.0
    %2006 = vmatprep.subr.mxu0 0.0
    %2007 = vmatpush2.msra.mxu0 0.0
    %2008 = vmatprep.subr.mxu0 0.0
    %2009 = vmatpush2.msra.mxu0 0.0
    %2010 = vmatprep.subr.mxu0 0.0
    %2011 = vmatpush2.msra.mxu0 0.0
    %2012 = vmatprep.mubr.f32.mxu0 0.0
    %2013 = vmatmul.mubr.f32.gmra.mxu0 %v1934
    %v2014 = vpop.f32.mrf.mxu0
    %v2015 = vadd.f32 0.0, %v2014
    %v2016 = vpop.f32.mrf.mxu0
    %v2017 = vadd.f32 0.0, %v2016
    %2018 = vdwg.mxu0
    %2019 = vmatprep.subr.mxu0 %v234
    %2020 = vmatpush1.msra.mxu0 %v233
    %2021 = vmatprep.subr.mxu0 %v230
    %2022 = vmatpush1.msra.mxu0 %v229
    %2023 = vmatprep.subr.mxu0 %v226
    %2024 = vmatpush1.msra.mxu0 %v225
    %2025 = vmatprep.subr.mxu0 %v222
    %2026 = vmatpush1.msra.mxu0 %v221
    %2027 = vmatprep.subr.mxu0 %v218
    %2028 = vmatpush1.msra.mxu0 %v217
    %2029 = vmatprep.subr.mxu0 %v214
    %2030 = vmatpush1.msra.mxu0 %v213
    %2031 = vmatprep.subr.mxu0 %v210
    %2032 = vmatpush1.msra.mxu0 %v209
    %2033 = vmatprep.subr.mxu0 %v206
    %2034 = vmatpush1.msra.mxu0 %v205
    %2035 = vmatprep.subr.mxu0 %v202
    %2036 = vmatpush1.msra.mxu0 %v201
    %2037 = vmatprep.subr.mxu0 %v198
    %2038 = vmatpush1.msra.mxu0 %v197
    %2039 = vmatprep.subr.mxu0 %v194
    %2040 = vmatpush1.msra.mxu0 %v193
    %2041 = vmatprep.subr.mxu0 %v190
    %2042 = vmatpush1.msra.mxu0 %v189
    %2043 = vmatprep.subr.mxu0 %v186
    %2044 = vmatpush1.msra.mxu0 %v185
    %2045 = vmatprep.subr.mxu0 %v182
    %2046 = vmatpush1.msra.mxu0 %v181
    %2047 = vmatprep.subr.mxu0 %v178
    %2048 = vmatpush1.msra.mxu0 %v177
    %2049 = vmatprep.subr.mxu0 %v174
    %2050 = vmatpush1.msra.mxu0 %v173
    %2051 = vmatprep.subr.mxu0 0.0
    %2052 = vmatpush2.msra.mxu0 0.0
    %2053 = vmatprep.subr.mxu0 0.0
    %2054 = vmatpush2.msra.mxu0 0.0
    %2055 = vmatprep.subr.mxu0 0.0
    %2056 = vmatpush2.msra.mxu0 0.0
    %2057 = vmatprep.subr.mxu0 0.0
    %2058 = vmatpush2.msra.mxu0 0.0
    %2059 = vmatprep.subr.mxu0 0.0
    %2060 = vmatpush2.msra.mxu0 0.0
    %2061 = vmatprep.subr.mxu0 0.0
    %2062 = vmatpush2.msra.mxu0 0.0
    %2063 = vmatprep.subr.mxu0 0.0
    %2064 = vmatpush2.msra.mxu0 0.0
    %2065 = vmatprep.subr.mxu0 0.0
    %2066 = vmatpush2.msra.mxu0 0.0
    %2067 = vmatprep.subr.mxu0 0.0
    %2068 = vmatpush2.msra.mxu0 0.0
    %2069 = vmatprep.subr.mxu0 0.0
    %2070 = vmatpush2.msra.mxu0 0.0
    %2071 = vmatprep.subr.mxu0 0.0
    %2072 = vmatpush2.msra.mxu0 0.0
    %2073 = vmatprep.subr.mxu0 0.0
    %2074 = vmatpush2.msra.mxu0 0.0
    %2075 = vmatprep.subr.mxu0 0.0
    %2076 = vmatpush2.msra.mxu0 0.0
    %2077 = vmatprep.subr.mxu0 0.0
    %2078 = vmatpush2.msra.mxu0 0.0
    %2079 = vmatprep.subr.mxu0 0.0
    %2080 = vmatpush2.msra.mxu0 0.0
    %2081 = vmatprep.subr.mxu0 0.0
    %2082 = vmatpush2.msra.mxu0 0.0
    %2083 = vmatprep.mubr.f32.mxu0 0.0
    %2084 = vmatmul.mubr.f32.gmra.mxu0 %v1934
    %v2085 = vpop.f32.mrf.mxu0
    %v2086 = vadd.f32 0.0, %v2085
    %v2087 = vpop.f32.mrf.mxu0
    %v2088 = vadd.f32 0.0, %v2087
    %2089 = vdwg.mxu0
    %v2094 = vcombine.low %v2015, %v2017
    %v2095 = vcombine.low %v2086, %v2088
    %v2097 = vunpack.c.l.s4 1966171168
    %v2098 = vunpack.c.0.s8 %v2097
    %v2099 = vlaneseq
    %v2100 = vshrl.u32 %v2099, 7
    %v2101 = vsub.s32 %v2098, %v2100
    %v2102 = vrot.slane %v2094, %v2101
    %v2104 = vunpack.c.l.s4 1966171168
    %v2105 = vunpack.c.0.s8 %v2104
    %v2106 = vlaneseq
    %v2107 = vshrl.u32 %v2106, 7
    %v2108 = vsub.s32 %v2105, %v2107
    %v2109 = vrot.slane %v2095, %v2108
    %v2110 = vcombine.low %v2102, %v2109
    %v2112 = vunpack.c.l.s4 1966171168
    %v2113 = vunpack.c.0.s8 %v2112
    %v2114 = vlaneseq
    %v2115 = vshrl.u32 %v2114, 7
    %v2116 = vsub.s32 %v2113, %v2115
    %v2117 = vrot.slane %v2110, %v2116
    %v2119 = vadd.f32 %v1947, %v2117
    %v2120 = vadd.f32 %v2119, %v235
    %v2121 = vxor.u32 %v2120, 2147483648
    %v2122 = vmul.f32 %v2121, 1.442695
    %v2123 = vpow.pop %v2122
    %v2124 = vadd.f32 %v2123, 1.0
    %v2125 = vrcp.pop %v2124
    %v2126 = vmul.f32 1.0, %v2125
    %v2128 = vrot.slane %v2120, 1
    %v2130 = vxor.u32 %v2128, 2147483648
    %v2131 = vmul.f32 %v2130, 1.442695
    %v2132 = vpow.pop %v2131
    %v2133 = vadd.f32 %v2132, 1.0
    %v2134 = vrcp.pop %v2133
    %v2135 = vmul.f32 1.0, %v2134
    %v2136 = vrot.slane %v2120, 2
    %v2138 = vtanh.pop %v2136
    %v2139 = vrot.slane %v2120, 3
    %v2141 = vxor.u32 %v2139, 2147483648
    %v2142 = vmul.f32 %v2141, 1.442695
    %v2143 = vpow.pop %v2142
    %v2144 = vadd.f32 %v2143, 1.0
    %v2145 = vrcp.pop %v2144
    %v2146 = vmul.f32 1.0, %v2145
    %v2147 = vmul.f32 %v2135, %v1935
    %v2148 = vmul.f32 %v2126, %v2138
    %v2149 = vadd.f32 %v2147, %v2148
    %v2150 = vtanh.pop %v2149
    %v2151 = vmul.f32 %v2146, %v2150
    %p2152 = scmp.gt.s32.totalorder %s170, 7
    %s2153 = scalar_select %p2152, 1, 0
    %v2154 = vstv %s2153
    %vm2155 = vcmp.eq.s32.totalorder %v2154, 1
    %v2156 = vsel %vm2155, %v2151, %v1934
    %v2157 = vsel %vm2155, %v2149, %v1935
    %v2158 = vsel %vm2155, %v2151, 0.0
    %2159 = vst [vmem:[#allocation2 + $0x7] sm:$0x1] %v2158
    %v2160 = vld [vmem:[#allocation2] sm:$0xff]
    %v2161 = vstv %s170
    %vm2162 = vcmp.lt.s32.totalorder %v383, %v2161
    %v2163 = vsel %vm2162, 1, 0
    %v2164 = vcvt.s32.f32 %v2163
    %2165 = vst [vmem:[#allocation21] sm:$0x1] 0.0
    %s2166 = sld [smem:[#allocation8]]
    %s2167 = sshra.s32 %s2166, 3
    %s2168 = sand.u32 %s2166, 7
    %s2169 = sshra.s32 %s2166, 3
    %s2170 = sand.u32 %s2166, 7
    %s2171 = smul.u32 %s2167, 4
    %s2172 = smul.u32 %s2171, 8
    %s2173 = sadd.s32 %s2172, %s2170
    %s2174 = scalar_lea.vmem [#allocation12], %s2173
    %v2175 = vld [vmem:[%s2174] ss:$8 sm:$0xf]
    %2176 = vmatprep.subr.mxu0 %v297
    %2177 = vmatpush1.msra.mxu0 %v296
    %2178 = vmatprep.subr.mxu0 %v293
    %2179 = vmatpush1.msra.mxu0 %v292
    %2180 = vmatprep.subr.mxu0 %v289
    %2181 = vmatpush1.msra.mxu0 %v288
    %2182 = vmatprep.subr.mxu0 %v285
    %2183 = vmatpush1.msra.mxu0 %v284
    %2184 = vmatprep.subr.mxu0 %v281
    %2185 = vmatpush1.msra.mxu0 %v280
    %2186 = vmatprep.subr.mxu0 %v277
    %2187 = vmatpush1.msra.mxu0 %v276
    %2188 = vmatprep.subr.mxu0 %v273
    %2189 = vmatpush1.msra.mxu0 %v272
    %2190 = vmatprep.subr.mxu0 %v269
    %2191 = vmatpush1.msra.mxu0 %v268
    %2192 = vmatprep.subr.mxu0 %v265
    %2193 = vmatpush1.msra.mxu0 %v264
    %2194 = vmatprep.subr.mxu0 %v261
    %2195 = vmatpush1.msra.mxu0 %v260
    %2196 = vmatprep.subr.mxu0 %v257
    %2197 = vmatpush1.msra.mxu0 %v256
    %2198 = vmatprep.subr.mxu0 %v253
    %2199 = vmatpush1.msra.mxu0 %v252
    %2200 = vmatprep.subr.mxu0 %v249
    %2201 = vmatpush1.msra.mxu0 %v248
    %2202 = vmatprep.subr.mxu0 %v245
    %2203 = vmatpush1.msra.mxu0 %v244
    %2204 = vmatprep.subr.mxu0 %v241
    %2205 = vmatpush1.msra.mxu0 %v240
    %2206 = vmatprep.subr.mxu0 %v237
    %2207 = vmatpush1.msra.mxu0 %v236
    %2208 = vmatprep.subr.mxu0 0.0
    %2209 = vmatpush2.msra.mxu0 0.0
    %2210 = vmatprep.subr.mxu0 0.0
    %2211 = vmatpush2.msra.mxu0 0.0
    %2212 = vmatprep.subr.mxu0 0.0
    %2213 = vmatpush2.msra.mxu0 0.0
    %2214 = vmatprep.subr.mxu0 0.0
    %2215 = vmatpush2.msra.mxu0 0.0
    %2216 = vmatprep.subr.mxu0 0.0
    %2217 = vmatpush2.msra.mxu0 0.0
    %2218 = vmatprep.subr.mxu0 0.0
    %2219 = vmatpush2.msra.mxu0 0.0
    %2220 = vmatprep.subr.mxu0 0.0
    %2221 = vmatpush2.msra.mxu0 0.0
    %2222 = vmatprep.subr.mxu0 0.0
    %2223 = vmatpush2.msra.mxu0 0.0
    %2224 = vmatprep.subr.mxu0 0.0
    %2225 = vmatpush2.msra.mxu0 0.0
    %2226 = vmatprep.subr.mxu0 0.0
    %2227 = vmatpush2.msra.mxu0 0.0
    %2228 = vmatprep.subr.mxu0 0.0
    %2229 = vmatpush2.msra.mxu0 0.0
    %2230 = vmatprep.subr.mxu0 0.0
    %2231 = vmatpush2.msra.mxu0 0.0
    %2232 = vmatprep.subr.mxu0 0.0
    %2233 = vmatpush2.msra.mxu0 0.0
    %2234 = vmatprep.subr.mxu0 0.0
    %2235 = vmatpush2.msra.mxu0 0.0
    %2236 = vmatprep.subr.mxu0 0.0
    %2237 = vmatpush2.msra.mxu0 0.0
    %2238 = vmatprep.subr.mxu0 0.0
    %2239 = vmatpush2.msra.mxu0 0.0
    %2240 = vmatprep.mubr.f32.mxu0 0.0
    %2241 = vmatmul.mubr.f32.gmra.mxu0 %v2156
    %v2242 = vpop.f32.mrf.mxu0
    %v2243 = vadd.f32 0.0, %v2242
    %v2244 = vpop.f32.mrf.mxu0
    %v2245 = vadd.f32 0.0, %v2244
    %2246 = vdwg.mxu0
    %2247 = vmatprep.subr.mxu0 %v299
    %2248 = vmatpush1.msra.mxu0 %v298
    %2249 = vmatprep.subr.mxu0 %v295
    %2250 = vmatpush1.msra.mxu0 %v294
    %2251 = vmatprep.subr.mxu0 %v291
    %2252 = vmatpush1.msra.mxu0 %v290
    %2253 = vmatprep.subr.mxu0 %v287
    %2254 = vmatpush1.msra.mxu0 %v286
    %2255 = vmatprep.subr.mxu0 %v283
    %2256 = vmatpush1.msra.mxu0 %v282
    %2257 = vmatprep.subr.mxu0 %v279
    %2258 = vmatpush1.msra.mxu0 %v278
    %2259 = vmatprep.subr.mxu0 %v275
    %2260 = vmatpush1.msra.mxu0 %v274
    %2261 = vmatprep.subr.mxu0 %v271
    %2262 = vmatpush1.msra.mxu0 %v270
    %2263 = vmatprep.subr.mxu0 %v267
    %2264 = vmatpush1.msra.mxu0 %v266
    %2265 = vmatprep.subr.mxu0 %v263
    %2266 = vmatpush1.msra.mxu0 %v262
    %2267 = vmatprep.subr.mxu0 %v259
    %2268 = vmatpush1.msra.mxu0 %v258
    %2269 = vmatprep.subr.mxu0 %v255
    %2270 = vmatpush1.msra.mxu0 %v254
    %2271 = vmatprep.subr.mxu0 %v251
    %2272 = vmatpush1.msra.mxu0 %v250
    %2273 = vmatprep.subr.mxu0 %v247
    %2274 = vmatpush1.msra.mxu0 %v246
    %2275 = vmatprep.subr.mxu0 %v243
    %2276 = vmatpush1.msra.mxu0 %v242
    %2277 = vmatprep.subr.mxu0 %v239
    %2278 = vmatpush1.msra.mxu0 %v238
    %2279 = vmatprep.subr.mxu0 0.0
    %2280 = vmatpush2.msra.mxu0 0.0
    %2281 = vmatprep.subr.mxu0 0.0
    %2282 = vmatpush2.msra.mxu0 0.0
    %2283 = vmatprep.subr.mxu0 0.0
    %2284 = vmatpush2.msra.mxu0 0.0
    %2285 = vmatprep.subr.mxu0 0.0
    %2286 = vmatpush2.msra.mxu0 0.0
    %2287 = vmatprep.subr.mxu0 0.0
    %2288 = vmatpush2.msra.mxu0 0.0
    %2289 = vmatprep.subr.mxu0 0.0
    %2290 = vmatpush2.msra.mxu0 0.0
    %2291 = vmatprep.subr.mxu0 0.0
    %2292 = vmatpush2.msra.mxu0 0.0
    %2293 = vmatprep.subr.mxu0 0.0
    %2294 = vmatpush2.msra.mxu0 0.0
    %2295 = vmatprep.subr.mxu0 0.0
    %2296 = vmatpush2.msra.mxu0 0.0
    %2297 = vmatprep.subr.mxu0 0.0
    %2298 = vmatpush2.msra.mxu0 0.0
    %2299 = vmatprep.subr.mxu0 0.0
    %2300 = vmatpush2.msra.mxu0 0.0
    %2301 = vmatprep.subr.mxu0 0.0
    %2302 = vmatpush2.msra.mxu0 0.0
    %2303 = vmatprep.subr.mxu0 0.0
    %2304 = vmatpush2.msra.mxu0 0.0
    %2305 = vmatprep.subr.mxu0 0.0
    %2306 = vmatpush2.msra.mxu0 0.0
    %2307 = vmatprep.subr.mxu0 0.0
    %2308 = vmatpush2.msra.mxu0 0.0
    %2309 = vmatprep.subr.mxu0 0.0
    %2310 = vmatpush2.msra.mxu0 0.0
    %2311 = vmatprep.mubr.f32.mxu0 0.0
    %2312 = vmatmul.mubr.f32.gmra.mxu0 %v2156
    %v2313 = vpop.f32.mrf.mxu0
    %v2314 = vadd.f32 0.0, %v2313
    %v2315 = vpop.f32.mrf.mxu0
    %v2316 = vadd.f32 0.0, %v2315
    %2317 = vdwg.mxu0
    %v2322 = vcombine.low %v2243, %v2245
    %v2323 = vcombine.low %v2314, %v2316
    %v2325 = vunpack.c.l.s4 1966171168
    %v2326 = vunpack.c.0.s8 %v2325
    %v2327 = vlaneseq
    %v2328 = vshrl.u32 %v2327, 7
    %v2329 = vsub.s32 %v2326, %v2328
    %v2330 = vrot.slane %v2322, %v2329
    %v2332 = vunpack.c.l.s4 1966171168
    %v2333 = vunpack.c.0.s8 %v2332
    %v2334 = vlaneseq
    %v2335 = vshrl.u32 %v2334, 7
    %v2336 = vsub.s32 %v2333, %v2335
    %v2337 = vrot.slane %v2323, %v2336
    %v2338 = vcombine.low %v2330, %v2337
    %v2340 = vunpack.c.l.s4 1966171168
    %v2341 = vunpack.c.0.s8 %v2340
    %v2342 = vlaneseq
    %v2343 = vshrl.u32 %v2342, 7
    %v2344 = vsub.s32 %v2341, %v2343
    %v2345 = vrot.slane %v2338, %v2344
    %v2347 = vadd.f32 %v2175, %v2345
    %v2348 = vadd.f32 %v2347, %v300
    %v2349 = vxor.u32 %v2348, 2147483648
    %v2350 = vmul.f32 %v2349, 1.442695
    %v2351 = vpow.pop %v2350
    %v2352 = vadd.f32 %v2351, 1.0
    %v2353 = vrcp.pop %v2352
    %v2354 = vmul.f32 1.0, %v2353
    %v2356 = vrot.slane %v2348, 1
    %v2358 = vxor.u32 %v2356, 2147483648
    %v2359 = vmul.f32 %v2358, 1.442695
    %v2360 = vpow.pop %v2359
    %v2361 = vadd.f32 %v2360, 1.0
    %v2362 = vrcp.pop %v2361
    %v2363 = vmul.f32 1.0, %v2362
    %v2364 = vrot.slane %v2348, 2
    %v2366 = vtanh.pop %v2364
    %v2367 = vrot.slane %v2348, 3
    %v2369 = vxor.u32 %v2367, 2147483648
    %v2370 = vmul.f32 %v2369, 1.442695
    %v2371 = vpow.pop %v2370
    %v2372 = vadd.f32 %v2371, 1.0
    %v2373 = vrcp.pop %v2372
    %v2374 = vmul.f32 1.0, %v2373
    %v2375 = vmul.f32 %v2363, %v2157
    %v2376 = vmul.f32 %v2354, %v2366
    %v2377 = vadd.f32 %v2375, %v2376
    %v2378 = vtanh.pop %v2377
    %v2379 = vmul.f32 %v2374, %v2378
    %2380 = vmatprep.subr.mxu0 0.0
    %2381 = vmatpush1.xpose.msra.mxu0 0.0
    %2382 = vmatprep.subr.mxu0 0.0
    %2383 = vmatpush1.xpose.msra.mxu0 0.0
    %2384 = vmatprep.subr.mxu0 0.0
    %2385 = vmatpush1.xpose.msra.mxu0 0.0
    %2386 = vmatprep.subr.mxu0 0.0
    %2387 = vmatpush1.xpose.msra.mxu0 0.0
    %2388 = vmatprep.subr.mxu0 0.0
    %2389 = vmatpush1.xpose.msra.mxu0 0.0
    %2390 = vmatprep.subr.mxu0 0.0
    %2391 = vmatpush1.xpose.msra.mxu0 0.0
    %2392 = vmatprep.subr.mxu0 0.0
    %2393 = vmatpush1.xpose.msra.mxu0 0.0
    %2394 = vmatprep.subr.mxu0 0.0
    %2395 = vmatpush1.xpose.msra.mxu0 0.0
    %2396 = vmatprep.subr.mxu0 0.0
    %2397 = vmatpush1.xpose.msra.mxu0 0.0
    %2398 = vmatprep.subr.mxu0 0.0
    %2399 = vmatpush1.xpose.msra.mxu0 0.0
    %2400 = vmatprep.subr.mxu0 0.0
    %2401 = vmatpush1.xpose.msra.mxu0 0.0
    %2402 = vmatprep.subr.mxu0 0.0
    %2403 = vmatpush1.xpose.msra.mxu0 0.0
    %2404 = vmatprep.subr.mxu0 0.0
    %2405 = vmatpush1.xpose.msra.mxu0 0.0
    %2406 = vmatprep.subr.mxu0 0.0
    %2407 = vmatpush1.xpose.msra.mxu0 0.0
    %2408 = vmatprep.subr.mxu0 0.0
    %2409 = vmatpush1.xpose.msra.mxu0 0.0
    %2410 = vmatprep.subr.mxu0 0.0
    %2411 = vmatpush1.xpose.msra.mxu0 %v2160
    %2412 = vmatprep.subr.mxu0 0.0
    %2413 = vmatpush2.xpose.msra.mxu0 0.0
    %2414 = vmatprep.subr.mxu0 0.0
    %2415 = vmatpush2.xpose.msra.mxu0 0.0
    %2416 = vmatprep.subr.mxu0 0.0
    %2417 = vmatpush2.xpose.msra.mxu0 0.0
    %2418 = vmatprep.subr.mxu0 0.0
    %2419 = vmatpush2.xpose.msra.mxu0 0.0
    %2420 = vmatprep.subr.mxu0 0.0
    %2421 = vmatpush2.xpose.msra.mxu0 0.0
    %2422 = vmatprep.subr.mxu0 0.0
    %2423 = vmatpush2.xpose.msra.mxu0 0.0
    %2424 = vmatprep.subr.mxu0 0.0
    %2425 = vmatpush2.xpose.msra.mxu0 0.0
    %2426 = vmatprep.subr.mxu0 0.0
    %2427 = vmatpush2.xpose.msra.mxu0 0.0
    %2428 = vmatprep.subr.mxu0 0.0
    %2429 = vmatpush2.xpose.msra.mxu0 0.0
    %2430 = vmatprep.subr.mxu0 0.0
    %2431 = vmatpush2.xpose.msra.mxu0 0.0
    %2432 = vmatprep.subr.mxu0 0.0
    %2433 = vmatpush2.xpose.msra.mxu0 0.0
    %2434 = vmatprep.subr.mxu0 0.0
    %2435 = vmatpush2.xpose.msra.mxu0 0.0
    %2436 = vmatprep.subr.mxu0 0.0
    %2437 = vmatpush2.xpose.msra.mxu0 0.0
    %2438 = vmatprep.subr.mxu0 0.0
    %2439 = vmatpush2.xpose.msra.mxu0 0.0
    %2440 = vmatprep.subr.mxu0 0.0
    %2441 = vmatpush2.xpose.msra.mxu0 0.0
    %2442 = vmatprep.subr.mxu0 0.0
    %2443 = vmatpush2.xpose.msra.mxu0 0.0
    %2444 = vmatprep.mubr.f32.mxu0 0.0
    %2445 = vmatmul.mubr.f32.gmra.mxu0 %v2379
    %v2446 = vpop.f32.mrf.mxu0
    %v2447 = vadd.f32 0.0, %v2446
    %v2448 = vpop.f32.mrf.mxu0
    %2449 = vdwg.mxu0
    %v2450 = vsel %vm2162, %v2447, -1e+30
    %vm2451 = vcmask 57344
    %v2452 = vsel %vm2451, %v2450, -inf
    %2453 = vmax.xlane.f32.xlu0 %v2452
    %v2454 = vpop.xlane.xlu0 %2453
    %v2455 = vsub.f32 %v2450, %v2454
    %v2456 = vmul.f32 %v2455, 1.442695
    %v2457 = vpow.pop %v2456
    %v2458 = vmul.f32 %v2457, %v2164
    %v2459 = vsel %vm2451, %v2458, 0.0
    %2460 = vadd.xlane.f32.xlu0 %v2459
    %v2461 = vpop.xlane.xlu0 %2460
    %v2462 = vmax.f32 %v2461, 1e-30
    %v2463 = vrcp.pop %v2462
    %v2464 = vmul.f32 %v2458, %v2463
    %vm2465 = vcmask 64512
    %v2467 = vsel %vm2465, %v2464, 0
    %2469 = vmatprep.subr.mxu0 0.0
    %2470 = vmatpush1.msra.mxu0 0.0
    %2471 = vmatprep.subr.mxu0 0.0
    %2472 = vmatpush1.msra.mxu0 0.0
    %2473 = vmatprep.subr.mxu0 0.0
    %2474 = vmatpush1.msra.mxu0 0.0
    %2475 = vmatprep.subr.mxu0 0.0
    %2476 = vmatpush1.msra.mxu0 0.0
    %2477 = vmatprep.subr.mxu0 0.0
    %2478 = vmatpush1.msra.mxu0 0.0
    %2479 = vmatprep.subr.mxu0 0.0
    %2480 = vmatpush1.msra.mxu0 0.0
    %2481 = vmatprep.subr.mxu0 0.0
    %2482 = vmatpush1.msra.mxu0 0.0
    %2483 = vmatprep.subr.mxu0 0.0
    %2484 = vmatpush1.msra.mxu0 0.0
    %2485 = vmatprep.subr.mxu0 0.0
    %2486 = vmatpush1.msra.mxu0 0.0
    %2487 = vmatprep.subr.mxu0 0.0
    %2488 = vmatpush1.msra.mxu0 0.0
    %2489 = vmatprep.subr.mxu0 0.0
    %2490 = vmatpush1.msra.mxu0 0.0
    %2491 = vmatprep.subr.mxu0 0.0
    %2492 = vmatpush1.msra.mxu0 0.0
    %2493 = vmatprep.subr.mxu0 0.0
    %2494 = vmatpush1.msra.mxu0 0.0
    %2495 = vmatprep.subr.mxu0 0.0
    %2496 = vmatpush1.msra.mxu0 0.0
    %2497 = vmatprep.subr.mxu0 0.0
    %2498 = vmatpush1.msra.mxu0 0.0
    %2499 = vmatprep.subr.mxu0 0.0
    %2500 = vmatpush1.msra.mxu0 %v2160
    %2501 = vmatprep.subr.mxu0 0.0
    %2502 = vmatpush2.msra.mxu0 0.0
    %2503 = vmatprep.subr.mxu0 0.0
    %2504 = vmatpush2.msra.mxu0 0.0
    %2505 = vmatprep.subr.mxu0 0.0
    %2506 = vmatpush2.msra.mxu0 0.0
    %2507 = vmatprep.subr.mxu0 0.0
    %2508 = vmatpush2.msra.mxu0 0.0
    %2509 = vmatprep.subr.mxu0 0.0
    %2510 = vmatpush2.msra.mxu0 0.0
    %2511 = vmatprep.subr.mxu0 0.0
    %2512 = vmatpush2.msra.mxu0 0.0
    %2513 = vmatprep.subr.mxu0 0.0
    %2514 = vmatpush2.msra.mxu0 0.0
    %2515 = vmatprep.subr.mxu0 0.0
    %2516 = vmatpush2.msra.mxu0 0.0
    %2517 = vmatprep.subr.mxu0 0.0
    %2518 = vmatpush2.msra.mxu0 0.0
    %2519 = vmatprep.subr.mxu0 0.0
    %2520 = vmatpush2.msra.mxu0 0.0
    %2521 = vmatprep.subr.mxu0 0.0
    %2522 = vmatpush2.msra.mxu0 0.0
    %2523 = vmatprep.subr.mxu0 0.0
    %2524 = vmatpush2.msra.mxu0 0.0
    %2525 = vmatprep.subr.mxu0 0.0
    %2526 = vmatpush2.msra.mxu0 0.0
    %2527 = vmatprep.subr.mxu0 0.0
    %2528 = vmatpush2.msra.mxu0 0.0
    %2529 = vmatprep.subr.mxu0 0.0
    %2530 = vmatpush2.msra.mxu0 0.0
    %2531 = vmatprep.subr.mxu0 0.0
    %2532 = vmatpush2.msra.mxu0 0.0
    %2533 = vmatprep.mubr.f32.mxu0 0.0
    %2534 = vmatmul.mubr.f32.gmra.mxu0 %v2467
    %v2535 = vpop.f32.mrf.mxu0
    %v2536 = vadd.f32 0.0, %v2535
    %v2537 = vpop.f32.mrf.mxu0
    %2538 = vdwg.mxu0
    %v2539 = vadd.f32 %v2379, %v2536
    %2540 = vmatprep.subr.mxu0 0.0
    %2541 = vmatpush1.msra.mxu0 %v380
    %2542 = vmatprep.subr.mxu0 0.0
    %2543 = vmatpush1.msra.mxu0 %v379
    %2544 = vmatprep.subr.mxu0 0.0
    %2545 = vmatpush1.msra.mxu0 %v378
    %2546 = vmatprep.subr.mxu0 0.0
    %2547 = vmatpush1.msra.mxu0 %v377
    %2548 = vmatprep.subr.mxu0 0.0
    %2549 = vmatpush1.msra.mxu0 %v376
    %2550 = vmatprep.subr.mxu0 0.0
    %2551 = vmatpush1.msra.mxu0 %v375
    %2552 = vmatprep.subr.mxu0 0.0
    %2553 = vmatpush1.msra.mxu0 %v374
    %2554 = vmatprep.subr.mxu0 0.0
    %2555 = vmatpush1.msra.mxu0 %v373
    %2556 = vmatprep.subr.mxu0 0.0
    %2557 = vmatpush1.msra.mxu0 %v372
    %2558 = vmatprep.subr.mxu0 0.0
    %2559 = vmatpush1.msra.mxu0 %v371
    %2560 = vmatprep.subr.mxu0 0.0
    %2561 = vmatpush1.msra.mxu0 %v370
    %2562 = vmatprep.subr.mxu0 0.0
    %2563 = vmatpush1.msra.mxu0 %v369
    %2564 = vmatprep.subr.mxu0 0.0
    %2565 = vmatpush1.msra.mxu0 %v368
    %2566 = vmatprep.subr.mxu0 0.0
    %2567 = vmatpush1.msra.mxu0 %v367
    %2568 = vmatprep.subr.mxu0 0.0
    %2569 = vmatpush1.msra.mxu0 %v366
    %2570 = vmatprep.subr.mxu0 0.0
    %2571 = vmatpush1.msra.mxu0 %v365
    %2572 = vmatprep.subr.mxu0 0.0
    %2573 = vmatpush2.msra.mxu0 0.0
    %2574 = vmatprep.subr.mxu0 0.0
    %2575 = vmatpush2.msra.mxu0 0.0
    %2576 = vmatprep.subr.mxu0 0.0
    %2577 = vmatpush2.msra.mxu0 0.0
    %2578 = vmatprep.subr.mxu0 0.0
    %2579 = vmatpush2.msra.mxu0 0.0
    %2580 = vmatprep.subr.mxu0 0.0
    %2581 = vmatpush2.msra.mxu0 0.0
    %2582 = vmatprep.subr.mxu0 0.0
    %2583 = vmatpush2.msra.mxu0 0.0
    %2584 = vmatprep.subr.mxu0 0.0
    %2585 = vmatpush2.msra.mxu0 0.0
    %2586 = vmatprep.subr.mxu0 0.0
    %2587 = vmatpush2.msra.mxu0 0.0
    %2588 = vmatprep.subr.mxu0 0.0
    %2589 = vmatpush2.msra.mxu0 0.0
    %2590 = vmatprep.subr.mxu0 0.0
    %2591 = vmatpush2.msra.mxu0 0.0
    %2592 = vmatprep.subr.mxu0 0.0
    %2593 = vmatpush2.msra.mxu0 0.0
    %2594 = vmatprep.subr.mxu0 0.0
    %2595 = vmatpush2.msra.mxu0 0.0
    %2596 = vmatprep.subr.mxu0 0.0
    %2597 = vmatpush2.msra.mxu0 0.0
    %2598 = vmatprep.subr.mxu0 0.0
    %2599 = vmatpush2.msra.mxu0 0.0
    %2600 = vmatprep.subr.mxu0 0.0
    %2601 = vmatpush2.msra.mxu0 0.0
    %2602 = vmatprep.subr.mxu0 0.0
    %2603 = vmatpush2.msra.mxu0 0.0
    %2604 = vmatprep.mubr.f32.mxu0 0.0
    %2605 = vmatmul.mubr.f32.gmra.mxu0 %v2539
    %v2606 = vpop.f32.mrf.mxu0
    %v2607 = vadd.f32 %v381, %v2606
    %v2608 = vpop.f32.mrf.mxu0
    %2609 = vdwg.mxu0
    %2610 = vst [vmem:[#allocation21 + $0x1] sm:$0x1] %v2607
    %v2611 = vsel %vm384, %v2607, -1e+30
    %vm2612 = vcmask 1040384
    %v2613 = vsel %vm2612, %v2611, -inf
    %2614 = vmax.xlane.f32.xlu0 %v2613
    %v2615 = vpop.xlane.xlu0 %2614
    %vm2616 = vcmp.ge.f32.partialorder %v2611, %v2615
    %v2617 = vsel %vm2616, %v383, 128
    %v2618 = vsel %vm2612, %v2617, 2147483647
    %v2619 = vand.u32 %v2618, 65535
    %v2620 = vshra.s32 %v2618, 16
    %v2621 = vcvt.s32.f32 %v2619
    %v2622 = vcvt.s32.f32 %v2620
    %2623 = vmin.xlane.f32.xlu0 %v2622
    %v2624 = vpop.xlane.xlu0 %2623
    %vm2625 = vcmp.eq.f32.partialorder %v2622, %v2624
    %v2626 = vsel %vm2625, %v2621, inf
    %2627 = vmin.xlane.f32.xlu0 %v2626
    %v2628 = vpop.xlane.xlu0 %2627
    %v2629 = vcvt.f32.s32 %v2628
    %v2630 = vcvt.f32.s32 %v2624
    %v2631 = vshll.u32 %v2630, 16
    %v2632 = vadd.s32 %v2631, %v2629
    %vm2633 = vcmp.eq.s32.totalorder %v383, %v2632
    %v2634 = vsel %vm2633, 1, 0
    %v2635 = vcvt.s32.f32 %v2634
    %s2636 = sld [smem:[#allocation8 + $0x1]]
    %v2637 = vstv %s2636
    %vm2638 = vcmp.eq.s32.totalorder %v383, %v2637
    %v2639 = vsel %vm2638, 1, 0
    %v2640 = vcvt.s32.f32 %v2639
    %s2641 = sld [smem:[#allocation10 + $0x1]]
    %p2642 = scmp.gt.s32.totalorder %s2641, 0
    %s2643 = scalar_select %p2642, 1, 0
    %v2644 = vstv %s2643
    %vm2645 = vcmp.eq.s32.totalorder %v2644, 1
    %v2646 = vsel %vm2645, %v2640, %v2635
    %2647 = vmatprep.subr.mxu0 %v297
    %2648 = vmatpush1.msra.mxu0 %v296
    %2649 = vmatprep.subr.mxu0 %v293
    %2650 = vmatpush1.msra.mxu0 %v292
    %2651 = vmatprep.subr.mxu0 %v289
    %2652 = vmatpush1.msra.mxu0 %v288
    %2653 = vmatprep.subr.mxu0 %v285
    %2654 = vmatpush1.msra.mxu0 %v284
    %2655 = vmatprep.subr.mxu0 %v281
    %2656 = vmatpush1.msra.mxu0 %v280
    %2657 = vmatprep.subr.mxu0 %v277
    %2658 = vmatpush1.msra.mxu0 %v276
    %2659 = vmatprep.subr.mxu0 %v273
    %2660 = vmatpush1.msra.mxu0 %v272
    %2661 = vmatprep.subr.mxu0 %v269
    %2662 = vmatpush1.msra.mxu0 %v268
    %2663 = vmatprep.subr.mxu0 %v265
    %2664 = vmatpush1.msra.mxu0 %v264
    %2665 = vmatprep.subr.mxu0 %v261
    %2666 = vmatpush1.msra.mxu0 %v260
    %2667 = vmatprep.subr.mxu0 %v257
    %2668 = vmatpush1.msra.mxu0 %v256
    %2669 = vmatprep.subr.mxu0 %v253
    %2670 = vmatpush1.msra.mxu0 %v252
    %2671 = vmatprep.subr.mxu0 %v249
    %2672 = vmatpush1.msra.mxu0 %v248
    %2673 = vmatprep.subr.mxu0 %v245
    %2674 = vmatpush1.msra.mxu0 %v244
    %2675 = vmatprep.subr.mxu0 %v241
    %2676 = vmatpush1.msra.mxu0 %v240
    %2677 = vmatprep.subr.mxu0 %v237
    %2678 = vmatpush1.msra.mxu0 %v236
    %2679 = vmatprep.subr.mxu0 0.0
    %2680 = vmatpush2.msra.mxu0 0.0
    %2681 = vmatprep.subr.mxu0 0.0
    %2682 = vmatpush2.msra.mxu0 0.0
    %2683 = vmatprep.subr.mxu0 0.0
    %2684 = vmatpush2.msra.mxu0 0.0
    %2685 = vmatprep.subr.mxu0 0.0
    %2686 = vmatpush2.msra.mxu0 0.0
    %2687 = vmatprep.subr.mxu0 0.0
    %2688 = vmatpush2.msra.mxu0 0.0
    %2689 = vmatprep.subr.mxu0 0.0
    %2690 = vmatpush2.msra.mxu0 0.0
    %2691 = vmatprep.subr.mxu0 0.0
    %2692 = vmatpush2.msra.mxu0 0.0
    %2693 = vmatprep.subr.mxu0 0.0
    %2694 = vmatpush2.msra.mxu0 0.0
    %2695 = vmatprep.subr.mxu0 0.0
    %2696 = vmatpush2.msra.mxu0 0.0
    %2697 = vmatprep.subr.mxu0 0.0
    %2698 = vmatpush2.msra.mxu0 0.0
    %2699 = vmatprep.subr.mxu0 0.0
    %2700 = vmatpush2.msra.mxu0 0.0
    %2701 = vmatprep.subr.mxu0 0.0
    %2702 = vmatpush2.msra.mxu0 0.0
    %2703 = vmatprep.subr.mxu0 0.0
    %2704 = vmatpush2.msra.mxu0 0.0
    %2705 = vmatprep.subr.mxu0 0.0
    %2706 = vmatpush2.msra.mxu0 0.0
    %2707 = vmatprep.subr.mxu0 0.0
    %2708 = vmatpush2.msra.mxu0 0.0
    %2709 = vmatprep.subr.mxu0 0.0
    %2710 = vmatpush2.msra.mxu0 0.0
    %2711 = vmatprep.mubr.f32.mxu0 0.0
    %2712 = vmatmul.mubr.f32.gmra.mxu0 %v2379
    %v2713 = vpop.f32.mrf.mxu0
    %v2714 = vadd.f32 0.0, %v2713
    %v2715 = vpop.f32.mrf.mxu0
    %v2716 = vadd.f32 0.0, %v2715
    %2717 = vdwg.mxu0
    %2718 = vmatprep.subr.mxu0 %v299
    %2719 = vmatpush1.msra.mxu0 %v298
    %2720 = vmatprep.subr.mxu0 %v295
    %2721 = vmatpush1.msra.mxu0 %v294
    %2722 = vmatprep.subr.mxu0 %v291
    %2723 = vmatpush1.msra.mxu0 %v290
    %2724 = vmatprep.subr.mxu0 %v287
    %2725 = vmatpush1.msra.mxu0 %v286
    %2726 = vmatprep.subr.mxu0 %v283
    %2727 = vmatpush1.msra.mxu0 %v282
    %2728 = vmatprep.subr.mxu0 %v279
    %2729 = vmatpush1.msra.mxu0 %v278
    %2730 = vmatprep.subr.mxu0 %v275
    %2731 = vmatpush1.msra.mxu0 %v274
    %2732 = vmatprep.subr.mxu0 %v271
    %2733 = vmatpush1.msra.mxu0 %v270
    %2734 = vmatprep.subr.mxu0 %v267
    %2735 = vmatpush1.msra.mxu0 %v266
    %2736 = vmatprep.subr.mxu0 %v263
    %2737 = vmatpush1.msra.mxu0 %v262
    %2738 = vmatprep.subr.mxu0 %v259
    %2739 = vmatpush1.msra.mxu0 %v258
    %2740 = vmatprep.subr.mxu0 %v255
    %2741 = vmatpush1.msra.mxu0 %v254
    %2742 = vmatprep.subr.mxu0 %v251
    %2743 = vmatpush1.msra.mxu0 %v250
    %2744 = vmatprep.subr.mxu0 %v247
    %2745 = vmatpush1.msra.mxu0 %v246
    %2746 = vmatprep.subr.mxu0 %v243
    %2747 = vmatpush1.msra.mxu0 %v242
    %2748 = vmatprep.subr.mxu0 %v239
    %2749 = vmatpush1.msra.mxu0 %v238
    %2750 = vmatprep.subr.mxu0 0.0
    %2751 = vmatpush2.msra.mxu0 0.0
    %2752 = vmatprep.subr.mxu0 0.0
    %2753 = vmatpush2.msra.mxu0 0.0
    %2754 = vmatprep.subr.mxu0 0.0
    %2755 = vmatpush2.msra.mxu0 0.0
    %2756 = vmatprep.subr.mxu0 0.0
    %2757 = vmatpush2.msra.mxu0 0.0
    %2758 = vmatprep.subr.mxu0 0.0
    %2759 = vmatpush2.msra.mxu0 0.0
    %2760 = vmatprep.subr.mxu0 0.0
    %2761 = vmatpush2.msra.mxu0 0.0
    %2762 = vmatprep.subr.mxu0 0.0
    %2763 = vmatpush2.msra.mxu0 0.0
    %2764 = vmatprep.subr.mxu0 0.0
    %2765 = vmatpush2.msra.mxu0 0.0
    %2766 = vmatprep.subr.mxu0 0.0
    %2767 = vmatpush2.msra.mxu0 0.0
    %2768 = vmatprep.subr.mxu0 0.0
    %2769 = vmatpush2.msra.mxu0 0.0
    %2770 = vmatprep.subr.mxu0 0.0
    %2771 = vmatpush2.msra.mxu0 0.0
    %2772 = vmatprep.subr.mxu0 0.0
    %2773 = vmatpush2.msra.mxu0 0.0
    %2774 = vmatprep.subr.mxu0 0.0
    %2775 = vmatpush2.msra.mxu0 0.0
    %2776 = vmatprep.subr.mxu0 0.0
    %2777 = vmatpush2.msra.mxu0 0.0
    %2778 = vmatprep.subr.mxu0 0.0
    %2779 = vmatpush2.msra.mxu0 0.0
    %2780 = vmatprep.subr.mxu0 0.0
    %2781 = vmatpush2.msra.mxu0 0.0
    %2782 = vmatprep.mubr.f32.mxu0 0.0
    %2783 = vmatmul.mubr.f32.gmra.mxu0 %v2379
    %v2784 = vpop.f32.mrf.mxu0
    %v2785 = vadd.f32 0.0, %v2784
    %v2786 = vpop.f32.mrf.mxu0
    %v2787 = vadd.f32 0.0, %v2786
    %2788 = vdwg.mxu0
    %2789 = vmatprep.subr.mxu0 %v362
    %2790 = vmatpush1.msra.mxu0 %v361
    %2791 = vmatprep.subr.mxu0 %v358
    %2792 = vmatpush1.msra.mxu0 %v357
    %2793 = vmatprep.subr.mxu0 %v354
    %2794 = vmatpush1.msra.mxu0 %v353
    %2795 = vmatprep.subr.mxu0 %v350
    %2796 = vmatpush1.msra.mxu0 %v349
    %2797 = vmatprep.subr.mxu0 %v346
    %2798 = vmatpush1.msra.mxu0 %v345
    %2799 = vmatprep.subr.mxu0 %v342
    %2800 = vmatpush1.msra.mxu0 %v341
    %2801 = vmatprep.subr.mxu0 %v338
    %2802 = vmatpush1.msra.mxu0 %v337
    %2803 = vmatprep.subr.mxu0 %v334
    %2804 = vmatpush1.msra.mxu0 %v333
    %2805 = vmatprep.subr.mxu0 %v330
    %2806 = vmatpush1.msra.mxu0 %v329
    %2807 = vmatprep.subr.mxu0 %v326
    %2808 = vmatpush1.msra.mxu0 %v325
    %2809 = vmatprep.subr.mxu0 %v322
    %2810 = vmatpush1.msra.mxu0 %v321
    %2811 = vmatprep.subr.mxu0 %v318
    %2812 = vmatpush1.msra.mxu0 %v317
    %2813 = vmatprep.subr.mxu0 %v314
    %2814 = vmatpush1.msra.mxu0 %v313
    %2815 = vmatprep.subr.mxu0 %v310
    %2816 = vmatpush1.msra.mxu0 %v309
    %2817 = vmatprep.subr.mxu0 %v306
    %2818 = vmatpush1.msra.mxu0 %v305
    %2819 = vmatprep.subr.mxu0 %v302
    %2820 = vmatpush1.msra.mxu0 %v301
    %2821 = vmatprep.subr.mxu0 0.0
    %2822 = vmatpush2.msra.mxu0 0.0
    %2823 = vmatprep.subr.mxu0 0.0
    %2824 = vmatpush2.msra.mxu0 0.0
    %2825 = vmatprep.subr.mxu0 0.0
    %2826 = vmatpush2.msra.mxu0 0.0
    %2827 = vmatprep.subr.mxu0 0.0
    %2828 = vmatpush2.msra.mxu0 0.0
    %2829 = vmatprep.subr.mxu0 0.0
    %2830 = vmatpush2.msra.mxu0 0.0
    %2831 = vmatprep.subr.mxu0 0.0
    %2832 = vmatpush2.msra.mxu0 0.0
    %2833 = vmatprep.subr.mxu0 0.0
    %2834 = vmatpush2.msra.mxu0 0.0
    %2835 = vmatprep.subr.mxu0 0.0
    %2836 = vmatpush2.msra.mxu0 0.0
    %2837 = vmatprep.subr.mxu0 0.0
    %2838 = vmatpush2.msra.mxu0 0.0
    %2839 = vmatprep.subr.mxu0 0.0
    %2840 = vmatpush2.msra.mxu0 0.0
    %2841 = vmatprep.subr.mxu0 0.0
    %2842 = vmatpush2.msra.mxu0 0.0
    %2843 = vmatprep.subr.mxu0 0.0
    %2844 = vmatpush2.msra.mxu0 0.0
    %2845 = vmatprep.subr.mxu0 0.0
    %2846 = vmatpush2.msra.mxu0 0.0
    %2847 = vmatprep.subr.mxu0 0.0
    %2848 = vmatpush2.msra.mxu0 0.0
    %2849 = vmatprep.subr.mxu0 0.0
    %2850 = vmatpush2.msra.mxu0 0.0
    %2851 = vmatprep.subr.mxu0 0.0
    %2852 = vmatpush2.msra.mxu0 0.0
    %2853 = vmatprep.mubr.f32.mxu0 0.0
    %2854 = vmatmul.mubr.f32.gmra.mxu0 %v2646
    %v2855 = vpop.f32.mrf.mxu0
    %v2856 = vadd.f32 %v2714, %v2855
    %v2857 = vpop.f32.mrf.mxu0
    %v2858 = vadd.f32 %v2716, %v2857
    %2859 = vdwg.mxu0
    %2860 = vmatprep.subr.mxu0 %v364
    %2861 = vmatpush1.msra.mxu0 %v363
    %2862 = vmatprep.subr.mxu0 %v360
    %2863 = vmatpush1.msra.mxu0 %v359
    %2864 = vmatprep.subr.mxu0 %v356
    %2865 = vmatpush1.msra.mxu0 %v355
    %2866 = vmatprep.subr.mxu0 %v352
    %2867 = vmatpush1.msra.mxu0 %v351
    %2868 = vmatprep.subr.mxu0 %v348
    %2869 = vmatpush1.msra.mxu0 %v347
    %2870 = vmatprep.subr.mxu0 %v344
    %2871 = vmatpush1.msra.mxu0 %v343
    %2872 = vmatprep.subr.mxu0 %v340
    %2873 = vmatpush1.msra.mxu0 %v339
    %2874 = vmatprep.subr.mxu0 %v336
    %2875 = vmatpush1.msra.mxu0 %v335
    %2876 = vmatprep.subr.mxu0 %v332
    %2877 = vmatpush1.msra.mxu0 %v331
    %2878 = vmatprep.subr.mxu0 %v328
    %2879 = vmatpush1.msra.mxu0 %v327
    %2880 = vmatprep.subr.mxu0 %v324
    %2881 = vmatpush1.msra.mxu0 %v323
    %2882 = vmatprep.subr.mxu0 %v320
    %2883 = vmatpush1.msra.mxu0 %v319
    %2884 = vmatprep.subr.mxu0 %v316
    %2885 = vmatpush1.msra.mxu0 %v315
    %2886 = vmatprep.subr.mxu0 %v312
    %2887 = vmatpush1.msra.mxu0 %v311
    %2888 = vmatprep.subr.mxu0 %v308
    %2889 = vmatpush1.msra.mxu0 %v307
    %2890 = vmatprep.subr.mxu0 %v304
    %2891 = vmatpush1.msra.mxu0 %v303
    %2892 = vmatprep.subr.mxu0 0.0
    %2893 = vmatpush2.msra.mxu0 0.0
    %2894 = vmatprep.subr.mxu0 0.0
    %2895 = vmatpush2.msra.mxu0 0.0
    %2896 = vmatprep.subr.mxu0 0.0
    %2897 = vmatpush2.msra.mxu0 0.0
    %2898 = vmatprep.subr.mxu0 0.0
    %2899 = vmatpush2.msra.mxu0 0.0
    %2900 = vmatprep.subr.mxu0 0.0
    %2901 = vmatpush2.msra.mxu0 0.0
    %2902 = vmatprep.subr.mxu0 0.0
    %2903 = vmatpush2.msra.mxu0 0.0
    %2904 = vmatprep.subr.mxu0 0.0
    %2905 = vmatpush2.msra.mxu0 0.0
    %2906 = vmatprep.subr.mxu0 0.0
    %2907 = vmatpush2.msra.mxu0 0.0
    %2908 = vmatprep.subr.mxu0 0.0
    %2909 = vmatpush2.msra.mxu0 0.0
    %2910 = vmatprep.subr.mxu0 0.0
    %2911 = vmatpush2.msra.mxu0 0.0
    %2912 = vmatprep.subr.mxu0 0.0
    %2913 = vmatpush2.msra.mxu0 0.0
    %2914 = vmatprep.subr.mxu0 0.0
    %2915 = vmatpush2.msra.mxu0 0.0
    %2916 = vmatprep.subr.mxu0 0.0
    %2917 = vmatpush2.msra.mxu0 0.0
    %2918 = vmatprep.subr.mxu0 0.0
    %2919 = vmatpush2.msra.mxu0 0.0
    %2920 = vmatprep.subr.mxu0 0.0
    %2921 = vmatpush2.msra.mxu0 0.0
    %2922 = vmatprep.subr.mxu0 0.0
    %2923 = vmatpush2.msra.mxu0 0.0
    %2924 = vmatprep.mubr.f32.mxu0 0.0
    %2925 = vmatmul.mubr.f32.gmra.mxu0 %v2646
    %v2926 = vpop.f32.mrf.mxu0
    %v2927 = vadd.f32 %v2785, %v2926
    %v2928 = vpop.f32.mrf.mxu0
    %v2929 = vadd.f32 %v2787, %v2928
    %2930 = vdwg.mxu0
    %v2932 = vlaneseq
    %v2933 = vshrl.u32 %v2932, 7
    %v2934 = vsub.s32 0, %v2933
    %v2935 = vrot.slane %v300, %v2934
    %v2936 = vlaneseq
    %v2937 = vshrl.u32 %v2936, 7
    %v2938 = vsub.s32 1, %v2937
    %v2939 = vrot.slane %v300, %v2938
    %v2940 = vlaneseq
    %v2941 = vshrl.u32 %v2940, 7
    %v2942 = vsub.s32 2, %v2941
    %v2943 = vrot.slane %v300, %v2942
    %v2944 = vlaneseq
    %v2945 = vshrl.u32 %v2944, 7
    %v2946 = vsub.s32 3, %v2945
    %v2947 = vrot.slane %v300, %v2946
    %v2952 = vadd.f32 %v2856, %v2935
    %v2953 = vadd.f32 %v2858, %v2939
    %v2954 = vadd.f32 %v2927, %v2943
    %v2955 = vadd.f32 %v2929, %v2947
    %v2956 = vxor.u32 %v2952, 2147483648
    %v2957 = vmul.f32 %v2956, 1.442695
    %v2958 = vpow.pop %v2957
    %v2959 = vadd.f32 %v2958, 1.0
    %v2960 = vrcp.pop %v2959
    %v2961 = vmul.f32 1.0, %v2960
    %v2962 = vxor.u32 %v2953, 2147483648
    %v2963 = vmul.f32 %v2962, 1.442695
    %v2964 = vpow.pop %v2963
    %v2965 = vadd.f32 %v2964, 1.0
    %v2966 = vrcp.pop %v2965
    %v2967 = vmul.f32 1.0, %v2966
    %v2968 = vtanh.pop %v2954
    %v2969 = vxor.u32 %v2955, 2147483648
    %v2970 = vmul.f32 %v2969, 1.442695
    %v2971 = vpow.pop %v2970
    %v2972 = vadd.f32 %v2971, 1.0
    %v2973 = vrcp.pop %v2972
    %v2974 = vmul.f32 1.0, %v2973
    %v2975 = vmul.f32 %v2967, %v2377
    %v2976 = vmul.f32 %v2961, %v2968
    %v2977 = vadd.f32 %v2975, %v2976
    %v2978 = vtanh.pop %v2977
    %v2979 = vmul.f32 %v2974, %v2978
    %2980 = vmatprep.subr.mxu0 0.0
    %2981 = vmatpush1.xpose.msra.mxu0 0.0
    %2982 = vmatprep.subr.mxu0 0.0
    %2983 = vmatpush1.xpose.msra.mxu0 0.0
    %2984 = vmatprep.subr.mxu0 0.0
    %2985 = vmatpush1.xpose.msra.mxu0 0.0
    %2986 = vmatprep.subr.mxu0 0.0
    %2987 = vmatpush1.xpose.msra.mxu0 0.0
    %2988 = vmatprep.subr.mxu0 0.0
    %2989 = vmatpush1.xpose.msra.mxu0 0.0
    %2990 = vmatprep.subr.mxu0 0.0
    %2991 = vmatpush1.xpose.msra.mxu0 0.0
    %2992 = vmatprep.subr.mxu0 0.0
    %2993 = vmatpush1.xpose.msra.mxu0 0.0
    %2994 = vmatprep.subr.mxu0 0.0
    %2995 = vmatpush1.xpose.msra.mxu0 0.0
    %2996 = vmatprep.subr.mxu0 0.0
    %2997 = vmatpush1.xpose.msra.mxu0 0.0
    %2998 = vmatprep.subr.mxu0 0.0
    %2999 = vmatpush1.xpose.msra.mxu0 0.0
    %3000 = vmatprep.subr.mxu0 0.0
    %3001 = vmatpush1.xpose.msra.mxu0 0.0
    %3002 = vmatprep.subr.mxu0 0.0
    %3003 = vmatpush1.xpose.msra.mxu0 0.0
    %3004 = vmatprep.subr.mxu0 0.0
    %3005 = vmatpush1.xpose.msra.mxu0 0.0
    %3006 = vmatprep.subr.mxu0 0.0
    %3007 = vmatpush1.xpose.msra.mxu0 0.0
    %3008 = vmatprep.subr.mxu0 0.0
    %3009 = vmatpush1.xpose.msra.mxu0 0.0
    %3010 = vmatprep.subr.mxu0 0.0
    %3011 = vmatpush1.xpose.msra.mxu0 %v2160
    %3012 = vmatprep.subr.mxu0 0.0
    %3013 = vmatpush2.xpose.msra.mxu0 0.0
    %3014 = vmatprep.subr.mxu0 0.0
    %3015 = vmatpush2.xpose.msra.mxu0 0.0
    %3016 = vmatprep.subr.mxu0 0.0
    %3017 = vmatpush2.xpose.msra.mxu0 0.0
    %3018 = vmatprep.subr.mxu0 0.0
    %3019 = vmatpush2.xpose.msra.mxu0 0.0
    %3020 = vmatprep.subr.mxu0 0.0
    %3021 = vmatpush2.xpose.msra.mxu0 0.0
    %3022 = vmatprep.subr.mxu0 0.0
    %3023 = vmatpush2.xpose.msra.mxu0 0.0
    %3024 = vmatprep.subr.mxu0 0.0
    %3025 = vmatpush2.xpose.msra.mxu0 0.0
    %3026 = vmatprep.subr.mxu0 0.0
    %3027 = vmatpush2.xpose.msra.mxu0 0.0
    %3028 = vmatprep.subr.mxu0 0.0
    %3029 = vmatpush2.xpose.msra.mxu0 0.0
    %3030 = vmatprep.subr.mxu0 0.0
    %3031 = vmatpush2.xpose.msra.mxu0 0.0
    %3032 = vmatprep.subr.mxu0 0.0
    %3033 = vmatpush2.xpose.msra.mxu0 0.0
    %3034 = vmatprep.subr.mxu0 0.0
    %3035 = vmatpush2.xpose.msra.mxu0 0.0
    %3036 = vmatprep.subr.mxu0 0.0
    %3037 = vmatpush2.xpose.msra.mxu0 0.0
    %3038 = vmatprep.subr.mxu0 0.0
    %3039 = vmatpush2.xpose.msra.mxu0 0.0
    %3040 = vmatprep.subr.mxu0 0.0
    %3041 = vmatpush2.xpose.msra.mxu0 0.0
    %3042 = vmatprep.subr.mxu0 0.0
    %3043 = vmatpush2.xpose.msra.mxu0 0.0
    %3044 = vmatprep.mubr.f32.mxu0 0.0
    %3045 = vmatmul.mubr.f32.gmra.mxu0 %v2979
    %v3046 = vpop.f32.mrf.mxu0
    %v3047 = vadd.f32 0.0, %v3046
    %v3048 = vpop.f32.mrf.mxu0
    %3049 = vdwg.mxu0
    %v3050 = vsel %vm2162, %v3047, -1e+30
    %v3051 = vsel %vm2451, %v3050, -inf
    %3052 = vmax.xlane.f32.xlu0 %v3051
    %v3053 = vpop.xlane.xlu0 %3052
    %v3054 = vsub.f32 %v3050, %v3053
    %v3055 = vmul.f32 %v3054, 1.442695
    %v3056 = vpow.pop %v3055
    %v3057 = vmul.f32 %v3056, %v2164
    %v3058 = vsel %vm2451, %v3057, 0.0
    %3059 = vadd.xlane.f32.xlu0 %v3058
    %v3060 = vpop.xlane.xlu0 %3059
    %v3061 = vmax.f32 %v3060, 1e-30
    %v3062 = vrcp.pop %v3061
    %v3063 = vmul.f32 %v3057, %v3062
    %v3065 = vsel %vm2465, %v3063, 0
    %3067 = vmatprep.subr.mxu0 0.0
    %3068 = vmatpush1.msra.mxu0 0.0
    %3069 = vmatprep.subr.mxu0 0.0
    %3070 = vmatpush1.msra.mxu0 0.0
    %3071 = vmatprep.subr.mxu0 0.0
    %3072 = vmatpush1.msra.mxu0 0.0
    %3073 = vmatprep.subr.mxu0 0.0
    %3074 = vmatpush1.msra.mxu0 0.0
    %3075 = vmatprep.subr.mxu0 0.0
    %3076 = vmatpush1.msra.mxu0 0.0
    %3077 = vmatprep.subr.mxu0 0.0
    %3078 = vmatpush1.msra.mxu0 0.0
    %3079 = vmatprep.subr.mxu0 0.0
    %3080 = vmatpush1.msra.mxu0 0.0
    %3081 = vmatprep.subr.mxu0 0.0
    %3082 = vmatpush1.msra.mxu0 0.0
    %3083 = vmatprep.subr.mxu0 0.0
    %3084 = vmatpush1.msra.mxu0 0.0
    %3085 = vmatprep.subr.mxu0 0.0
    %3086 = vmatpush1.msra.mxu0 0.0
    %3087 = vmatprep.subr.mxu0 0.0
    %3088 = vmatpush1.msra.mxu0 0.0
    %3089 = vmatprep.subr.mxu0 0.0
    %3090 = vmatpush1.msra.mxu0 0.0
    %3091 = vmatprep.subr.mxu0 0.0
    %3092 = vmatpush1.msra.mxu0 0.0
    %3093 = vmatprep.subr.mxu0 0.0
    %3094 = vmatpush1.msra.mxu0 0.0
    %3095 = vmatprep.subr.mxu0 0.0
    %3096 = vmatpush1.msra.mxu0 0.0
    %3097 = vmatprep.subr.mxu0 0.0
    %3098 = vmatpush1.msra.mxu0 %v2160
    %3099 = vmatprep.subr.mxu0 0.0
    %3100 = vmatpush2.msra.mxu0 0.0
    %3101 = vmatprep.subr.mxu0 0.0
    %3102 = vmatpush2.msra.mxu0 0.0
    %3103 = vmatprep.subr.mxu0 0.0
    %3104 = vmatpush2.msra.mxu0 0.0
    %3105 = vmatprep.subr.mxu0 0.0
    %3106 = vmatpush2.msra.mxu0 0.0
    %3107 = vmatprep.subr.mxu0 0.0
    %3108 = vmatpush2.msra.mxu0 0.0
    %3109 = vmatprep.subr.mxu0 0.0
    %3110 = vmatpush2.msra.mxu0 0.0
    %3111 = vmatprep.subr.mxu0 0.0
    %3112 = vmatpush2.msra.mxu0 0.0
    %3113 = vmatprep.subr.mxu0 0.0
    %3114 = vmatpush2.msra.mxu0 0.0
    %3115 = vmatprep.subr.mxu0 0.0
    %3116 = vmatpush2.msra.mxu0 0.0
    %3117 = vmatprep.subr.mxu0 0.0
    %3118 = vmatpush2.msra.mxu0 0.0
    %3119 = vmatprep.subr.mxu0 0.0
    %3120 = vmatpush2.msra.mxu0 0.0
    %3121 = vmatprep.subr.mxu0 0.0
    %3122 = vmatpush2.msra.mxu0 0.0
    %3123 = vmatprep.subr.mxu0 0.0
    %3124 = vmatpush2.msra.mxu0 0.0
    %3125 = vmatprep.subr.mxu0 0.0
    %3126 = vmatpush2.msra.mxu0 0.0
    %3127 = vmatprep.subr.mxu0 0.0
    %3128 = vmatpush2.msra.mxu0 0.0
    %3129 = vmatprep.subr.mxu0 0.0
    %3130 = vmatpush2.msra.mxu0 0.0
    %3131 = vmatprep.mubr.f32.mxu0 0.0
    %3132 = vmatmul.mubr.f32.gmra.mxu0 %v3065
    %v3133 = vpop.f32.mrf.mxu0
    %v3134 = vadd.f32 0.0, %v3133
    %v3135 = vpop.f32.mrf.mxu0
    %3136 = vdwg.mxu0
    %v3137 = vadd.f32 %v2979, %v3134
    %3138 = vmatprep.subr.mxu0 0.0
    %3139 = vmatpush1.msra.mxu0 %v380
    %3140 = vmatprep.subr.mxu0 0.0
    %3141 = vmatpush1.msra.mxu0 %v379
    %3142 = vmatprep.subr.mxu0 0.0
    %3143 = vmatpush1.msra.mxu0 %v378
    %3144 = vmatprep.subr.mxu0 0.0
    %3145 = vmatpush1.msra.mxu0 %v377
    %3146 = vmatprep.subr.mxu0 0.0
    %3147 = vmatpush1.msra.mxu0 %v376
    %3148 = vmatprep.subr.mxu0 0.0
    %3149 = vmatpush1.msra.mxu0 %v375
    %3150 = vmatprep.subr.mxu0 0.0
    %3151 = vmatpush1.msra.mxu0 %v374
    %3152 = vmatprep.subr.mxu0 0.0
    %3153 = vmatpush1.msra.mxu0 %v373
    %3154 = vmatprep.subr.mxu0 0.0
    %3155 = vmatpush1.msra.mxu0 %v372
    %3156 = vmatprep.subr.mxu0 0.0
    %3157 = vmatpush1.msra.mxu0 %v371
    %3158 = vmatprep.subr.mxu0 0.0
    %3159 = vmatpush1.msra.mxu0 %v370
    %3160 = vmatprep.subr.mxu0 0.0
    %3161 = vmatpush1.msra.mxu0 %v369
    %3162 = vmatprep.subr.mxu0 0.0
    %3163 = vmatpush1.msra.mxu0 %v368
    %3164 = vmatprep.subr.mxu0 0.0
    %3165 = vmatpush1.msra.mxu0 %v367
    %3166 = vmatprep.subr.mxu0 0.0
    %3167 = vmatpush1.msra.mxu0 %v366
    %3168 = vmatprep.subr.mxu0 0.0
    %3169 = vmatpush1.msra.mxu0 %v365
    %3170 = vmatprep.subr.mxu0 0.0
    %3171 = vmatpush2.msra.mxu0 0.0
    %3172 = vmatprep.subr.mxu0 0.0
    %3173 = vmatpush2.msra.mxu0 0.0
    %3174 = vmatprep.subr.mxu0 0.0
    %3175 = vmatpush2.msra.mxu0 0.0
    %3176 = vmatprep.subr.mxu0 0.0
    %3177 = vmatpush2.msra.mxu0 0.0
    %3178 = vmatprep.subr.mxu0 0.0
    %3179 = vmatpush2.msra.mxu0 0.0
    %3180 = vmatprep.subr.mxu0 0.0
    %3181 = vmatpush2.msra.mxu0 0.0
    %3182 = vmatprep.subr.mxu0 0.0
    %3183 = vmatpush2.msra.mxu0 0.0
    %3184 = vmatprep.subr.mxu0 0.0
    %3185 = vmatpush2.msra.mxu0 0.0
    %3186 = vmatprep.subr.mxu0 0.0
    %3187 = vmatpush2.msra.mxu0 0.0
    %3188 = vmatprep.subr.mxu0 0.0
    %3189 = vmatpush2.msra.mxu0 0.0
    %3190 = vmatprep.subr.mxu0 0.0
    %3191 = vmatpush2.msra.mxu0 0.0
    %3192 = vmatprep.subr.mxu0 0.0
    %3193 = vmatpush2.msra.mxu0 0.0
    %3194 = vmatprep.subr.mxu0 0.0
    %3195 = vmatpush2.msra.mxu0 0.0
    %3196 = vmatprep.subr.mxu0 0.0
    %3197 = vmatpush2.msra.mxu0 0.0
    %3198 = vmatprep.subr.mxu0 0.0
    %3199 = vmatpush2.msra.mxu0 0.0
    %3200 = vmatprep.subr.mxu0 0.0
    %3201 = vmatpush2.msra.mxu0 0.0
    %3202 = vmatprep.mubr.f32.mxu0 0.0
    %3203 = vmatmul.mubr.f32.gmra.mxu0 %v3137
    %v3204 = vpop.f32.mrf.mxu0
    %v3205 = vadd.f32 %v381, %v3204
    %v3206 = vpop.f32.mrf.mxu0
    %3207 = vdwg.mxu0
    %3208 = vst [vmem:[#allocation21 + $0x2] sm:$0x1] %v3205
    %v3209 = vsel %vm384, %v3205, -1e+30
    %v3210 = vsel %vm2612, %v3209, -inf
    %3211 = vmax.xlane.f32.xlu0 %v3210
    %v3212 = vpop.xlane.xlu0 %3211
    %vm3213 = vcmp.ge.f32.partialorder %v3209, %v3212
    %v3214 = vsel %vm3213, %v383, 128
    %v3215 = vsel %vm2612, %v3214, 2147483647
    %v3216 = vand.u32 %v3215, 65535
    %v3217 = vshra.s32 %v3215, 16
    %v3218 = vcvt.s32.f32 %v3216
    %v3219 = vcvt.s32.f32 %v3217
    %3220 = vmin.xlane.f32.xlu0 %v3219
    %v3221 = vpop.xlane.xlu0 %3220
    %vm3222 = vcmp.eq.f32.partialorder %v3219, %v3221
    %v3223 = vsel %vm3222, %v3218, inf
    %3224 = vmin.xlane.f32.xlu0 %v3223
    %v3225 = vpop.xlane.xlu0 %3224
    %v3226 = vcvt.f32.s32 %v3225
    %v3227 = vcvt.f32.s32 %v3221
    %v3228 = vshll.u32 %v3227, 16
    %v3229 = vadd.s32 %v3228, %v3226
    %vm3230 = vcmp.eq.s32.totalorder %v383, %v3229
    %v3231 = vsel %vm3230, 1, 0
    %v3232 = vcvt.s32.f32 %v3231
    %s3233 = sld [smem:[#allocation8 + $0x2]]
    %v3234 = vstv %s3233
    %vm3235 = vcmp.eq.s32.totalorder %v383, %v3234
    %v3236 = vsel %vm3235, 1, 0
    %v3237 = vcvt.s32.f32 %v3236
    %s3238 = sld [smem:[#allocation10 + $0x2]]
    %p3239 = scmp.gt.s32.totalorder %s3238, 0
    %s3240 = scalar_select %p3239, 1, 0
    %v3241 = vstv %s3240
    %vm3242 = vcmp.eq.s32.totalorder %v3241, 1
    %v3243 = vsel %vm3242, %v3237, %v3232
    %3244 = vmatprep.subr.mxu0 %v297
    %3245 = vmatpush1.msra.mxu0 %v296
    %3246 = vmatprep.subr.mxu0 %v293
    %3247 = vmatpush1.msra.mxu0 %v292
    %3248 = vmatprep.subr.mxu0 %v289
    %3249 = vmatpush1.msra.mxu0 %v288
    %3250 = vmatprep.subr.mxu0 %v285
    %3251 = vmatpush1.msra.mxu0 %v284
    %3252 = vmatprep.subr.mxu0 %v281
    %3253 = vmatpush1.msra.mxu0 %v280
    %3254 = vmatprep.subr.mxu0 %v277
    %3255 = vmatpush1.msra.mxu0 %v276
    %3256 = vmatprep.subr.mxu0 %v273
    %3257 = vmatpush1.msra.mxu0 %v272
    %3258 = vmatprep.subr.mxu0 %v269
    %3259 = vmatpush1.msra.mxu0 %v268
    %3260 = vmatprep.subr.mxu0 %v265
    %3261 = vmatpush1.msra.mxu0 %v264
    %3262 = vmatprep.subr.mxu0 %v261
    %3263 = vmatpush1.msra.mxu0 %v260
    %3264 = vmatprep.subr.mxu0 %v257
    %3265 = vmatpush1.msra.mxu0 %v256
    %3266 = vmatprep.subr.mxu0 %v253
    %3267 = vmatpush1.msra.mxu0 %v252
    %3268 = vmatprep.subr.mxu0 %v249
    %3269 = vmatpush1.msra.mxu0 %v248
    %3270 = vmatprep.subr.mxu0 %v245
    %3271 = vmatpush1.msra.mxu0 %v244
    %3272 = vmatprep.subr.mxu0 %v241
    %3273 = vmatpush1.msra.mxu0 %v240
    %3274 = vmatprep.subr.mxu0 %v237
    %3275 = vmatpush1.msra.mxu0 %v236
    %3276 = vmatprep.subr.mxu0 0.0
    %3277 = vmatpush2.msra.mxu0 0.0
    %3278 = vmatprep.subr.mxu0 0.0
    %3279 = vmatpush2.msra.mxu0 0.0
    %3280 = vmatprep.subr.mxu0 0.0
    %3281 = vmatpush2.msra.mxu0 0.0
    %3282 = vmatprep.subr.mxu0 0.0
    %3283 = vmatpush2.msra.mxu0 0.0
    %3284 = vmatprep.subr.mxu0 0.0
    %3285 = vmatpush2.msra.mxu0 0.0
    %3286 = vmatprep.subr.mxu0 0.0
    %3287 = vmatpush2.msra.mxu0 0.0
    %3288 = vmatprep.subr.mxu0 0.0
    %3289 = vmatpush2.msra.mxu0 0.0
    %3290 = vmatprep.subr.mxu0 0.0
    %3291 = vmatpush2.msra.mxu0 0.0
    %3292 = vmatprep.subr.mxu0 0.0
    %3293 = vmatpush2.msra.mxu0 0.0
    %3294 = vmatprep.subr.mxu0 0.0
    %3295 = vmatpush2.msra.mxu0 0.0
    %3296 = vmatprep.subr.mxu0 0.0
    %3297 = vmatpush2.msra.mxu0 0.0
    %3298 = vmatprep.subr.mxu0 0.0
    %3299 = vmatpush2.msra.mxu0 0.0
    %3300 = vmatprep.subr.mxu0 0.0
    %3301 = vmatpush2.msra.mxu0 0.0
    %3302 = vmatprep.subr.mxu0 0.0
    %3303 = vmatpush2.msra.mxu0 0.0
    %3304 = vmatprep.subr.mxu0 0.0
    %3305 = vmatpush2.msra.mxu0 0.0
    %3306 = vmatprep.subr.mxu0 0.0
    %3307 = vmatpush2.msra.mxu0 0.0
    %3308 = vmatprep.mubr.f32.mxu0 0.0
    %3309 = vmatmul.mubr.f32.gmra.mxu0 %v2979
    %v3310 = vpop.f32.mrf.mxu0
    %v3311 = vadd.f32 0.0, %v3310
    %v3312 = vpop.f32.mrf.mxu0
    %v3313 = vadd.f32 0.0, %v3312
    %3314 = vdwg.mxu0
    %3315 = vmatprep.subr.mxu0 %v299
    %3316 = vmatpush1.msra.mxu0 %v298
    %3317 = vmatprep.subr.mxu0 %v295
    %3318 = vmatpush1.msra.mxu0 %v294
    %3319 = vmatprep.subr.mxu0 %v291
    %3320 = vmatpush1.msra.mxu0 %v290
    %3321 = vmatprep.subr.mxu0 %v287
    %3322 = vmatpush1.msra.mxu0 %v286
    %3323 = vmatprep.subr.mxu0 %v283
    %3324 = vmatpush1.msra.mxu0 %v282
    %3325 = vmatprep.subr.mxu0 %v279
    %3326 = vmatpush1.msra.mxu0 %v278
    %3327 = vmatprep.subr.mxu0 %v275
    %3328 = vmatpush1.msra.mxu0 %v274
    %3329 = vmatprep.subr.mxu0 %v271
    %3330 = vmatpush1.msra.mxu0 %v270
    %3331 = vmatprep.subr.mxu0 %v267
    %3332 = vmatpush1.msra.mxu0 %v266
    %3333 = vmatprep.subr.mxu0 %v263
    %3334 = vmatpush1.msra.mxu0 %v262
    %3335 = vmatprep.subr.mxu0 %v259
    %3336 = vmatpush1.msra.mxu0 %v258
    %3337 = vmatprep.subr.mxu0 %v255
    %3338 = vmatpush1.msra.mxu0 %v254
    %3339 = vmatprep.subr.mxu0 %v251
    %3340 = vmatpush1.msra.mxu0 %v250
    %3341 = vmatprep.subr.mxu0 %v247
    %3342 = vmatpush1.msra.mxu0 %v246
    %3343 = vmatprep.subr.mxu0 %v243
    %3344 = vmatpush1.msra.mxu0 %v242
    %3345 = vmatprep.subr.mxu0 %v239
    %3346 = vmatpush1.msra.mxu0 %v238
    %3347 = vmatprep.subr.mxu0 0.0
    %3348 = vmatpush2.msra.mxu0 0.0
    %3349 = vmatprep.subr.mxu0 0.0
    %3350 = vmatpush2.msra.mxu0 0.0
    %3351 = vmatprep.subr.mxu0 0.0
    %3352 = vmatpush2.msra.mxu0 0.0
    %3353 = vmatprep.subr.mxu0 0.0
    %3354 = vmatpush2.msra.mxu0 0.0
    %3355 = vmatprep.subr.mxu0 0.0
    %3356 = vmatpush2.msra.mxu0 0.0
    %3357 = vmatprep.subr.mxu0 0.0
    %3358 = vmatpush2.msra.mxu0 0.0
    %3359 = vmatprep.subr.mxu0 0.0
    %3360 = vmatpush2.msra.mxu0 0.0
    %3361 = vmatprep.subr.mxu0 0.0
    %3362 = vmatpush2.msra.mxu0 0.0
    %3363 = vmatprep.subr.mxu0 0.0
    %3364 = vmatpush2.msra.mxu0 0.0
    %3365 = vmatprep.subr.mxu0 0.0
    %3366 = vmatpush2.msra.mxu0 0.0
    %3367 = vmatprep.subr.mxu0 0.0
    %3368 = vmatpush2.msra.mxu0 0.0
    %3369 = vmatprep.subr.mxu0 0.0
    %3370 = vmatpush2.msra.mxu0 0.0
    %3371 = vmatprep.subr.mxu0 0.0
    %3372 = vmatpush2.msra.mxu0 0.0
    %3373 = vmatprep.subr.mxu0 0.0
    %3374 = vmatpush2.msra.mxu0 0.0
    %3375 = vmatprep.subr.mxu0 0.0
    %3376 = vmatpush2.msra.mxu0 0.0
    %3377 = vmatprep.subr.mxu0 0.0
    %3378 = vmatpush2.msra.mxu0 0.0
    %3379 = vmatprep.mubr.f32.mxu0 0.0
    %3380 = vmatmul.mubr.f32.gmra.mxu0 %v2979
    %v3381 = vpop.f32.mrf.mxu0
    %v3382 = vadd.f32 0.0, %v3381
    %v3383 = vpop.f32.mrf.mxu0
    %v3384 = vadd.f32 0.0, %v3383
    %3385 = vdwg.mxu0
    %3386 = vmatprep.subr.mxu0 %v362
    %3387 = vmatpush1.msra.mxu0 %v361
    %3388 = vmatprep.subr.mxu0 %v358
    %3389 = vmatpush1.msra.mxu0 %v357
    %3390 = vmatprep.subr.mxu0 %v354
    %3391 = vmatpush1.msra.mxu0 %v353
    %3392 = vmatprep.subr.mxu0 %v350
    %3393 = vmatpush1.msra.mxu0 %v349
    %3394 = vmatprep.subr.mxu0 %v346
    %3395 = vmatpush1.msra.mxu0 %v345
    %3396 = vmatprep.subr.mxu0 %v342
    %3397 = vmatpush1.msra.mxu0 %v341
    %3398 = vmatprep.subr.mxu0 %v338
    %3399 = vmatpush1.msra.mxu0 %v337
    %3400 = vmatprep.subr.mxu0 %v334
    %3401 = vmatpush1.msra.mxu0 %v333
    %3402 = vmatprep.subr.mxu0 %v330
    %3403 = vmatpush1.msra.mxu0 %v329
    %3404 = vmatprep.subr.mxu0 %v326
    %3405 = vmatpush1.msra.mxu0 %v325
    %3406 = vmatprep.subr.mxu0 %v322
    %3407 = vmatpush1.msra.mxu0 %v321
    %3408 = vmatprep.subr.mxu0 %v318
    %3409 = vmatpush1.msra.mxu0 %v317
    %3410 = vmatprep.subr.mxu0 %v314
    %3411 = vmatpush1.msra.mxu0 %v313
    %3412 = vmatprep.subr.mxu0 %v310
    %3413 = vmatpush1.msra.mxu0 %v309
    %3414 = vmatprep.subr.mxu0 %v306
    %3415 = vmatpush1.msra.mxu0 %v305
    %3416 = vmatprep.subr.mxu0 %v302
    %3417 = vmatpush1.msra.mxu0 %v301
    %3418 = vmatprep.subr.mxu0 0.0
    %3419 = vmatpush2.msra.mxu0 0.0
    %3420 = vmatprep.subr.mxu0 0.0
    %3421 = vmatpush2.msra.mxu0 0.0
    %3422 = vmatprep.subr.mxu0 0.0
    %3423 = vmatpush2.msra.mxu0 0.0
    %3424 = vmatprep.subr.mxu0 0.0
    %3425 = vmatpush2.msra.mxu0 0.0
    %3426 = vmatprep.subr.mxu0 0.0
    %3427 = vmatpush2.msra.mxu0 0.0
    %3428 = vmatprep.subr.mxu0 0.0
    %3429 = vmatpush2.msra.mxu0 0.0
    %3430 = vmatprep.subr.mxu0 0.0
    %3431 = vmatpush2.msra.mxu0 0.0
    %3432 = vmatprep.subr.mxu0 0.0
    %3433 = vmatpush2.msra.mxu0 0.0
    %3434 = vmatprep.subr.mxu0 0.0
    %3435 = vmatpush2.msra.mxu0 0.0
    %3436 = vmatprep.subr.mxu0 0.0
    %3437 = vmatpush2.msra.mxu0 0.0
    %3438 = vmatprep.subr.mxu0 0.0
    %3439 = vmatpush2.msra.mxu0 0.0
    %3440 = vmatprep.subr.mxu0 0.0
    %3441 = vmatpush2.msra.mxu0 0.0
    %3442 = vmatprep.subr.mxu0 0.0
    %3443 = vmatpush2.msra.mxu0 0.0
    %3444 = vmatprep.subr.mxu0 0.0
    %3445 = vmatpush2.msra.mxu0 0.0
    %3446 = vmatprep.subr.mxu0 0.0
    %3447 = vmatpush2.msra.mxu0 0.0
    %3448 = vmatprep.subr.mxu0 0.0
    %3449 = vmatpush2.msra.mxu0 0.0
    %3450 = vmatprep.mubr.f32.mxu0 0.0
    %3451 = vmatmul.mubr.f32.gmra.mxu0 %v3243
    %v3452 = vpop.f32.mrf.mxu0
    %v3453 = vadd.f32 %v3311, %v3452
    %v3454 = vpop.f32.mrf.mxu0
    %v3455 = vadd.f32 %v3313, %v3454
    %3456 = vdwg.mxu0
    %3457 = vmatprep.subr.mxu0 %v364
    %3458 = vmatpush1.msra.mxu0 %v363
    %3459 = vmatprep.subr.mxu0 %v360
    %3460 = vmatpush1.msra.mxu0 %v359
    %3461 = vmatprep.subr.mxu0 %v356
    %3462 = vmatpush1.msra.mxu0 %v355
    %3463 = vmatprep.subr.mxu0 %v352
    %3464 = vmatpush1.msra.mxu0 %v351
    %3465 = vmatprep.subr.mxu0 %v348
    %3466 = vmatpush1.msra.mxu0 %v347
    %3467 = vmatprep.subr.mxu0 %v344
    %3468 = vmatpush1.msra.mxu0 %v343
    %3469 = vmatprep.subr.mxu0 %v340
    %3470 = vmatpush1.msra.mxu0 %v339
    %3471 = vmatprep.subr.mxu0 %v336
    %3472 = vmatpush1.msra.mxu0 %v335
    %3473 = vmatprep.subr.mxu0 %v332
    %3474 = vmatpush1.msra.mxu0 %v331
    %3475 = vmatprep.subr.mxu0 %v328
    %3476 = vmatpush1.msra.mxu0 %v327
    %3477 = vmatprep.subr.mxu0 %v324
    %3478 = vmatpush1.msra.mxu0 %v323
    %3479 = vmatprep.subr.mxu0 %v320
    %3480 = vmatpush1.msra.mxu0 %v319
    %3481 = vmatprep.subr.mxu0 %v316
    %3482 = vmatpush1.msra.mxu0 %v315
    %3483 = vmatprep.subr.mxu0 %v312
    %3484 = vmatpush1.msra.mxu0 %v311
    %3485 = vmatprep.subr.mxu0 %v308
    %3486 = vmatpush1.msra.mxu0 %v307
    %3487 = vmatprep.subr.mxu0 %v304
    %3488 = vmatpush1.msra.mxu0 %v303
    %3489 = vmatprep.subr.mxu0 0.0
    %3490 = vmatpush2.msra.mxu0 0.0
    %3491 = vmatprep.subr.mxu0 0.0
    %3492 = vmatpush2.msra.mxu0 0.0
    %3493 = vmatprep.subr.mxu0 0.0
    %3494 = vmatpush2.msra.mxu0 0.0
    %3495 = vmatprep.subr.mxu0 0.0
    %3496 = vmatpush2.msra.mxu0 0.0
    %3497 = vmatprep.subr.mxu0 0.0
    %3498 = vmatpush2.msra.mxu0 0.0
    %3499 = vmatprep.subr.mxu0 0.0
    %3500 = vmatpush2.msra.mxu0 0.0
    %3501 = vmatprep.subr.mxu0 0.0
    %3502 = vmatpush2.msra.mxu0 0.0
    %3503 = vmatprep.subr.mxu0 0.0
    %3504 = vmatpush2.msra.mxu0 0.0
    %3505 = vmatprep.subr.mxu0 0.0
    %3506 = vmatpush2.msra.mxu0 0.0
    %3507 = vmatprep.subr.mxu0 0.0
    %3508 = vmatpush2.msra.mxu0 0.0
    %3509 = vmatprep.subr.mxu0 0.0
    %3510 = vmatpush2.msra.mxu0 0.0
    %3511 = vmatprep.subr.mxu0 0.0
    %3512 = vmatpush2.msra.mxu0 0.0
    %3513 = vmatprep.subr.mxu0 0.0
    %3514 = vmatpush2.msra.mxu0 0.0
    %3515 = vmatprep.subr.mxu0 0.0
    %3516 = vmatpush2.msra.mxu0 0.0
    %3517 = vmatprep.subr.mxu0 0.0
    %3518 = vmatpush2.msra.mxu0 0.0
    %3519 = vmatprep.subr.mxu0 0.0
    %3520 = vmatpush2.msra.mxu0 0.0
    %3521 = vmatprep.mubr.f32.mxu0 0.0
    %3522 = vmatmul.mubr.f32.gmra.mxu0 %v3243
    %v3523 = vpop.f32.mrf.mxu0
    %v3524 = vadd.f32 %v3382, %v3523
    %v3525 = vpop.f32.mrf.mxu0
    %v3526 = vadd.f32 %v3384, %v3525
    %3527 = vdwg.mxu0
    %v3528 = vadd.f32 %v3453, %v2935
    %v3529 = vadd.f32 %v3455, %v2939
    %v3530 = vadd.f32 %v3524, %v2943
    %v3531 = vadd.f32 %v3526, %v2947
    %v3532 = vxor.u32 %v3528, 2147483648
    %v3533 = vmul.f32 %v3532, 1.442695
    %v3534 = vpow.pop %v3533
    %v3535 = vadd.f32 %v3534, 1.0
    %v3536 = vrcp.pop %v3535
    %v3537 = vmul.f32 1.0, %v3536
    %v3538 = vxor.u32 %v3529, 2147483648
    %v3539 = vmul.f32 %v3538, 1.442695
    %v3540 = vpow.pop %v3539
    %v3541 = vadd.f32 %v3540, 1.0
    %v3542 = vrcp.pop %v3541
    %v3543 = vmul.f32 1.0, %v3542
    %v3544 = vtanh.pop %v3530
    %v3545 = vxor.u32 %v3531, 2147483648
    %v3546 = vmul.f32 %v3545, 1.442695
    %v3547 = vpow.pop %v3546
    %v3548 = vadd.f32 %v3547, 1.0
    %v3549 = vrcp.pop %v3548
    %v3550 = vmul.f32 1.0, %v3549
    %v3551 = vmul.f32 %v3543, %v2977
    %v3552 = vmul.f32 %v3537, %v3544
    %v3553 = vadd.f32 %v3551, %v3552
    %v3554 = vtanh.pop %v3553
    %v3555 = vmul.f32 %v3550, %v3554
    %3556 = vmatprep.subr.mxu0 0.0
    %3557 = vmatpush1.xpose.msra.mxu0 0.0
    %3558 = vmatprep.subr.mxu0 0.0
    %3559 = vmatpush1.xpose.msra.mxu0 0.0
    %3560 = vmatprep.subr.mxu0 0.0
    %3561 = vmatpush1.xpose.msra.mxu0 0.0
    %3562 = vmatprep.subr.mxu0 0.0
    %3563 = vmatpush1.xpose.msra.mxu0 0.0
    %3564 = vmatprep.subr.mxu0 0.0
    %3565 = vmatpush1.xpose.msra.mxu0 0.0
    %3566 = vmatprep.subr.mxu0 0.0
    %3567 = vmatpush1.xpose.msra.mxu0 0.0
    %3568 = vmatprep.subr.mxu0 0.0
    %3569 = vmatpush1.xpose.msra.mxu0 0.0
    %3570 = vmatprep.subr.mxu0 0.0
    %3571 = vmatpush1.xpose.msra.mxu0 0.0
    %3572 = vmatprep.subr.mxu0 0.0
    %3573 = vmatpush1.xpose.msra.mxu0 0.0
    %3574 = vmatprep.subr.mxu0 0.0
    %3575 = vmatpush1.xpose.msra.mxu0 0.0
    %3576 = vmatprep.subr.mxu0 0.0
    %3577 = vmatpush1.xpose.msra.mxu0 0.0
    %3578 = vmatprep.subr.mxu0 0.0
    %3579 = vmatpush1.xpose.msra.mxu0 0.0
    %3580 = vmatprep.subr.mxu0 0.0
    %3581 = vmatpush1.xpose.msra.mxu0 0.0
    %3582 = vmatprep.subr.mxu0 0.0
    %3583 = vmatpush1.xpose.msra.mxu0 0.0
    %3584 = vmatprep.subr.mxu0 0.0
    %3585 = vmatpush1.xpose.msra.mxu0 0.0
    %3586 = vmatprep.subr.mxu0 0.0
    %3587 = vmatpush1.xpose.msra.mxu0 %v2160
    %3588 = vmatprep.subr.mxu0 0.0
    %3589 = vmatpush2.xpose.msra.mxu0 0.0
    %3590 = vmatprep.subr.mxu0 0.0
    %3591 = vmatpush2.xpose.msra.mxu0 0.0
    %3592 = vmatprep.subr.mxu0 0.0
    %3593 = vmatpush2.xpose.msra.mxu0 0.0
    %3594 = vmatprep.subr.mxu0 0.0
    %3595 = vmatpush2.xpose.msra.mxu0 0.0
    %3596 = vmatprep.subr.mxu0 0.0
    %3597 = vmatpush2.xpose.msra.mxu0 0.0
    %3598 = vmatprep.subr.mxu0 0.0
    %3599 = vmatpush2.xpose.msra.mxu0 0.0
    %3600 = vmatprep.subr.mxu0 0.0
    %3601 = vmatpush2.xpose.msra.mxu0 0.0
    %3602 = vmatprep.subr.mxu0 0.0
    %3603 = vmatpush2.xpose.msra.mxu0 0.0
    %3604 = vmatprep.subr.mxu0 0.0
    %3605 = vmatpush2.xpose.msra.mxu0 0.0
    %3606 = vmatprep.subr.mxu0 0.0
    %3607 = vmatpush2.xpose.msra.mxu0 0.0
    %3608 = vmatprep.subr.mxu0 0.0
    %3609 = vmatpush2.xpose.msra.mxu0 0.0
    %3610 = vmatprep.subr.mxu0 0.0
    %3611 = vmatpush2.xpose.msra.mxu0 0.0
    %3612 = vmatprep.subr.mxu0 0.0
    %3613 = vmatpush2.xpose.msra.mxu0 0.0
    %3614 = vmatprep.subr.mxu0 0.0
    %3615 = vmatpush2.xpose.msra.mxu0 0.0
    %3616 = vmatprep.subr.mxu0 0.0
    %3617 = vmatpush2.xpose.msra.mxu0 0.0
    %3618 = vmatprep.subr.mxu0 0.0
    %3619 = vmatpush2.xpose.msra.mxu0 0.0
    %3620 = vmatprep.mubr.f32.mxu0 0.0
    %3621 = vmatmul.mubr.f32.gmra.mxu0 %v3555
    %v3622 = vpop.f32.mrf.mxu0
    %v3623 = vadd.f32 0.0, %v3622
    %v3624 = vpop.f32.mrf.mxu0
    %3625 = vdwg.mxu0
    %v3626 = vsel %vm2162, %v3623, -1e+30
    %v3627 = vsel %vm2451, %v3626, -inf
    %3628 = vmax.xlane.f32.xlu0 %v3627
    %v3629 = vpop.xlane.xlu0 %3628
    %v3630 = vsub.f32 %v3626, %v3629
    %v3631 = vmul.f32 %v3630, 1.442695
    %v3632 = vpow.pop %v3631
    %v3633 = vmul.f32 %v3632, %v2164
    %v3634 = vsel %vm2451, %v3633, 0.0
    %3635 = vadd.xlane.f32.xlu0 %v3634
    %v3636 = vpop.xlane.xlu0 %3635
    %v3637 = vmax.f32 %v3636, 1e-30
    %v3638 = vrcp.pop %v3637
    %v3639 = vmul.f32 %v3633, %v3638
    %v3641 = vsel %vm2465, %v3639, 0
    %3643 = vmatprep.subr.mxu0 0.0
    %3644 = vmatpush1.msra.mxu0 0.0
    %3645 = vmatprep.subr.mxu0 0.0
    %3646 = vmatpush1.msra.mxu0 0.0
    %3647 = vmatprep.subr.mxu0 0.0
    %3648 = vmatpush1.msra.mxu0 0.0
    %3649 = vmatprep.subr.mxu0 0.0
    %3650 = vmatpush1.msra.mxu0 0.0
    %3651 = vmatprep.subr.mxu0 0.0
    %3652 = vmatpush1.msra.mxu0 0.0
    %3653 = vmatprep.subr.mxu0 0.0
    %3654 = vmatpush1.msra.mxu0 0.0
    %3655 = vmatprep.subr.mxu0 0.0
    %3656 = vmatpush1.msra.mxu0 0.0
    %3657 = vmatprep.subr.mxu0 0.0
    %3658 = vmatpush1.msra.mxu0 0.0
    %3659 = vmatprep.subr.mxu0 0.0
    %3660 = vmatpush1.msra.mxu0 0.0
    %3661 = vmatprep.subr.mxu0 0.0
    %3662 = vmatpush1.msra.mxu0 0.0
    %3663 = vmatprep.subr.mxu0 0.0
    %3664 = vmatpush1.msra.mxu0 0.0
    %3665 = vmatprep.subr.mxu0 0.0
    %3666 = vmatpush1.msra.mxu0 0.0
    %3667 = vmatprep.subr.mxu0 0.0
    %3668 = vmatpush1.msra.mxu0 0.0
    %3669 = vmatprep.subr.mxu0 0.0
    %3670 = vmatpush1.msra.mxu0 0.0
    %3671 = vmatprep.subr.mxu0 0.0
    %3672 = vmatpush1.msra.mxu0 0.0
    %3673 = vmatprep.subr.mxu0 0.0
    %3674 = vmatpush1.msra.mxu0 %v2160
    %3675 = vmatprep.subr.mxu0 0.0
    %3676 = vmatpush2.msra.mxu0 0.0
    %3677 = vmatprep.subr.mxu0 0.0
    %3678 = vmatpush2.msra.mxu0 0.0
    %3679 = vmatprep.subr.mxu0 0.0
    %3680 = vmatpush2.msra.mxu0 0.0
    %3681 = vmatprep.subr.mxu0 0.0
    %3682 = vmatpush2.msra.mxu0 0.0
    %3683 = vmatprep.subr.mxu0 0.0
    %3684 = vmatpush2.msra.mxu0 0.0
    %3685 = vmatprep.subr.mxu0 0.0
    %3686 = vmatpush2.msra.mxu0 0.0
    %3687 = vmatprep.subr.mxu0 0.0
    %3688 = vmatpush2.msra.mxu0 0.0
    %3689 = vmatprep.subr.mxu0 0.0
    %3690 = vmatpush2.msra.mxu0 0.0
    %3691 = vmatprep.subr.mxu0 0.0
    %3692 = vmatpush2.msra.mxu0 0.0
    %3693 = vmatprep.subr.mxu0 0.0
    %3694 = vmatpush2.msra.mxu0 0.0
    %3695 = vmatprep.subr.mxu0 0.0
    %3696 = vmatpush2.msra.mxu0 0.0
    %3697 = vmatprep.subr.mxu0 0.0
    %3698 = vmatpush2.msra.mxu0 0.0
    %3699 = vmatprep.subr.mxu0 0.0
    %3700 = vmatpush2.msra.mxu0 0.0
    %3701 = vmatprep.subr.mxu0 0.0
    %3702 = vmatpush2.msra.mxu0 0.0
    %3703 = vmatprep.subr.mxu0 0.0
    %3704 = vmatpush2.msra.mxu0 0.0
    %3705 = vmatprep.subr.mxu0 0.0
    %3706 = vmatpush2.msra.mxu0 0.0
    %3707 = vmatprep.mubr.f32.mxu0 0.0
    %3708 = vmatmul.mubr.f32.gmra.mxu0 %v3641
    %v3709 = vpop.f32.mrf.mxu0
    %v3710 = vadd.f32 0.0, %v3709
    %v3711 = vpop.f32.mrf.mxu0
    %3712 = vdwg.mxu0
    %v3713 = vadd.f32 %v3555, %v3710
    %3714 = vmatprep.subr.mxu0 0.0
    %3715 = vmatpush1.msra.mxu0 %v380
    %3716 = vmatprep.subr.mxu0 0.0
    %3717 = vmatpush1.msra.mxu0 %v379
    %3718 = vmatprep.subr.mxu0 0.0
    %3719 = vmatpush1.msra.mxu0 %v378
    %3720 = vmatprep.subr.mxu0 0.0
    %3721 = vmatpush1.msra.mxu0 %v377
    %3722 = vmatprep.subr.mxu0 0.0
    %3723 = vmatpush1.msra.mxu0 %v376
    %3724 = vmatprep.subr.mxu0 0.0
    %3725 = vmatpush1.msra.mxu0 %v375
    %3726 = vmatprep.subr.mxu0 0.0
    %3727 = vmatpush1.msra.mxu0 %v374
    %3728 = vmatprep.subr.mxu0 0.0
    %3729 = vmatpush1.msra.mxu0 %v373
    %3730 = vmatprep.subr.mxu0 0.0
    %3731 = vmatpush1.msra.mxu0 %v372
    %3732 = vmatprep.subr.mxu0 0.0
    %3733 = vmatpush1.msra.mxu0 %v371
    %3734 = vmatprep.subr.mxu0 0.0
    %3735 = vmatpush1.msra.mxu0 %v370
    %3736 = vmatprep.subr.mxu0 0.0
    %3737 = vmatpush1.msra.mxu0 %v369
    %3738 = vmatprep.subr.mxu0 0.0
    %3739 = vmatpush1.msra.mxu0 %v368
    %3740 = vmatprep.subr.mxu0 0.0
    %3741 = vmatpush1.msra.mxu0 %v367
    %3742 = vmatprep.subr.mxu0 0.0
    %3743 = vmatpush1.msra.mxu0 %v366
    %3744 = vmatprep.subr.mxu0 0.0
    %3745 = vmatpush1.msra.mxu0 %v365
    %3746 = vmatprep.subr.mxu0 0.0
    %3747 = vmatpush2.msra.mxu0 0.0
    %3748 = vmatprep.subr.mxu0 0.0
    %3749 = vmatpush2.msra.mxu0 0.0
    %3750 = vmatprep.subr.mxu0 0.0
    %3751 = vmatpush2.msra.mxu0 0.0
    %3752 = vmatprep.subr.mxu0 0.0
    %3753 = vmatpush2.msra.mxu0 0.0
    %3754 = vmatprep.subr.mxu0 0.0
    %3755 = vmatpush2.msra.mxu0 0.0
    %3756 = vmatprep.subr.mxu0 0.0
    %3757 = vmatpush2.msra.mxu0 0.0
    %3758 = vmatprep.subr.mxu0 0.0
    %3759 = vmatpush2.msra.mxu0 0.0
    %3760 = vmatprep.subr.mxu0 0.0
    %3761 = vmatpush2.msra.mxu0 0.0
    %3762 = vmatprep.subr.mxu0 0.0
    %3763 = vmatpush2.msra.mxu0 0.0
    %3764 = vmatprep.subr.mxu0 0.0
    %3765 = vmatpush2.msra.mxu0 0.0
    %3766 = vmatprep.subr.mxu0 0.0
    %3767 = vmatpush2.msra.mxu0 0.0
    %3768 = vmatprep.subr.mxu0 0.0
    %3769 = vmatpush2.msra.mxu0 0.0
    %3770 = vmatprep.subr.mxu0 0.0
    %3771 = vmatpush2.msra.mxu0 0.0
    %3772 = vmatprep.subr.mxu0 0.0
    %3773 = vmatpush2.msra.mxu0 0.0
    %3774 = vmatprep.subr.mxu0 0.0
    %3775 = vmatpush2.msra.mxu0 0.0
    %3776 = vmatprep.subr.mxu0 0.0
    %3777 = vmatpush2.msra.mxu0 0.0
    %3778 = vmatprep.mubr.f32.mxu0 0.0
    %3779 = vmatmul.mubr.f32.gmra.mxu0 %v3713
    %v3780 = vpop.f32.mrf.mxu0
    %v3781 = vadd.f32 %v381, %v3780
    %v3782 = vpop.f32.mrf.mxu0
    %3783 = vdwg.mxu0
    %3784 = vst [vmem:[#allocation21 + $0x3] sm:$0x1] %v3781
    %v3785 = vsel %vm384, %v3781, -1e+30
    %v3786 = vsel %vm2612, %v3785, -inf
    %3787 = vmax.xlane.f32.xlu0 %v3786
    %v3788 = vpop.xlane.xlu0 %3787
    %vm3789 = vcmp.ge.f32.partialorder %v3785, %v3788
    %v3790 = vsel %vm3789, %v383, 128
    %v3791 = vsel %vm2612, %v3790, 2147483647
    %v3792 = vand.u32 %v3791, 65535
    %v3793 = vshra.s32 %v3791, 16
    %v3794 = vcvt.s32.f32 %v3792
    %v3795 = vcvt.s32.f32 %v3793
    %3796 = vmin.xlane.f32.xlu0 %v3795
    %v3797 = vpop.xlane.xlu0 %3796
    %vm3798 = vcmp.eq.f32.partialorder %v3795, %v3797
    %v3799 = vsel %vm3798, %v3794, inf
    %3800 = vmin.xlane.f32.xlu0 %v3799
    %v3801 = vpop.xlane.xlu0 %3800
    %v3802 = vcvt.f32.s32 %v3801
    %v3803 = vcvt.f32.s32 %v3797
    %v3804 = vshll.u32 %v3803, 16
    %v3805 = vadd.s32 %v3804, %v3802
    %vm3806 = vcmp.eq.s32.totalorder %v383, %v3805
    %v3807 = vsel %vm3806, 1, 0
    %v3808 = vcvt.s32.f32 %v3807
    %s3809 = sld [smem:[#allocation8 + $0x3]]
    %v3810 = vstv %s3809
    %vm3811 = vcmp.eq.s32.totalorder %v383, %v3810
    %v3812 = vsel %vm3811, 1, 0
    %v3813 = vcvt.s32.f32 %v3812
    %s3814 = sld [smem:[#allocation10 + $0x3]]
    %p3815 = scmp.gt.s32.totalorder %s3814, 0
    %s3816 = scalar_select %p3815, 1, 0
    %v3817 = vstv %s3816
    %vm3818 = vcmp.eq.s32.totalorder %v3817, 1
    %v3819 = vsel %vm3818, %v3813, %v3808
    %3820 = vmatprep.subr.mxu0 %v297
    %3821 = vmatpush1.msra.mxu0 %v296
    %3822 = vmatprep.subr.mxu0 %v293
    %3823 = vmatpush1.msra.mxu0 %v292
    %3824 = vmatprep.subr.mxu0 %v289
    %3825 = vmatpush1.msra.mxu0 %v288
    %3826 = vmatprep.subr.mxu0 %v285
    %3827 = vmatpush1.msra.mxu0 %v284
    %3828 = vmatprep.subr.mxu0 %v281
    %3829 = vmatpush1.msra.mxu0 %v280
    %3830 = vmatprep.subr.mxu0 %v277
    %3831 = vmatpush1.msra.mxu0 %v276
    %3832 = vmatprep.subr.mxu0 %v273
    %3833 = vmatpush1.msra.mxu0 %v272
    %3834 = vmatprep.subr.mxu0 %v269
    %3835 = vmatpush1.msra.mxu0 %v268
    %3836 = vmatprep.subr.mxu0 %v265
    %3837 = vmatpush1.msra.mxu0 %v264
    %3838 = vmatprep.subr.mxu0 %v261
    %3839 = vmatpush1.msra.mxu0 %v260
    %3840 = vmatprep.subr.mxu0 %v257
    %3841 = vmatpush1.msra.mxu0 %v256
    %3842 = vmatprep.subr.mxu0 %v253
    %3843 = vmatpush1.msra.mxu0 %v252
    %3844 = vmatprep.subr.mxu0 %v249
    %3845 = vmatpush1.msra.mxu0 %v248
    %3846 = vmatprep.subr.mxu0 %v245
    %3847 = vmatpush1.msra.mxu0 %v244
    %3848 = vmatprep.subr.mxu0 %v241
    %3849 = vmatpush1.msra.mxu0 %v240
    %3850 = vmatprep.subr.mxu0 %v237
    %3851 = vmatpush1.msra.mxu0 %v236
    %3852 = vmatprep.subr.mxu0 0.0
    %3853 = vmatpush2.msra.mxu0 0.0
    %3854 = vmatprep.subr.mxu0 0.0
    %3855 = vmatpush2.msra.mxu0 0.0
    %3856 = vmatprep.subr.mxu0 0.0
    %3857 = vmatpush2.msra.mxu0 0.0
    %3858 = vmatprep.subr.mxu0 0.0
    %3859 = vmatpush2.msra.mxu0 0.0
    %3860 = vmatprep.subr.mxu0 0.0
    %3861 = vmatpush2.msra.mxu0 0.0
    %3862 = vmatprep.subr.mxu0 0.0
    %3863 = vmatpush2.msra.mxu0 0.0
    %3864 = vmatprep.subr.mxu0 0.0
    %3865 = vmatpush2.msra.mxu0 0.0
    %3866 = vmatprep.subr.mxu0 0.0
    %3867 = vmatpush2.msra.mxu0 0.0
    %3868 = vmatprep.subr.mxu0 0.0
    %3869 = vmatpush2.msra.mxu0 0.0
    %3870 = vmatprep.subr.mxu0 0.0
    %3871 = vmatpush2.msra.mxu0 0.0
    %3872 = vmatprep.subr.mxu0 0.0
    %3873 = vmatpush2.msra.mxu0 0.0
    %3874 = vmatprep.subr.mxu0 0.0
    %3875 = vmatpush2.msra.mxu0 0.0
    %3876 = vmatprep.subr.mxu0 0.0
    %3877 = vmatpush2.msra.mxu0 0.0
    %3878 = vmatprep.subr.mxu0 0.0
    %3879 = vmatpush2.msra.mxu0 0.0
    %3880 = vmatprep.subr.mxu0 0.0
    %3881 = vmatpush2.msra.mxu0 0.0
    %3882 = vmatprep.subr.mxu0 0.0
    %3883 = vmatpush2.msra.mxu0 0.0
    %3884 = vmatprep.mubr.f32.mxu0 0.0
    %3885 = vmatmul.mubr.f32.gmra.mxu0 %v3555
    %v3886 = vpop.f32.mrf.mxu0
    %v3887 = vadd.f32 0.0, %v3886
    %v3888 = vpop.f32.mrf.mxu0
    %v3889 = vadd.f32 0.0, %v3888
    %3890 = vdwg.mxu0
    %3891 = vmatprep.subr.mxu0 %v299
    %3892 = vmatpush1.msra.mxu0 %v298
    %3893 = vmatprep.subr.mxu0 %v295
    %3894 = vmatpush1.msra.mxu0 %v294
    %3895 = vmatprep.subr.mxu0 %v291
    %3896 = vmatpush1.msra.mxu0 %v290
    %3897 = vmatprep.subr.mxu0 %v287
    %3898 = vmatpush1.msra.mxu0 %v286
    %3899 = vmatprep.subr.mxu0 %v283
    %3900 = vmatpush1.msra.mxu0 %v282
    %3901 = vmatprep.subr.mxu0 %v279
    %3902 = vmatpush1.msra.mxu0 %v278
    %3903 = vmatprep.subr.mxu0 %v275
    %3904 = vmatpush1.msra.mxu0 %v274
    %3905 = vmatprep.subr.mxu0 %v271
    %3906 = vmatpush1.msra.mxu0 %v270
    %3907 = vmatprep.subr.mxu0 %v267
    %3908 = vmatpush1.msra.mxu0 %v266
    %3909 = vmatprep.subr.mxu0 %v263
    %3910 = vmatpush1.msra.mxu0 %v262
    %3911 = vmatprep.subr.mxu0 %v259
    %3912 = vmatpush1.msra.mxu0 %v258
    %3913 = vmatprep.subr.mxu0 %v255
    %3914 = vmatpush1.msra.mxu0 %v254
    %3915 = vmatprep.subr.mxu0 %v251
    %3916 = vmatpush1.msra.mxu0 %v250
    %3917 = vmatprep.subr.mxu0 %v247
    %3918 = vmatpush1.msra.mxu0 %v246
    %3919 = vmatprep.subr.mxu0 %v243
    %3920 = vmatpush1.msra.mxu0 %v242
    %3921 = vmatprep.subr.mxu0 %v239
    %3922 = vmatpush1.msra.mxu0 %v238
    %3923 = vmatprep.subr.mxu0 0.0
    %3924 = vmatpush2.msra.mxu0 0.0
    %3925 = vmatprep.subr.mxu0 0.0
    %3926 = vmatpush2.msra.mxu0 0.0
    %3927 = vmatprep.subr.mxu0 0.0
    %3928 = vmatpush2.msra.mxu0 0.0
    %3929 = vmatprep.subr.mxu0 0.0
    %3930 = vmatpush2.msra.mxu0 0.0
    %3931 = vmatprep.subr.mxu0 0.0
    %3932 = vmatpush2.msra.mxu0 0.0
    %3933 = vmatprep.subr.mxu0 0.0
    %3934 = vmatpush2.msra.mxu0 0.0
    %3935 = vmatprep.subr.mxu0 0.0
    %3936 = vmatpush2.msra.mxu0 0.0
    %3937 = vmatprep.subr.mxu0 0.0
    %3938 = vmatpush2.msra.mxu0 0.0
    %3939 = vmatprep.subr.mxu0 0.0
    %3940 = vmatpush2.msra.mxu0 0.0
    %3941 = vmatprep.subr.mxu0 0.0
    %3942 = vmatpush2.msra.mxu0 0.0
    %3943 = vmatprep.subr.mxu0 0.0
    %3944 = vmatpush2.msra.mxu0 0.0
    %3945 = vmatprep.subr.mxu0 0.0
    %3946 = vmatpush2.msra.mxu0 0.0
    %3947 = vmatprep.subr.mxu0 0.0
    %3948 = vmatpush2.msra.mxu0 0.0
    %3949 = vmatprep.subr.mxu0 0.0
    %3950 = vmatpush2.msra.mxu0 0.0
    %3951 = vmatprep.subr.mxu0 0.0
    %3952 = vmatpush2.msra.mxu0 0.0
    %3953 = vmatprep.subr.mxu0 0.0
    %3954 = vmatpush2.msra.mxu0 0.0
    %3955 = vmatprep.mubr.f32.mxu0 0.0
    %3956 = vmatmul.mubr.f32.gmra.mxu0 %v3555
    %v3957 = vpop.f32.mrf.mxu0
    %v3958 = vadd.f32 0.0, %v3957
    %v3959 = vpop.f32.mrf.mxu0
    %v3960 = vadd.f32 0.0, %v3959
    %3961 = vdwg.mxu0
    %3962 = vmatprep.subr.mxu0 %v362
    %3963 = vmatpush1.msra.mxu0 %v361
    %3964 = vmatprep.subr.mxu0 %v358
    %3965 = vmatpush1.msra.mxu0 %v357
    %3966 = vmatprep.subr.mxu0 %v354
    %3967 = vmatpush1.msra.mxu0 %v353
    %3968 = vmatprep.subr.mxu0 %v350
    %3969 = vmatpush1.msra.mxu0 %v349
    %3970 = vmatprep.subr.mxu0 %v346
    %3971 = vmatpush1.msra.mxu0 %v345
    %3972 = vmatprep.subr.mxu0 %v342
    %3973 = vmatpush1.msra.mxu0 %v341
    %3974 = vmatprep.subr.mxu0 %v338
    %3975 = vmatpush1.msra.mxu0 %v337
    %3976 = vmatprep.subr.mxu0 %v334
    %3977 = vmatpush1.msra.mxu0 %v333
    %3978 = vmatprep.subr.mxu0 %v330
    %3979 = vmatpush1.msra.mxu0 %v329
    %3980 = vmatprep.subr.mxu0 %v326
    %3981 = vmatpush1.msra.mxu0 %v325
    %3982 = vmatprep.subr.mxu0 %v322
    %3983 = vmatpush1.msra.mxu0 %v321
    %3984 = vmatprep.subr.mxu0 %v318
    %3985 = vmatpush1.msra.mxu0 %v317
    %3986 = vmatprep.subr.mxu0 %v314
    %3987 = vmatpush1.msra.mxu0 %v313
    %3988 = vmatprep.subr.mxu0 %v310
    %3989 = vmatpush1.msra.mxu0 %v309
    %3990 = vmatprep.subr.mxu0 %v306
    %3991 = vmatpush1.msra.mxu0 %v305
    %3992 = vmatprep.subr.mxu0 %v302
    %3993 = vmatpush1.msra.mxu0 %v301
    %3994 = vmatprep.subr.mxu0 0.0
    %3995 = vmatpush2.msra.mxu0 0.0
    %3996 = vmatprep.subr.mxu0 0.0
    %3997 = vmatpush2.msra.mxu0 0.0
    %3998 = vmatprep.subr.mxu0 0.0
    %3999 = vmatpush2.msra.mxu0 0.0
    %4000 = vmatprep.subr.mxu0 0.0
    %4001 = vmatpush2.msra.mxu0 0.0
    %4002 = vmatprep.subr.mxu0 0.0
    %4003 = vmatpush2.msra.mxu0 0.0
    %4004 = vmatprep.subr.mxu0 0.0
    %4005 = vmatpush2.msra.mxu0 0.0
    %4006 = vmatprep.subr.mxu0 0.0
    %4007 = vmatpush2.msra.mxu0 0.0
    %4008 = vmatprep.subr.mxu0 0.0
    %4009 = vmatpush2.msra.mxu0 0.0
    %4010 = vmatprep.subr.mxu0 0.0
    %4011 = vmatpush2.msra.mxu0 0.0
    %4012 = vmatprep.subr.mxu0 0.0
    %4013 = vmatpush2.msra.mxu0 0.0
    %4014 = vmatprep.subr.mxu0 0.0
    %4015 = vmatpush2.msra.mxu0 0.0
    %4016 = vmatprep.subr.mxu0 0.0
    %4017 = vmatpush2.msra.mxu0 0.0
    %4018 = vmatprep.subr.mxu0 0.0
    %4019 = vmatpush2.msra.mxu0 0.0
    %4020 = vmatprep.subr.mxu0 0.0
    %4021 = vmatpush2.msra.mxu0 0.0
    %4022 = vmatprep.subr.mxu0 0.0
    %4023 = vmatpush2.msra.mxu0 0.0
    %4024 = vmatprep.subr.mxu0 0.0
    %4025 = vmatpush2.msra.mxu0 0.0
    %4026 = vmatprep.mubr.f32.mxu0 0.0
    %4027 = vmatmul.mubr.f32.gmra.mxu0 %v3819
    %v4028 = vpop.f32.mrf.mxu0
    %v4029 = vadd.f32 %v3887, %v4028
    %v4030 = vpop.f32.mrf.mxu0
    %v4031 = vadd.f32 %v3889, %v4030
    %4032 = vdwg.mxu0
    %4033 = vmatprep.subr.mxu0 %v364
    %4034 = vmatpush1.msra.mxu0 %v363
    %4035 = vmatprep.subr.mxu0 %v360
    %4036 = vmatpush1.msra.mxu0 %v359
    %4037 = vmatprep.subr.mxu0 %v356
    %4038 = vmatpush1.msra.mxu0 %v355
    %4039 = vmatprep.subr.mxu0 %v352
    %4040 = vmatpush1.msra.mxu0 %v351
    %4041 = vmatprep.subr.mxu0 %v348
    %4042 = vmatpush1.msra.mxu0 %v347
    %4043 = vmatprep.subr.mxu0 %v344
    %4044 = vmatpush1.msra.mxu0 %v343
    %4045 = vmatprep.subr.mxu0 %v340
    %4046 = vmatpush1.msra.mxu0 %v339
    %4047 = vmatprep.subr.mxu0 %v336
    %4048 = vmatpush1.msra.mxu0 %v335
    %4049 = vmatprep.subr.mxu0 %v332
    %4050 = vmatpush1.msra.mxu0 %v331
    %4051 = vmatprep.subr.mxu0 %v328
    %4052 = vmatpush1.msra.mxu0 %v327
    %4053 = vmatprep.subr.mxu0 %v324
    %4054 = vmatpush1.msra.mxu0 %v323
    %4055 = vmatprep.subr.mxu0 %v320
    %4056 = vmatpush1.msra.mxu0 %v319
    %4057 = vmatprep.subr.mxu0 %v316
    %4058 = vmatpush1.msra.mxu0 %v315
    %4059 = vmatprep.subr.mxu0 %v312
    %4060 = vmatpush1.msra.mxu0 %v311
    %4061 = vmatprep.subr.mxu0 %v308
    %4062 = vmatpush1.msra.mxu0 %v307
    %4063 = vmatprep.subr.mxu0 %v304
    %4064 = vmatpush1.msra.mxu0 %v303
    %4065 = vmatprep.subr.mxu0 0.0
    %4066 = vmatpush2.msra.mxu0 0.0
    %4067 = vmatprep.subr.mxu0 0.0
    %4068 = vmatpush2.msra.mxu0 0.0
    %4069 = vmatprep.subr.mxu0 0.0
    %4070 = vmatpush2.msra.mxu0 0.0
    %4071 = vmatprep.subr.mxu0 0.0
    %4072 = vmatpush2.msra.mxu0 0.0
    %4073 = vmatprep.subr.mxu0 0.0
    %4074 = vmatpush2.msra.mxu0 0.0
    %4075 = vmatprep.subr.mxu0 0.0
    %4076 = vmatpush2.msra.mxu0 0.0
    %4077 = vmatprep.subr.mxu0 0.0
    %4078 = vmatpush2.msra.mxu0 0.0
    %4079 = vmatprep.subr.mxu0 0.0
    %4080 = vmatpush2.msra.mxu0 0.0
    %4081 = vmatprep.subr.mxu0 0.0
    %4082 = vmatpush2.msra.mxu0 0.0
    %4083 = vmatprep.subr.mxu0 0.0
    %4084 = vmatpush2.msra.mxu0 0.0
    %4085 = vmatprep.subr.mxu0 0.0
    %4086 = vmatpush2.msra.mxu0 0.0
    %4087 = vmatprep.subr.mxu0 0.0
    %4088 = vmatpush2.msra.mxu0 0.0
    %4089 = vmatprep.subr.mxu0 0.0
    %4090 = vmatpush2.msra.mxu0 0.0
    %4091 = vmatprep.subr.mxu0 0.0
    %4092 = vmatpush2.msra.mxu0 0.0
    %4093 = vmatprep.subr.mxu0 0.0
    %4094 = vmatpush2.msra.mxu0 0.0
    %4095 = vmatprep.subr.mxu0 0.0
    %4096 = vmatpush2.msra.mxu0 0.0
    %4097 = vmatprep.mubr.f32.mxu0 0.0
    %4098 = vmatmul.mubr.f32.gmra.mxu0 %v3819
    %v4099 = vpop.f32.mrf.mxu0
    %v4100 = vadd.f32 %v3958, %v4099
    %v4101 = vpop.f32.mrf.mxu0
    %v4102 = vadd.f32 %v3960, %v4101
    %4103 = vdwg.mxu0
    %v4104 = vadd.f32 %v4029, %v2935
    %v4105 = vadd.f32 %v4031, %v2939
    %v4106 = vadd.f32 %v4100, %v2943
    %v4107 = vadd.f32 %v4102, %v2947
    %v4108 = vxor.u32 %v4104, 2147483648
    %v4109 = vmul.f32 %v4108, 1.442695
    %v4110 = vpow.pop %v4109
    %v4111 = vadd.f32 %v4110, 1.0
    %v4112 = vrcp.pop %v4111
    %v4113 = vmul.f32 1.0, %v4112
    %v4114 = vxor.u32 %v4105, 2147483648
    %v4115 = vmul.f32 %v4114, 1.442695
    %v4116 = vpow.pop %v4115
    %v4117 = vadd.f32 %v4116, 1.0
    %v4118 = vrcp.pop %v4117
    %v4119 = vmul.f32 1.0, %v4118
    %v4120 = vtanh.pop %v4106
    %v4121 = vxor.u32 %v4107, 2147483648
    %v4122 = vmul.f32 %v4121, 1.442695
    %v4123 = vpow.pop %v4122
    %v4124 = vadd.f32 %v4123, 1.0
    %v4125 = vrcp.pop %v4124
    %v4126 = vmul.f32 1.0, %v4125
    %v4127 = vmul.f32 %v4119, %v3553
    %v4128 = vmul.f32 %v4113, %v4120
    %v4129 = vadd.f32 %v4127, %v4128
    %v4130 = vtanh.pop %v4129
    %v4131 = vmul.f32 %v4126, %v4130
    %4132 = vmatprep.subr.mxu0 0.0
    %4133 = vmatpush1.xpose.msra.mxu0 0.0
    %4134 = vmatprep.subr.mxu0 0.0
    %4135 = vmatpush1.xpose.msra.mxu0 0.0
    %4136 = vmatprep.subr.mxu0 0.0
    %4137 = vmatpush1.xpose.msra.mxu0 0.0
    %4138 = vmatprep.subr.mxu0 0.0
    %4139 = vmatpush1.xpose.msra.mxu0 0.0
    %4140 = vmatprep.subr.mxu0 0.0
    %4141 = vmatpush1.xpose.msra.mxu0 0.0
    %4142 = vmatprep.subr.mxu0 0.0
    %4143 = vmatpush1.xpose.msra.mxu0 0.0
    %4144 = vmatprep.subr.mxu0 0.0
    %4145 = vmatpush1.xpose.msra.mxu0 0.0
    %4146 = vmatprep.subr.mxu0 0.0
    %4147 = vmatpush1.xpose.msra.mxu0 0.0
    %4148 = vmatprep.subr.mxu0 0.0
    %4149 = vmatpush1.xpose.msra.mxu0 0.0
    %4150 = vmatprep.subr.mxu0 0.0
    %4151 = vmatpush1.xpose.msra.mxu0 0.0
    %4152 = vmatprep.subr.mxu0 0.0
    %4153 = vmatpush1.xpose.msra.mxu0 0.0
    %4154 = vmatprep.subr.mxu0 0.0
    %4155 = vmatpush1.xpose.msra.mxu0 0.0
    %4156 = vmatprep.subr.mxu0 0.0
    %4157 = vmatpush1.xpose.msra.mxu0 0.0
    %4158 = vmatprep.subr.mxu0 0.0
    %4159 = vmatpush1.xpose.msra.mxu0 0.0
    %4160 = vmatprep.subr.mxu0 0.0
    %4161 = vmatpush1.xpose.msra.mxu0 0.0
    %4162 = vmatprep.subr.mxu0 0.0
    %4163 = vmatpush1.xpose.msra.mxu0 %v2160
    %4164 = vmatprep.subr.mxu0 0.0
    %4165 = vmatpush2.xpose.msra.mxu0 0.0
    %4166 = vmatprep.subr.mxu0 0.0
    %4167 = vmatpush2.xpose.msra.mxu0 0.0
    %4168 = vmatprep.subr.mxu0 0.0
    %4169 = vmatpush2.xpose.msra.mxu0 0.0
    %4170 = vmatprep.subr.mxu0 0.0
    %4171 = vmatpush2.xpose.msra.mxu0 0.0
    %4172 = vmatprep.subr.mxu0 0.0
    %4173 = vmatpush2.xpose.msra.mxu0 0.0
    %4174 = vmatprep.subr.mxu0 0.0
    %4175 = vmatpush2.xpose.msra.mxu0 0.0
    %4176 = vmatprep.subr.mxu0 0.0
    %4177 = vmatpush2.xpose.msra.mxu0 0.0
    %4178 = vmatprep.subr.mxu0 0.0
    %4179 = vmatpush2.xpose.msra.mxu0 0.0
    %4180 = vmatprep.subr.mxu0 0.0
    %4181 = vmatpush2.xpose.msra.mxu0 0.0
    %4182 = vmatprep.subr.mxu0 0.0
    %4183 = vmatpush2.xpose.msra.mxu0 0.0
    %4184 = vmatprep.subr.mxu0 0.0
    %4185 = vmatpush2.xpose.msra.mxu0 0.0
    %4186 = vmatprep.subr.mxu0 0.0
    %4187 = vmatpush2.xpose.msra.mxu0 0.0
    %4188 = vmatprep.subr.mxu0 0.0
    %4189 = vmatpush2.xpose.msra.mxu0 0.0
    %4190 = vmatprep.subr.mxu0 0.0
    %4191 = vmatpush2.xpose.msra.mxu0 0.0
    %4192 = vmatprep.subr.mxu0 0.0
    %4193 = vmatpush2.xpose.msra.mxu0 0.0
    %4194 = vmatprep.subr.mxu0 0.0
    %4195 = vmatpush2.xpose.msra.mxu0 0.0
    %4196 = vmatprep.mubr.f32.mxu0 0.0
    %4197 = vmatmul.mubr.f32.gmra.mxu0 %v4131
    %v4198 = vpop.f32.mrf.mxu0
    %v4199 = vadd.f32 0.0, %v4198
    %v4200 = vpop.f32.mrf.mxu0
    %4201 = vdwg.mxu0
    %v4202 = vsel %vm2162, %v4199, -1e+30
    %v4203 = vsel %vm2451, %v4202, -inf
    %4204 = vmax.xlane.f32.xlu0 %v4203
    %v4205 = vpop.xlane.xlu0 %4204
    %v4206 = vsub.f32 %v4202, %v4205
    %v4207 = vmul.f32 %v4206, 1.442695
    %v4208 = vpow.pop %v4207
    %v4209 = vmul.f32 %v4208, %v2164
    %v4210 = vsel %vm2451, %v4209, 0.0
    %4211 = vadd.xlane.f32.xlu0 %v4210
    %v4212 = vpop.xlane.xlu0 %4211
    %v4213 = vmax.f32 %v4212, 1e-30
    %v4214 = vrcp.pop %v4213
    %v4215 = vmul.f32 %v4209, %v4214
    %v4217 = vsel %vm2465, %v4215, 0
    %4219 = vmatprep.subr.mxu0 0.0
    %4220 = vmatpush1.msra.mxu0 0.0
    %4221 = vmatprep.subr.mxu0 0.0
    %4222 = vmatpush1.msra.mxu0 0.0
    %4223 = vmatprep.subr.mxu0 0.0
    %4224 = vmatpush1.msra.mxu0 0.0
    %4225 = vmatprep.subr.mxu0 0.0
    %4226 = vmatpush1.msra.mxu0 0.0
    %4227 = vmatprep.subr.mxu0 0.0
    %4228 = vmatpush1.msra.mxu0 0.0
    %4229 = vmatprep.subr.mxu0 0.0
    %4230 = vmatpush1.msra.mxu0 0.0
    %4231 = vmatprep.subr.mxu0 0.0
    %4232 = vmatpush1.msra.mxu0 0.0
    %4233 = vmatprep.subr.mxu0 0.0
    %4234 = vmatpush1.msra.mxu0 0.0
    %4235 = vmatprep.subr.mxu0 0.0
    %4236 = vmatpush1.msra.mxu0 0.0
    %4237 = vmatprep.subr.mxu0 0.0
    %4238 = vmatpush1.msra.mxu0 0.0
    %4239 = vmatprep.subr.mxu0 0.0
    %4240 = vmatpush1.msra.mxu0 0.0
    %4241 = vmatprep.subr.mxu0 0.0
    %4242 = vmatpush1.msra.mxu0 0.0
    %4243 = vmatprep.subr.mxu0 0.0
    %4244 = vmatpush1.msra.mxu0 0.0
    %4245 = vmatprep.subr.mxu0 0.0
    %4246 = vmatpush1.msra.mxu0 0.0
    %4247 = vmatprep.subr.mxu0 0.0
    %4248 = vmatpush1.msra.mxu0 0.0
    %4249 = vmatprep.subr.mxu0 0.0
    %4250 = vmatpush1.msra.mxu0 %v2160
    %4251 = vmatprep.subr.mxu0 0.0
    %4252 = vmatpush2.msra.mxu0 0.0
    %4253 = vmatprep.subr.mxu0 0.0
    %4254 = vmatpush2.msra.mxu0 0.0
    %4255 = vmatprep.subr.mxu0 0.0
    %4256 = vmatpush2.msra.mxu0 0.0
    %4257 = vmatprep.subr.mxu0 0.0
    %4258 = vmatpush2.msra.mxu0 0.0
    %4259 = vmatprep.subr.mxu0 0.0
    %4260 = vmatpush2.msra.mxu0 0.0
    %4261 = vmatprep.subr.mxu0 0.0
    %4262 = vmatpush2.msra.mxu0 0.0
    %4263 = vmatprep.subr.mxu0 0.0
    %4264 = vmatpush2.msra.mxu0 0.0
    %4265 = vmatprep.subr.mxu0 0.0
    %4266 = vmatpush2.msra.mxu0 0.0
    %4267 = vmatprep.subr.mxu0 0.0
    %4268 = vmatpush2.msra.mxu0 0.0
    %4269 = vmatprep.subr.mxu0 0.0
    %4270 = vmatpush2.msra.mxu0 0.0
    %4271 = vmatprep.subr.mxu0 0.0
    %4272 = vmatpush2.msra.mxu0 0.0
    %4273 = vmatprep.subr.mxu0 0.0
    %4274 = vmatpush2.msra.mxu0 0.0
    %4275 = vmatprep.subr.mxu0 0.0
    %4276 = vmatpush2.msra.mxu0 0.0
    %4277 = vmatprep.subr.mxu0 0.0
    %4278 = vmatpush2.msra.mxu0 0.0
    %4279 = vmatprep.subr.mxu0 0.0
    %4280 = vmatpush2.msra.mxu0 0.0
    %4281 = vmatprep.subr.mxu0 0.0
    %4282 = vmatpush2.msra.mxu0 0.0
    %4283 = vmatprep.mubr.f32.mxu0 0.0
    %4284 = vmatmul.mubr.f32.gmra.mxu0 %v4217
    %v4285 = vpop.f32.mrf.mxu0
    %v4286 = vadd.f32 0.0, %v4285
    %v4287 = vpop.f32.mrf.mxu0
    %4288 = vdwg.mxu0
    %v4289 = vadd.f32 %v4131, %v4286
    %4290 = vmatprep.subr.mxu0 0.0
    %4291 = vmatpush1.msra.mxu0 %v380
    %4292 = vmatprep.subr.mxu0 0.0
    %4293 = vmatpush1.msra.mxu0 %v379
    %4294 = vmatprep.subr.mxu0 0.0
    %4295 = vmatpush1.msra.mxu0 %v378
    %4296 = vmatprep.subr.mxu0 0.0
    %4297 = vmatpush1.msra.mxu0 %v377
    %4298 = vmatprep.subr.mxu0 0.0
    %4299 = vmatpush1.msra.mxu0 %v376
    %4300 = vmatprep.subr.mxu0 0.0
    %4301 = vmatpush1.msra.mxu0 %v375
    %4302 = vmatprep.subr.mxu0 0.0
    %4303 = vmatpush1.msra.mxu0 %v374
    %4304 = vmatprep.subr.mxu0 0.0
    %4305 = vmatpush1.msra.mxu0 %v373
    %4306 = vmatprep.subr.mxu0 0.0
    %4307 = vmatpush1.msra.mxu0 %v372
    %4308 = vmatprep.subr.mxu0 0.0
    %4309 = vmatpush1.msra.mxu0 %v371
    %4310 = vmatprep.subr.mxu0 0.0
    %4311 = vmatpush1.msra.mxu0 %v370
    %4312 = vmatprep.subr.mxu0 0.0
    %4313 = vmatpush1.msra.mxu0 %v369
    %4314 = vmatprep.subr.mxu0 0.0
    %4315 = vmatpush1.msra.mxu0 %v368
    %4316 = vmatprep.subr.mxu0 0.0
    %4317 = vmatpush1.msra.mxu0 %v367
    %4318 = vmatprep.subr.mxu0 0.0
    %4319 = vmatpush1.msra.mxu0 %v366
    %4320 = vmatprep.subr.mxu0 0.0
    %4321 = vmatpush1.msra.mxu0 %v365
    %4322 = vmatprep.subr.mxu0 0.0
    %4323 = vmatpush2.msra.mxu0 0.0
    %4324 = vmatprep.subr.mxu0 0.0
    %4325 = vmatpush2.msra.mxu0 0.0
    %4326 = vmatprep.subr.mxu0 0.0
    %4327 = vmatpush2.msra.mxu0 0.0
    %4328 = vmatprep.subr.mxu0 0.0
    %4329 = vmatpush2.msra.mxu0 0.0
    %4330 = vmatprep.subr.mxu0 0.0
    %4331 = vmatpush2.msra.mxu0 0.0
    %4332 = vmatprep.subr.mxu0 0.0
    %4333 = vmatpush2.msra.mxu0 0.0
    %4334 = vmatprep.subr.mxu0 0.0
    %4335 = vmatpush2.msra.mxu0 0.0
    %4336 = vmatprep.subr.mxu0 0.0
    %4337 = vmatpush2.msra.mxu0 0.0
    %4338 = vmatprep.subr.mxu0 0.0
    %4339 = vmatpush2.msra.mxu0 0.0
    %4340 = vmatprep.subr.mxu0 0.0
    %4341 = vmatpush2.msra.mxu0 0.0
    %4342 = vmatprep.subr.mxu0 0.0
    %4343 = vmatpush2.msra.mxu0 0.0
    %4344 = vmatprep.subr.mxu0 0.0
    %4345 = vmatpush2.msra.mxu0 0.0
    %4346 = vmatprep.subr.mxu0 0.0
    %4347 = vmatpush2.msra.mxu0 0.0
    %4348 = vmatprep.subr.mxu0 0.0
    %4349 = vmatpush2.msra.mxu0 0.0
    %4350 = vmatprep.subr.mxu0 0.0
    %4351 = vmatpush2.msra.mxu0 0.0
    %4352 = vmatprep.subr.mxu0 0.0
    %4353 = vmatpush2.msra.mxu0 0.0
    %4354 = vmatprep.mubr.f32.mxu0 0.0
    %4355 = vmatmul.mubr.f32.gmra.mxu0 %v4289
    %v4356 = vpop.f32.mrf.mxu0
    %v4357 = vadd.f32 %v381, %v4356
    %v4358 = vpop.f32.mrf.mxu0
    %4359 = vdwg.mxu0
    %4360 = vst [vmem:[#allocation21 + $0x4] sm:$0x1] %v4357
    %v4361 = vsel %vm384, %v4357, -1e+30
    %v4362 = vsel %vm2612, %v4361, -inf
    %4363 = vmax.xlane.f32.xlu0 %v4362
    %v4364 = vpop.xlane.xlu0 %4363
    %vm4365 = vcmp.ge.f32.partialorder %v4361, %v4364
    %v4366 = vsel %vm4365, %v383, 128
    %v4367 = vsel %vm2612, %v4366, 2147483647
    %v4368 = vand.u32 %v4367, 65535
    %v4369 = vshra.s32 %v4367, 16
    %v4370 = vcvt.s32.f32 %v4368
    %v4371 = vcvt.s32.f32 %v4369
    %4372 = vmin.xlane.f32.xlu0 %v4371
    %v4373 = vpop.xlane.xlu0 %4372
    %vm4374 = vcmp.eq.f32.partialorder %v4371, %v4373
    %v4375 = vsel %vm4374, %v4370, inf
    %4376 = vmin.xlane.f32.xlu0 %v4375
    %v4377 = vpop.xlane.xlu0 %4376
    %v4378 = vcvt.f32.s32 %v4377
    %v4379 = vcvt.f32.s32 %v4373
    %v4380 = vshll.u32 %v4379, 16
    %v4381 = vadd.s32 %v4380, %v4378
    %vm4382 = vcmp.eq.s32.totalorder %v383, %v4381
    %v4383 = vsel %vm4382, 1, 0
    %v4384 = vcvt.s32.f32 %v4383
    %s4385 = sld [smem:[#allocation8 + $0x4]]
    %v4386 = vstv %s4385
    %vm4387 = vcmp.eq.s32.totalorder %v383, %v4386
    %v4388 = vsel %vm4387, 1, 0
    %v4389 = vcvt.s32.f32 %v4388
    %s4390 = sld [smem:[#allocation10 + $0x4]]
    %p4391 = scmp.gt.s32.totalorder %s4390, 0
    %s4392 = scalar_select %p4391, 1, 0
    %v4393 = vstv %s4392
    %vm4394 = vcmp.eq.s32.totalorder %v4393, 1
    %v4395 = vsel %vm4394, %v4389, %v4384
    %4396 = vmatprep.subr.mxu0 %v297
    %4397 = vmatpush1.msra.mxu0 %v296
    %4398 = vmatprep.subr.mxu0 %v293
    %4399 = vmatpush1.msra.mxu0 %v292
    %4400 = vmatprep.subr.mxu0 %v289
    %4401 = vmatpush1.msra.mxu0 %v288
    %4402 = vmatprep.subr.mxu0 %v285
    %4403 = vmatpush1.msra.mxu0 %v284
    %4404 = vmatprep.subr.mxu0 %v281
    %4405 = vmatpush1.msra.mxu0 %v280
    %4406 = vmatprep.subr.mxu0 %v277
    %4407 = vmatpush1.msra.mxu0 %v276
    %4408 = vmatprep.subr.mxu0 %v273
    %4409 = vmatpush1.msra.mxu0 %v272
    %4410 = vmatprep.subr.mxu0 %v269
    %4411 = vmatpush1.msra.mxu0 %v268
    %4412 = vmatprep.subr.mxu0 %v265
    %4413 = vmatpush1.msra.mxu0 %v264
    %4414 = vmatprep.subr.mxu0 %v261
    %4415 = vmatpush1.msra.mxu0 %v260
    %4416 = vmatprep.subr.mxu0 %v257
    %4417 = vmatpush1.msra.mxu0 %v256
    %4418 = vmatprep.subr.mxu0 %v253
    %4419 = vmatpush1.msra.mxu0 %v252
    %4420 = vmatprep.subr.mxu0 %v249
    %4421 = vmatpush1.msra.mxu0 %v248
    %4422 = vmatprep.subr.mxu0 %v245
    %4423 = vmatpush1.msra.mxu0 %v244
    %4424 = vmatprep.subr.mxu0 %v241
    %4425 = vmatpush1.msra.mxu0 %v240
    %4426 = vmatprep.subr.mxu0 %v237
    %4427 = vmatpush1.msra.mxu0 %v236
    %4428 = vmatprep.subr.mxu0 0.0
    %4429 = vmatpush2.msra.mxu0 0.0
    %4430 = vmatprep.subr.mxu0 0.0
    %4431 = vmatpush2.msra.mxu0 0.0
    %4432 = vmatprep.subr.mxu0 0.0
    %4433 = vmatpush2.msra.mxu0 0.0
    %4434 = vmatprep.subr.mxu0 0.0
    %4435 = vmatpush2.msra.mxu0 0.0
    %4436 = vmatprep.subr.mxu0 0.0
    %4437 = vmatpush2.msra.mxu0 0.0
    %4438 = vmatprep.subr.mxu0 0.0
    %4439 = vmatpush2.msra.mxu0 0.0
    %4440 = vmatprep.subr.mxu0 0.0
    %4441 = vmatpush2.msra.mxu0 0.0
    %4442 = vmatprep.subr.mxu0 0.0
    %4443 = vmatpush2.msra.mxu0 0.0
    %4444 = vmatprep.subr.mxu0 0.0
    %4445 = vmatpush2.msra.mxu0 0.0
    %4446 = vmatprep.subr.mxu0 0.0
    %4447 = vmatpush2.msra.mxu0 0.0
    %4448 = vmatprep.subr.mxu0 0.0
    %4449 = vmatpush2.msra.mxu0 0.0
    %4450 = vmatprep.subr.mxu0 0.0
    %4451 = vmatpush2.msra.mxu0 0.0
    %4452 = vmatprep.subr.mxu0 0.0
    %4453 = vmatpush2.msra.mxu0 0.0
    %4454 = vmatprep.subr.mxu0 0.0
    %4455 = vmatpush2.msra.mxu0 0.0
    %4456 = vmatprep.subr.mxu0 0.0
    %4457 = vmatpush2.msra.mxu0 0.0
    %4458 = vmatprep.subr.mxu0 0.0
    %4459 = vmatpush2.msra.mxu0 0.0
    %4460 = vmatprep.mubr.f32.mxu0 0.0
    %4461 = vmatmul.mubr.f32.gmra.mxu0 %v4131
    %v4462 = vpop.f32.mrf.mxu0
    %v4463 = vadd.f32 0.0, %v4462
    %v4464 = vpop.f32.mrf.mxu0
    %v4465 = vadd.f32 0.0, %v4464
    %4466 = vdwg.mxu0
    %4467 = vmatprep.subr.mxu0 %v299
    %4468 = vmatpush1.msra.mxu0 %v298
    %4469 = vmatprep.subr.mxu0 %v295
    %4470 = vmatpush1.msra.mxu0 %v294
    %4471 = vmatprep.subr.mxu0 %v291
    %4472 = vmatpush1.msra.mxu0 %v290
    %4473 = vmatprep.subr.mxu0 %v287
    %4474 = vmatpush1.msra.mxu0 %v286
    %4475 = vmatprep.subr.mxu0 %v283
    %4476 = vmatpush1.msra.mxu0 %v282
    %4477 = vmatprep.subr.mxu0 %v279
    %4478 = vmatpush1.msra.mxu0 %v278
    %4479 = vmatprep.subr.mxu0 %v275
    %4480 = vmatpush1.msra.mxu0 %v274
    %4481 = vmatprep.subr.mxu0 %v271
    %4482 = vmatpush1.msra.mxu0 %v270
    %4483 = vmatprep.subr.mxu0 %v267
    %4484 = vmatpush1.msra.mxu0 %v266
    %4485 = vmatprep.subr.mxu0 %v263
    %4486 = vmatpush1.msra.mxu0 %v262
    %4487 = vmatprep.subr.mxu0 %v259
    %4488 = vmatpush1.msra.mxu0 %v258
    %4489 = vmatprep.subr.mxu0 %v255
    %4490 = vmatpush1.msra.mxu0 %v254
    %4491 = vmatprep.subr.mxu0 %v251
    %4492 = vmatpush1.msra.mxu0 %v250
    %4493 = vmatprep.subr.mxu0 %v247
    %4494 = vmatpush1.msra.mxu0 %v246
    %4495 = vmatprep.subr.mxu0 %v243
    %4496 = vmatpush1.msra.mxu0 %v242
    %4497 = vmatprep.subr.mxu0 %v239
    %4498 = vmatpush1.msra.mxu0 %v238
    %4499 = vmatprep.subr.mxu0 0.0
    %4500 = vmatpush2.msra.mxu0 0.0
    %4501 = vmatprep.subr.mxu0 0.0
    %4502 = vmatpush2.msra.mxu0 0.0
    %4503 = vmatprep.subr.mxu0 0.0
    %4504 = vmatpush2.msra.mxu0 0.0
    %4505 = vmatprep.subr.mxu0 0.0
    %4506 = vmatpush2.msra.mxu0 0.0
    %4507 = vmatprep.subr.mxu0 0.0
    %4508 = vmatpush2.msra.mxu0 0.0
    %4509 = vmatprep.subr.mxu0 0.0
    %4510 = vmatpush2.msra.mxu0 0.0
    %4511 = vmatprep.subr.mxu0 0.0
    %4512 = vmatpush2.msra.mxu0 0.0
    %4513 = vmatprep.subr.mxu0 0.0
    %4514 = vmatpush2.msra.mxu0 0.0
    %4515 = vmatprep.subr.mxu0 0.0
    %4516 = vmatpush2.msra.mxu0 0.0
    %4517 = vmatprep.subr.mxu0 0.0
    %4518 = vmatpush2.msra.mxu0 0.0
    %4519 = vmatprep.subr.mxu0 0.0
    %4520 = vmatpush2.msra.mxu0 0.0
    %4521 = vmatprep.subr.mxu0 0.0
    %4522 = vmatpush2.msra.mxu0 0.0
    %4523 = vmatprep.subr.mxu0 0.0
    %4524 = vmatpush2.msra.mxu0 0.0
    %4525 = vmatprep.subr.mxu0 0.0
    %4526 = vmatpush2.msra.mxu0 0.0
    %4527 = vmatprep.subr.mxu0 0.0
    %4528 = vmatpush2.msra.mxu0 0.0
    %4529 = vmatprep.subr.mxu0 0.0
    %4530 = vmatpush2.msra.mxu0 0.0
    %4531 = vmatprep.mubr.f32.mxu0 0.0
    %4532 = vmatmul.mubr.f32.gmra.mxu0 %v4131
    %v4533 = vpop.f32.mrf.mxu0
    %v4534 = vadd.f32 0.0, %v4533
    %v4535 = vpop.f32.mrf.mxu0
    %v4536 = vadd.f32 0.0, %v4535
    %4537 = vdwg.mxu0
    %4538 = vmatprep.subr.mxu0 %v362
    %4539 = vmatpush1.msra.mxu0 %v361
    %4540 = vmatprep.subr.mxu0 %v358
    %4541 = vmatpush1.msra.mxu0 %v357
    %4542 = vmatprep.subr.mxu0 %v354
    %4543 = vmatpush1.msra.mxu0 %v353
    %4544 = vmatprep.subr.mxu0 %v350
    %4545 = vmatpush1.msra.mxu0 %v349
    %4546 = vmatprep.subr.mxu0 %v346
    %4547 = vmatpush1.msra.mxu0 %v345
    %4548 = vmatprep.subr.mxu0 %v342
    %4549 = vmatpush1.msra.mxu0 %v341
    %4550 = vmatprep.subr.mxu0 %v338
    %4551 = vmatpush1.msra.mxu0 %v337
    %4552 = vmatprep.subr.mxu0 %v334
    %4553 = vmatpush1.msra.mxu0 %v333
    %4554 = vmatprep.subr.mxu0 %v330
    %4555 = vmatpush1.msra.mxu0 %v329
    %4556 = vmatprep.subr.mxu0 %v326
    %4557 = vmatpush1.msra.mxu0 %v325
    %4558 = vmatprep.subr.mxu0 %v322
    %4559 = vmatpush1.msra.mxu0 %v321
    %4560 = vmatprep.subr.mxu0 %v318
    %4561 = vmatpush1.msra.mxu0 %v317
    %4562 = vmatprep.subr.mxu0 %v314
    %4563 = vmatpush1.msra.mxu0 %v313
    %4564 = vmatprep.subr.mxu0 %v310
    %4565 = vmatpush1.msra.mxu0 %v309
    %4566 = vmatprep.subr.mxu0 %v306
    %4567 = vmatpush1.msra.mxu0 %v305
    %4568 = vmatprep.subr.mxu0 %v302
    %4569 = vmatpush1.msra.mxu0 %v301
    %4570 = vmatprep.subr.mxu0 0.0
    %4571 = vmatpush2.msra.mxu0 0.0
    %4572 = vmatprep.subr.mxu0 0.0
    %4573 = vmatpush2.msra.mxu0 0.0
    %4574 = vmatprep.subr.mxu0 0.0
    %4575 = vmatpush2.msra.mxu0 0.0
    %4576 = vmatprep.subr.mxu0 0.0
    %4577 = vmatpush2.msra.mxu0 0.0
    %4578 = vmatprep.subr.mxu0 0.0
    %4579 = vmatpush2.msra.mxu0 0.0
    %4580 = vmatprep.subr.mxu0 0.0
    %4581 = vmatpush2.msra.mxu0 0.0
    %4582 = vmatprep.subr.mxu0 0.0
    %4583 = vmatpush2.msra.mxu0 0.0
    %4584 = vmatprep.subr.mxu0 0.0
    %4585 = vmatpush2.msra.mxu0 0.0
    %4586 = vmatprep.subr.mxu0 0.0
    %4587 = vmatpush2.msra.mxu0 0.0
    %4588 = vmatprep.subr.mxu0 0.0
    %4589 = vmatpush2.msra.mxu0 0.0
    %4590 = vmatprep.subr.mxu0 0.0
    %4591 = vmatpush2.msra.mxu0 0.0
    %4592 = vmatprep.subr.mxu0 0.0
    %4593 = vmatpush2.msra.mxu0 0.0
    %4594 = vmatprep.subr.mxu0 0.0
    %4595 = vmatpush2.msra.mxu0 0.0
    %4596 = vmatprep.subr.mxu0 0.0
    %4597 = vmatpush2.msra.mxu0 0.0
    %4598 = vmatprep.subr.mxu0 0.0
    %4599 = vmatpush2.msra.mxu0 0.0
    %4600 = vmatprep.subr.mxu0 0.0
    %4601 = vmatpush2.msra.mxu0 0.0
    %4602 = vmatprep.mubr.f32.mxu0 0.0
    %4603 = vmatmul.mubr.f32.gmra.mxu0 %v4395
    %v4604 = vpop.f32.mrf.mxu0
    %v4605 = vadd.f32 %v4463, %v4604
    %v4606 = vpop.f32.mrf.mxu0
    %v4607 = vadd.f32 %v4465, %v4606
    %4608 = vdwg.mxu0
    %4609 = vmatprep.subr.mxu0 %v364
    %4610 = vmatpush1.msra.mxu0 %v363
    %4611 = vmatprep.subr.mxu0 %v360
    %4612 = vmatpush1.msra.mxu0 %v359
    %4613 = vmatprep.subr.mxu0 %v356
    %4614 = vmatpush1.msra.mxu0 %v355
    %4615 = vmatprep.subr.mxu0 %v352
    %4616 = vmatpush1.msra.mxu0 %v351
    %4617 = vmatprep.subr.mxu0 %v348
    %4618 = vmatpush1.msra.mxu0 %v347
    %4619 = vmatprep.subr.mxu0 %v344
    %4620 = vmatpush1.msra.mxu0 %v343
    %4621 = vmatprep.subr.mxu0 %v340
    %4622 = vmatpush1.msra.mxu0 %v339
    %4623 = vmatprep.subr.mxu0 %v336
    %4624 = vmatpush1.msra.mxu0 %v335
    %4625 = vmatprep.subr.mxu0 %v332
    %4626 = vmatpush1.msra.mxu0 %v331
    %4627 = vmatprep.subr.mxu0 %v328
    %4628 = vmatpush1.msra.mxu0 %v327
    %4629 = vmatprep.subr.mxu0 %v324
    %4630 = vmatpush1.msra.mxu0 %v323
    %4631 = vmatprep.subr.mxu0 %v320
    %4632 = vmatpush1.msra.mxu0 %v319
    %4633 = vmatprep.subr.mxu0 %v316
    %4634 = vmatpush1.msra.mxu0 %v315
    %4635 = vmatprep.subr.mxu0 %v312
    %4636 = vmatpush1.msra.mxu0 %v311
    %4637 = vmatprep.subr.mxu0 %v308
    %4638 = vmatpush1.msra.mxu0 %v307
    %4639 = vmatprep.subr.mxu0 %v304
    %4640 = vmatpush1.msra.mxu0 %v303
    %4641 = vmatprep.subr.mxu0 0.0
    %4642 = vmatpush2.msra.mxu0 0.0
    %4643 = vmatprep.subr.mxu0 0.0
    %4644 = vmatpush2.msra.mxu0 0.0
    %4645 = vmatprep.subr.mxu0 0.0
    %4646 = vmatpush2.msra.mxu0 0.0
    %4647 = vmatprep.subr.mxu0 0.0
    %4648 = vmatpush2.msra.mxu0 0.0
    %4649 = vmatprep.subr.mxu0 0.0
    %4650 = vmatpush2.msra.mxu0 0.0
    %4651 = vmatprep.subr.mxu0 0.0
    %4652 = vmatpush2.msra.mxu0 0.0
    %4653 = vmatprep.subr.mxu0 0.0
    %4654 = vmatpush2.msra.mxu0 0.0
    %4655 = vmatprep.subr.mxu0 0.0
    %4656 = vmatpush2.msra.mxu0 0.0
    %4657 = vmatprep.subr.mxu0 0.0
    %4658 = vmatpush2.msra.mxu0 0.0
    %4659 = vmatprep.subr.mxu0 0.0
    %4660 = vmatpush2.msra.mxu0 0.0
    %4661 = vmatprep.subr.mxu0 0.0
    %4662 = vmatpush2.msra.mxu0 0.0
    %4663 = vmatprep.subr.mxu0 0.0
    %4664 = vmatpush2.msra.mxu0 0.0
    %4665 = vmatprep.subr.mxu0 0.0
    %4666 = vmatpush2.msra.mxu0 0.0
    %4667 = vmatprep.subr.mxu0 0.0
    %4668 = vmatpush2.msra.mxu0 0.0
    %4669 = vmatprep.subr.mxu0 0.0
    %4670 = vmatpush2.msra.mxu0 0.0
    %4671 = vmatprep.subr.mxu0 0.0
    %4672 = vmatpush2.msra.mxu0 0.0
    %4673 = vmatprep.mubr.f32.mxu0 0.0
    %4674 = vmatmul.mubr.f32.gmra.mxu0 %v4395
    %v4675 = vpop.f32.mrf.mxu0
    %v4676 = vadd.f32 %v4534, %v4675
    %v4677 = vpop.f32.mrf.mxu0
    %v4678 = vadd.f32 %v4536, %v4677
    %4679 = vdwg.mxu0
    %v4680 = vadd.f32 %v4605, %v2935
    %v4681 = vadd.f32 %v4607, %v2939
    %v4682 = vadd.f32 %v4676, %v2943
    %v4683 = vadd.f32 %v4678, %v2947
    %v4684 = vxor.u32 %v4680, 2147483648
    %v4685 = vmul.f32 %v4684, 1.442695
    %v4686 = vpow.pop %v4685
    %v4687 = vadd.f32 %v4686, 1.0
    %v4688 = vrcp.pop %v4687
    %v4689 = vmul.f32 1.0, %v4688
    %v4690 = vxor.u32 %v4681, 2147483648
    %v4691 = vmul.f32 %v4690, 1.442695
    %v4692 = vpow.pop %v4691
    %v4693 = vadd.f32 %v4692, 1.0
    %v4694 = vrcp.pop %v4693
    %v4695 = vmul.f32 1.0, %v4694
    %v4696 = vtanh.pop %v4682
    %v4697 = vxor.u32 %v4683, 2147483648
    %v4698 = vmul.f32 %v4697, 1.442695
    %v4699 = vpow.pop %v4698
    %v4700 = vadd.f32 %v4699, 1.0
    %v4701 = vrcp.pop %v4700
    %v4702 = vmul.f32 1.0, %v4701
    %v4703 = vmul.f32 %v4695, %v4129
    %v4704 = vmul.f32 %v4689, %v4696
    %v4705 = vadd.f32 %v4703, %v4704
    %v4706 = vtanh.pop %v4705
    %v4707 = vmul.f32 %v4702, %v4706
    %4708 = vmatprep.subr.mxu0 0.0
    %4709 = vmatpush1.xpose.msra.mxu0 0.0
    %4710 = vmatprep.subr.mxu0 0.0
    %4711 = vmatpush1.xpose.msra.mxu0 0.0
    %4712 = vmatprep.subr.mxu0 0.0
    %4713 = vmatpush1.xpose.msra.mxu0 0.0
    %4714 = vmatprep.subr.mxu0 0.0
    %4715 = vmatpush1.xpose.msra.mxu0 0.0
    %4716 = vmatprep.subr.mxu0 0.0
    %4717 = vmatpush1.xpose.msra.mxu0 0.0
    %4718 = vmatprep.subr.mxu0 0.0
    %4719 = vmatpush1.xpose.msra.mxu0 0.0
    %4720 = vmatprep.subr.mxu0 0.0
    %4721 = vmatpush1.xpose.msra.mxu0 0.0
    %4722 = vmatprep.subr.mxu0 0.0
    %4723 = vmatpush1.xpose.msra.mxu0 0.0
    %4724 = vmatprep.subr.mxu0 0.0
    %4725 = vmatpush1.xpose.msra.mxu0 0.0
    %4726 = vmatprep.subr.mxu0 0.0
    %4727 = vmatpush1.xpose.msra.mxu0 0.0
    %4728 = vmatprep.subr.mxu0 0.0
    %4729 = vmatpush1.xpose.msra.mxu0 0.0
    %4730 = vmatprep.subr.mxu0 0.0
    %4731 = vmatpush1.xpose.msra.mxu0 0.0
    %4732 = vmatprep.subr.mxu0 0.0
    %4733 = vmatpush1.xpose.msra.mxu0 0.0
    %4734 = vmatprep.subr.mxu0 0.0
    %4735 = vmatpush1.xpose.msra.mxu0 0.0
    %4736 = vmatprep.subr.mxu0 0.0
    %4737 = vmatpush1.xpose.msra.mxu0 0.0
    %4738 = vmatprep.subr.mxu0 0.0
    %4739 = vmatpush1.xpose.msra.mxu0 %v2160
    %4740 = vmatprep.subr.mxu0 0.0
    %4741 = vmatpush2.xpose.msra.mxu0 0.0
    %4742 = vmatprep.subr.mxu0 0.0
    %4743 = vmatpush2.xpose.msra.mxu0 0.0
    %4744 = vmatprep.subr.mxu0 0.0
    %4745 = vmatpush2.xpose.msra.mxu0 0.0
    %4746 = vmatprep.subr.mxu0 0.0
    %4747 = vmatpush2.xpose.msra.mxu0 0.0
    %4748 = vmatprep.subr.mxu0 0.0
    %4749 = vmatpush2.xpose.msra.mxu0 0.0
    %4750 = vmatprep.subr.mxu0 0.0
    %4751 = vmatpush2.xpose.msra.mxu0 0.0
    %4752 = vmatprep.subr.mxu0 0.0
    %4753 = vmatpush2.xpose.msra.mxu0 0.0
    %4754 = vmatprep.subr.mxu0 0.0
    %4755 = vmatpush2.xpose.msra.mxu0 0.0
    %4756 = vmatprep.subr.mxu0 0.0
    %4757 = vmatpush2.xpose.msra.mxu0 0.0
    %4758 = vmatprep.subr.mxu0 0.0
    %4759 = vmatpush2.xpose.msra.mxu0 0.0
    %4760 = vmatprep.subr.mxu0 0.0
    %4761 = vmatpush2.xpose.msra.mxu0 0.0
    %4762 = vmatprep.subr.mxu0 0.0
    %4763 = vmatpush2.xpose.msra.mxu0 0.0
    %4764 = vmatprep.subr.mxu0 0.0
    %4765 = vmatpush2.xpose.msra.mxu0 0.0
    %4766 = vmatprep.subr.mxu0 0.0
    %4767 = vmatpush2.xpose.msra.mxu0 0.0
    %4768 = vmatprep.subr.mxu0 0.0
    %4769 = vmatpush2.xpose.msra.mxu0 0.0
    %4770 = vmatprep.subr.mxu0 0.0
    %4771 = vmatpush2.xpose.msra.mxu0 0.0
    %4772 = vmatprep.mubr.f32.mxu0 0.0
    %4773 = vmatmul.mubr.f32.gmra.mxu0 %v4707
    %v4774 = vpop.f32.mrf.mxu0
    %v4775 = vadd.f32 0.0, %v4774
    %v4776 = vpop.f32.mrf.mxu0
    %4777 = vdwg.mxu0
    %v4778 = vsel %vm2162, %v4775, -1e+30
    %v4779 = vsel %vm2451, %v4778, -inf
    %4780 = vmax.xlane.f32.xlu0 %v4779
    %v4781 = vpop.xlane.xlu0 %4780
    %v4782 = vsub.f32 %v4778, %v4781
    %v4783 = vmul.f32 %v4782, 1.442695
    %v4784 = vpow.pop %v4783
    %v4785 = vmul.f32 %v4784, %v2164
    %v4786 = vsel %vm2451, %v4785, 0.0
    %4787 = vadd.xlane.f32.xlu0 %v4786
    %v4788 = vpop.xlane.xlu0 %4787
    %v4789 = vmax.f32 %v4788, 1e-30
    %v4790 = vrcp.pop %v4789
    %v4791 = vmul.f32 %v4785, %v4790
    %v4793 = vsel %vm2465, %v4791, 0
    %4795 = vmatprep.subr.mxu0 0.0
    %4796 = vmatpush1.msra.mxu0 0.0
    %4797 = vmatprep.subr.mxu0 0.0
    %4798 = vmatpush1.msra.mxu0 0.0
    %4799 = vmatprep.subr.mxu0 0.0
    %4800 = vmatpush1.msra.mxu0 0.0
    %4801 = vmatprep.subr.mxu0 0.0
    %4802 = vmatpush1.msra.mxu0 0.0
    %4803 = vmatprep.subr.mxu0 0.0
    %4804 = vmatpush1.msra.mxu0 0.0
    %4805 = vmatprep.subr.mxu0 0.0
    %4806 = vmatpush1.msra.mxu0 0.0
    %4807 = vmatprep.subr.mxu0 0.0
    %4808 = vmatpush1.msra.mxu0 0.0
    %4809 = vmatprep.subr.mxu0 0.0
    %4810 = vmatpush1.msra.mxu0 0.0
    %4811 = vmatprep.subr.mxu0 0.0
    %4812 = vmatpush1.msra.mxu0 0.0
    %4813 = vmatprep.subr.mxu0 0.0
    %4814 = vmatpush1.msra.mxu0 0.0
    %4815 = vmatprep.subr.mxu0 0.0
    %4816 = vmatpush1.msra.mxu0 0.0
    %4817 = vmatprep.subr.mxu0 0.0
    %4818 = vmatpush1.msra.mxu0 0.0
    %4819 = vmatprep.subr.mxu0 0.0
    %4820 = vmatpush1.msra.mxu0 0.0
    %4821 = vmatprep.subr.mxu0 0.0
    %4822 = vmatpush1.msra.mxu0 0.0
    %4823 = vmatprep.subr.mxu0 0.0
    %4824 = vmatpush1.msra.mxu0 0.0
    %4825 = vmatprep.subr.mxu0 0.0
    %4826 = vmatpush1.msra.mxu0 %v2160
    %4827 = vmatprep.subr.mxu0 0.0
    %4828 = vmatpush2.msra.mxu0 0.0
    %4829 = vmatprep.subr.mxu0 0.0
    %4830 = vmatpush2.msra.mxu0 0.0
    %4831 = vmatprep.subr.mxu0 0.0
    %4832 = vmatpush2.msra.mxu0 0.0
    %4833 = vmatprep.subr.mxu0 0.0
    %4834 = vmatpush2.msra.mxu0 0.0
    %4835 = vmatprep.subr.mxu0 0.0
    %4836 = vmatpush2.msra.mxu0 0.0
    %4837 = vmatprep.subr.mxu0 0.0
    %4838 = vmatpush2.msra.mxu0 0.0
    %4839 = vmatprep.subr.mxu0 0.0
    %4840 = vmatpush2.msra.mxu0 0.0
    %4841 = vmatprep.subr.mxu0 0.0
    %4842 = vmatpush2.msra.mxu0 0.0
    %4843 = vmatprep.subr.mxu0 0.0
    %4844 = vmatpush2.msra.mxu0 0.0
    %4845 = vmatprep.subr.mxu0 0.0
    %4846 = vmatpush2.msra.mxu0 0.0
    %4847 = vmatprep.subr.mxu0 0.0
    %4848 = vmatpush2.msra.mxu0 0.0
    %4849 = vmatprep.subr.mxu0 0.0
    %4850 = vmatpush2.msra.mxu0 0.0
    %4851 = vmatprep.subr.mxu0 0.0
    %4852 = vmatpush2.msra.mxu0 0.0
    %4853 = vmatprep.subr.mxu0 0.0
    %4854 = vmatpush2.msra.mxu0 0.0
    %4855 = vmatprep.subr.mxu0 0.0
    %4856 = vmatpush2.msra.mxu0 0.0
    %4857 = vmatprep.subr.mxu0 0.0
    %4858 = vmatpush2.msra.mxu0 0.0
    %4859 = vmatprep.mubr.f32.mxu0 0.0
    %4860 = vmatmul.mubr.f32.gmra.mxu0 %v4793
    %v4861 = vpop.f32.mrf.mxu0
    %v4862 = vadd.f32 0.0, %v4861
    %v4863 = vpop.f32.mrf.mxu0
    %4864 = vdwg.mxu0
    %v4865 = vadd.f32 %v4707, %v4862
    %4866 = vmatprep.subr.mxu0 0.0
    %4867 = vmatpush1.msra.mxu0 %v380
    %4868 = vmatprep.subr.mxu0 0.0
    %4869 = vmatpush1.msra.mxu0 %v379
    %4870 = vmatprep.subr.mxu0 0.0
    %4871 = vmatpush1.msra.mxu0 %v378
    %4872 = vmatprep.subr.mxu0 0.0
    %4873 = vmatpush1.msra.mxu0 %v377
    %4874 = vmatprep.subr.mxu0 0.0
    %4875 = vmatpush1.msra.mxu0 %v376
    %4876 = vmatprep.subr.mxu0 0.0
    %4877 = vmatpush1.msra.mxu0 %v375
    %4878 = vmatprep.subr.mxu0 0.0
    %4879 = vmatpush1.msra.mxu0 %v374
    %4880 = vmatprep.subr.mxu0 0.0
    %4881 = vmatpush1.msra.mxu0 %v373
    %4882 = vmatprep.subr.mxu0 0.0
    %4883 = vmatpush1.msra.mxu0 %v372
    %4884 = vmatprep.subr.mxu0 0.0
    %4885 = vmatpush1.msra.mxu0 %v371
    %4886 = vmatprep.subr.mxu0 0.0
    %4887 = vmatpush1.msra.mxu0 %v370
    %4888 = vmatprep.subr.mxu0 0.0
    %4889 = vmatpush1.msra.mxu0 %v369
    %4890 = vmatprep.subr.mxu0 0.0
    %4891 = vmatpush1.msra.mxu0 %v368
    %4892 = vmatprep.subr.mxu0 0.0
    %4893 = vmatpush1.msra.mxu0 %v367
    %4894 = vmatprep.subr.mxu0 0.0
    %4895 = vmatpush1.msra.mxu0 %v366
    %4896 = vmatprep.subr.mxu0 0.0
    %4897 = vmatpush1.msra.mxu0 %v365
    %4898 = vmatprep.subr.mxu0 0.0
    %4899 = vmatpush2.msra.mxu0 0.0
    %4900 = vmatprep.subr.mxu0 0.0
    %4901 = vmatpush2.msra.mxu0 0.0
    %4902 = vmatprep.subr.mxu0 0.0
    %4903 = vmatpush2.msra.mxu0 0.0
    %4904 = vmatprep.subr.mxu0 0.0
    %4905 = vmatpush2.msra.mxu0 0.0
    %4906 = vmatprep.subr.mxu0 0.0
    %4907 = vmatpush2.msra.mxu0 0.0
    %4908 = vmatprep.subr.mxu0 0.0
    %4909 = vmatpush2.msra.mxu0 0.0
    %4910 = vmatprep.subr.mxu0 0.0
    %4911 = vmatpush2.msra.mxu0 0.0
    %4912 = vmatprep.subr.mxu0 0.0
    %4913 = vmatpush2.msra.mxu0 0.0
    %4914 = vmatprep.subr.mxu0 0.0
    %4915 = vmatpush2.msra.mxu0 0.0
    %4916 = vmatprep.subr.mxu0 0.0
    %4917 = vmatpush2.msra.mxu0 0.0
    %4918 = vmatprep.subr.mxu0 0.0
    %4919 = vmatpush2.msra.mxu0 0.0
    %4920 = vmatprep.subr.mxu0 0.0
    %4921 = vmatpush2.msra.mxu0 0.0
    %4922 = vmatprep.subr.mxu0 0.0
    %4923 = vmatpush2.msra.mxu0 0.0
    %4924 = vmatprep.subr.mxu0 0.0
    %4925 = vmatpush2.msra.mxu0 0.0
    %4926 = vmatprep.subr.mxu0 0.0
    %4927 = vmatpush2.msra.mxu0 0.0
    %4928 = vmatprep.subr.mxu0 0.0
    %4929 = vmatpush2.msra.mxu0 0.0
    %4930 = vmatprep.mubr.f32.mxu0 0.0
    %4931 = vmatmul.mubr.f32.gmra.mxu0 %v4865
    %v4932 = vpop.f32.mrf.mxu0
    %v4933 = vadd.f32 %v381, %v4932
    %v4934 = vpop.f32.mrf.mxu0
    %4935 = vdwg.mxu0
    %4936 = vst [vmem:[#allocation21 + $0x5] sm:$0x1] %v4933
    %v4937 = vsel %vm384, %v4933, -1e+30
    %v4938 = vsel %vm2612, %v4937, -inf
    %4939 = vmax.xlane.f32.xlu0 %v4938
    %v4940 = vpop.xlane.xlu0 %4939
    %vm4941 = vcmp.ge.f32.partialorder %v4937, %v4940
    %v4942 = vsel %vm4941, %v383, 128
    %v4943 = vsel %vm2612, %v4942, 2147483647
    %v4944 = vand.u32 %v4943, 65535
    %v4945 = vshra.s32 %v4943, 16
    %v4946 = vcvt.s32.f32 %v4944
    %v4947 = vcvt.s32.f32 %v4945
    %4948 = vmin.xlane.f32.xlu0 %v4947
    %v4949 = vpop.xlane.xlu0 %4948
    %vm4950 = vcmp.eq.f32.partialorder %v4947, %v4949
    %v4951 = vsel %vm4950, %v4946, inf
    %4952 = vmin.xlane.f32.xlu0 %v4951
    %v4953 = vpop.xlane.xlu0 %4952
    %v4954 = vcvt.f32.s32 %v4953
    %v4955 = vcvt.f32.s32 %v4949
    %v4956 = vshll.u32 %v4955, 16
    %v4957 = vadd.s32 %v4956, %v4954
    %vm4958 = vcmp.eq.s32.totalorder %v383, %v4957
    %v4959 = vsel %vm4958, 1, 0
    %v4960 = vcvt.s32.f32 %v4959
    %s4961 = sld [smem:[#allocation8 + $0x5]]
    %v4962 = vstv %s4961
    %vm4963 = vcmp.eq.s32.totalorder %v383, %v4962
    %v4964 = vsel %vm4963, 1, 0
    %v4965 = vcvt.s32.f32 %v4964
    %s4966 = sld [smem:[#allocation10 + $0x5]]
    %p4967 = scmp.gt.s32.totalorder %s4966, 0
    %s4968 = scalar_select %p4967, 1, 0
    %v4969 = vstv %s4968
    %vm4970 = vcmp.eq.s32.totalorder %v4969, 1
    %v4971 = vsel %vm4970, %v4965, %v4960
    %4972 = vmatprep.subr.mxu0 %v297
    %4973 = vmatpush1.msra.mxu0 %v296
    %4974 = vmatprep.subr.mxu0 %v293
    %4975 = vmatpush1.msra.mxu0 %v292
    %4976 = vmatprep.subr.mxu0 %v289
    %4977 = vmatpush1.msra.mxu0 %v288
    %4978 = vmatprep.subr.mxu0 %v285
    %4979 = vmatpush1.msra.mxu0 %v284
    %4980 = vmatprep.subr.mxu0 %v281
    %4981 = vmatpush1.msra.mxu0 %v280
    %4982 = vmatprep.subr.mxu0 %v277
    %4983 = vmatpush1.msra.mxu0 %v276
    %4984 = vmatprep.subr.mxu0 %v273
    %4985 = vmatpush1.msra.mxu0 %v272
    %4986 = vmatprep.subr.mxu0 %v269
    %4987 = vmatpush1.msra.mxu0 %v268
    %4988 = vmatprep.subr.mxu0 %v265
    %4989 = vmatpush1.msra.mxu0 %v264
    %4990 = vmatprep.subr.mxu0 %v261
    %4991 = vmatpush1.msra.mxu0 %v260
    %4992 = vmatprep.subr.mxu0 %v257
    %4993 = vmatpush1.msra.mxu0 %v256
    %4994 = vmatprep.subr.mxu0 %v253
    %4995 = vmatpush1.msra.mxu0 %v252
    %4996 = vmatprep.subr.mxu0 %v249
    %4997 = vmatpush1.msra.mxu0 %v248
    %4998 = vmatprep.subr.mxu0 %v245
    %4999 = vmatpush1.msra.mxu0 %v244
    %5000 = vmatprep.subr.mxu0 %v241
    %5001 = vmatpush1.msra.mxu0 %v240
    %5002 = vmatprep.subr.mxu0 %v237
    %5003 = vmatpush1.msra.mxu0 %v236
    %5004 = vmatprep.subr.mxu0 0.0
    %5005 = vmatpush2.msra.mxu0 0.0
    %5006 = vmatprep.subr.mxu0 0.0
    %5007 = vmatpush2.msra.mxu0 0.0
    %5008 = vmatprep.subr.mxu0 0.0
    %5009 = vmatpush2.msra.mxu0 0.0
    %5010 = vmatprep.subr.mxu0 0.0
    %5011 = vmatpush2.msra.mxu0 0.0
    %5012 = vmatprep.subr.mxu0 0.0
    %5013 = vmatpush2.msra.mxu0 0.0
    %5014 = vmatprep.subr.mxu0 0.0
    %5015 = vmatpush2.msra.mxu0 0.0
    %5016 = vmatprep.subr.mxu0 0.0
    %5017 = vmatpush2.msra.mxu0 0.0
    %5018 = vmatprep.subr.mxu0 0.0
    %5019 = vmatpush2.msra.mxu0 0.0
    %5020 = vmatprep.subr.mxu0 0.0
    %5021 = vmatpush2.msra.mxu0 0.0
    %5022 = vmatprep.subr.mxu0 0.0
    %5023 = vmatpush2.msra.mxu0 0.0
    %5024 = vmatprep.subr.mxu0 0.0
    %5025 = vmatpush2.msra.mxu0 0.0
    %5026 = vmatprep.subr.mxu0 0.0
    %5027 = vmatpush2.msra.mxu0 0.0
    %5028 = vmatprep.subr.mxu0 0.0
    %5029 = vmatpush2.msra.mxu0 0.0
    %5030 = vmatprep.subr.mxu0 0.0
    %5031 = vmatpush2.msra.mxu0 0.0
    %5032 = vmatprep.subr.mxu0 0.0
    %5033 = vmatpush2.msra.mxu0 0.0
    %5034 = vmatprep.subr.mxu0 0.0
    %5035 = vmatpush2.msra.mxu0 0.0
    %5036 = vmatprep.mubr.f32.mxu0 0.0
    %5037 = vmatmul.mubr.f32.gmra.mxu0 %v4707
    %v5038 = vpop.f32.mrf.mxu0
    %v5039 = vadd.f32 0.0, %v5038
    %v5040 = vpop.f32.mrf.mxu0
    %v5041 = vadd.f32 0.0, %v5040
    %5042 = vdwg.mxu0
    %5043 = vmatprep.subr.mxu0 %v299
    %5044 = vmatpush1.msra.mxu0 %v298
    %5045 = vmatprep.subr.mxu0 %v295
    %5046 = vmatpush1.msra.mxu0 %v294
    %5047 = vmatprep.subr.mxu0 %v291
    %5048 = vmatpush1.msra.mxu0 %v290
    %5049 = vmatprep.subr.mxu0 %v287
    %5050 = vmatpush1.msra.mxu0 %v286
    %5051 = vmatprep.subr.mxu0 %v283
    %5052 = vmatpush1.msra.mxu0 %v282
    %5053 = vmatprep.subr.mxu0 %v279
    %5054 = vmatpush1.msra.mxu0 %v278
    %5055 = vmatprep.subr.mxu0 %v275
    %5056 = vmatpush1.msra.mxu0 %v274
    %5057 = vmatprep.subr.mxu0 %v271
    %5058 = vmatpush1.msra.mxu0 %v270
    %5059 = vmatprep.subr.mxu0 %v267
    %5060 = vmatpush1.msra.mxu0 %v266
    %5061 = vmatprep.subr.mxu0 %v263
    %5062 = vmatpush1.msra.mxu0 %v262
    %5063 = vmatprep.subr.mxu0 %v259
    %5064 = vmatpush1.msra.mxu0 %v258
    %5065 = vmatprep.subr.mxu0 %v255
    %5066 = vmatpush1.msra.mxu0 %v254
    %5067 = vmatprep.subr.mxu0 %v251
    %5068 = vmatpush1.msra.mxu0 %v250
    %5069 = vmatprep.subr.mxu0 %v247
    %5070 = vmatpush1.msra.mxu0 %v246
    %5071 = vmatprep.subr.mxu0 %v243
    %5072 = vmatpush1.msra.mxu0 %v242
    %5073 = vmatprep.subr.mxu0 %v239
    %5074 = vmatpush1.msra.mxu0 %v238
    %5075 = vmatprep.subr.mxu0 0.0
    %5076 = vmatpush2.msra.mxu0 0.0
    %5077 = vmatprep.subr.mxu0 0.0
    %5078 = vmatpush2.msra.mxu0 0.0
    %5079 = vmatprep.subr.mxu0 0.0
    %5080 = vmatpush2.msra.mxu0 0.0
    %5081 = vmatprep.subr.mxu0 0.0
    %5082 = vmatpush2.msra.mxu0 0.0
    %5083 = vmatprep.subr.mxu0 0.0
    %5084 = vmatpush2.msra.mxu0 0.0
    %5085 = vmatprep.subr.mxu0 0.0
    %5086 = vmatpush2.msra.mxu0 0.0
    %5087 = vmatprep.subr.mxu0 0.0
    %5088 = vmatpush2.msra.mxu0 0.0
    %5089 = vmatprep.subr.mxu0 0.0
    %5090 = vmatpush2.msra.mxu0 0.0
    %5091 = vmatprep.subr.mxu0 0.0
    %5092 = vmatpush2.msra.mxu0 0.0
    %5093 = vmatprep.subr.mxu0 0.0
    %5094 = vmatpush2.msra.mxu0 0.0
    %5095 = vmatprep.subr.mxu0 0.0
    %5096 = vmatpush2.msra.mxu0 0.0
    %5097 = vmatprep.subr.mxu0 0.0
    %5098 = vmatpush2.msra.mxu0 0.0
    %5099 = vmatprep.subr.mxu0 0.0
    %5100 = vmatpush2.msra.mxu0 0.0
    %5101 = vmatprep.subr.mxu0 0.0
    %5102 = vmatpush2.msra.mxu0 0.0
    %5103 = vmatprep.subr.mxu0 0.0
    %5104 = vmatpush2.msra.mxu0 0.0
    %5105 = vmatprep.subr.mxu0 0.0
    %5106 = vmatpush2.msra.mxu0 0.0
    %5107 = vmatprep.mubr.f32.mxu0 0.0
    %5108 = vmatmul.mubr.f32.gmra.mxu0 %v4707
    %v5109 = vpop.f32.mrf.mxu0
    %v5110 = vadd.f32 0.0, %v5109
    %v5111 = vpop.f32.mrf.mxu0
    %v5112 = vadd.f32 0.0, %v5111
    %5113 = vdwg.mxu0
    %5114 = vmatprep.subr.mxu0 %v362
    %5115 = vmatpush1.msra.mxu0 %v361
    %5116 = vmatprep.subr.mxu0 %v358
    %5117 = vmatpush1.msra.mxu0 %v357
    %5118 = vmatprep.subr.mxu0 %v354
    %5119 = vmatpush1.msra.mxu0 %v353
    %5120 = vmatprep.subr.mxu0 %v350
    %5121 = vmatpush1.msra.mxu0 %v349
    %5122 = vmatprep.subr.mxu0 %v346
    %5123 = vmatpush1.msra.mxu0 %v345
    %5124 = vmatprep.subr.mxu0 %v342
    %5125 = vmatpush1.msra.mxu0 %v341
    %5126 = vmatprep.subr.mxu0 %v338
    %5127 = vmatpush1.msra.mxu0 %v337
    %5128 = vmatprep.subr.mxu0 %v334
    %5129 = vmatpush1.msra.mxu0 %v333
    %5130 = vmatprep.subr.mxu0 %v330
    %5131 = vmatpush1.msra.mxu0 %v329
    %5132 = vmatprep.subr.mxu0 %v326
    %5133 = vmatpush1.msra.mxu0 %v325
    %5134 = vmatprep.subr.mxu0 %v322
    %5135 = vmatpush1.msra.mxu0 %v321
    %5136 = vmatprep.subr.mxu0 %v318
    %5137 = vmatpush1.msra.mxu0 %v317
    %5138 = vmatprep.subr.mxu0 %v314
    %5139 = vmatpush1.msra.mxu0 %v313
    %5140 = vmatprep.subr.mxu0 %v310
    %5141 = vmatpush1.msra.mxu0 %v309
    %5142 = vmatprep.subr.mxu0 %v306
    %5143 = vmatpush1.msra.mxu0 %v305
    %5144 = vmatprep.subr.mxu0 %v302
    %5145 = vmatpush1.msra.mxu0 %v301
    %5146 = vmatprep.subr.mxu0 0.0
    %5147 = vmatpush2.msra.mxu0 0.0
    %5148 = vmatprep.subr.mxu0 0.0
    %5149 = vmatpush2.msra.mxu0 0.0
    %5150 = vmatprep.subr.mxu0 0.0
    %5151 = vmatpush2.msra.mxu0 0.0
    %5152 = vmatprep.subr.mxu0 0.0
    %5153 = vmatpush2.msra.mxu0 0.0
    %5154 = vmatprep.subr.mxu0 0.0
    %5155 = vmatpush2.msra.mxu0 0.0
    %5156 = vmatprep.subr.mxu0 0.0
    %5157 = vmatpush2.msra.mxu0 0.0
    %5158 = vmatprep.subr.mxu0 0.0
    %5159 = vmatpush2.msra.mxu0 0.0
    %5160 = vmatprep.subr.mxu0 0.0
    %5161 = vmatpush2.msra.mxu0 0.0
    %5162 = vmatprep.subr.mxu0 0.0
    %5163 = vmatpush2.msra.mxu0 0.0
    %5164 = vmatprep.subr.mxu0 0.0
    %5165 = vmatpush2.msra.mxu0 0.0
    %5166 = vmatprep.subr.mxu0 0.0
    %5167 = vmatpush2.msra.mxu0 0.0
    %5168 = vmatprep.subr.mxu0 0.0
    %5169 = vmatpush2.msra.mxu0 0.0
    %5170 = vmatprep.subr.mxu0 0.0
    %5171 = vmatpush2.msra.mxu0 0.0
    %5172 = vmatprep.subr.mxu0 0.0
    %5173 = vmatpush2.msra.mxu0 0.0
    %5174 = vmatprep.subr.mxu0 0.0
    %5175 = vmatpush2.msra.mxu0 0.0
    %5176 = vmatprep.subr.mxu0 0.0
    %5177 = vmatpush2.msra.mxu0 0.0
    %5178 = vmatprep.mubr.f32.mxu0 0.0
    %5179 = vmatmul.mubr.f32.gmra.mxu0 %v4971
    %v5180 = vpop.f32.mrf.mxu0
    %v5181 = vadd.f32 %v5039, %v5180
    %v5182 = vpop.f32.mrf.mxu0
    %v5183 = vadd.f32 %v5041, %v5182
    %5184 = vdwg.mxu0
    %5185 = vmatprep.subr.mxu0 %v364
    %5186 = vmatpush1.msra.mxu0 %v363
    %5187 = vmatprep.subr.mxu0 %v360
    %5188 = vmatpush1.msra.mxu0 %v359
    %5189 = vmatprep.subr.mxu0 %v356
    %5190 = vmatpush1.msra.mxu0 %v355
    %5191 = vmatprep.subr.mxu0 %v352
    %5192 = vmatpush1.msra.mxu0 %v351
    %5193 = vmatprep.subr.mxu0 %v348
    %5194 = vmatpush1.msra.mxu0 %v347
    %5195 = vmatprep.subr.mxu0 %v344
    %5196 = vmatpush1.msra.mxu0 %v343
    %5197 = vmatprep.subr.mxu0 %v340
    %5198 = vmatpush1.msra.mxu0 %v339
    %5199 = vmatprep.subr.mxu0 %v336
    %5200 = vmatpush1.msra.mxu0 %v335
    %5201 = vmatprep.subr.mxu0 %v332
    %5202 = vmatpush1.msra.mxu0 %v331
    %5203 = vmatprep.subr.mxu0 %v328
    %5204 = vmatpush1.msra.mxu0 %v327
    %5205 = vmatprep.subr.mxu0 %v324
    %5206 = vmatpush1.msra.mxu0 %v323
    %5207 = vmatprep.subr.mxu0 %v320
    %5208 = vmatpush1.msra.mxu0 %v319
    %5209 = vmatprep.subr.mxu0 %v316
    %5210 = vmatpush1.msra.mxu0 %v315
    %5211 = vmatprep.subr.mxu0 %v312
    %5212 = vmatpush1.msra.mxu0 %v311
    %5213 = vmatprep.subr.mxu0 %v308
    %5214 = vmatpush1.msra.mxu0 %v307
    %5215 = vmatprep.subr.mxu0 %v304
    %5216 = vmatpush1.msra.mxu0 %v303
    %5217 = vmatprep.subr.mxu0 0.0
    %5218 = vmatpush2.msra.mxu0 0.0
    %5219 = vmatprep.subr.mxu0 0.0
    %5220 = vmatpush2.msra.mxu0 0.0
    %5221 = vmatprep.subr.mxu0 0.0
    %5222 = vmatpush2.msra.mxu0 0.0
    %5223 = vmatprep.subr.mxu0 0.0
    %5224 = vmatpush2.msra.mxu0 0.0
    %5225 = vmatprep.subr.mxu0 0.0
    %5226 = vmatpush2.msra.mxu0 0.0
    %5227 = vmatprep.subr.mxu0 0.0
    %5228 = vmatpush2.msra.mxu0 0.0
    %5229 = vmatprep.subr.mxu0 0.0
    %5230 = vmatpush2.msra.mxu0 0.0
    %5231 = vmatprep.subr.mxu0 0.0
    %5232 = vmatpush2.msra.mxu0 0.0
    %5233 = vmatprep.subr.mxu0 0.0
    %5234 = vmatpush2.msra.mxu0 0.0
    %5235 = vmatprep.subr.mxu0 0.0
    %5236 = vmatpush2.msra.mxu0 0.0
    %5237 = vmatprep.subr.mxu0 0.0
    %5238 = vmatpush2.msra.mxu0 0.0
    %5239 = vmatprep.subr.mxu0 0.0
    %5240 = vmatpush2.msra.mxu0 0.0
    %5241 = vmatprep.subr.mxu0 0.0
    %5242 = vmatpush2.msra.mxu0 0.0
    %5243 = vmatprep.subr.mxu0 0.0
    %5244 = vmatpush2.msra.mxu0 0.0
    %5245 = vmatprep.subr.mxu0 0.0
    %5246 = vmatpush2.msra.mxu0 0.0
    %5247 = vmatprep.subr.mxu0 0.0
    %5248 = vmatpush2.msra.mxu0 0.0
    %5249 = vmatprep.mubr.f32.mxu0 0.0
    %5250 = vmatmul.mubr.f32.gmra.mxu0 %v4971
    %v5251 = vpop.f32.mrf.mxu0
    %v5252 = vadd.f32 %v5110, %v5251
    %v5253 = vpop.f32.mrf.mxu0
    %v5254 = vadd.f32 %v5112, %v5253
    %5255 = vdwg.mxu0
    %v5256 = vadd.f32 %v5181, %v2935
    %v5257 = vadd.f32 %v5183, %v2939
    %v5258 = vadd.f32 %v5252, %v2943
    %v5259 = vadd.f32 %v5254, %v2947
    %v5260 = vxor.u32 %v5256, 2147483648
    %v5261 = vmul.f32 %v5260, 1.442695
    %v5262 = vpow.pop %v5261
    %v5263 = vadd.f32 %v5262, 1.0
    %v5264 = vrcp.pop %v5263
    %v5265 = vmul.f32 1.0, %v5264
    %v5266 = vxor.u32 %v5257, 2147483648
    %v5267 = vmul.f32 %v5266, 1.442695
    %v5268 = vpow.pop %v5267
    %v5269 = vadd.f32 %v5268, 1.0
    %v5270 = vrcp.pop %v5269
    %v5271 = vmul.f32 1.0, %v5270
    %v5272 = vtanh.pop %v5258
    %v5273 = vxor.u32 %v5259, 2147483648
    %v5274 = vmul.f32 %v5273, 1.442695
    %v5275 = vpow.pop %v5274
    %v5276 = vadd.f32 %v5275, 1.0
    %v5277 = vrcp.pop %v5276
    %v5278 = vmul.f32 1.0, %v5277
    %v5279 = vmul.f32 %v5271, %v4705
    %v5280 = vmul.f32 %v5265, %v5272
    %v5281 = vadd.f32 %v5279, %v5280
    %v5282 = vtanh.pop %v5281
    %v5283 = vmul.f32 %v5278, %v5282
    %5284 = vmatprep.subr.mxu0 0.0
    %5285 = vmatpush1.xpose.msra.mxu0 0.0
    %5286 = vmatprep.subr.mxu0 0.0
    %5287 = vmatpush1.xpose.msra.mxu0 0.0
    %5288 = vmatprep.subr.mxu0 0.0
    %5289 = vmatpush1.xpose.msra.mxu0 0.0
    %5290 = vmatprep.subr.mxu0 0.0
    %5291 = vmatpush1.xpose.msra.mxu0 0.0
    %5292 = vmatprep.subr.mxu0 0.0
    %5293 = vmatpush1.xpose.msra.mxu0 0.0
    %5294 = vmatprep.subr.mxu0 0.0
    %5295 = vmatpush1.xpose.msra.mxu0 0.0
    %5296 = vmatprep.subr.mxu0 0.0
    %5297 = vmatpush1.xpose.msra.mxu0 0.0
    %5298 = vmatprep.subr.mxu0 0.0
    %5299 = vmatpush1.xpose.msra.mxu0 0.0
    %5300 = vmatprep.subr.mxu0 0.0
    %5301 = vmatpush1.xpose.msra.mxu0 0.0
    %5302 = vmatprep.subr.mxu0 0.0
    %5303 = vmatpush1.xpose.msra.mxu0 0.0
    %5304 = vmatprep.subr.mxu0 0.0
    %5305 = vmatpush1.xpose.msra.mxu0 0.0
    %5306 = vmatprep.subr.mxu0 0.0
    %5307 = vmatpush1.xpose.msra.mxu0 0.0
    %5308 = vmatprep.subr.mxu0 0.0
    %5309 = vmatpush1.xpose.msra.mxu0 0.0
    %5310 = vmatprep.subr.mxu0 0.0
    %5311 = vmatpush1.xpose.msra.mxu0 0.0
    %5312 = vmatprep.subr.mxu0 0.0
    %5313 = vmatpush1.xpose.msra.mxu0 0.0
    %5314 = vmatprep.subr.mxu0 0.0
    %5315 = vmatpush1.xpose.msra.mxu0 %v2160
    %5316 = vmatprep.subr.mxu0 0.0
    %5317 = vmatpush2.xpose.msra.mxu0 0.0
    %5318 = vmatprep.subr.mxu0 0.0
    %5319 = vmatpush2.xpose.msra.mxu0 0.0
    %5320 = vmatprep.subr.mxu0 0.0
    %5321 = vmatpush2.xpose.msra.mxu0 0.0
    %5322 = vmatprep.subr.mxu0 0.0
    %5323 = vmatpush2.xpose.msra.mxu0 0.0
    %5324 = vmatprep.subr.mxu0 0.0
    %5325 = vmatpush2.xpose.msra.mxu0 0.0
    %5326 = vmatprep.subr.mxu0 0.0
    %5327 = vmatpush2.xpose.msra.mxu0 0.0
    %5328 = vmatprep.subr.mxu0 0.0
    %5329 = vmatpush2.xpose.msra.mxu0 0.0
    %5330 = vmatprep.subr.mxu0 0.0
    %5331 = vmatpush2.xpose.msra.mxu0 0.0
    %5332 = vmatprep.subr.mxu0 0.0
    %5333 = vmatpush2.xpose.msra.mxu0 0.0
    %5334 = vmatprep.subr.mxu0 0.0
    %5335 = vmatpush2.xpose.msra.mxu0 0.0
    %5336 = vmatprep.subr.mxu0 0.0
    %5337 = vmatpush2.xpose.msra.mxu0 0.0
    %5338 = vmatprep.subr.mxu0 0.0
    %5339 = vmatpush2.xpose.msra.mxu0 0.0
    %5340 = vmatprep.subr.mxu0 0.0
    %5341 = vmatpush2.xpose.msra.mxu0 0.0
    %5342 = vmatprep.subr.mxu0 0.0
    %5343 = vmatpush2.xpose.msra.mxu0 0.0
    %5344 = vmatprep.subr.mxu0 0.0
    %5345 = vmatpush2.xpose.msra.mxu0 0.0
    %5346 = vmatprep.subr.mxu0 0.0
    %5347 = vmatpush2.xpose.msra.mxu0 0.0
    %5348 = vmatprep.mubr.f32.mxu0 0.0
    %5349 = vmatmul.mubr.f32.gmra.mxu0 %v5283
    %v5350 = vpop.f32.mrf.mxu0
    %v5351 = vadd.f32 0.0, %v5350
    %v5352 = vpop.f32.mrf.mxu0
    %5353 = vdwg.mxu0
    %v5354 = vsel %vm2162, %v5351, -1e+30
    %v5355 = vsel %vm2451, %v5354, -inf
    %5356 = vmax.xlane.f32.xlu0 %v5355
    %v5357 = vpop.xlane.xlu0 %5356
    %v5358 = vsub.f32 %v5354, %v5357
    %v5359 = vmul.f32 %v5358, 1.442695
    %v5360 = vpow.pop %v5359
    %v5361 = vmul.f32 %v5360, %v2164
    %v5362 = vsel %vm2451, %v5361, 0.0
    %5363 = vadd.xlane.f32.xlu0 %v5362
    %v5364 = vpop.xlane.xlu0 %5363
    %v5365 = vmax.f32 %v5364, 1e-30
    %v5366 = vrcp.pop %v5365
    %v5367 = vmul.f32 %v5361, %v5366
    %v5369 = vsel %vm2465, %v5367, 0
    %5371 = vmatprep.subr.mxu0 0.0
    %5372 = vmatpush1.msra.mxu0 0.0
    %5373 = vmatprep.subr.mxu0 0.0
    %5374 = vmatpush1.msra.mxu0 0.0
    %5375 = vmatprep.subr.mxu0 0.0
    %5376 = vmatpush1.msra.mxu0 0.0
    %5377 = vmatprep.subr.mxu0 0.0
    %5378 = vmatpush1.msra.mxu0 0.0
    %5379 = vmatprep.subr.mxu0 0.0
    %5380 = vmatpush1.msra.mxu0 0.0
    %5381 = vmatprep.subr.mxu0 0.0
    %5382 = vmatpush1.msra.mxu0 0.0
    %5383 = vmatprep.subr.mxu0 0.0
    %5384 = vmatpush1.msra.mxu0 0.0
    %5385 = vmatprep.subr.mxu0 0.0
    %5386 = vmatpush1.msra.mxu0 0.0
    %5387 = vmatprep.subr.mxu0 0.0
    %5388 = vmatpush1.msra.mxu0 0.0
    %5389 = vmatprep.subr.mxu0 0.0
    %5390 = vmatpush1.msra.mxu0 0.0
    %5391 = vmatprep.subr.mxu0 0.0
    %5392 = vmatpush1.msra.mxu0 0.0
    %5393 = vmatprep.subr.mxu0 0.0
    %5394 = vmatpush1.msra.mxu0 0.0
    %5395 = vmatprep.subr.mxu0 0.0
    %5396 = vmatpush1.msra.mxu0 0.0
    %5397 = vmatprep.subr.mxu0 0.0
    %5398 = vmatpush1.msra.mxu0 0.0
    %5399 = vmatprep.subr.mxu0 0.0
    %5400 = vmatpush1.msra.mxu0 0.0
    %5401 = vmatprep.subr.mxu0 0.0
    %5402 = vmatpush1.msra.mxu0 %v2160
    %5403 = vmatprep.subr.mxu0 0.0
    %5404 = vmatpush2.msra.mxu0 0.0
    %5405 = vmatprep.subr.mxu0 0.0
    %5406 = vmatpush2.msra.mxu0 0.0
    %5407 = vmatprep.subr.mxu0 0.0
    %5408 = vmatpush2.msra.mxu0 0.0
    %5409 = vmatprep.subr.mxu0 0.0
    %5410 = vmatpush2.msra.mxu0 0.0
    %5411 = vmatprep.subr.mxu0 0.0
    %5412 = vmatpush2.msra.mxu0 0.0
    %5413 = vmatprep.subr.mxu0 0.0
    %5414 = vmatpush2.msra.mxu0 0.0
    %5415 = vmatprep.subr.mxu0 0.0
    %5416 = vmatpush2.msra.mxu0 0.0
    %5417 = vmatprep.subr.mxu0 0.0
    %5418 = vmatpush2.msra.mxu0 0.0
    %5419 = vmatprep.subr.mxu0 0.0
    %5420 = vmatpush2.msra.mxu0 0.0
    %5421 = vmatprep.subr.mxu0 0.0
    %5422 = vmatpush2.msra.mxu0 0.0
    %5423 = vmatprep.subr.mxu0 0.0
    %5424 = vmatpush2.msra.mxu0 0.0
    %5425 = vmatprep.subr.mxu0 0.0
    %5426 = vmatpush2.msra.mxu0 0.0
    %5427 = vmatprep.subr.mxu0 0.0
    %5428 = vmatpush2.msra.mxu0 0.0
    %5429 = vmatprep.subr.mxu0 0.0
    %5430 = vmatpush2.msra.mxu0 0.0
    %5431 = vmatprep.subr.mxu0 0.0
    %5432 = vmatpush2.msra.mxu0 0.0
    %5433 = vmatprep.subr.mxu0 0.0
    %5434 = vmatpush2.msra.mxu0 0.0
    %5435 = vmatprep.mubr.f32.mxu0 0.0
    %5436 = vmatmul.mubr.f32.gmra.mxu0 %v5369
    %v5437 = vpop.f32.mrf.mxu0
    %v5438 = vadd.f32 0.0, %v5437
    %v5439 = vpop.f32.mrf.mxu0
    %5440 = vdwg.mxu0
    %v5441 = vadd.f32 %v5283, %v5438
    %5442 = vmatprep.subr.mxu0 0.0
    %5443 = vmatpush1.msra.mxu0 %v380
    %5444 = vmatprep.subr.mxu0 0.0
    %5445 = vmatpush1.msra.mxu0 %v379
    %5446 = vmatprep.subr.mxu0 0.0
    %5447 = vmatpush1.msra.mxu0 %v378
    %5448 = vmatprep.subr.mxu0 0.0
    %5449 = vmatpush1.msra.mxu0 %v377
    %5450 = vmatprep.subr.mxu0 0.0
    %5451 = vmatpush1.msra.mxu0 %v376
    %5452 = vmatprep.subr.mxu0 0.0
    %5453 = vmatpush1.msra.mxu0 %v375
    %5454 = vmatprep.subr.mxu0 0.0
    %5455 = vmatpush1.msra.mxu0 %v374
    %5456 = vmatprep.subr.mxu0 0.0
    %5457 = vmatpush1.msra.mxu0 %v373
    %5458 = vmatprep.subr.mxu0 0.0
    %5459 = vmatpush1.msra.mxu0 %v372
    %5460 = vmatprep.subr.mxu0 0.0
    %5461 = vmatpush1.msra.mxu0 %v371
    %5462 = vmatprep.subr.mxu0 0.0
    %5463 = vmatpush1.msra.mxu0 %v370
    %5464 = vmatprep.subr.mxu0 0.0
    %5465 = vmatpush1.msra.mxu0 %v369
    %5466 = vmatprep.subr.mxu0 0.0
    %5467 = vmatpush1.msra.mxu0 %v368
    %5468 = vmatprep.subr.mxu0 0.0
    %5469 = vmatpush1.msra.mxu0 %v367
    %5470 = vmatprep.subr.mxu0 0.0
    %5471 = vmatpush1.msra.mxu0 %v366
    %5472 = vmatprep.subr.mxu0 0.0
    %5473 = vmatpush1.msra.mxu0 %v365
    %5474 = vmatprep.subr.mxu0 0.0
    %5475 = vmatpush2.msra.mxu0 0.0
    %5476 = vmatprep.subr.mxu0 0.0
    %5477 = vmatpush2.msra.mxu0 0.0
    %5478 = vmatprep.subr.mxu0 0.0
    %5479 = vmatpush2.msra.mxu0 0.0
    %5480 = vmatprep.subr.mxu0 0.0
    %5481 = vmatpush2.msra.mxu0 0.0
    %5482 = vmatprep.subr.mxu0 0.0
    %5483 = vmatpush2.msra.mxu0 0.0
    %5484 = vmatprep.subr.mxu0 0.0
    %5485 = vmatpush2.msra.mxu0 0.0
    %5486 = vmatprep.subr.mxu0 0.0
    %5487 = vmatpush2.msra.mxu0 0.0
    %5488 = vmatprep.subr.mxu0 0.0
    %5489 = vmatpush2.msra.mxu0 0.0
    %5490 = vmatprep.subr.mxu0 0.0
    %5491 = vmatpush2.msra.mxu0 0.0
    %5492 = vmatprep.subr.mxu0 0.0
    %5493 = vmatpush2.msra.mxu0 0.0
    %5494 = vmatprep.subr.mxu0 0.0
    %5495 = vmatpush2.msra.mxu0 0.0
    %5496 = vmatprep.subr.mxu0 0.0
    %5497 = vmatpush2.msra.mxu0 0.0
    %5498 = vmatprep.subr.mxu0 0.0
    %5499 = vmatpush2.msra.mxu0 0.0
    %5500 = vmatprep.subr.mxu0 0.0
    %5501 = vmatpush2.msra.mxu0 0.0
    %5502 = vmatprep.subr.mxu0 0.0
    %5503 = vmatpush2.msra.mxu0 0.0
    %5504 = vmatprep.subr.mxu0 0.0
    %5505 = vmatpush2.msra.mxu0 0.0
    %5506 = vmatprep.mubr.f32.mxu0 0.0
    %5507 = vmatmul.mubr.f32.gmra.mxu0 %v5441
    %v5508 = vpop.f32.mrf.mxu0
    %v5509 = vadd.f32 %v381, %v5508
    %v5510 = vpop.f32.mrf.mxu0
    %5511 = vdwg.mxu0
    %5512 = vst [vmem:[#allocation21 + $0x6] sm:$0x1] %v5509
    %v5513 = vsel %vm384, %v5509, -1e+30
    %v5514 = vsel %vm2612, %v5513, -inf
    %5515 = vmax.xlane.f32.xlu0 %v5514
    %v5516 = vpop.xlane.xlu0 %5515
    %vm5517 = vcmp.ge.f32.partialorder %v5513, %v5516
    %v5518 = vsel %vm5517, %v383, 128
    %v5519 = vsel %vm2612, %v5518, 2147483647
    %v5520 = vand.u32 %v5519, 65535
    %v5521 = vshra.s32 %v5519, 16
    %v5522 = vcvt.s32.f32 %v5520
    %v5523 = vcvt.s32.f32 %v5521
    %5524 = vmin.xlane.f32.xlu0 %v5523
    %v5525 = vpop.xlane.xlu0 %5524
    %vm5526 = vcmp.eq.f32.partialorder %v5523, %v5525
    %v5527 = vsel %vm5526, %v5522, inf
    %5528 = vmin.xlane.f32.xlu0 %v5527
    %v5529 = vpop.xlane.xlu0 %5528
    %v5530 = vcvt.f32.s32 %v5529
    %v5531 = vcvt.f32.s32 %v5525
    %v5532 = vshll.u32 %v5531, 16
    %v5533 = vadd.s32 %v5532, %v5530
    %vm5534 = vcmp.eq.s32.totalorder %v383, %v5533
    %v5535 = vsel %vm5534, 1, 0
    %v5536 = vcvt.s32.f32 %v5535
    %s5537 = sld [smem:[#allocation8 + $0x6]]
    %v5538 = vstv %s5537
    %vm5539 = vcmp.eq.s32.totalorder %v383, %v5538
    %v5540 = vsel %vm5539, 1, 0
    %v5541 = vcvt.s32.f32 %v5540
    %s5542 = sld [smem:[#allocation10 + $0x6]]
    %p5543 = scmp.gt.s32.totalorder %s5542, 0
    %s5544 = scalar_select %p5543, 1, 0
    %v5545 = vstv %s5544
    %vm5546 = vcmp.eq.s32.totalorder %v5545, 1
    %v5547 = vsel %vm5546, %v5541, %v5536
    %5548 = vmatprep.subr.mxu0 %v297
    %5549 = vmatpush1.msra.mxu0 %v296
    %5550 = vmatprep.subr.mxu0 %v293
    %5551 = vmatpush1.msra.mxu0 %v292
    %5552 = vmatprep.subr.mxu0 %v289
    %5553 = vmatpush1.msra.mxu0 %v288
    %5554 = vmatprep.subr.mxu0 %v285
    %5555 = vmatpush1.msra.mxu0 %v284
    %5556 = vmatprep.subr.mxu0 %v281
    %5557 = vmatpush1.msra.mxu0 %v280
    %5558 = vmatprep.subr.mxu0 %v277
    %5559 = vmatpush1.msra.mxu0 %v276
    %5560 = vmatprep.subr.mxu0 %v273
    %5561 = vmatpush1.msra.mxu0 %v272
    %5562 = vmatprep.subr.mxu0 %v269
    %5563 = vmatpush1.msra.mxu0 %v268
    %5564 = vmatprep.subr.mxu0 %v265
    %5565 = vmatpush1.msra.mxu0 %v264
    %5566 = vmatprep.subr.mxu0 %v261
    %5567 = vmatpush1.msra.mxu0 %v260
    %5568 = vmatprep.subr.mxu0 %v257
    %5569 = vmatpush1.msra.mxu0 %v256
    %5570 = vmatprep.subr.mxu0 %v253
    %5571 = vmatpush1.msra.mxu0 %v252
    %5572 = vmatprep.subr.mxu0 %v249
    %5573 = vmatpush1.msra.mxu0 %v248
    %5574 = vmatprep.subr.mxu0 %v245
    %5575 = vmatpush1.msra.mxu0 %v244
    %5576 = vmatprep.subr.mxu0 %v241
    %5577 = vmatpush1.msra.mxu0 %v240
    %5578 = vmatprep.subr.mxu0 %v237
    %5579 = vmatpush1.msra.mxu0 %v236
    %5580 = vmatprep.subr.mxu0 0.0
    %5581 = vmatpush2.msra.mxu0 0.0
    %5582 = vmatprep.subr.mxu0 0.0
    %5583 = vmatpush2.msra.mxu0 0.0
    %5584 = vmatprep.subr.mxu0 0.0
    %5585 = vmatpush2.msra.mxu0 0.0
    %5586 = vmatprep.subr.mxu0 0.0
    %5587 = vmatpush2.msra.mxu0 0.0
    %5588 = vmatprep.subr.mxu0 0.0
    %5589 = vmatpush2.msra.mxu0 0.0
    %5590 = vmatprep.subr.mxu0 0.0
    %5591 = vmatpush2.msra.mxu0 0.0
    %5592 = vmatprep.subr.mxu0 0.0
    %5593 = vmatpush2.msra.mxu0 0.0
    %5594 = vmatprep.subr.mxu0 0.0
    %5595 = vmatpush2.msra.mxu0 0.0
    %5596 = vmatprep.subr.mxu0 0.0
    %5597 = vmatpush2.msra.mxu0 0.0
    %5598 = vmatprep.subr.mxu0 0.0
    %5599 = vmatpush2.msra.mxu0 0.0
    %5600 = vmatprep.subr.mxu0 0.0
    %5601 = vmatpush2.msra.mxu0 0.0
    %5602 = vmatprep.subr.mxu0 0.0
    %5603 = vmatpush2.msra.mxu0 0.0
    %5604 = vmatprep.subr.mxu0 0.0
    %5605 = vmatpush2.msra.mxu0 0.0
    %5606 = vmatprep.subr.mxu0 0.0
    %5607 = vmatpush2.msra.mxu0 0.0
    %5608 = vmatprep.subr.mxu0 0.0
    %5609 = vmatpush2.msra.mxu0 0.0
    %5610 = vmatprep.subr.mxu0 0.0
    %5611 = vmatpush2.msra.mxu0 0.0
    %5612 = vmatprep.mubr.f32.mxu0 0.0
    %5613 = vmatmul.mubr.f32.gmra.mxu0 %v5283
    %v5614 = vpop.f32.mrf.mxu0
    %v5615 = vadd.f32 0.0, %v5614
    %v5616 = vpop.f32.mrf.mxu0
    %v5617 = vadd.f32 0.0, %v5616
    %5618 = vdwg.mxu0
    %5619 = vmatprep.subr.mxu0 %v299
    %5620 = vmatpush1.msra.mxu0 %v298
    %5621 = vmatprep.subr.mxu0 %v295
    %5622 = vmatpush1.msra.mxu0 %v294
    %5623 = vmatprep.subr.mxu0 %v291
    %5624 = vmatpush1.msra.mxu0 %v290
    %5625 = vmatprep.subr.mxu0 %v287
    %5626 = vmatpush1.msra.mxu0 %v286
    %5627 = vmatprep.subr.mxu0 %v283
    %5628 = vmatpush1.msra.mxu0 %v282
    %5629 = vmatprep.subr.mxu0 %v279
    %5630 = vmatpush1.msra.mxu0 %v278
    %5631 = vmatprep.subr.mxu0 %v275
    %5632 = vmatpush1.msra.mxu0 %v274
    %5633 = vmatprep.subr.mxu0 %v271
    %5634 = vmatpush1.msra.mxu0 %v270
    %5635 = vmatprep.subr.mxu0 %v267
    %5636 = vmatpush1.msra.mxu0 %v266
    %5637 = vmatprep.subr.mxu0 %v263
    %5638 = vmatpush1.msra.mxu0 %v262
    %5639 = vmatprep.subr.mxu0 %v259
    %5640 = vmatpush1.msra.mxu0 %v258
    %5641 = vmatprep.subr.mxu0 %v255
    %5642 = vmatpush1.msra.mxu0 %v254
    %5643 = vmatprep.subr.mxu0 %v251
    %5644 = vmatpush1.msra.mxu0 %v250
    %5645 = vmatprep.subr.mxu0 %v247
    %5646 = vmatpush1.msra.mxu0 %v246
    %5647 = vmatprep.subr.mxu0 %v243
    %5648 = vmatpush1.msra.mxu0 %v242
    %5649 = vmatprep.subr.mxu0 %v239
    %5650 = vmatpush1.msra.mxu0 %v238
    %5651 = vmatprep.subr.mxu0 0.0
    %5652 = vmatpush2.msra.mxu0 0.0
    %5653 = vmatprep.subr.mxu0 0.0
    %5654 = vmatpush2.msra.mxu0 0.0
    %5655 = vmatprep.subr.mxu0 0.0
    %5656 = vmatpush2.msra.mxu0 0.0
    %5657 = vmatprep.subr.mxu0 0.0
    %5658 = vmatpush2.msra.mxu0 0.0
    %5659 = vmatprep.subr.mxu0 0.0
    %5660 = vmatpush2.msra.mxu0 0.0
    %5661 = vmatprep.subr.mxu0 0.0
    %5662 = vmatpush2.msra.mxu0 0.0
    %5663 = vmatprep.subr.mxu0 0.0
    %5664 = vmatpush2.msra.mxu0 0.0
    %5665 = vmatprep.subr.mxu0 0.0
    %5666 = vmatpush2.msra.mxu0 0.0
    %5667 = vmatprep.subr.mxu0 0.0
    %5668 = vmatpush2.msra.mxu0 0.0
    %5669 = vmatprep.subr.mxu0 0.0
    %5670 = vmatpush2.msra.mxu0 0.0
    %5671 = vmatprep.subr.mxu0 0.0
    %5672 = vmatpush2.msra.mxu0 0.0
    %5673 = vmatprep.subr.mxu0 0.0
    %5674 = vmatpush2.msra.mxu0 0.0
    %5675 = vmatprep.subr.mxu0 0.0
    %5676 = vmatpush2.msra.mxu0 0.0
    %5677 = vmatprep.subr.mxu0 0.0
    %5678 = vmatpush2.msra.mxu0 0.0
    %5679 = vmatprep.subr.mxu0 0.0
    %5680 = vmatpush2.msra.mxu0 0.0
    %5681 = vmatprep.subr.mxu0 0.0
    %5682 = vmatpush2.msra.mxu0 0.0
    %5683 = vmatprep.mubr.f32.mxu0 0.0
    %5684 = vmatmul.mubr.f32.gmra.mxu0 %v5283
    %v5685 = vpop.f32.mrf.mxu0
    %v5686 = vadd.f32 0.0, %v5685
    %v5687 = vpop.f32.mrf.mxu0
    %v5688 = vadd.f32 0.0, %v5687
    %5689 = vdwg.mxu0
    %5690 = vmatprep.subr.mxu0 %v362
    %5691 = vmatpush1.msra.mxu0 %v361
    %5692 = vmatprep.subr.mxu0 %v358
    %5693 = vmatpush1.msra.mxu0 %v357
    %5694 = vmatprep.subr.mxu0 %v354
    %5695 = vmatpush1.msra.mxu0 %v353
    %5696 = vmatprep.subr.mxu0 %v350
    %5697 = vmatpush1.msra.mxu0 %v349
    %5698 = vmatprep.subr.mxu0 %v346
    %5699 = vmatpush1.msra.mxu0 %v345
    %5700 = vmatprep.subr.mxu0 %v342
    %5701 = vmatpush1.msra.mxu0 %v341
    %5702 = vmatprep.subr.mxu0 %v338
    %5703 = vmatpush1.msra.mxu0 %v337
    %5704 = vmatprep.subr.mxu0 %v334
    %5705 = vmatpush1.msra.mxu0 %v333
    %5706 = vmatprep.subr.mxu0 %v330
    %5707 = vmatpush1.msra.mxu0 %v329
    %5708 = vmatprep.subr.mxu0 %v326
    %5709 = vmatpush1.msra.mxu0 %v325
    %5710 = vmatprep.subr.mxu0 %v322
    %5711 = vmatpush1.msra.mxu0 %v321
    %5712 = vmatprep.subr.mxu0 %v318
    %5713 = vmatpush1.msra.mxu0 %v317
    %5714 = vmatprep.subr.mxu0 %v314
    %5715 = vmatpush1.msra.mxu0 %v313
    %5716 = vmatprep.subr.mxu0 %v310
    %5717 = vmatpush1.msra.mxu0 %v309
    %5718 = vmatprep.subr.mxu0 %v306
    %5719 = vmatpush1.msra.mxu0 %v305
    %5720 = vmatprep.subr.mxu0 %v302
    %5721 = vmatpush1.msra.mxu0 %v301
    %5722 = vmatprep.subr.mxu0 0.0
    %5723 = vmatpush2.msra.mxu0 0.0
    %5724 = vmatprep.subr.mxu0 0.0
    %5725 = vmatpush2.msra.mxu0 0.0
    %5726 = vmatprep.subr.mxu0 0.0
    %5727 = vmatpush2.msra.mxu0 0.0
    %5728 = vmatprep.subr.mxu0 0.0
    %5729 = vmatpush2.msra.mxu0 0.0
    %5730 = vmatprep.subr.mxu0 0.0
    %5731 = vmatpush2.msra.mxu0 0.0
    %5732 = vmatprep.subr.mxu0 0.0
    %5733 = vmatpush2.msra.mxu0 0.0
    %5734 = vmatprep.subr.mxu0 0.0
    %5735 = vmatpush2.msra.mxu0 0.0
    %5736 = vmatprep.subr.mxu0 0.0
    %5737 = vmatpush2.msra.mxu0 0.0
    %5738 = vmatprep.subr.mxu0 0.0
    %5739 = vmatpush2.msra.mxu0 0.0
    %5740 = vmatprep.subr.mxu0 0.0
    %5741 = vmatpush2.msra.mxu0 0.0
    %5742 = vmatprep.subr.mxu0 0.0
    %5743 = vmatpush2.msra.mxu0 0.0
    %5744 = vmatprep.subr.mxu0 0.0
    %5745 = vmatpush2.msra.mxu0 0.0
    %5746 = vmatprep.subr.mxu0 0.0
    %5747 = vmatpush2.msra.mxu0 0.0
    %5748 = vmatprep.subr.mxu0 0.0
    %5749 = vmatpush2.msra.mxu0 0.0
    %5750 = vmatprep.subr.mxu0 0.0
    %5751 = vmatpush2.msra.mxu0 0.0
    %5752 = vmatprep.subr.mxu0 0.0
    %5753 = vmatpush2.msra.mxu0 0.0
    %5754 = vmatprep.mubr.f32.mxu0 0.0
    %5755 = vmatmul.mubr.f32.gmra.mxu0 %v5547
    %v5756 = vpop.f32.mrf.mxu0
    %v5757 = vadd.f32 %v5615, %v5756
    %v5758 = vpop.f32.mrf.mxu0
    %v5759 = vadd.f32 %v5617, %v5758
    %5760 = vdwg.mxu0
    %5761 = vmatprep.subr.mxu0 %v364
    %5762 = vmatpush1.msra.mxu0 %v363
    %5763 = vmatprep.subr.mxu0 %v360
    %5764 = vmatpush1.msra.mxu0 %v359
    %5765 = vmatprep.subr.mxu0 %v356
    %5766 = vmatpush1.msra.mxu0 %v355
    %5767 = vmatprep.subr.mxu0 %v352
    %5768 = vmatpush1.msra.mxu0 %v351
    %5769 = vmatprep.subr.mxu0 %v348
    %5770 = vmatpush1.msra.mxu0 %v347
    %5771 = vmatprep.subr.mxu0 %v344
    %5772 = vmatpush1.msra.mxu0 %v343
    %5773 = vmatprep.subr.mxu0 %v340
    %5774 = vmatpush1.msra.mxu0 %v339
    %5775 = vmatprep.subr.mxu0 %v336
    %5776 = vmatpush1.msra.mxu0 %v335
    %5777 = vmatprep.subr.mxu0 %v332
    %5778 = vmatpush1.msra.mxu0 %v331
    %5779 = vmatprep.subr.mxu0 %v328
    %5780 = vmatpush1.msra.mxu0 %v327
    %5781 = vmatprep.subr.mxu0 %v324
    %5782 = vmatpush1.msra.mxu0 %v323
    %5783 = vmatprep.subr.mxu0 %v320
    %5784 = vmatpush1.msra.mxu0 %v319
    %5785 = vmatprep.subr.mxu0 %v316
    %5786 = vmatpush1.msra.mxu0 %v315
    %5787 = vmatprep.subr.mxu0 %v312
    %5788 = vmatpush1.msra.mxu0 %v311
    %5789 = vmatprep.subr.mxu0 %v308
    %5790 = vmatpush1.msra.mxu0 %v307
    %5791 = vmatprep.subr.mxu0 %v304
    %5792 = vmatpush1.msra.mxu0 %v303
    %5793 = vmatprep.subr.mxu0 0.0
    %5794 = vmatpush2.msra.mxu0 0.0
    %5795 = vmatprep.subr.mxu0 0.0
    %5796 = vmatpush2.msra.mxu0 0.0
    %5797 = vmatprep.subr.mxu0 0.0
    %5798 = vmatpush2.msra.mxu0 0.0
    %5799 = vmatprep.subr.mxu0 0.0
    %5800 = vmatpush2.msra.mxu0 0.0
    %5801 = vmatprep.subr.mxu0 0.0
    %5802 = vmatpush2.msra.mxu0 0.0
    %5803 = vmatprep.subr.mxu0 0.0
    %5804 = vmatpush2.msra.mxu0 0.0
    %5805 = vmatprep.subr.mxu0 0.0
    %5806 = vmatpush2.msra.mxu0 0.0
    %5807 = vmatprep.subr.mxu0 0.0
    %5808 = vmatpush2.msra.mxu0 0.0
    %5809 = vmatprep.subr.mxu0 0.0
    %5810 = vmatpush2.msra.mxu0 0.0
    %5811 = vmatprep.subr.mxu0 0.0
    %5812 = vmatpush2.msra.mxu0 0.0
    %5813 = vmatprep.subr.mxu0 0.0
    %5814 = vmatpush2.msra.mxu0 0.0
    %5815 = vmatprep.subr.mxu0 0.0
    %5816 = vmatpush2.msra.mxu0 0.0
    %5817 = vmatprep.subr.mxu0 0.0
    %5818 = vmatpush2.msra.mxu0 0.0
    %5819 = vmatprep.subr.mxu0 0.0
    %5820 = vmatpush2.msra.mxu0 0.0
    %5821 = vmatprep.subr.mxu0 0.0
    %5822 = vmatpush2.msra.mxu0 0.0
    %5823 = vmatprep.subr.mxu0 0.0
    %5824 = vmatpush2.msra.mxu0 0.0
    %5825 = vmatprep.mubr.f32.mxu0 0.0
    %5826 = vmatmul.mubr.f32.gmra.mxu0 %v5547
    %v5827 = vpop.f32.mrf.mxu0
    %v5828 = vadd.f32 %v5686, %v5827
    %v5829 = vpop.f32.mrf.mxu0
    %v5830 = vadd.f32 %v5688, %v5829
    %5831 = vdwg.mxu0
    %v5832 = vadd.f32 %v5757, %v2935
    %v5833 = vadd.f32 %v5759, %v2939
    %v5834 = vadd.f32 %v5828, %v2943
    %v5835 = vadd.f32 %v5830, %v2947
    %v5836 = vxor.u32 %v5832, 2147483648
    %v5837 = vmul.f32 %v5836, 1.442695
    %v5838 = vpow.pop %v5837
    %v5839 = vadd.f32 %v5838, 1.0
    %v5840 = vrcp.pop %v5839
    %v5841 = vmul.f32 1.0, %v5840
    %v5842 = vxor.u32 %v5833, 2147483648
    %v5843 = vmul.f32 %v5842, 1.442695
    %v5844 = vpow.pop %v5843
    %v5845 = vadd.f32 %v5844, 1.0
    %v5846 = vrcp.pop %v5845
    %v5847 = vmul.f32 1.0, %v5846
    %v5848 = vtanh.pop %v5834
    %v5849 = vxor.u32 %v5835, 2147483648
    %v5850 = vmul.f32 %v5849, 1.442695
    %v5851 = vpow.pop %v5850
    %v5852 = vadd.f32 %v5851, 1.0
    %v5853 = vrcp.pop %v5852
    %v5854 = vmul.f32 1.0, %v5853
    %v5855 = vmul.f32 %v5847, %v5281
    %v5856 = vmul.f32 %v5841, %v5848
    %v5857 = vadd.f32 %v5855, %v5856
    %v5858 = vtanh.pop %v5857
    %v5859 = vmul.f32 %v5854, %v5858
    %5860 = vmatprep.subr.mxu0 0.0
    %5861 = vmatpush1.xpose.msra.mxu0 0.0
    %5862 = vmatprep.subr.mxu0 0.0
    %5863 = vmatpush1.xpose.msra.mxu0 0.0
    %5864 = vmatprep.subr.mxu0 0.0
    %5865 = vmatpush1.xpose.msra.mxu0 0.0
    %5866 = vmatprep.subr.mxu0 0.0
    %5867 = vmatpush1.xpose.msra.mxu0 0.0
    %5868 = vmatprep.subr.mxu0 0.0
    %5869 = vmatpush1.xpose.msra.mxu0 0.0
    %5870 = vmatprep.subr.mxu0 0.0
    %5871 = vmatpush1.xpose.msra.mxu0 0.0
    %5872 = vmatprep.subr.mxu0 0.0
    %5873 = vmatpush1.xpose.msra.mxu0 0.0
    %5874 = vmatprep.subr.mxu0 0.0
    %5875 = vmatpush1.xpose.msra.mxu0 0.0
    %5876 = vmatprep.subr.mxu0 0.0
    %5877 = vmatpush1.xpose.msra.mxu0 0.0
    %5878 = vmatprep.subr.mxu0 0.0
    %5879 = vmatpush1.xpose.msra.mxu0 0.0
    %5880 = vmatprep.subr.mxu0 0.0
    %5881 = vmatpush1.xpose.msra.mxu0 0.0
    %5882 = vmatprep.subr.mxu0 0.0
    %5883 = vmatpush1.xpose.msra.mxu0 0.0
    %5884 = vmatprep.subr.mxu0 0.0
    %5885 = vmatpush1.xpose.msra.mxu0 0.0
    %5886 = vmatprep.subr.mxu0 0.0
    %5887 = vmatpush1.xpose.msra.mxu0 0.0
    %5888 = vmatprep.subr.mxu0 0.0
    %5889 = vmatpush1.xpose.msra.mxu0 0.0
    %5890 = vmatprep.subr.mxu0 0.0
    %5891 = vmatpush1.xpose.msra.mxu0 %v2160
    %5892 = vmatprep.subr.mxu0 0.0
    %5893 = vmatpush2.xpose.msra.mxu0 0.0
    %5894 = vmatprep.subr.mxu0 0.0
    %5895 = vmatpush2.xpose.msra.mxu0 0.0
    %5896 = vmatprep.subr.mxu0 0.0
    %5897 = vmatpush2.xpose.msra.mxu0 0.0
    %5898 = vmatprep.subr.mxu0 0.0
    %5899 = vmatpush2.xpose.msra.mxu0 0.0
    %5900 = vmatprep.subr.mxu0 0.0
    %5901 = vmatpush2.xpose.msra.mxu0 0.0
    %5902 = vmatprep.subr.mxu0 0.0
    %5903 = vmatpush2.xpose.msra.mxu0 0.0
    %5904 = vmatprep.subr.mxu0 0.0
    %5905 = vmatpush2.xpose.msra.mxu0 0.0
    %5906 = vmatprep.subr.mxu0 0.0
    %5907 = vmatpush2.xpose.msra.mxu0 0.0
    %5908 = vmatprep.subr.mxu0 0.0
    %5909 = vmatpush2.xpose.msra.mxu0 0.0
    %5910 = vmatprep.subr.mxu0 0.0
    %5911 = vmatpush2.xpose.msra.mxu0 0.0
    %5912 = vmatprep.subr.mxu0 0.0
    %5913 = vmatpush2.xpose.msra.mxu0 0.0
    %5914 = vmatprep.subr.mxu0 0.0
    %5915 = vmatpush2.xpose.msra.mxu0 0.0
    %5916 = vmatprep.subr.mxu0 0.0
    %5917 = vmatpush2.xpose.msra.mxu0 0.0
    %5918 = vmatprep.subr.mxu0 0.0
    %5919 = vmatpush2.xpose.msra.mxu0 0.0
    %5920 = vmatprep.subr.mxu0 0.0
    %5921 = vmatpush2.xpose.msra.mxu0 0.0
    %5922 = vmatprep.subr.mxu0 0.0
    %5923 = vmatpush2.xpose.msra.mxu0 0.0
    %5924 = vmatprep.mubr.f32.mxu0 0.0
    %5925 = vmatmul.mubr.f32.gmra.mxu0 %v5859
    %v5926 = vpop.f32.mrf.mxu0
    %v5927 = vadd.f32 0.0, %v5926
    %v5928 = vpop.f32.mrf.mxu0
    %5929 = vdwg.mxu0
    %v5930 = vsel %vm2162, %v5927, -1e+30
    %v5931 = vsel %vm2451, %v5930, -inf
    %5932 = vmax.xlane.f32.xlu0 %v5931
    %v5933 = vpop.xlane.xlu0 %5932
    %v5934 = vsub.f32 %v5930, %v5933
    %v5935 = vmul.f32 %v5934, 1.442695
    %v5936 = vpow.pop %v5935
    %v5937 = vmul.f32 %v5936, %v2164
    %v5938 = vsel %vm2451, %v5937, 0.0
    %5939 = vadd.xlane.f32.xlu0 %v5938
    %v5940 = vpop.xlane.xlu0 %5939
    %v5941 = vmax.f32 %v5940, 1e-30
    %v5942 = vrcp.pop %v5941
    %v5943 = vmul.f32 %v5937, %v5942
    %v5945 = vsel %vm2465, %v5943, 0
    %5947 = vmatprep.subr.mxu0 0.0
    %5948 = vmatpush1.msra.mxu0 0.0
    %5949 = vmatprep.subr.mxu0 0.0
    %5950 = vmatpush1.msra.mxu0 0.0
    %5951 = vmatprep.subr.mxu0 0.0
    %5952 = vmatpush1.msra.mxu0 0.0
    %5953 = vmatprep.subr.mxu0 0.0
    %5954 = vmatpush1.msra.mxu0 0.0
    %5955 = vmatprep.subr.mxu0 0.0
    %5956 = vmatpush1.msra.mxu0 0.0
    %5957 = vmatprep.subr.mxu0 0.0
    %5958 = vmatpush1.msra.mxu0 0.0
    %5959 = vmatprep.subr.mxu0 0.0
    %5960 = vmatpush1.msra.mxu0 0.0
    %5961 = vmatprep.subr.mxu0 0.0
    %5962 = vmatpush1.msra.mxu0 0.0
    %5963 = vmatprep.subr.mxu0 0.0
    %5964 = vmatpush1.msra.mxu0 0.0
    %5965 = vmatprep.subr.mxu0 0.0
    %5966 = vmatpush1.msra.mxu0 0.0
    %5967 = vmatprep.subr.mxu0 0.0
    %5968 = vmatpush1.msra.mxu0 0.0
    %5969 = vmatprep.subr.mxu0 0.0
    %5970 = vmatpush1.msra.mxu0 0.0
    %5971 = vmatprep.subr.mxu0 0.0
    %5972 = vmatpush1.msra.mxu0 0.0
    %5973 = vmatprep.subr.mxu0 0.0
    %5974 = vmatpush1.msra.mxu0 0.0
    %5975 = vmatprep.subr.mxu0 0.0
    %5976 = vmatpush1.msra.mxu0 0.0
    %5977 = vmatprep.subr.mxu0 0.0
    %5978 = vmatpush1.msra.mxu0 %v2160
    %5979 = vmatprep.subr.mxu0 0.0
    %5980 = vmatpush2.msra.mxu0 0.0
    %5981 = vmatprep.subr.mxu0 0.0
    %5982 = vmatpush2.msra.mxu0 0.0
    %5983 = vmatprep.subr.mxu0 0.0
    %5984 = vmatpush2.msra.mxu0 0.0
    %5985 = vmatprep.subr.mxu0 0.0
    %5986 = vmatpush2.msra.mxu0 0.0
    %5987 = vmatprep.subr.mxu0 0.0
    %5988 = vmatpush2.msra.mxu0 0.0
    %5989 = vmatprep.subr.mxu0 0.0
    %5990 = vmatpush2.msra.mxu0 0.0
    %5991 = vmatprep.subr.mxu0 0.0
    %5992 = vmatpush2.msra.mxu0 0.0
    %5993 = vmatprep.subr.mxu0 0.0
    %5994 = vmatpush2.msra.mxu0 0.0
    %5995 = vmatprep.subr.mxu0 0.0
    %5996 = vmatpush2.msra.mxu0 0.0
    %5997 = vmatprep.subr.mxu0 0.0
    %5998 = vmatpush2.msra.mxu0 0.0
    %5999 = vmatprep.subr.mxu0 0.0
    %6000 = vmatpush2.msra.mxu0 0.0
    %6001 = vmatprep.subr.mxu0 0.0
    %6002 = vmatpush2.msra.mxu0 0.0
    %6003 = vmatprep.subr.mxu0 0.0
    %6004 = vmatpush2.msra.mxu0 0.0
    %6005 = vmatprep.subr.mxu0 0.0
    %6006 = vmatpush2.msra.mxu0 0.0
    %6007 = vmatprep.subr.mxu0 0.0
    %6008 = vmatpush2.msra.mxu0 0.0
    %6009 = vmatprep.subr.mxu0 0.0
    %6010 = vmatpush2.msra.mxu0 0.0
    %6011 = vmatprep.mubr.f32.mxu0 0.0
    %6012 = vmatmul.mubr.f32.gmra.mxu0 %v5945
    %v6013 = vpop.f32.mrf.mxu0
    %v6014 = vadd.f32 0.0, %v6013
    %v6015 = vpop.f32.mrf.mxu0
    %6016 = vdwg.mxu0
    %v6017 = vadd.f32 %v5859, %v6014
    %6018 = vmatprep.subr.mxu0 0.0
    %6019 = vmatpush1.msra.mxu0 %v380
    %6020 = vmatprep.subr.mxu0 0.0
    %6021 = vmatpush1.msra.mxu0 %v379
    %6022 = vmatprep.subr.mxu0 0.0
    %6023 = vmatpush1.msra.mxu0 %v378
    %6024 = vmatprep.subr.mxu0 0.0
    %6025 = vmatpush1.msra.mxu0 %v377
    %6026 = vmatprep.subr.mxu0 0.0
    %6027 = vmatpush1.msra.mxu0 %v376
    %6028 = vmatprep.subr.mxu0 0.0
    %6029 = vmatpush1.msra.mxu0 %v375
    %6030 = vmatprep.subr.mxu0 0.0
    %6031 = vmatpush1.msra.mxu0 %v374
    %6032 = vmatprep.subr.mxu0 0.0
    %6033 = vmatpush1.msra.mxu0 %v373
    %6034 = vmatprep.subr.mxu0 0.0
    %6035 = vmatpush1.msra.mxu0 %v372
    %6036 = vmatprep.subr.mxu0 0.0
    %6037 = vmatpush1.msra.mxu0 %v371
    %6038 = vmatprep.subr.mxu0 0.0
    %6039 = vmatpush1.msra.mxu0 %v370
    %6040 = vmatprep.subr.mxu0 0.0
    %6041 = vmatpush1.msra.mxu0 %v369
    %6042 = vmatprep.subr.mxu0 0.0
    %6043 = vmatpush1.msra.mxu0 %v368
    %6044 = vmatprep.subr.mxu0 0.0
    %6045 = vmatpush1.msra.mxu0 %v367
    %6046 = vmatprep.subr.mxu0 0.0
    %6047 = vmatpush1.msra.mxu0 %v366
    %6048 = vmatprep.subr.mxu0 0.0
    %6049 = vmatpush1.msra.mxu0 %v365
    %6050 = vmatprep.subr.mxu0 0.0
    %6051 = vmatpush2.msra.mxu0 0.0
    %6052 = vmatprep.subr.mxu0 0.0
    %6053 = vmatpush2.msra.mxu0 0.0
    %6054 = vmatprep.subr.mxu0 0.0
    %6055 = vmatpush2.msra.mxu0 0.0
    %6056 = vmatprep.subr.mxu0 0.0
    %6057 = vmatpush2.msra.mxu0 0.0
    %6058 = vmatprep.subr.mxu0 0.0
    %6059 = vmatpush2.msra.mxu0 0.0
    %6060 = vmatprep.subr.mxu0 0.0
    %6061 = vmatpush2.msra.mxu0 0.0
    %6062 = vmatprep.subr.mxu0 0.0
    %6063 = vmatpush2.msra.mxu0 0.0
    %6064 = vmatprep.subr.mxu0 0.0
    %6065 = vmatpush2.msra.mxu0 0.0
    %6066 = vmatprep.subr.mxu0 0.0
    %6067 = vmatpush2.msra.mxu0 0.0
    %6068 = vmatprep.subr.mxu0 0.0
    %6069 = vmatpush2.msra.mxu0 0.0
    %6070 = vmatprep.subr.mxu0 0.0
    %6071 = vmatpush2.msra.mxu0 0.0
    %6072 = vmatprep.subr.mxu0 0.0
    %6073 = vmatpush2.msra.mxu0 0.0
    %6074 = vmatprep.subr.mxu0 0.0
    %6075 = vmatpush2.msra.mxu0 0.0
    %6076 = vmatprep.subr.mxu0 0.0
    %6077 = vmatpush2.msra.mxu0 0.0
    %6078 = vmatprep.subr.mxu0 0.0
    %6079 = vmatpush2.msra.mxu0 0.0
    %6080 = vmatprep.subr.mxu0 0.0
    %6081 = vmatpush2.msra.mxu0 0.0
    %6082 = vmatprep.mubr.f32.mxu0 0.0
    %6083 = vmatmul.mubr.f32.gmra.mxu0 %v6017
    %v6084 = vpop.f32.mrf.mxu0
    %v6085 = vadd.f32 %v381, %v6084
    %v6086 = vpop.f32.mrf.mxu0
    %6087 = vdwg.mxu0
    %6088 = vst [vmem:[#allocation21 + $0x7] sm:$0x1] %v6085
    // Predicated region
    $region90: #{seq2seq_forward.1} parent=1 // pred_check
      _
    $region91: #{seq2seq_forward.1} parent=1 // pred_check_branch
      %6090 = sbr.rel (0) target = $region93
    $region92: #{seq2seq_forward.1} parent=1 // pred_region
      %s6092 = ssub.s32 128, 128
      %6093 = vsyncadd [#allocation6], %s6092
      %s6095 = sshll.u32 [#allocation21], 4
      %s6096 = int_to_ptr.vmem [resolvable:$true] %s6095
      %6098 = dma.vmem_to_hbm [thread:$0]  %s6096, 128, %s12, [#allocation6]
    $region93: #{seq2seq_forward.1} parent=1 // pred_fallthru
      _
    // Predicated region
    $region94: #{seq2seq_forward.1} parent=1 // pred_check
      _
    $region95: #{seq2seq_forward.1} parent=1 // pred_check_branch
      %6100 = sbr.rel (0) target = $region97
    $region96: #{seq2seq_forward.1} parent=1 // pred_region
      %6101 = dma.done [#allocation6], 128
    $region97: #{seq2seq_forward.1} parent=1 // pred_fallthru
      _
    %6102 = vsyncpa [#allocation5], 1
    %6103 = vsyncpa [#allocation13], 1
    %6104 = vsyncpa [#allocation16], 1
    %6105 = vsyncpa [#allocation19], 1
    %6106 = vsyncpa [#allocation6], 1
    %6107 = vsyncpa [#allocation7], 1
    %6108 = vsyncpa [#allocation9], 1

</llo_original>
